<compile_context>
chip_gen: v6e
topology: v6e:2x2x1
jax: 0.10.0
libtpu: 0.0.40
codegen_flags: <defaults>
</compile_context>

<pallas_src>
import functools
import numpy as np

import jax
import jax.numpy as jnp
from jax.experimental import pallas as pl
from jax.experimental.pallas import tpu as pltpu

VMEM_LIMIT = 40 * 1024 * 1024   # comfortable on v5e/v6e (128MiB) and v7x (64MiB)
ACC_BUDGET = 192 * 1024         # keep the f32 conv accumulator inside the vregs


def _cdiv(a, b):
    return -(-a // b)


def _round_up(a, b):
    return _cdiv(a, b) * b


# ----------------------------------------------------------------------------
# Stride-1 conv2d: shift-and-matmul over the KHxKW taps on a flattened H*W
# raster.  Grid = (batch, cout_tile, row_block); each step produces RB output
# rows (Wp-wide, junk columns cropped afterwards) for one Cout tile.
# ----------------------------------------------------------------------------
def _conv_kernel(x_ref, w_ref, b_ref, o_ref, *, KH, KW, RB, Wp, relu):
    # x_ref: (1, Hp*Wp, Cin) f32   full padded image (flattened H*W)
    # w_ref: (KH*KW, Cin, CT) bf16
    # b_ref: (1, CT) f32
    # o_ref: (1, RB*Wp, CT)  bf16/f32
    M = RB * Wp
    CT = o_ref.shape[2]
    base = pl.multiple_of(pl.program_id(2) * M, 16)
    acc = jnp.zeros((M, CT), jnp.float32)
    for kh in range(KH):
        for kw in range(KW):
            xs = x_ref[0, pl.ds(base + kh * Wp + kw, M), :].astype(jnp.bfloat16)
            acc = acc + jnp.dot(xs, w_ref[kh * KW + kw],
                                preferred_element_type=jnp.float32)
    acc = acc + b_ref[...]
    if relu:
        acc = jnp.maximum(acc, 0.0)
    o_ref[0] = acc.astype(o_ref.dtype)


# ----------------------------------------------------------------------------
# Dense (matmul) kernel for the fc6/fc7/score_fr head.  Grid = (Cout tiles,
# K tiles); the weight is streamed from HBM exactly once, batch folded into M.
# ----------------------------------------------------------------------------
def _dense_kernel(x_ref, w_ref, b_ref, o_ref, acc_ref, *, relu):
    k = pl.program_id(1)

    @pl.when(k == 0)
    def _():
        acc_ref[...] = jnp.zeros_like(acc_ref)

    acc_ref[...] += jnp.dot(x_ref[...], w_ref[...],
                            preferred_element_type=jnp.float32)

    @pl.when(k == pl.num_programs(1) - 1)
    def _():
        r = acc_ref[...] + b_ref[...]
        if relu:
            r = jnp.maximum(r, 0.0)
        o_ref[...] = r.astype(o_ref.dtype)


def _pick_tile(n, cap):
    if n <= cap:
        return n
    for t in range(cap, 0, -1):
        if n % t == 0 and t % 128 == 0:
            return t
    return n


def dense(x2d, w2d, b, *, relu, out_dtype):
    """x2d: (M, K); w2d: (K, Cout); b: (Cout,)."""
    M, K = x2d.shape
    _, Cout = w2d.shape
    TK = _pick_tile(K, 4096)      # fc6: 3584  fc7: 4096
    TN = _pick_tile(Cout, 1024)   # fc6/fc7: 1024  score: 128
    kern = functools.partial(_dense_kernel, relu=relu)
    return pl.pallas_call(
        kern,
        out_shape=jax.ShapeDtypeStruct((M, Cout), out_dtype),
        grid=(Cout // TN, K // TK),
        in_specs=[
            pl.BlockSpec((M, TK), lambda j, k: (0, k)),
            pl.BlockSpec((TK, TN), lambda j, k: (k, j)),
            pl.BlockSpec((1, TN), lambda j, k: (0, j)),
        ],
        out_specs=pl.BlockSpec((M, TN), lambda j, k: (0, j)),
        scratch_shapes=[pltpu.VMEM((M, TN), jnp.float32)],
        compiler_params=pltpu.CompilerParams(
            dimension_semantics=("parallel", "arbitrary"),
            vmem_limit_bytes=VMEM_LIMIT),
    )(x2d.astype(jnp.bfloat16), w2d.astype(jnp.bfloat16),
      b.reshape(1, Cout).astype(jnp.float32))


def conv2d(x, w, b, *, padding=0, relu=False, out_dtype=jnp.bfloat16):
    """x: (N,H,W,Cin) NHWC; w: (KH,KW,Cin,Cout); b: (Cout,). Stride-1 conv."""
    N, H, W, Cin = x.shape
    KH, KW, _, Cout = w.shape

    # 1x1 conv -> pure matmul over all pixels (batch folded into M).
    if padding == 0 and KH == 1 and KW == 1:
        y = dense(x.reshape(N * H * W, Cin), w.reshape(Cin, Cout), b,
                  relu=relu, out_dtype=out_dtype)
        return y.reshape(N, H, W, Cout)

    # Kernel covers the whole input (fc6 at this resolution) -> single matmul.
    if padding == 0 and (H, W) == (KH, KW):
        y = dense(x.reshape(N, H * W * Cin), w.reshape(KH * KW * Cin, Cout), b,
                  relu=relu, out_dtype=out_dtype)
        return y.reshape(N, 1, 1, Cout)

    # General spatial path.
    Ho = H + 2 * padding - KH + 1
    Wo = W + 2 * padding - KW + 1
    Wp = _round_up(W + 2 * padding, 16)   # lane/sublane friendly raster width

    CT = Cout if Cout <= 256 else 256                       # weight slab <= 8MB
    rb_cap = max(1, ACC_BUDGET // (Wp * CT * 4))            # acc stays in vregs
    n_rb = _cdiv(Ho, rb_cap)
    RB = _cdiv(Ho, n_rb)
    Hp = n_rb * RB + KH           # extra rows: row-block padding + wrap slack

    # TODO(synk): at real FCN resolutions the resident full image should be
    # replaced by a row-windowed (halo) input BlockSpec to respect VMEM.
    xp = jnp.pad(x.astype(jnp.float32),
                 ((0, 0),
                  (padding, Hp - H - padding),
                  (padding, Wp - W - padding),
                  (0, 0)))
    xf = xp.reshape(N, Hp * Wp, Cin)
    wr = w.reshape(KH * KW, Cin, Cout).astype(jnp.bfloat16)
    br = b.reshape(1, Cout).astype(jnp.float32)

    kern = functools.partial(_conv_kernel, KH=KH, KW=KW, RB=RB, Wp=Wp, relu=relu)
    outf = pl.pallas_call(
        kern,
        out_shape=jax.ShapeDtypeStruct((N, n_rb * RB * Wp, Cout), out_dtype),
        grid=(N, Cout // CT, n_rb),
        in_specs=[
            pl.BlockSpec((1, Hp * Wp, Cin), lambda n, c, r: (n, 0, 0)),
            pl.BlockSpec((KH * KW, Cin, CT), lambda n, c, r: (0, 0, c)),
            pl.BlockSpec((1, CT), lambda n, c, r: (0, c)),
        ],
        out_specs=pl.BlockSpec((1, RB * Wp, CT), lambda n, c, r: (n, r, c)),
        compiler_params=pltpu.CompilerParams(
            dimension_semantics=("parallel", "parallel", "parallel"),
            vmem_limit_bytes=VMEM_LIMIT),
    )(xf, wr, br)
    out = outf.reshape(N, n_rb * RB, Wp, Cout)
    return out[:, :Ho, :Wo, :]


# ----------------------------------------------------------------------------
# MaxPool 2x2 / stride 2, ceil_mode=True.  The 2x2 taps are exposed by a free
# row-major reshape to (N, Ho, 2, Wo, 2C); the kernel reduces rb=8 output rows
# per step (no strided-slice copies in HBM).
# ----------------------------------------------------------------------------
def _maxpool_kernel(x_ref, o_ref):
    # x_ref: (1, rb, 2, Wo, 2C);  o_ref: (1, rb, Wo, C)
    C = o_ref.shape[3]
    hmax = jnp.maximum(x_ref[0, :, 0], x_ref[0, :, 1])       # (rb, Wo, 2C)
    o_ref[0] = jnp.maximum(hmax[..., :C], hmax[..., C:])


def maxpool2x2_ceil(x, *, rb=8):
    N, H, W, C = x.shape
    Ho, Wo = _cdiv(H, 2), _cdiv(W, 2)
    Hop = _round_up(Ho, rb)
    xp = jnp.pad(x, ((0, 0), (0, 2 * Hop - H), (0, 2 * Wo - W), (0, 0)),
                 constant_values=-jnp.inf)
    xr = xp.reshape(N, Hop, 2, Wo, 2 * C)                    # free reshape
    out = pl.pallas_call(
        _maxpool_kernel,
        out_shape=jax.ShapeDtypeStruct((N, Hop, Wo, C), x.dtype),
        grid=(N, Hop // rb),
        in_specs=[pl.BlockSpec((1, rb, 2, Wo, 2 * C),
                               lambda n, r: (n, r, 0, 0, 0))],
        out_specs=pl.BlockSpec((1, rb, Wo, C), lambda n, r: (n, r, 0, 0)),
        compiler_params=pltpu.CompilerParams(
            dimension_semantics=("parallel", "parallel"),
            vmem_limit_bytes=VMEM_LIMIT),
    )(xr)
    return out[:, :Ho]


# ----------------------------------------------------------------------------
# upscore: ConvTranspose2d(num_classes, num_classes, 64, stride=32, bias=False)
# with the bilinear weight, which is diagonal across channels -> depthwise
# bilinear overlap-add inside the kernel (no dense 64*64*C matmul).
# ----------------------------------------------------------------------------
def _upscore_kernel(x_ref, f_ref, o_ref, *, stride):
    # x_ref: (1, Hs, Ws, C) f32;  f_ref: (KH, KW, 1) f32;  o_ref: (1,Hout,Wout,C)
    Hs, Ws = x_ref.shape[1], x_ref.shape[2]
    KH, KW = f_ref.shape[0], f_ref.shape[1]
    o_ref[...] = jnp.zeros_like(o_ref)
    for hi in range(Hs):                 # static overlap-add (Hs=Ws=1 here)
        for wi in range(Ws):
            v = x_ref[0, hi, wi, :].astype(jnp.float32)
            o_ref[0, hi * stride:hi * stride + KH,
                  wi * stride:wi * stride + KW, :] += f_ref[...] * v[None, None, :]


def upscore_bilinear(x, filt, *, stride):
    # TODO(synk): at real FCN resolutions the whole-output-per-batch block must
    # be tiled (4 non-overlapping interleaves of the stride-32 grid).
    N, Hs, Ws, C = x.shape
    KH, KW = filt.shape
    Hout = (Hs - 1) * stride + KH
    Wout = (Ws - 1) * stride + KW
    kern = functools.partial(_upscore_kernel, stride=stride)
    return pl.pallas_call(
        kern,
        out_shape=jax.ShapeDtypeStruct((N, Hout, Wout, C), jnp.float32),
        grid=(N,),
        in_specs=[pl.BlockSpec((1, Hs, Ws, C), lambda n: (n, 0, 0, 0)),
                  pl.BlockSpec((KH, KW, 1), lambda n: (0, 0, 0))],
        out_specs=pl.BlockSpec((1, Hout, Wout, C), lambda n: (n, 0, 0, 0)),
        compiler_params=pltpu.CompilerParams(
            dimension_semantics=("parallel",),
            vmem_limit_bytes=VMEM_LIMIT),
    )(x.astype(jnp.float32), filt.reshape(KH, KW, 1).astype(jnp.float32))


# ----------------------------------------------------------------------------
# Parameter construction (deterministic, synthetic).
# ----------------------------------------------------------------------------
VGG16_CFG = [(3, 64), (64, 64), 'M', (64, 128), (128, 128), 'M',
             (128, 256), (256, 256), (256, 256), 'M',
             (256, 512), (512, 512), (512, 512), 'M',
             (512, 512), (512, 512), (512, 512), 'M']


def bilinear_filter(kernel_size):
    # The full ConvTranspose2d weight of FCN32 is diag(filt) across channels.
    factor = (kernel_size + 1) // 2
    center = factor - 1 if kernel_size % 2 == 1 else factor - 0.5
    og = np.ogrid[:kernel_size, :kernel_size]
    filt = ((1 - abs(og[0] - center) / factor)
            * (1 - abs(og[1] - center) / factor)).astype(np.float32)
    return jnp.asarray(filt)


def init_params(key, num_classes=21):
    def conv_init(k, kh, kw, cin, cout):
        std = float(np.sqrt(2.0 / (kh * kw * cin)))
        w = jax.random.normal(k, (kh, kw, cin, cout), jnp.float32) * std
        return w.astype(jnp.bfloat16), jnp.zeros((cout,), jnp.float32)

    keys = jax.random.split(key, 20)
    ki = 0
    feats = []
    for item in VGG16_CFG:
        if item == 'M':
            feats.append('M')
        else:
            cin, cout = item
            feats.append(conv_init(keys[ki], 3, 3, cin, cout))
            ki += 1

    params = {'features': feats}
    params['fc6'] = conv_init(keys[ki], 7, 7, 512, 4096); ki += 1
    params['fc7'] = conv_init(keys[ki], 1, 1, 4096, 4096); ki += 1
    # The PyTorch module zero-inits score_fr; small random values keep the
    # synthetic forward pass numerically non-degenerate.
    w_score = (jax.random.normal(keys[ki], (1, 1, 4096, num_classes),
                                 jnp.float32) * 0.01).astype(jnp.bfloat16)
    ki += 1
    params['score_fr'] = (w_score, jnp.zeros((num_classes,), jnp.float32))
    params['upscore_filt'] = bilinear_filter(64)
    return params


# ----------------------------------------------------------------------------
# Forward pass (mirrors FCN32VGG.forward).
# ----------------------------------------------------------------------------
def fcn32_vgg_forward(params, x_nchw):
    N, C, H, W = x_nchw.shape
    x = jnp.transpose(x_nchw, (0, 2, 3, 1)).astype(jnp.bfloat16)   # NCHW -> NHWC

    # features5 (VGG16; first conv padded by 100, pools ceil_mode=True)
    first_conv = True
    for item in params['features']:
        if item == 'M':
            x = maxpool2x2_ceil(x)
        else:
            w, b = item
            pad = 100 if first_conv else 1
            x = conv2d(x, w, b, padding=pad, relu=True)
            first_conv = False

    # score_fr head: fc6 -> ReLU -> Dropout -> fc7 -> ReLU -> Dropout -> score
    # TODO(synk): Dropout is treated as eval-mode identity (no stochastic mask).
    w, b = params['fc6']
    x = conv2d(x, w, b, padding=0, relu=True)
    w, b = params['fc7']
    x = conv2d(x, w, b, padding=0, relu=True)

    # score_fr: zero-pad the class dim to a lane-dense multiple of 128.
    w, b = params['score_fr']
    nc = w.shape[-1]
    cp = _round_up(nc, 128)
    wp = jnp.pad(w, ((0, 0), (0, 0), (0, 0), (0, cp - nc)))
    bp = jnp.pad(b, (0, cp - nc))
    x = conv2d(x, wp, bp, padding=0, relu=False, out_dtype=jnp.float32)

    # upscore (depthwise bilinear transposed conv), then crop like the module.
    up = upscore_bilinear(x, params['upscore_filt'], stride=32)
    up = up[:, 19:19 + H, 19:19 + W, :nc]
    return jnp.transpose(up, (0, 3, 1, 2)).astype(jnp.float32)     # NHWC -> NCHW


if __name__ == "__main__":
    key = jax.random.PRNGKey(0)
    pkey, xkey = jax.random.split(key)
    params = init_params(pkey, num_classes=21)
    x = jax.random.normal(xkey, (2, 3, 16, 16), jnp.float32)       # NCHW

    out = fcn32_vgg_forward(params, x)
    out = jax.block_until_ready(out)

    assert out.shape == (2, 21, 16, 16), out.shape
    assert bool(jnp.all(jnp.isfinite(out)))
    print("KERNEL_OK")
</pallas_src>

<mosaic_0001>
module attributes {stable_mosaic.version = 11 : i64} {
  func.func @_conv_kernel(%arg0: i32, %arg1: i32, %arg2: i32, %arg3: memref<1x49056x3xf32, #tpu.memory_space<vmem>>, %arg4: memref<9x3x64xbf16, #tpu.memory_space<vmem>>, %arg5: memref<1x64xf32, #tpu.memory_space<vmem>>, %arg6: memref<1x672x64xbf16, #tpu.memory_space<vmem>>) attributes {dimension_semantics = [#tpu.dimension_semantics<parallel>, #tpu.dimension_semantics<parallel>, #tpu.dimension_semantics<parallel>], iteration_bounds = array<i64: 2, 1, 72>, scalar_prefetch = 0 : i64, scratch_operands = 0 : i64, tpu.core_type = #tpu.core_type<tc>, window_params = [{transform_indices = @transform_0, window_bounds = array<i64: 1, 49056, 3>}, {transform_indices = @transform_1, window_bounds = array<i64: 9, 3, 64>}, {transform_indices = @transform_2, window_bounds = array<i64: 1, 64>}, {transform_indices = @transform_3, window_bounds = array<i64: 1, 672, 64>}]} {
    %c672_i32 = arith.constant 672 : i32
    %0 = arith.muli %arg2, %c672_i32 : i32
    %1 = tpu.assume_multiple %0, 16 : i32
    %cst = arith.constant 0.000000e+00 : f32
    %2 = vector.broadcast %cst : f32 to vector<672x64xf32>
    %c0_i32 = arith.constant 0 : i32
    %3 = arith.addi %1, %c0_i32 : i32
    %c0_i32_0 = arith.constant 0 : i32
    %4 = arith.addi %3, %c0_i32_0 : i32
    %c0 = arith.constant 0 : index
    %5 = arith.index_cast %4 : i32 to index
    %c0_1 = arith.constant 0 : index
    %6 = vector.load %arg3[%c0, %5, %c0_1] : memref<1x49056x3xf32, #tpu.memory_space<vmem>>, vector<1x672x3xf32>
    %7 = vector.shape_cast %6 : vector<1x672x3xf32> to vector<672x3xf32>
    %8 = arith.truncf %7 : vector<672x3xf32> to vector<672x3xbf16>
    %c0_2 = arith.constant 0 : index
    %c0_3 = arith.constant 0 : index
    %c0_4 = arith.constant 0 : index
    %9 = vector.load %arg4[%c0_2, %c0_3, %c0_4] : memref<9x3x64xbf16, #tpu.memory_space<vmem>>, vector<1x3x64xbf16>
    %10 = vector.shape_cast %9 : vector<1x3x64xbf16> to vector<3x64xbf16>
    %cst_5 = arith.constant dense<0.000000e+00> : vector<672x64xf32>
    %11 = tpu.matmul %8, %10, %cst_5 {dimension_numbers = #tpu.dot_dimension_numbers<[1], [0], [0], [1], [0, 0, 1, 1], [], []>} : vector<672x3xbf16>, vector<3x64xbf16>, vector<672x64xf32> -> vector<672x64xf32>
    %12 = arith.addf %2, %11 : vector<672x64xf32>
    %c0_i32_6 = arith.constant 0 : i32
    %13 = arith.addi %1, %c0_i32_6 : i32
    %c1_i32 = arith.constant 1 : i32
    %14 = arith.addi %13, %c1_i32 : i32
    %c0_7 = arith.constant 0 : index
    %15 = arith.index_cast %14 : i32 to index
    %c0_8 = arith.constant 0 : index
    %16 = vector.load %arg3[%c0_7, %15, %c0_8] : memref<1x49056x3xf32, #tpu.memory_space<vmem>>, vector<1x672x3xf32>
    %17 = vector.shape_cast %16 : vector<1x672x3xf32> to vector<672x3xf32>
    %18 = arith.truncf %17 : vector<672x3xf32> to vector<672x3xbf16>
    %c1 = arith.constant 1 : index
    %c0_9 = arith.constant 0 : index
    %c0_10 = arith.constant 0 : index
    %19 = vector.load %arg4[%c1, %c0_9, %c0_10] : memref<9x3x64xbf16, #tpu.memory_space<vmem>>, vector<1x3x64xbf16>
    %20 = vector.shape_cast %19 : vector<1x3x64xbf16> to vector<3x64xbf16>
    %cst_11 = arith.constant dense<0.000000e+00> : vector<672x64xf32>
    %21 = tpu.matmul %18, %20, %cst_11 {dimension_numbers = #tpu.dot_dimension_numbers<[1], [0], [0], [1], [0, 0, 1, 1], [], []>} : vector<672x3xbf16>, vector<3x64xbf16>, vector<672x64xf32> -> vector<672x64xf32>
    %22 = arith.addf %12, %21 : vector<672x64xf32>
    %c0_i32_12 = arith.constant 0 : i32
    %23 = arith.addi %1, %c0_i32_12 : i32
    %c2_i32 = arith.constant 2 : i32
    %24 = arith.addi %23, %c2_i32 : i32
    %c0_13 = arith.constant 0 : index
    %25 = arith.index_cast %24 : i32 to index
    %c0_14 = arith.constant 0 : index
    %26 = vector.load %arg3[%c0_13, %25, %c0_14] : memref<1x49056x3xf32, #tpu.memory_space<vmem>>, vector<1x672x3xf32>
    %27 = vector.shape_cast %26 : vector<1x672x3xf32> to vector<672x3xf32>
    %28 = arith.truncf %27 : vector<672x3xf32> to vector<672x3xbf16>
    %c2 = arith.constant 2 : index
    %c0_15 = arith.constant 0 : index
    %c0_16 = arith.constant 0 : index
    %29 = vector.load %arg4[%c2, %c0_15, %c0_16] : memref<9x3x64xbf16, #tpu.memory_space<vmem>>, vector<1x3x64xbf16>
    %30 = vector.shape_cast %29 : vector<1x3x64xbf16> to vector<3x64xbf16>
    %cst_17 = arith.constant dense<0.000000e+00> : vector<672x64xf32>
    %31 = tpu.matmul %28, %30, %cst_17 {dimension_numbers = #tpu.dot_dimension_numbers<[1], [0], [0], [1], [0, 0, 1, 1], [], []>} : vector<672x3xbf16>, vector<3x64xbf16>, vector<672x64xf32> -> vector<672x64xf32>
    %32 = arith.addf %22, %31 : vector<672x64xf32>
    %c224_i32 = arith.constant 224 : i32
    %33 = arith.addi %1, %c224_i32 : i32
    %c0_i32_18 = arith.constant 0 : i32
    %34 = arith.addi %33, %c0_i32_18 : i32
    %c0_19 = arith.constant 0 : index
    %35 = arith.index_cast %34 : i32 to index
    %c0_20 = arith.constant 0 : index
    %36 = vector.load %arg3[%c0_19, %35, %c0_20] : memref<1x49056x3xf32, #tpu.memory_space<vmem>>, vector<1x672x3xf32>
    %37 = vector.shape_cast %36 : vector<1x672x3xf32> to vector<672x3xf32>
    %38 = arith.truncf %37 : vector<672x3xf32> to vector<672x3xbf16>
    %c3 = arith.constant 3 : index
    %c0_21 = arith.constant 0 : index
    %c0_22 = arith.constant 0 : index
    %39 = vector.load %arg4[%c3, %c0_21, %c0_22] : memref<9x3x64xbf16, #tpu.memory_space<vmem>>, vector<1x3x64xbf16>
    %40 = vector.shape_cast %39 : vector<1x3x64xbf16> to vector<3x64xbf16>
    %cst_23 = arith.constant dense<0.000000e+00> : vector<672x64xf32>
    %41 = tpu.matmul %38, %40, %cst_23 {dimension_numbers = #tpu.dot_dimension_numbers<[1], [0], [0], [1], [0, 0, 1, 1], [], []>} : vector<672x3xbf16>, vector<3x64xbf16>, vector<672x64xf32> -> vector<672x64xf32>
    %42 = arith.addf %32, %41 : vector<672x64xf32>
    %c224_i32_24 = arith.constant 224 : i32
    %43 = arith.addi %1, %c224_i32_24 : i32
    %c1_i32_25 = arith.constant 1 : i32
    %44 = arith.addi %43, %c1_i32_25 : i32
    %c0_26 = arith.constant 0 : index
    %45 = arith.index_cast %44 : i32 to index
    %c0_27 = arith.constant 0 : index
    %46 = vector.load %arg3[%c0_26, %45, %c0_27] : memref<1x49056x3xf32, #tpu.memory_space<vmem>>, vector<1x672x3xf32>
    %47 = vector.shape_cast %46 : vector<1x672x3xf32> to vector<672x3xf32>
    %48 = arith.truncf %47 : vector<672x3xf32> to vector<672x3xbf16>
    %c4 = arith.constant 4 : index
    %c0_28 = arith.constant 0 : index
    %c0_29 = arith.constant 0 : index
    %49 = vector.load %arg4[%c4, %c0_28, %c0_29] : memref<9x3x64xbf16, #tpu.memory_space<vmem>>, vector<1x3x64xbf16>
    %50 = vector.shape_cast %49 : vector<1x3x64xbf16> to vector<3x64xbf16>
    %cst_30 = arith.constant dense<0.000000e+00> : vector<672x64xf32>
    %51 = tpu.matmul %48, %50, %cst_30 {dimension_numbers = #tpu.dot_dimension_numbers<[1], [0], [0], [1], [0, 0, 1, 1], [], []>} : vector<672x3xbf16>, vector<3x64xbf16>, vector<672x64xf32> -> vector<672x64xf32>
    %52 = arith.addf %42, %51 : vector<672x64xf32>
    %c224_i32_31 = arith.constant 224 : i32
    %53 = arith.addi %1, %c224_i32_31 : i32
    %c2_i32_32 = arith.constant 2 : i32
    %54 = arith.addi %53, %c2_i32_32 : i32
    %c0_33 = arith.constant 0 : index
    %55 = arith.index_cast %54 : i32 to index
    %c0_34 = arith.constant 0 : index
    %56 = vector.load %arg3[%c0_33, %55, %c0_34] : memref<1x49056x3xf32, #tpu.memory_space<vmem>>, vector<1x672x3xf32>
    %57 = vector.shape_cast %56 : vector<1x672x3xf32> to vector<672x3xf32>
    %58 = arith.truncf %57 : vector<672x3xf32> to vector<672x3xbf16>
    %c5 = arith.constant 5 : index
    %c0_35 = arith.constant 0 : index
    %c0_36 = arith.constant 0 : index
    %59 = vector.load %arg4[%c5, %c0_35, %c0_36] : memref<9x3x64xbf16, #tpu.memory_space<vmem>>, vector<1x3x64xbf16>
    %60 = vector.shape_cast %59 : vector<1x3x64xbf16> to vector<3x64xbf16>
    %cst_37 = arith.constant dense<0.000000e+00> : vector<672x64xf32>
    %61 = tpu.matmul %58, %60, %cst_37 {dimension_numbers = #tpu.dot_dimension_numbers<[1], [0], [0], [1], [0, 0, 1, 1], [], []>} : vector<672x3xbf16>, vector<3x64xbf16>, vector<672x64xf32> -> vector<672x64xf32>
    %62 = arith.addf %52, %61 : vector<672x64xf32>
    %c448_i32 = arith.constant 448 : i32
    %63 = arith.addi %1, %c448_i32 : i32
    %c0_i32_38 = arith.constant 0 : i32
    %64 = arith.addi %63, %c0_i32_38 : i32
    %c0_39 = arith.constant 0 : index
    %65 = arith.index_cast %64 : i32 to index
    %c0_40 = arith.constant 0 : index
    %66 = vector.load %arg3[%c0_39, %65, %c0_40] : memref<1x49056x3xf32, #tpu.memory_space<vmem>>, vector<1x672x3xf32>
    %67 = vector.shape_cast %66 : vector<1x672x3xf32> to vector<672x3xf32>
    %68 = arith.truncf %67 : vector<672x3xf32> to vector<672x3xbf16>
    %c6 = arith.constant 6 : index
    %c0_41 = arith.constant 0 : index
    %c0_42 = arith.constant 0 : index
    %69 = vector.load %arg4[%c6, %c0_41, %c0_42] : memref<9x3x64xbf16, #tpu.memory_space<vmem>>, vector<1x3x64xbf16>
    %70 = vector.shape_cast %69 : vector<1x3x64xbf16> to vector<3x64xbf16>
    %cst_43 = arith.constant dense<0.000000e+00> : vector<672x64xf32>
    %71 = tpu.matmul %68, %70, %cst_43 {dimension_numbers = #tpu.dot_dimension_numbers<[1], [0], [0], [1], [0, 0, 1, 1], [], []>} : vector<672x3xbf16>, vector<3x64xbf16>, vector<672x64xf32> -> vector<672x64xf32>
    %72 = arith.addf %62, %71 : vector<672x64xf32>
    %c448_i32_44 = arith.constant 448 : i32
    %73 = arith.addi %1, %c448_i32_44 : i32
    %c1_i32_45 = arith.constant 1 : i32
    %74 = arith.addi %73, %c1_i32_45 : i32
    %c0_46 = arith.constant 0 : index
    %75 = arith.index_cast %74 : i32 to index
    %c0_47 = arith.constant 0 : index
    %76 = vector.load %arg3[%c0_46, %75, %c0_47] : memref<1x49056x3xf32, #tpu.memory_space<vmem>>, vector<1x672x3xf32>
    %77 = vector.shape_cast %76 : vector<1x672x3xf32> to vector<672x3xf32>
    %78 = arith.truncf %77 : vector<672x3xf32> to vector<672x3xbf16>
    %c7 = arith.constant 7 : index
    %c0_48 = arith.constant 0 : index
    %c0_49 = arith.constant 0 : index
    %79 = vector.load %arg4[%c7, %c0_48, %c0_49] : memref<9x3x64xbf16, #tpu.memory_space<vmem>>, vector<1x3x64xbf16>
    %80 = vector.shape_cast %79 : vector<1x3x64xbf16> to vector<3x64xbf16>
    %cst_50 = arith.constant dense<0.000000e+00> : vector<672x64xf32>
    %81 = tpu.matmul %78, %80, %cst_50 {dimension_numbers = #tpu.dot_dimension_numbers<[1], [0], [0], [1], [0, 0, 1, 1], [], []>} : vector<672x3xbf16>, vector<3x64xbf16>, vector<672x64xf32> -> vector<672x64xf32>
    %82 = arith.addf %72, %81 : vector<672x64xf32>
    %c448_i32_51 = arith.constant 448 : i32
    %83 = arith.addi %1, %c448_i32_51 : i32
    %c2_i32_52 = arith.constant 2 : i32
    %84 = arith.addi %83, %c2_i32_52 : i32
    %c0_53 = arith.constant 0 : index
    %85 = arith.index_cast %84 : i32 to index
    %c0_54 = arith.constant 0 : index
    %86 = vector.load %arg3[%c0_53, %85, %c0_54] : memref<1x49056x3xf32, #tpu.memory_space<vmem>>, vector<1x672x3xf32>
    %87 = vector.shape_cast %86 : vector<1x672x3xf32> to vector<672x3xf32>
    %88 = arith.truncf %87 : vector<672x3xf32> to vector<672x3xbf16>
    %c8 = arith.constant 8 : index
    %c0_55 = arith.constant 0 : index
    %c0_56 = arith.constant 0 : index
    %89 = vector.load %arg4[%c8, %c0_55, %c0_56] : memref<9x3x64xbf16, #tpu.memory_space<vmem>>, vector<1x3x64xbf16>
    %90 = vector.shape_cast %89 : vector<1x3x64xbf16> to vector<3x64xbf16>
    %cst_57 = arith.constant dense<0.000000e+00> : vector<672x64xf32>
    %91 = tpu.matmul %88, %90, %cst_57 {dimension_numbers = #tpu.dot_dimension_numbers<[1], [0], [0], [1], [0, 0, 1, 1], [], []>} : vector<672x3xbf16>, vector<3x64xbf16>, vector<672x64xf32> -> vector<672x64xf32>
    %92 = arith.addf %82, %91 : vector<672x64xf32>
    %c0_58 = arith.constant 0 : index
    %c0_59 = arith.constant 0 : index
    %93 = vector.load %arg5[%c0_58, %c0_59] : memref<1x64xf32, #tpu.memory_space<vmem>>, vector<1x64xf32>
    %94 = vector.broadcast %93 : vector<1x64xf32> to vector<672x64xf32>
    %95 = arith.addf %92, %94 : vector<672x64xf32>
    %cst_60 = arith.constant 0.000000e+00 : f32
    %96 = vector.broadcast %cst_60 : f32 to vector<672x64xf32>
    %97 = arith.maximumf %95, %96 : vector<672x64xf32>
    %98 = arith.truncf %97 : vector<672x64xf32> to vector<672x64xbf16>
    %c0_61 = arith.constant 0 : index
    %c0_62 = arith.constant 0 : index
    %c0_63 = arith.constant 0 : index
    %99 = vector.load %arg6[%c0_61, %c0_62, %c0_63] : memref<1x672x64xbf16, #tpu.memory_space<vmem>>, vector<1x672x64xbf16>
    %100 = vector.shape_cast %99 : vector<1x672x64xbf16> to vector<672x64xbf16>
    %101 = vector.shape_cast %98 : vector<672x64xbf16> to vector<1x672x64xbf16>
    tpu.vector_store %arg6[%c0_61, %c0_62, %c0_63], %101 {strides = array<i32>} : memref<1x672x64xbf16, #tpu.memory_space<vmem>>, vector<1x672x64xbf16>,
    return
  }
  func.func @transform_0(%arg0: i32, %arg1: i32, %arg2: i32) -> (i32, i32, i32) {
    %c0_i32 = arith.constant 0 : i32
    %c0_i32_0 = arith.constant 0 : i32
    %c0_i32_1 = arith.constant 0 : i32
    return %arg0, %c0_i32, %c0_i32_0 : i32, i32, i32
  }
  func.func @transform_1(%arg0: i32, %arg1: i32, %arg2: i32) -> (i32, i32, i32) {
    %c0_i32 = arith.constant 0 : i32
    %c0_i32_0 = arith.constant 0 : i32
    %c0_i32_1 = arith.constant 0 : i32
    return %c0_i32, %c0_i32_0, %arg1 : i32, i32, i32
  }
  func.func @transform_2(%arg0: i32, %arg1: i32, %arg2: i32) -> (i32, i32) {
    %c0_i32 = arith.constant 0 : i32
    %c0_i32_0 = arith.constant 0 : i32
    return %c0_i32, %arg1 : i32, i32
  }
  func.func @transform_3(%arg0: i32, %arg1: i32, %arg2: i32) -> (i32, i32, i32) {
    %c0_i32 = arith.constant 0 : i32
    return %arg0, %arg2, %arg1 : i32, i32, i32
  }
}

</mosaic_0001>

<llo_original>
// kernel: tpu_custom_call.1
$region0: #{tpu_custom_call.1}
  #allocation0 [shape = 'u32[]', space=smem, size = 0x4, offset = 0x4, fixed_abs, tag = 'smem constant byte address 0x4 - core index']
  #allocation1 [shape = 'u32[144,128]{1,0:T(1,128)}', space=vmem, size = 0x12000, scoped, tag = 'internal scratch']
  %s0 = inlined_call_operand.vmem [shape: f32[2,49056,3], index: 0, kind: input, shape index: {}]
  %s1 = inlined_call_operand.vmem [shape: bf16[9,3,64], index: 1, kind: input, shape index: {}]
  %s2 = inlined_call_operand.vmem [shape: f32[1,64], index: 2, kind: input, shape index: {}]
  %s3 = inlined_call_operand.vmem [shape: bf16[2,48384,64], index: 3, kind: output, shape index: {}]
  %s4 = sld [smem:[#allocation0]]
  $region45: #{tpu_custom_call.1} parent=0
    _
  %s6 = ssub.s32 1, %s4
  %s7 = scalar_select 0, %s6, %s4
  loop: start=0, step=1, limit=146
  $region2: #{tpu_custom_call.1} parent=0 // loop_pre_header
    _
  $region3: #{tpu_custom_call.1} parent=0 // loop_header
    %s9 = sphi 0, %s13
    %p10 = scmp.ge.s32.totalorder %s9, 146
    %s16 = sphi 0, %s35
    %s17 = sphi 0, %s31
    %s18 = sphi 0, %s27
    %s19 = sphi 0, %s16
    %s20 = sphi 0, %s17
    %s21 = sphi 0, %s18
    %s22 = sphi 0, %s19
    %s23 = sphi 0, %s20
    %s24 = sphi 0, %s21
    %s38 = sphi 0, %s40
    %s41 = sphi 0, %s38
    %s42 = sphi 0, %s41
    %s58 = sphi 0, %s42
    %s64 = sphi 0, %s66
    %s67 = sphi 0, %s64
    %s68 = sphi 0, %s67
    %s84 = sphi 0, %s68
    %s90 = sphi 0, %s92
    %s93 = sphi 0, %s90
    %s94 = sphi 0, %s93
    %s110 = sphi 0, %s94
    %s120 = sphi 0, %s122
    %s123 = sphi 0, %s120
    %s124 = sphi 0, %s123
    %s140 = sphi 0, %s124
  $region4: #{tpu_custom_call.1} parent=0 // loop_header_branch
    %12 = sbr.rel (%p10) target = $region8
  $region5: #{tpu_custom_call.1} parent=0 // loop_body
    %s14 = ssub.s32 %s9, 1
    %s15 = ssub.s32 %s9, 2
    %s25 = sadd.s32 1, %s18
    %p26 = scmp.ge.s32.totalorder %s25, 72
    %s27 = scalar_select %p26, 0, %s25
    %s28 = sadd.s32 1, %s17
    %s29 = scalar_select %p26, %s28, %s17
    %p30 = scmp.ge.s32.totalorder %s29, 1
    %s31 = scalar_select %p30, 0, %s29
    %s32 = sadd.s32 1, %s16
    %s33 = scalar_select %p30, %s32, %s16
    %p34 = scmp.ge.s32.totalorder %s33, 2
    %s35 = scalar_select %p34, 0, %s33
    %s36 = ssub.s32 %s16, %s35
    %p37 = scmp.eq.s32.totalorder %s36, 0
    %s39 = sadd.s32 %s38, 1
    %s40 = scalar_select %p37, %s38, %s39
    %p43 = pneg %p37
    %p44 = scmp.eq.s32.totalorder %s9, 143
    %p45 = por %p43, %p44
    %p46 = scmp.ne.s32.totalorder %s38, %s41
    %p47 = scmp.eq.s32.totalorder %s9, 0
    %p48 = por %p46, %p47
    %p49 = scmp.ne.s32.totalorder %s38, %s41
    %p50 = scmp.eq.s32.totalorder %s14, 143
    %p51 = por %p49, %p50
    %p52 = scmp.ne.s32.totalorder %s41, %s42
    %p53 = scmp.eq.s32.totalorder %s14, 0
    %p54 = por %p52, %p53
    %p55 = scmp.ne.s32.totalorder %s41, %s42
    %p56 = scmp.eq.s32.totalorder %s15, 143
    %p57 = por %p55, %p56
    %p59 = scmp.ne.s32.totalorder %s42, %s58
    %p60 = scmp.eq.s32.totalorder %s15, 0
    %p61 = por %p59, %p60
    %s62 = ssub.s32 %s17, %s31
    %p63 = scmp.eq.s32.totalorder %s62, 0
    %s65 = sadd.s32 %s64, 1
    %s66 = scalar_select %p63, %s64, %s65
    %p69 = pneg %p63
    %p70 = scmp.eq.s32.totalorder %s9, 143
    %p71 = por %p69, %p70
    %p72 = scmp.ne.s32.totalorder %s64, %s67
    %p73 = scmp.eq.s32.totalorder %s9, 0
    %p74 = por %p72, %p73
    %p75 = scmp.ne.s32.totalorder %s64, %s67
    %p76 = scmp.eq.s32.totalorder %s14, 143
    %p77 = por %p75, %p76
    %p78 = scmp.ne.s32.totalorder %s67, %s68
    %p79 = scmp.eq.s32.totalorder %s14, 0
    %p80 = por %p78, %p79
    %p81 = scmp.ne.s32.totalorder %s67, %s68
    %p82 = scmp.eq.s32.totalorder %s15, 143
    %p83 = por %p81, %p82
    %p85 = scmp.ne.s32.totalorder %s68, %s84
    %p86 = scmp.eq.s32.totalorder %s15, 0
    %p87 = por %p85, %p86
    %s88 = ssub.s32 %s17, %s31
    %p89 = scmp.eq.s32.totalorder %s88, 0
    %s91 = sadd.s32 %s90, 1
    %s92 = scalar_select %p89, %s90, %s91
    %p95 = pneg %p89
    %p96 = scmp.eq.s32.totalorder %s9, 143
    %p97 = por %p95, %p96
    %p98 = scmp.ne.s32.totalorder %s90, %s93
    %p99 = scmp.eq.s32.totalorder %s9, 0
    %p100 = por %p98, %p99
    %p101 = scmp.ne.s32.totalorder %s90, %s93
    %p102 = scmp.eq.s32.totalorder %s14, 143
    %p103 = por %p101, %p102
    %p104 = scmp.ne.s32.totalorder %s93, %s94
    %p105 = scmp.eq.s32.totalorder %s14, 0
    %p106 = por %p104, %p105
    %p107 = scmp.ne.s32.totalorder %s93, %s94
    %p108 = scmp.eq.s32.totalorder %s15, 143
    %p109 = por %p107, %p108
    %p111 = scmp.ne.s32.totalorder %s94, %s110
    %p112 = scmp.eq.s32.totalorder %s15, 0
    %p113 = por %p111, %p112
    %s114 = ssub.s32 %s16, %s35
    %s115 = ssub.s32 %s18, %s27
    %s116 = sor.u32 %s114, %s115
    %s117 = ssub.s32 %s17, %s31
    %s118 = sor.u32 %s116, %s117
    %p119 = scmp.eq.s32.totalorder %s118, 0
    %s121 = sadd.s32 %s120, 1
    %s122 = scalar_select %p119, %s120, %s121
    %p125 = pneg %p119
    %p126 = scmp.eq.s32.totalorder %s9, 143
    %p127 = por %p125, %p126
    %p128 = scmp.ne.s32.totalorder %s120, %s123
    %p129 = scmp.eq.s32.totalorder %s9, 0
    %p130 = por %p128, %p129
    %p131 = scmp.ne.s32.totalorder %s120, %s123
    %p132 = scmp.eq.s32.totalorder %s14, 143
    %p133 = por %p131, %p132
    %p134 = scmp.ne.s32.totalorder %s123, %s124
    %p135 = scmp.eq.s32.totalorder %s14, 0
    %p136 = por %p134, %p135
    %p137 = scmp.ne.s32.totalorder %s123, %s124
    %p138 = scmp.eq.s32.totalorder %s15, 143
    %p139 = por %p137, %p138
    %p141 = scmp.ne.s32.totalorder %s124, %s140
    %p142 = scmp.eq.s32.totalorder %s15, 0
    %p143 = por %p141, %p142
    %p144 = scmp.le.s32.totalorder 1, %s9
    %p145 = scmp.lt.s32.totalorder %s9, 145
    %p146 = pnand %p144, %p145
    %p147 = pneg %p146
    // Predicated region
    $region9: #{tpu_custom_call.1} parent=5 // pred_check
      _
    $region10: #{tpu_custom_call.1} parent=5 // pred_check_branch
      %149 = sbr.rel (%p146) target = $region12
    $region11: #{tpu_custom_call.1} parent=5 // pred_region
      %s150 = ssub.s32 %s9, 1
      // Predicated region
      $region13: #{tpu_custom_call.1} parent=11 // pred_check
        %p151 = pneg %p80
      $region14: #{tpu_custom_call.1} parent=11 // pred_check_branch
        %153 = sbr.rel (%p151) target = $region16
      $region15: #{tpu_custom_call.1} parent=11 // pred_region
        %p154 = scmp.lt.s32.totalorder %s20, 0
        %s155 = scalar_select %p154, %s20, 0
        %s156 = smul.addr %s155, 2
        %s157 = scalar_lea.vmem %s1, %s156
      $region16: #{tpu_custom_call.1} parent=11 // pred_fallthru
        _
      // Predicated region
      $region17: #{tpu_custom_call.1} parent=11 // pred_check
        %p158 = pneg %p106
      $region18: #{tpu_custom_call.1} parent=11 // pred_check_branch
        %160 = sbr.rel (%p158) target = $region20
      $region19: #{tpu_custom_call.1} parent=11 // pred_region
        %p161 = scmp.lt.s32.totalorder %s20, 0
        %s162 = scalar_select %p161, %s20, 0
        %s163 = scalar_lea.vmem %s2, %s162
      $region20: #{tpu_custom_call.1} parent=11 // pred_fallthru
        _
    $region12: #{tpu_custom_call.1} parent=5 // pred_fallthru
      _
    %p164 = scmp.lt.s32.totalorder %s9, 144
    // Predicated region
    $region21: #{tpu_custom_call.1} parent=5 // pred_check
      %p165 = pneg %p164
    $region22: #{tpu_custom_call.1} parent=5 // pred_check_branch
      %167 = sbr.rel (%p165) target = $region24
    $region23: #{tpu_custom_call.1} parent=5 // pred_region
      // Predicated region
      $region25: #{tpu_custom_call.1} parent=23 // pred_check
        %p168 = pneg %p48
      $region26: #{tpu_custom_call.1} parent=23 // pred_check_branch
        %170 = sbr.rel (%p168) target = $region28
      $region27: #{tpu_custom_call.1} parent=23 // pred_region
        %p171 = scmp.lt.s32.totalorder %s16, 1
        %s172 = scalar_select %p171, %s16, 1
        %s173 = smul.addr %s172, 6132
        %s174 = smul.addr %s173, 8
        %s175 = scalar_lea.vmem %s0, %s174
      $region28: #{tpu_custom_call.1} parent=23 // pred_fallthru
        _
    $region24: #{tpu_custom_call.1} parent=5 // pred_fallthru
      _
    %p176 = scmp.le.s32.totalorder 1, %s9
    %p177 = scmp.lt.s32.totalorder %s9, 145
    %p178 = pnand %p176, %p177
    %p179 = pneg %p178
    // Predicated region
    $region29: #{tpu_custom_call.1} parent=5 // pred_check
      _
    $region30: #{tpu_custom_call.1} parent=5 // pred_check_branch
      %181 = sbr.rel (%p178) target = $region32
    $region31: #{tpu_custom_call.1} parent=5 // pred_region
      %s182 = ssub.s32 %s9, 1
      %p183 = scmp.lt.s32.totalorder %s19, 1
      %s184 = scalar_select %p183, %s19, 1
      %s185 = smul.addr %s184, 6132
      %s186 = smul.addr %s185, 8
      %s187 = scalar_lea.vmem %s0, %s186
      %p188 = pneg %p54
      %p189 = pneg %p51
      %p190 = scmp.lt.s32.totalorder %s20, 0
      %s191 = scalar_select %p190, %s20, 0
      %s192 = smul.addr %s191, 2
      %s193 = scalar_lea.vmem %s1, %s192
      %p194 = pneg %p80
      %p195 = pneg %p77
      %p196 = scmp.lt.s32.totalorder %s20, 0
      %s197 = scalar_select %p196, %s20, 0
      %s198 = scalar_lea.vmem %s2, %s197
      %p199 = pneg %p106
      %p200 = pneg %p103
      %p201 = pneg %p136
      %p202 = pneg %p133
      %s203 = smul.u32 84, %s21
      %p204 = scmp.lt.s32.totalorder %s19, 1
      %s205 = scalar_select %p204, %s19, 1
      %p206 = scmp.lt.s32.totalorder %s203, 6047
      %s207 = scalar_select %p206, %s203, 6047
      %p208 = scmp.lt.s32.totalorder %s20, 0
      %s209 = scalar_select %p208, %s20, 0
      %s210 = sadd.s32 %s209, %s207
      %s211 = smul.addr %s205, 6048
      %s212 = sadd.s32 %s210, %s211
      %s213 = smul.addr %s212, 4
      %s214 = scalar_lea.vmem %s3, %s213
      %p215 = scmp.lt.s32.totalorder %s19, 1
      %s216 = scalar_select %p215, %s19, 1
      %s217 = smul.addr %s216, 6132
      %s218 = smul.addr %s217, 8
      %s219 = scalar_lea.vmem %s0, %s218
      %p220 = scmp.lt.s32.totalorder %s20, 0
      %s221 = scalar_select %p220, %s20, 0
      %s222 = smul.addr %s221, 2
      %s223 = scalar_lea.vmem %s1, %s222
      %p224 = scmp.lt.s32.totalorder %s20, 0
      %s225 = scalar_select %p224, %s20, 0
      %s226 = scalar_lea.vmem %s2, %s225
      %s227 = smul.u32 84, %s21
      %p228 = scmp.lt.s32.totalorder %s19, 1
      %s229 = scalar_select %p228, %s19, 1
      %p230 = scmp.lt.s32.totalorder %s227, 6047
      %s231 = scalar_select %p230, %s227, 6047
      %p232 = scmp.lt.s32.totalorder %s20, 0
      %s233 = scalar_select %p232, %s20, 0
      %s234 = sadd.s32 %s233, %s231
      %s235 = smul.addr %s229, 6048
      %s236 = sadd.s32 %s234, %s235
      %s237 = smul.addr %s236, 4
      %s238 = scalar_lea.vmem %s3, %s237
      %s239 = smul.u32 84, %s21
      %s241 = smul.u32 %s21, 672
      %s242 = scalar_lea.vmem %s219, %s241
      %v243 = vld [vmem:[%s242] sm:$0xff]
      %v244 = vld [vmem:[%s242 + $0x8] sm:$0xff]
      %v245 = vld [vmem:[%s242 + $0x10] sm:$0xff]
      %v246 = vld [vmem:[%s242 + $0x18] sm:$0xff]
      %v247 = vld [vmem:[%s242 + $0x20] sm:$0xff]
      %v248 = vld [vmem:[%s242 + $0x28] sm:$0xff]
      %v249 = vld [vmem:[%s242 + $0x30] sm:$0xff]
      %v250 = vld [vmem:[%s242 + $0x38] sm:$0xff]
      %v251 = vld [vmem:[%s242 + $0x40] sm:$0xff]
      %v252 = vld [vmem:[%s242 + $0x48] sm:$0xff]
      %v253 = vld [vmem:[%s242 + $0x50] sm:$0xff]
      %v254 = vld [vmem:[%s242 + $0x58] sm:$0xff]
      %v255 = vld [vmem:[%s242 + $0x60] sm:$0xff]
      %v256 = vld [vmem:[%s242 + $0x68] sm:$0xff]
      %v257 = vld [vmem:[%s242 + $0x70] sm:$0xff]
      %v258 = vld [vmem:[%s242 + $0x78] sm:$0xff]
      %v259 = vld [vmem:[%s242 + $0x80] sm:$0xff]
      %v260 = vld [vmem:[%s242 + $0x88] sm:$0xff]
      %v261 = vld [vmem:[%s242 + $0x90] sm:$0xff]
      %v262 = vld [vmem:[%s242 + $0x98] sm:$0xff]
      %v263 = vld [vmem:[%s242 + $0xa0] sm:$0xff]
      %v264 = vld [vmem:[%s242 + $0xa8] sm:$0xff]
      %v265 = vld [vmem:[%s242 + $0xb0] sm:$0xff]
      %v266 = vld [vmem:[%s242 + $0xb8] sm:$0xff]
      %v267 = vld [vmem:[%s242 + $0xc0] sm:$0xff]
      %v268 = vld [vmem:[%s242 + $0xc8] sm:$0xff]
      %v269 = vld [vmem:[%s242 + $0xd0] sm:$0xff]
      %v270 = vld [vmem:[%s242 + $0xd8] sm:$0xff]
      %v271 = vld [vmem:[%s242 + $0xe0] sm:$0xff]
      %v272 = vld [vmem:[%s242 + $0xe8] sm:$0xff]
      %v273 = vld [vmem:[%s242 + $0xf0] sm:$0xff]
      %v274 = vld [vmem:[%s242 + $0xf8] sm:$0xff]
      %v275 = vld [vmem:[%s242 + $0x100] sm:$0xff]
      %v276 = vld [vmem:[%s242 + $0x108] sm:$0xff]
      %v277 = vld [vmem:[%s242 + $0x110] sm:$0xff]
      %v278 = vld [vmem:[%s242 + $0x118] sm:$0xff]
      %v279 = vld [vmem:[%s242 + $0x120] sm:$0xff]
      %v280 = vld [vmem:[%s242 + $0x128] sm:$0xff]
      %v281 = vld [vmem:[%s242 + $0x130] sm:$0xff]
      %v282 = vld [vmem:[%s242 + $0x138] sm:$0xff]
      %v283 = vld [vmem:[%s242 + $0x140] sm:$0xff]
      %v284 = vld [vmem:[%s242 + $0x148] sm:$0xff]
      %v285 = vld [vmem:[%s242 + $0x150] sm:$0xff]
      %v286 = vld [vmem:[%s242 + $0x158] sm:$0xff]
      %v287 = vld [vmem:[%s242 + $0x160] sm:$0xff]
      %v288 = vld [vmem:[%s242 + $0x168] sm:$0xff]
      %v289 = vld [vmem:[%s242 + $0x170] sm:$0xff]
      %v290 = vld [vmem:[%s242 + $0x178] sm:$0xff]
      %v291 = vld [vmem:[%s242 + $0x180] sm:$0xff]
      %v292 = vld [vmem:[%s242 + $0x188] sm:$0xff]
      %v293 = vld [vmem:[%s242 + $0x190] sm:$0xff]
      %v294 = vld [vmem:[%s242 + $0x198] sm:$0xff]
      %v295 = vld [vmem:[%s242 + $0x1a0] sm:$0xff]
      %v296 = vld [vmem:[%s242 + $0x1a8] sm:$0xff]
      %v297 = vld [vmem:[%s242 + $0x1b0] sm:$0xff]
      %v298 = vld [vmem:[%s242 + $0x1b8] sm:$0xff]
      %v299 = vld [vmem:[%s242 + $0x1c0] sm:$0xff]
      %v300 = vld [vmem:[%s242 + $0x1c8] sm:$0xff]
      %v301 = vld [vmem:[%s242 + $0x1d0] sm:$0xff]
      %v302 = vld [vmem:[%s242 + $0x1d8] sm:$0xff]
      %v303 = vld [vmem:[%s242 + $0x1e0] sm:$0xff]
      %v304 = vld [vmem:[%s242 + $0x1e8] sm:$0xff]
      %v305 = vld [vmem:[%s242 + $0x1f0] sm:$0xff]
      %v306 = vld [vmem:[%s242 + $0x1f8] sm:$0xff]
      %v307 = vld [vmem:[%s242 + $0x200] sm:$0xff]
      %v308 = vld [vmem:[%s242 + $0x208] sm:$0xff]
      %v309 = vld [vmem:[%s242 + $0x210] sm:$0xff]
      %v310 = vld [vmem:[%s242 + $0x218] sm:$0xff]
      %v311 = vld [vmem:[%s242 + $0x220] sm:$0xff]
      %v312 = vld [vmem:[%s242 + $0x228] sm:$0xff]
      %v313 = vld [vmem:[%s242 + $0x230] sm:$0xff]
      %v314 = vld [vmem:[%s242 + $0x238] sm:$0xff]
      %v315 = vld [vmem:[%s242 + $0x240] sm:$0xff]
      %v316 = vld [vmem:[%s242 + $0x248] sm:$0xff]
      %v317 = vld [vmem:[%s242 + $0x250] sm:$0xff]
      %v318 = vld [vmem:[%s242 + $0x258] sm:$0xff]
      %v319 = vld [vmem:[%s242 + $0x260] sm:$0xff]
      %v320 = vld [vmem:[%s242 + $0x268] sm:$0xff]
      %v321 = vld [vmem:[%s242 + $0x270] sm:$0xff]
      %v322 = vld [vmem:[%s242 + $0x278] sm:$0xff]
      %v323 = vld [vmem:[%s242 + $0x280] sm:$0xff]
      %v324 = vld [vmem:[%s242 + $0x288] sm:$0xff]
      %v325 = vld [vmem:[%s242 + $0x290] sm:$0xff]
      %v326 = vld [vmem:[%s242 + $0x298] sm:$0xff]
      %v327 = vpack.c.bf16 %v244, %v243
      %v328 = vpack.c.bf16 %v246, %v245
      %v329 = vpack.c.bf16 %v248, %v247
      %v330 = vpack.c.bf16 %v250, %v249
      %v331 = vpack.c.bf16 %v252, %v251
      %v332 = vpack.c.bf16 %v254, %v253
      %v333 = vpack.c.bf16 %v256, %v255
      %v334 = vpack.c.bf16 %v258, %v257
      %v335 = vpack.c.bf16 %v260, %v259
      %v336 = vpack.c.bf16 %v262, %v261
      %v337 = vpack.c.bf16 %v264, %v263
      %v338 = vpack.c.bf16 %v266, %v265
      %v339 = vpack.c.bf16 %v268, %v267
      %v340 = vpack.c.bf16 %v270, %v269
      %v341 = vpack.c.bf16 %v272, %v271
      %v342 = vpack.c.bf16 %v274, %v273
      %v343 = vpack.c.bf16 %v276, %v275
      %v344 = vpack.c.bf16 %v278, %v277
      %v345 = vpack.c.bf16 %v280, %v279
      %v346 = vpack.c.bf16 %v282, %v281
      %v347 = vpack.c.bf16 %v284, %v283
      %v348 = vpack.c.bf16 %v286, %v285
      %v349 = vpack.c.bf16 %v288, %v287
      %v350 = vpack.c.bf16 %v290, %v289
      %v351 = vpack.c.bf16 %v292, %v291
      %v352 = vpack.c.bf16 %v294, %v293
      %v353 = vpack.c.bf16 %v296, %v295
      %v354 = vpack.c.bf16 %v298, %v297
      %v355 = vpack.c.bf16 %v300, %v299
      %v356 = vpack.c.bf16 %v302, %v301
      %v357 = vpack.c.bf16 %v304, %v303
      %v358 = vpack.c.bf16 %v306, %v305
      %v359 = vpack.c.bf16 %v308, %v307
      %v360 = vpack.c.bf16 %v310, %v309
      %v361 = vpack.c.bf16 %v312, %v311
      %v362 = vpack.c.bf16 %v314, %v313
      %v363 = vpack.c.bf16 %v316, %v315
      %v364 = vpack.c.bf16 %v318, %v317
      %v365 = vpack.c.bf16 %v320, %v319
      %v366 = vpack.c.bf16 %v322, %v321
      %v367 = vpack.c.bf16 %v324, %v323
      %v368 = vpack.c.bf16 %v326, %v325
      %v369 = vld [vmem:[%s223] sm:$0x3]
      %s370 = sadd.s32 %s241, 1
      %s371 = scalar_lea.vmem %s219, %s370
      %v372 = vld [vmem:[%s371] sm:$0xff]
      %v373 = vld [vmem:[%s371 + $0x8] sm:$0xff]
      %v374 = vld [vmem:[%s371 + $0x10] sm:$0xff]
      %v375 = vld [vmem:[%s371 + $0x18] sm:$0xff]
      %v376 = vld [vmem:[%s371 + $0x20] sm:$0xff]
      %v377 = vld [vmem:[%s371 + $0x28] sm:$0xff]
      %v378 = vld [vmem:[%s371 + $0x30] sm:$0xff]
      %v379 = vld [vmem:[%s371 + $0x38] sm:$0xff]
      %v380 = vld [vmem:[%s371 + $0x40] sm:$0xff]
      %v381 = vld [vmem:[%s371 + $0x48] sm:$0xff]
      %v382 = vld [vmem:[%s371 + $0x50] sm:$0xff]
      %v383 = vld [vmem:[%s371 + $0x58] sm:$0xff]
      %v384 = vld [vmem:[%s371 + $0x60] sm:$0xff]
      %v385 = vld [vmem:[%s371 + $0x68] sm:$0xff]
      %v386 = vld [vmem:[%s371 + $0x70] sm:$0xff]
      %v387 = vld [vmem:[%s371 + $0x78] sm:$0xff]
      %v388 = vld [vmem:[%s371 + $0x80] sm:$0xff]
      %v389 = vld [vmem:[%s371 + $0x88] sm:$0xff]
      %v390 = vld [vmem:[%s371 + $0x90] sm:$0xff]
      %v391 = vld [vmem:[%s371 + $0x98] sm:$0xff]
      %v392 = vld [vmem:[%s371 + $0xa0] sm:$0xff]
      %v393 = vld [vmem:[%s371 + $0xa8] sm:$0xff]
      %v394 = vld [vmem:[%s371 + $0xb0] sm:$0xff]
      %v395 = vld [vmem:[%s371 + $0xb8] sm:$0xff]
      %v396 = vld [vmem:[%s371 + $0xc0] sm:$0xff]
      %v397 = vld [vmem:[%s371 + $0xc8] sm:$0xff]
      %v398 = vld [vmem:[%s371 + $0xd0] sm:$0xff]
      %v399 = vld [vmem:[%s371 + $0xd8] sm:$0xff]
      %v400 = vld [vmem:[%s371 + $0xe0] sm:$0xff]
      %v401 = vld [vmem:[%s371 + $0xe8] sm:$0xff]
      %v402 = vld [vmem:[%s371 + $0xf0] sm:$0xff]
      %v403 = vld [vmem:[%s371 + $0xf8] sm:$0xff]
      %v404 = vld [vmem:[%s371 + $0x100] sm:$0xff]
      %v405 = vld [vmem:[%s371 + $0x108] sm:$0xff]
      %v406 = vld [vmem:[%s371 + $0x110] sm:$0xff]
      %v407 = vld [vmem:[%s371 + $0x118] sm:$0xff]
      %v408 = vld [vmem:[%s371 + $0x120] sm:$0xff]
      %v409 = vld [vmem:[%s371 + $0x128] sm:$0xff]
      %v410 = vld [vmem:[%s371 + $0x130] sm:$0xff]
      %v411 = vld [vmem:[%s371 + $0x138] sm:$0xff]
      %v412 = vld [vmem:[%s371 + $0x140] sm:$0xff]
      %v413 = vld [vmem:[%s371 + $0x148] sm:$0xff]
      %v414 = vld [vmem:[%s371 + $0x150] sm:$0xff]
      %v415 = vld [vmem:[%s371 + $0x158] sm:$0xff]
      %v416 = vld [vmem:[%s371 + $0x160] sm:$0xff]
      %v417 = vld [vmem:[%s371 + $0x168] sm:$0xff]
      %v418 = vld [vmem:[%s371 + $0x170] sm:$0xff]
      %v419 = vld [vmem:[%s371 + $0x178] sm:$0xff]
      %v420 = vld [vmem:[%s371 + $0x180] sm:$0xff]
      %v421 = vld [vmem:[%s371 + $0x188] sm:$0xff]
      %v422 = vld [vmem:[%s371 + $0x190] sm:$0xff]
      %v423 = vld [vmem:[%s371 + $0x198] sm:$0xff]
      %v424 = vld [vmem:[%s371 + $0x1a0] sm:$0xff]
      %v425 = vld [vmem:[%s371 + $0x1a8] sm:$0xff]
      %v426 = vld [vmem:[%s371 + $0x1b0] sm:$0xff]
      %v427 = vld [vmem:[%s371 + $0x1b8] sm:$0xff]
      %v428 = vld [vmem:[%s371 + $0x1c0] sm:$0xff]
      %v429 = vld [vmem:[%s371 + $0x1c8] sm:$0xff]
      %v430 = vld [vmem:[%s371 + $0x1d0] sm:$0xff]
      %v431 = vld [vmem:[%s371 + $0x1d8] sm:$0xff]
      %v432 = vld [vmem:[%s371 + $0x1e0] sm:$0xff]
      %v433 = vld [vmem:[%s371 + $0x1e8] sm:$0xff]
      %v434 = vld [vmem:[%s371 + $0x1f0] sm:$0xff]
      %v435 = vld [vmem:[%s371 + $0x1f8] sm:$0xff]
      %v436 = vld [vmem:[%s371 + $0x200] sm:$0xff]
      %v437 = vld [vmem:[%s371 + $0x208] sm:$0xff]
      %v438 = vld [vmem:[%s371 + $0x210] sm:$0xff]
      %v439 = vld [vmem:[%s371 + $0x218] sm:$0xff]
      %v440 = vld [vmem:[%s371 + $0x220] sm:$0xff]
      %v441 = vld [vmem:[%s371 + $0x228] sm:$0xff]
      %v442 = vld [vmem:[%s371 + $0x230] sm:$0xff]
      %v443 = vld [vmem:[%s371 + $0x238] sm:$0xff]
      %v444 = vld [vmem:[%s371 + $0x240] sm:$0xff]
      %v445 = vld [vmem:[%s371 + $0x248] sm:$0xff]
      %v446 = vld [vmem:[%s371 + $0x250] sm:$0xff]
      %v447 = vld [vmem:[%s371 + $0x258] sm:$0xff]
      %v448 = vld [vmem:[%s371 + $0x260] sm:$0xff]
      %v449 = vld [vmem:[%s371 + $0x268] sm:$0xff]
      %v450 = vld [vmem:[%s371 + $0x270] sm:$0xff]
      %v451 = vld [vmem:[%s371 + $0x278] sm:$0xff]
      %v452 = vld [vmem:[%s371 + $0x280] sm:$0xff]
      %v453 = vld [vmem:[%s371 + $0x288] sm:$0xff]
      %v454 = vld [vmem:[%s371 + $0x290] sm:$0xff]
      %v455 = vld [vmem:[%s371 + $0x298] sm:$0xff]
      %v456 = vpack.c.bf16 %v373, %v372
      %v457 = vpack.c.bf16 %v375, %v374
      %v458 = vpack.c.bf16 %v377, %v376
      %v459 = vpack.c.bf16 %v379, %v378
      %v460 = vpack.c.bf16 %v381, %v380
      %v461 = vpack.c.bf16 %v383, %v382
      %v462 = vpack.c.bf16 %v385, %v384
      %v463 = vpack.c.bf16 %v387, %v386
      %v464 = vpack.c.bf16 %v389, %v388
      %v465 = vpack.c.bf16 %v391, %v390
      %v466 = vpack.c.bf16 %v393, %v392
      %v467 = vpack.c.bf16 %v395, %v394
      %v468 = vpack.c.bf16 %v397, %v396
      %v469 = vpack.c.bf16 %v399, %v398
      %v470 = vpack.c.bf16 %v401, %v400
      %v471 = vpack.c.bf16 %v403, %v402
      %v472 = vpack.c.bf16 %v405, %v404
      %v473 = vpack.c.bf16 %v407, %v406
      %v474 = vpack.c.bf16 %v409, %v408
      %v475 = vpack.c.bf16 %v411, %v410
      %v476 = vpack.c.bf16 %v413, %v412
      %v477 = vpack.c.bf16 %v415, %v414
      %v478 = vpack.c.bf16 %v417, %v416
      %v479 = vpack.c.bf16 %v419, %v418
      %v480 = vpack.c.bf16 %v421, %v420
      %v481 = vpack.c.bf16 %v423, %v422
      %v482 = vpack.c.bf16 %v425, %v424
      %v483 = vpack.c.bf16 %v427, %v426
      %v484 = vpack.c.bf16 %v429, %v428
      %v485 = vpack.c.bf16 %v431, %v430
      %v486 = vpack.c.bf16 %v433, %v432
      %v487 = vpack.c.bf16 %v435, %v434
      %v488 = vpack.c.bf16 %v437, %v436
      %v489 = vpack.c.bf16 %v439, %v438
      %v490 = vpack.c.bf16 %v441, %v440
      %v491 = vpack.c.bf16 %v443, %v442
      %v492 = vpack.c.bf16 %v445, %v444
      %v493 = vpack.c.bf16 %v447, %v446
      %v494 = vpack.c.bf16 %v449, %v448
      %v495 = vpack.c.bf16 %v451, %v450
      %v496 = vpack.c.bf16 %v453, %v452
      %v497 = vpack.c.bf16 %v455, %v454
      %s498 = scalar_lea.vmem %s223, 2
      %v499 = vld [vmem:[%s498] sm:$0x3]
      %vm500 = vcmask 23552
      %v502 = vsel %vm500, %v456, 0
      %v505 = vsel %vm500, %v457, 0
      %v508 = vsel %vm500, %v458, 0
      %v511 = vsel %vm500, %v459, 0
      %v514 = vsel %vm500, %v460, 0
      %v517 = vsel %vm500, %v461, 0
      %v520 = vsel %vm500, %v462, 0
      %v523 = vsel %vm500, %v463, 0
      %v526 = vsel %vm500, %v464, 0
      %v529 = vsel %vm500, %v465, 0
      %v532 = vsel %vm500, %v466, 0
      %v535 = vsel %vm500, %v467, 0
      %v538 = vsel %vm500, %v468, 0
      %v541 = vsel %vm500, %v469, 0
      %v544 = vsel %vm500, %v470, 0
      %v547 = vsel %vm500, %v471, 0
      %v550 = vsel %vm500, %v472, 0
      %v553 = vsel %vm500, %v473, 0
      %v556 = vsel %vm500, %v474, 0
      %v559 = vsel %vm500, %v475, 0
      %v562 = vsel %vm500, %v476, 0
      %v565 = vsel %vm500, %v477, 0
      %v568 = vsel %vm500, %v478, 0
      %v571 = vsel %vm500, %v479, 0
      %v574 = vsel %vm500, %v480, 0
      %v577 = vsel %vm500, %v481, 0
      %v580 = vsel %vm500, %v482, 0
      %v583 = vsel %vm500, %v483, 0
      %v586 = vsel %vm500, %v484, 0
      %v589 = vsel %vm500, %v485, 0
      %v592 = vsel %vm500, %v486, 0
      %v595 = vsel %vm500, %v487, 0
      %v598 = vsel %vm500, %v488, 0
      %v601 = vsel %vm500, %v489, 0
      %v604 = vsel %vm500, %v490, 0
      %v607 = vsel %vm500, %v491, 0
      %v610 = vsel %vm500, %v492, 0
      %v613 = vsel %vm500, %v493, 0
      %v616 = vsel %vm500, %v494, 0
      %v619 = vsel %vm500, %v495, 0
      %v622 = vsel %vm500, %v496, 0
      %v625 = vsel %vm500, %v497, 0
      %vm627 = vcmask 1040384
      %vm628 = vcmask 1041408
      %v629 = vsel %vm627, 4294967295, 65535
      %v630 = vsel %vm628, %v629, 0
      %v632 = vand.u32 %v499, %v630
      %634 = vmatprep.subr.bf16.mxu0 0
      %635 = vmatpush1.bf16.msra.mxu0 0
      %636 = vmatprep.subr.bf16.mxu0 0
      %637 = vmatpush1.bf16.msra.mxu0 0
      %638 = vmatprep.subr.bf16.mxu0 0
      %639 = vmatpush1.bf16.msra.mxu0 0
      %640 = vmatprep.subr.bf16.mxu0 0
      %641 = vmatpush1.bf16.msra.mxu0 0
      %642 = vmatprep.subr.bf16.mxu0 0
      %643 = vmatpush1.bf16.msra.mxu0 0
      %644 = vmatprep.subr.bf16.mxu0 0
      %645 = vmatpush1.bf16.msra.mxu0 0
      %646 = vmatprep.subr.bf16.mxu0 0
      %647 = vmatpush1.bf16.msra.mxu0 0
      %648 = vmatprep.subr.bf16.mxu0 0
      %649 = vmatpush1.bf16.msra.mxu0 %v632
      %650 = vmatprep.subr.bf16.mxu0 0
      %651 = vmatpush2.bf16.msra.mxu0 0
      %652 = vmatprep.subr.bf16.mxu0 0
      %653 = vmatpush2.bf16.msra.mxu0 0
      %654 = vmatprep.subr.bf16.mxu0 0
      %655 = vmatpush2.bf16.msra.mxu0 0
      %656 = vmatprep.subr.bf16.mxu0 0
      %657 = vmatpush2.bf16.msra.mxu0 0
      %658 = vmatprep.subr.bf16.mxu0 0
      %659 = vmatpush2.bf16.msra.mxu0 0
      %660 = vmatprep.subr.bf16.mxu0 0
      %661 = vmatpush2.bf16.msra.mxu0 0
      %662 = vmatprep.subr.bf16.mxu0 0
      %663 = vmatpush2.bf16.msra.mxu0 0
      %664 = vmatprep.subr.bf16.mxu0 0
      %665 = vmatpush2.bf16.msra.mxu0 0
      %666 = vmatprep.mubr.bf16.mxu0 0
      %667 = vmatmul.mubr.bf16.gmra.mxu0 %v502
      %v668 = vpop.f32.mrf.mxu0
      %v669 = vadd.f32 0.0, %v668
      %v670 = vpop.f32.mrf.mxu0
      %v671 = vpop.f32.mrf.mxu0
      %v672 = vadd.f32 0.0, %v671
      %v673 = vpop.f32.mrf.mxu0
      %674 = vmatprep.mubr.bf16.mxu0 0
      %675 = vmatmul.mubr.bf16.gmra.mxu0 %v505
      %v676 = vpop.f32.mrf.mxu0
      %v677 = vadd.f32 0.0, %v676
      %v678 = vpop.f32.mrf.mxu0
      %v679 = vpop.f32.mrf.mxu0
      %v680 = vadd.f32 0.0, %v679
      %v681 = vpop.f32.mrf.mxu0
      %682 = vmatprep.mubr.bf16.mxu0 0
      %683 = vmatmul.mubr.bf16.gmra.mxu0 %v508
      %v684 = vpop.f32.mrf.mxu0
      %v685 = vadd.f32 0.0, %v684
      %v686 = vpop.f32.mrf.mxu0
      %v687 = vpop.f32.mrf.mxu0
      %v688 = vadd.f32 0.0, %v687
      %v689 = vpop.f32.mrf.mxu0
      %690 = vmatprep.mubr.bf16.mxu0 0
      %691 = vmatmul.mubr.bf16.gmra.mxu0 %v511
      %v692 = vpop.f32.mrf.mxu0
      %v693 = vadd.f32 0.0, %v692
      %v694 = vpop.f32.mrf.mxu0
      %v695 = vpop.f32.mrf.mxu0
      %v696 = vadd.f32 0.0, %v695
      %v697 = vpop.f32.mrf.mxu0
      %698 = vmatprep.mubr.bf16.mxu0 0
      %699 = vmatmul.mubr.bf16.gmra.mxu0 %v514
      %v700 = vpop.f32.mrf.mxu0
      %v701 = vadd.f32 0.0, %v700
      %v702 = vpop.f32.mrf.mxu0
      %v703 = vpop.f32.mrf.mxu0
      %v704 = vadd.f32 0.0, %v703
      %v705 = vpop.f32.mrf.mxu0
      %706 = vmatprep.mubr.bf16.mxu0 0
      %707 = vmatmul.mubr.bf16.gmra.mxu0 %v517
      %v708 = vpop.f32.mrf.mxu0
      %v709 = vadd.f32 0.0, %v708
      %v710 = vpop.f32.mrf.mxu0
      %v711 = vpop.f32.mrf.mxu0
      %v712 = vadd.f32 0.0, %v711
      %v713 = vpop.f32.mrf.mxu0
      %714 = vmatprep.mubr.bf16.mxu0 0
      %715 = vmatmul.mubr.bf16.gmra.mxu0 %v520
      %v716 = vpop.f32.mrf.mxu0
      %v717 = vadd.f32 0.0, %v716
      %v718 = vpop.f32.mrf.mxu0
      %v719 = vpop.f32.mrf.mxu0
      %v720 = vadd.f32 0.0, %v719
      %v721 = vpop.f32.mrf.mxu0
      %722 = vmatprep.mubr.bf16.mxu0 0
      %723 = vmatmul.mubr.bf16.gmra.mxu0 %v523
      %v724 = vpop.f32.mrf.mxu0
      %v725 = vadd.f32 0.0, %v724
      %v726 = vpop.f32.mrf.mxu0
      %v727 = vpop.f32.mrf.mxu0
      %v728 = vadd.f32 0.0, %v727
      %v729 = vpop.f32.mrf.mxu0
      %730 = vmatprep.mubr.bf16.mxu0 0
      %731 = vmatmul.mubr.bf16.gmra.mxu0 %v526
      %v732 = vpop.f32.mrf.mxu0
      %v733 = vadd.f32 0.0, %v732
      %v734 = vpop.f32.mrf.mxu0
      %v735 = vpop.f32.mrf.mxu0
      %v736 = vadd.f32 0.0, %v735
      %v737 = vpop.f32.mrf.mxu0
      %738 = vmatprep.mubr.bf16.mxu0 0
      %739 = vmatmul.mubr.bf16.gmra.mxu0 %v529
      %v740 = vpop.f32.mrf.mxu0
      %v741 = vadd.f32 0.0, %v740
      %v742 = vpop.f32.mrf.mxu0
      %v743 = vpop.f32.mrf.mxu0
      %v744 = vadd.f32 0.0, %v743
      %v745 = vpop.f32.mrf.mxu0
      %746 = vmatprep.mubr.bf16.mxu0 0
      %747 = vmatmul.mubr.bf16.gmra.mxu0 %v532
      %v748 = vpop.f32.mrf.mxu0
      %v749 = vadd.f32 0.0, %v748
      %v750 = vpop.f32.mrf.mxu0
      %v751 = vpop.f32.mrf.mxu0
      %v752 = vadd.f32 0.0, %v751
      %v753 = vpop.f32.mrf.mxu0
      %754 = vmatprep.mubr.bf16.mxu0 0
      %755 = vmatmul.mubr.bf16.gmra.mxu0 %v535
      %v756 = vpop.f32.mrf.mxu0
      %v757 = vadd.f32 0.0, %v756
      %v758 = vpop.f32.mrf.mxu0
      %v759 = vpop.f32.mrf.mxu0
      %v760 = vadd.f32 0.0, %v759
      %v761 = vpop.f32.mrf.mxu0
      %762 = vmatprep.mubr.bf16.mxu0 0
      %763 = vmatmul.mubr.bf16.gmra.mxu0 %v538
      %v764 = vpop.f32.mrf.mxu0
      %v765 = vadd.f32 0.0, %v764
      %v766 = vpop.f32.mrf.mxu0
      %v767 = vpop.f32.mrf.mxu0
      %v768 = vadd.f32 0.0, %v767
      %v769 = vpop.f32.mrf.mxu0
      %770 = vmatprep.mubr.bf16.mxu0 0
      %771 = vmatmul.mubr.bf16.gmra.mxu0 %v541
      %v772 = vpop.f32.mrf.mxu0
      %v773 = vadd.f32 0.0, %v772
      %v774 = vpop.f32.mrf.mxu0
      %v775 = vpop.f32.mrf.mxu0
      %v776 = vadd.f32 0.0, %v775
      %v777 = vpop.f32.mrf.mxu0
      %778 = vmatprep.mubr.bf16.mxu0 0
      %779 = vmatmul.mubr.bf16.gmra.mxu0 %v544
      %v780 = vpop.f32.mrf.mxu0
      %v781 = vadd.f32 0.0, %v780
      %v782 = vpop.f32.mrf.mxu0
      %v783 = vpop.f32.mrf.mxu0
      %v784 = vadd.f32 0.0, %v783
      %v785 = vpop.f32.mrf.mxu0
      %786 = vmatprep.mubr.bf16.mxu0 0
      %787 = vmatmul.mubr.bf16.gmra.mxu0 %v547
      %v788 = vpop.f32.mrf.mxu0
      %v789 = vadd.f32 0.0, %v788
      %v790 = vpop.f32.mrf.mxu0
      %v791 = vpop.f32.mrf.mxu0
      %v792 = vadd.f32 0.0, %v791
      %v793 = vpop.f32.mrf.mxu0
      %794 = vmatprep.mubr.bf16.mxu0 0
      %795 = vmatmul.mubr.bf16.gmra.mxu0 %v550
      %v796 = vpop.f32.mrf.mxu0
      %v797 = vadd.f32 0.0, %v796
      %v798 = vpop.f32.mrf.mxu0
      %v799 = vpop.f32.mrf.mxu0
      %v800 = vadd.f32 0.0, %v799
      %v801 = vpop.f32.mrf.mxu0
      %802 = vmatprep.mubr.bf16.mxu0 0
      %803 = vmatmul.mubr.bf16.gmra.mxu0 %v553
      %v804 = vpop.f32.mrf.mxu0
      %v805 = vadd.f32 0.0, %v804
      %v806 = vpop.f32.mrf.mxu0
      %v807 = vpop.f32.mrf.mxu0
      %v808 = vadd.f32 0.0, %v807
      %v809 = vpop.f32.mrf.mxu0
      %810 = vmatprep.mubr.bf16.mxu0 0
      %811 = vmatmul.mubr.bf16.gmra.mxu0 %v556
      %v812 = vpop.f32.mrf.mxu0
      %v813 = vadd.f32 0.0, %v812
      %v814 = vpop.f32.mrf.mxu0
      %v815 = vpop.f32.mrf.mxu0
      %v816 = vadd.f32 0.0, %v815
      %v817 = vpop.f32.mrf.mxu0
      %818 = vmatprep.mubr.bf16.mxu0 0
      %819 = vmatmul.mubr.bf16.gmra.mxu0 %v559
      %v820 = vpop.f32.mrf.mxu0
      %v821 = vadd.f32 0.0, %v820
      %v822 = vpop.f32.mrf.mxu0
      %v823 = vpop.f32.mrf.mxu0
      %v824 = vadd.f32 0.0, %v823
      %v825 = vpop.f32.mrf.mxu0
      %826 = vmatprep.mubr.bf16.mxu0 0
      %827 = vmatmul.mubr.bf16.gmra.mxu0 %v562
      %v828 = vpop.f32.mrf.mxu0
      %v829 = vadd.f32 0.0, %v828
      %v830 = vpop.f32.mrf.mxu0
      %v831 = vpop.f32.mrf.mxu0
      %v832 = vadd.f32 0.0, %v831
      %v833 = vpop.f32.mrf.mxu0
      %834 = vmatprep.mubr.bf16.mxu0 0
      %835 = vmatmul.mubr.bf16.gmra.mxu0 %v565
      %v836 = vpop.f32.mrf.mxu0
      %v837 = vadd.f32 0.0, %v836
      %v838 = vpop.f32.mrf.mxu0
      %v839 = vpop.f32.mrf.mxu0
      %v840 = vadd.f32 0.0, %v839
      %v841 = vpop.f32.mrf.mxu0
      %842 = vmatprep.mubr.bf16.mxu0 0
      %843 = vmatmul.mubr.bf16.gmra.mxu0 %v568
      %v844 = vpop.f32.mrf.mxu0
      %v845 = vadd.f32 0.0, %v844
      %v846 = vpop.f32.mrf.mxu0
      %v847 = vpop.f32.mrf.mxu0
      %v848 = vadd.f32 0.0, %v847
      %v849 = vpop.f32.mrf.mxu0
      %850 = vmatprep.mubr.bf16.mxu0 0
      %851 = vmatmul.mubr.bf16.gmra.mxu0 %v571
      %v852 = vpop.f32.mrf.mxu0
      %v853 = vadd.f32 0.0, %v852
      %v854 = vpop.f32.mrf.mxu0
      %v855 = vpop.f32.mrf.mxu0
      %v856 = vadd.f32 0.0, %v855
      %v857 = vpop.f32.mrf.mxu0
      %858 = vmatprep.mubr.bf16.mxu0 0
      %859 = vmatmul.mubr.bf16.gmra.mxu0 %v574
      %v860 = vpop.f32.mrf.mxu0
      %v861 = vadd.f32 0.0, %v860
      %v862 = vpop.f32.mrf.mxu0
      %v863 = vpop.f32.mrf.mxu0
      %v864 = vadd.f32 0.0, %v863
      %v865 = vpop.f32.mrf.mxu0
      %866 = vmatprep.mubr.bf16.mxu0 0
      %867 = vmatmul.mubr.bf16.gmra.mxu0 %v577
      %v868 = vpop.f32.mrf.mxu0
      %v869 = vadd.f32 0.0, %v868
      %v870 = vpop.f32.mrf.mxu0
      %v871 = vpop.f32.mrf.mxu0
      %v872 = vadd.f32 0.0, %v871
      %v873 = vpop.f32.mrf.mxu0
      %874 = vmatprep.mubr.bf16.mxu0 0
      %875 = vmatmul.mubr.bf16.gmra.mxu0 %v580
      %v876 = vpop.f32.mrf.mxu0
      %v877 = vadd.f32 0.0, %v876
      %v878 = vpop.f32.mrf.mxu0
      %v879 = vpop.f32.mrf.mxu0
      %v880 = vadd.f32 0.0, %v879
      %v881 = vpop.f32.mrf.mxu0
      %882 = vmatprep.mubr.bf16.mxu0 0
      %883 = vmatmul.mubr.bf16.gmra.mxu0 %v583
      %v884 = vpop.f32.mrf.mxu0
      %v885 = vadd.f32 0.0, %v884
      %v886 = vpop.f32.mrf.mxu0
      %v887 = vpop.f32.mrf.mxu0
      %v888 = vadd.f32 0.0, %v887
      %v889 = vpop.f32.mrf.mxu0
      %890 = vmatprep.mubr.bf16.mxu0 0
      %891 = vmatmul.mubr.bf16.gmra.mxu0 %v586
      %v892 = vpop.f32.mrf.mxu0
      %v893 = vadd.f32 0.0, %v892
      %v894 = vpop.f32.mrf.mxu0
      %v895 = vpop.f32.mrf.mxu0
      %v896 = vadd.f32 0.0, %v895
      %v897 = vpop.f32.mrf.mxu0
      %898 = vmatprep.mubr.bf16.mxu0 0
      %899 = vmatmul.mubr.bf16.gmra.mxu0 %v589
      %v900 = vpop.f32.mrf.mxu0
      %v901 = vadd.f32 0.0, %v900
      %v902 = vpop.f32.mrf.mxu0
      %v903 = vpop.f32.mrf.mxu0
      %v904 = vadd.f32 0.0, %v903
      %v905 = vpop.f32.mrf.mxu0
      %906 = vmatprep.mubr.bf16.mxu0 0
      %907 = vmatmul.mubr.bf16.gmra.mxu0 %v592
      %v908 = vpop.f32.mrf.mxu0
      %v909 = vadd.f32 0.0, %v908
      %v910 = vpop.f32.mrf.mxu0
      %v911 = vpop.f32.mrf.mxu0
      %v912 = vadd.f32 0.0, %v911
      %v913 = vpop.f32.mrf.mxu0
      %914 = vmatprep.mubr.bf16.mxu0 0
      %915 = vmatmul.mubr.bf16.gmra.mxu0 %v595
      %v916 = vpop.f32.mrf.mxu0
      %v917 = vadd.f32 0.0, %v916
      %v918 = vpop.f32.mrf.mxu0
      %v919 = vpop.f32.mrf.mxu0
      %v920 = vadd.f32 0.0, %v919
      %v921 = vpop.f32.mrf.mxu0
      %922 = vmatprep.mubr.bf16.mxu0 0
      %923 = vmatmul.mubr.bf16.gmra.mxu0 %v598
      %v924 = vpop.f32.mrf.mxu0
      %v925 = vadd.f32 0.0, %v924
      %v926 = vpop.f32.mrf.mxu0
      %v927 = vpop.f32.mrf.mxu0
      %v928 = vadd.f32 0.0, %v927
      %v929 = vpop.f32.mrf.mxu0
      %930 = vmatprep.mubr.bf16.mxu0 0
      %931 = vmatmul.mubr.bf16.gmra.mxu0 %v601
      %v932 = vpop.f32.mrf.mxu0
      %v933 = vadd.f32 0.0, %v932
      %v934 = vpop.f32.mrf.mxu0
      %v935 = vpop.f32.mrf.mxu0
      %v936 = vadd.f32 0.0, %v935
      %v937 = vpop.f32.mrf.mxu0
      %938 = vmatprep.mubr.bf16.mxu0 0
      %939 = vmatmul.mubr.bf16.gmra.mxu0 %v604
      %v940 = vpop.f32.mrf.mxu0
      %v941 = vadd.f32 0.0, %v940
      %v942 = vpop.f32.mrf.mxu0
      %v943 = vpop.f32.mrf.mxu0
      %v944 = vadd.f32 0.0, %v943
      %v945 = vpop.f32.mrf.mxu0
      %946 = vmatprep.mubr.bf16.mxu0 0
      %947 = vmatmul.mubr.bf16.gmra.mxu0 %v607
      %v948 = vpop.f32.mrf.mxu0
      %v949 = vadd.f32 0.0, %v948
      %v950 = vpop.f32.mrf.mxu0
      %v951 = vpop.f32.mrf.mxu0
      %v952 = vadd.f32 0.0, %v951
      %v953 = vpop.f32.mrf.mxu0
      %954 = vmatprep.mubr.bf16.mxu0 0
      %955 = vmatmul.mubr.bf16.gmra.mxu0 %v610
      %v956 = vpop.f32.mrf.mxu0
      %v957 = vadd.f32 0.0, %v956
      %v958 = vpop.f32.mrf.mxu0
      %v959 = vpop.f32.mrf.mxu0
      %v960 = vadd.f32 0.0, %v959
      %v961 = vpop.f32.mrf.mxu0
      %962 = vmatprep.mubr.bf16.mxu0 0
      %963 = vmatmul.mubr.bf16.gmra.mxu0 %v613
      %v964 = vpop.f32.mrf.mxu0
      %v965 = vadd.f32 0.0, %v964
      %v966 = vpop.f32.mrf.mxu0
      %v967 = vpop.f32.mrf.mxu0
      %v968 = vadd.f32 0.0, %v967
      %v969 = vpop.f32.mrf.mxu0
      %970 = vmatprep.mubr.bf16.mxu0 0
      %971 = vmatmul.mubr.bf16.gmra.mxu0 %v616
      %v972 = vpop.f32.mrf.mxu0
      %v973 = vadd.f32 0.0, %v972
      %v974 = vpop.f32.mrf.mxu0
      %v975 = vpop.f32.mrf.mxu0
      %v976 = vadd.f32 0.0, %v975
      %v977 = vpop.f32.mrf.mxu0
      %978 = vmatprep.mubr.bf16.mxu0 0
      %979 = vmatmul.mubr.bf16.gmra.mxu0 %v619
      %v980 = vpop.f32.mrf.mxu0
      %v981 = vadd.f32 0.0, %v980
      %v982 = vpop.f32.mrf.mxu0
      %v983 = vpop.f32.mrf.mxu0
      %v984 = vadd.f32 0.0, %v983
      %v985 = vpop.f32.mrf.mxu0
      %986 = vmatprep.mubr.bf16.mxu0 0
      %987 = vmatmul.mubr.bf16.gmra.mxu0 %v622
      %v988 = vpop.f32.mrf.mxu0
      %v989 = vadd.f32 0.0, %v988
      %v990 = vpop.f32.mrf.mxu0
      %v991 = vpop.f32.mrf.mxu0
      %v992 = vadd.f32 0.0, %v991
      %v993 = vpop.f32.mrf.mxu0
      %994 = vmatprep.mubr.bf16.mxu0 0
      %995 = vmatmul.mubr.bf16.gmra.mxu0 %v625
      %v996 = vpop.f32.mrf.mxu0
      %v997 = vadd.f32 0.0, %v996
      %v998 = vpop.f32.mrf.mxu0
      %v999 = vpop.f32.mrf.mxu0
      %v1000 = vadd.f32 0.0, %v999
      %v1001 = vpop.f32.mrf.mxu0
      %1002 = vdwg.mxu0
      %v1004 = vsel %vm500, %v327, 0
      %v1007 = vsel %vm500, %v328, 0
      %v1010 = vsel %vm500, %v329, 0
      %v1013 = vsel %vm500, %v330, 0
      %v1016 = vsel %vm500, %v331, 0
      %v1019 = vsel %vm500, %v332, 0
      %v1022 = vsel %vm500, %v333, 0
      %v1025 = vsel %vm500, %v334, 0
      %v1028 = vsel %vm500, %v335, 0
      %v1031 = vsel %vm500, %v336, 0
      %v1034 = vsel %vm500, %v337, 0
      %v1037 = vsel %vm500, %v338, 0
      %v1040 = vsel %vm500, %v339, 0
      %v1043 = vsel %vm500, %v340, 0
      %v1046 = vsel %vm500, %v341, 0
      %v1049 = vsel %vm500, %v342, 0
      %v1052 = vsel %vm500, %v343, 0
      %v1055 = vsel %vm500, %v344, 0
      %v1058 = vsel %vm500, %v345, 0
      %v1061 = vsel %vm500, %v346, 0
      %v1064 = vsel %vm500, %v347, 0
      %v1067 = vsel %vm500, %v348, 0
      %v1070 = vsel %vm500, %v349, 0
      %v1073 = vsel %vm500, %v350, 0
      %v1076 = vsel %vm500, %v351, 0
      %v1079 = vsel %vm500, %v352, 0
      %v1082 = vsel %vm500, %v353, 0
      %v1085 = vsel %vm500, %v354, 0
      %v1088 = vsel %vm500, %v355, 0
      %v1091 = vsel %vm500, %v356, 0
      %v1094 = vsel %vm500, %v357, 0
      %v1097 = vsel %vm500, %v358, 0
      %v1100 = vsel %vm500, %v359, 0
      %v1103 = vsel %vm500, %v360, 0
      %v1106 = vsel %vm500, %v361, 0
      %v1109 = vsel %vm500, %v362, 0
      %v1112 = vsel %vm500, %v363, 0
      %v1115 = vsel %vm500, %v364, 0
      %v1118 = vsel %vm500, %v365, 0
      %v1121 = vsel %vm500, %v366, 0
      %v1124 = vsel %vm500, %v367, 0
      %v1127 = vsel %vm500, %v368, 0
      %v1130 = vand.u32 %v369, %v630
      %1132 = vmatprep.subr.bf16.mxu0 0
      %1133 = vmatpush1.bf16.msra.mxu0 0
      %1134 = vmatprep.subr.bf16.mxu0 0
      %1135 = vmatpush1.bf16.msra.mxu0 0
      %1136 = vmatprep.subr.bf16.mxu0 0
      %1137 = vmatpush1.bf16.msra.mxu0 0
      %1138 = vmatprep.subr.bf16.mxu0 0
      %1139 = vmatpush1.bf16.msra.mxu0 0
      %1140 = vmatprep.subr.bf16.mxu0 0
      %1141 = vmatpush1.bf16.msra.mxu0 0
      %1142 = vmatprep.subr.bf16.mxu0 0
      %1143 = vmatpush1.bf16.msra.mxu0 0
      %1144 = vmatprep.subr.bf16.mxu0 0
      %1145 = vmatpush1.bf16.msra.mxu0 0
      %1146 = vmatprep.subr.bf16.mxu0 0
      %1147 = vmatpush1.bf16.msra.mxu0 %v1130
      %1148 = vmatprep.subr.bf16.mxu0 0
      %1149 = vmatpush2.bf16.msra.mxu0 0
      %1150 = vmatprep.subr.bf16.mxu0 0
      %1151 = vmatpush2.bf16.msra.mxu0 0
      %1152 = vmatprep.subr.bf16.mxu0 0
      %1153 = vmatpush2.bf16.msra.mxu0 0
      %1154 = vmatprep.subr.bf16.mxu0 0
      %1155 = vmatpush2.bf16.msra.mxu0 0
      %1156 = vmatprep.subr.bf16.mxu0 0
      %1157 = vmatpush2.bf16.msra.mxu0 0
      %1158 = vmatprep.subr.bf16.mxu0 0
      %1159 = vmatpush2.bf16.msra.mxu0 0
      %1160 = vmatprep.subr.bf16.mxu0 0
      %1161 = vmatpush2.bf16.msra.mxu0 0
      %1162 = vmatprep.subr.bf16.mxu0 0
      %1163 = vmatpush2.bf16.msra.mxu0 0
      %1164 = vmatprep.mubr.bf16.mxu0 0
      %1165 = vmatmul.mubr.bf16.gmra.mxu0 %v1004
      %v1166 = vpop.f32.mrf.mxu0
      %v1167 = vadd.f32 %v669, %v1166
      %v1168 = vpop.f32.mrf.mxu0
      %v1169 = vpop.f32.mrf.mxu0
      %v1170 = vadd.f32 %v672, %v1169
      %v1171 = vpop.f32.mrf.mxu0
      %1172 = vmatprep.mubr.bf16.mxu0 0
      %1173 = vmatmul.mubr.bf16.gmra.mxu0 %v1007
      %v1174 = vpop.f32.mrf.mxu0
      %v1175 = vadd.f32 %v677, %v1174
      %v1176 = vpop.f32.mrf.mxu0
      %v1177 = vpop.f32.mrf.mxu0
      %v1178 = vadd.f32 %v680, %v1177
      %v1179 = vpop.f32.mrf.mxu0
      %1180 = vmatprep.mubr.bf16.mxu0 0
      %1181 = vmatmul.mubr.bf16.gmra.mxu0 %v1010
      %v1182 = vpop.f32.mrf.mxu0
      %v1183 = vadd.f32 %v685, %v1182
      %v1184 = vpop.f32.mrf.mxu0
      %v1185 = vpop.f32.mrf.mxu0
      %v1186 = vadd.f32 %v688, %v1185
      %v1187 = vpop.f32.mrf.mxu0
      %1188 = vmatprep.mubr.bf16.mxu0 0
      %1189 = vmatmul.mubr.bf16.gmra.mxu0 %v1013
      %v1190 = vpop.f32.mrf.mxu0
      %v1191 = vadd.f32 %v693, %v1190
      %v1192 = vpop.f32.mrf.mxu0
      %v1193 = vpop.f32.mrf.mxu0
      %v1194 = vadd.f32 %v696, %v1193
      %v1195 = vpop.f32.mrf.mxu0
      %1196 = vmatprep.mubr.bf16.mxu0 0
      %1197 = vmatmul.mubr.bf16.gmra.mxu0 %v1016
      %v1198 = vpop.f32.mrf.mxu0
      %v1199 = vadd.f32 %v701, %v1198
      %v1200 = vpop.f32.mrf.mxu0
      %v1201 = vpop.f32.mrf.mxu0
      %v1202 = vadd.f32 %v704, %v1201
      %v1203 = vpop.f32.mrf.mxu0
      %1204 = vmatprep.mubr.bf16.mxu0 0
      %1205 = vmatmul.mubr.bf16.gmra.mxu0 %v1019
      %v1206 = vpop.f32.mrf.mxu0
      %v1207 = vadd.f32 %v709, %v1206
      %v1208 = vpop.f32.mrf.mxu0
      %v1209 = vpop.f32.mrf.mxu0
      %v1210 = vadd.f32 %v712, %v1209
      %v1211 = vpop.f32.mrf.mxu0
      %1212 = vmatprep.mubr.bf16.mxu0 0
      %1213 = vmatmul.mubr.bf16.gmra.mxu0 %v1022
      %v1214 = vpop.f32.mrf.mxu0
      %v1215 = vadd.f32 %v717, %v1214
      %v1216 = vpop.f32.mrf.mxu0
      %v1217 = vpop.f32.mrf.mxu0
      %v1218 = vadd.f32 %v720, %v1217
      %v1219 = vpop.f32.mrf.mxu0
      %1220 = vmatprep.mubr.bf16.mxu0 0
      %1221 = vmatmul.mubr.bf16.gmra.mxu0 %v1025
      %v1222 = vpop.f32.mrf.mxu0
      %v1223 = vadd.f32 %v725, %v1222
      %v1224 = vpop.f32.mrf.mxu0
      %v1225 = vpop.f32.mrf.mxu0
      %v1226 = vadd.f32 %v728, %v1225
      %v1227 = vpop.f32.mrf.mxu0
      %1228 = vmatprep.mubr.bf16.mxu0 0
      %1229 = vmatmul.mubr.bf16.gmra.mxu0 %v1028
      %v1230 = vpop.f32.mrf.mxu0
      %v1231 = vadd.f32 %v733, %v1230
      %v1232 = vpop.f32.mrf.mxu0
      %v1233 = vpop.f32.mrf.mxu0
      %v1234 = vadd.f32 %v736, %v1233
      %v1235 = vpop.f32.mrf.mxu0
      %1236 = vmatprep.mubr.bf16.mxu0 0
      %1237 = vmatmul.mubr.bf16.gmra.mxu0 %v1031
      %v1238 = vpop.f32.mrf.mxu0
      %v1239 = vadd.f32 %v741, %v1238
      %v1240 = vpop.f32.mrf.mxu0
      %v1241 = vpop.f32.mrf.mxu0
      %v1242 = vadd.f32 %v744, %v1241
      %v1243 = vpop.f32.mrf.mxu0
      %1244 = vmatprep.mubr.bf16.mxu0 0
      %1245 = vmatmul.mubr.bf16.gmra.mxu0 %v1034
      %v1246 = vpop.f32.mrf.mxu0
      %v1247 = vadd.f32 %v749, %v1246
      %v1248 = vpop.f32.mrf.mxu0
      %v1249 = vpop.f32.mrf.mxu0
      %v1250 = vadd.f32 %v752, %v1249
      %v1251 = vpop.f32.mrf.mxu0
      %1252 = vmatprep.mubr.bf16.mxu0 0
      %1253 = vmatmul.mubr.bf16.gmra.mxu0 %v1037
      %v1254 = vpop.f32.mrf.mxu0
      %v1255 = vadd.f32 %v757, %v1254
      %v1256 = vpop.f32.mrf.mxu0
      %v1257 = vpop.f32.mrf.mxu0
      %v1258 = vadd.f32 %v760, %v1257
      %v1259 = vpop.f32.mrf.mxu0
      %1260 = vmatprep.mubr.bf16.mxu0 0
      %1261 = vmatmul.mubr.bf16.gmra.mxu0 %v1040
      %v1262 = vpop.f32.mrf.mxu0
      %v1263 = vadd.f32 %v765, %v1262
      %v1264 = vpop.f32.mrf.mxu0
      %v1265 = vpop.f32.mrf.mxu0
      %v1266 = vadd.f32 %v768, %v1265
      %v1267 = vpop.f32.mrf.mxu0
      %1268 = vmatprep.mubr.bf16.mxu0 0
      %1269 = vmatmul.mubr.bf16.gmra.mxu0 %v1043
      %v1270 = vpop.f32.mrf.mxu0
      %v1271 = vadd.f32 %v773, %v1270
      %v1272 = vpop.f32.mrf.mxu0
      %v1273 = vpop.f32.mrf.mxu0
      %v1274 = vadd.f32 %v776, %v1273
      %v1275 = vpop.f32.mrf.mxu0
      %1276 = vmatprep.mubr.bf16.mxu0 0
      %1277 = vmatmul.mubr.bf16.gmra.mxu0 %v1046
      %v1278 = vpop.f32.mrf.mxu0
      %v1279 = vadd.f32 %v781, %v1278
      %v1280 = vpop.f32.mrf.mxu0
      %v1281 = vpop.f32.mrf.mxu0
      %v1282 = vadd.f32 %v784, %v1281
      %v1283 = vpop.f32.mrf.mxu0
      %1284 = vmatprep.mubr.bf16.mxu0 0
      %1285 = vmatmul.mubr.bf16.gmra.mxu0 %v1049
      %v1286 = vpop.f32.mrf.mxu0
      %v1287 = vadd.f32 %v789, %v1286
      %v1288 = vpop.f32.mrf.mxu0
      %v1289 = vpop.f32.mrf.mxu0
      %v1290 = vadd.f32 %v792, %v1289
      %v1291 = vpop.f32.mrf.mxu0
      %1292 = vmatprep.mubr.bf16.mxu0 0
      %1293 = vmatmul.mubr.bf16.gmra.mxu0 %v1052
      %v1294 = vpop.f32.mrf.mxu0
      %v1295 = vadd.f32 %v797, %v1294
      %v1296 = vpop.f32.mrf.mxu0
      %v1297 = vpop.f32.mrf.mxu0
      %v1298 = vadd.f32 %v800, %v1297
      %v1299 = vpop.f32.mrf.mxu0
      %1300 = vmatprep.mubr.bf16.mxu0 0
      %1301 = vmatmul.mubr.bf16.gmra.mxu0 %v1055
      %v1302 = vpop.f32.mrf.mxu0
      %v1303 = vadd.f32 %v805, %v1302
      %v1304 = vpop.f32.mrf.mxu0
      %v1305 = vpop.f32.mrf.mxu0
      %v1306 = vadd.f32 %v808, %v1305
      %v1307 = vpop.f32.mrf.mxu0
      %1308 = vmatprep.mubr.bf16.mxu0 0
      %1309 = vmatmul.mubr.bf16.gmra.mxu0 %v1058
      %v1310 = vpop.f32.mrf.mxu0
      %v1311 = vadd.f32 %v813, %v1310
      %v1312 = vpop.f32.mrf.mxu0
      %v1313 = vpop.f32.mrf.mxu0
      %v1314 = vadd.f32 %v816, %v1313
      %v1315 = vpop.f32.mrf.mxu0
      %1316 = vmatprep.mubr.bf16.mxu0 0
      %1317 = vmatmul.mubr.bf16.gmra.mxu0 %v1061
      %v1318 = vpop.f32.mrf.mxu0
      %v1319 = vadd.f32 %v821, %v1318
      %v1320 = vpop.f32.mrf.mxu0
      %v1321 = vpop.f32.mrf.mxu0
      %v1322 = vadd.f32 %v824, %v1321
      %v1323 = vpop.f32.mrf.mxu0
      %1324 = vmatprep.mubr.bf16.mxu0 0
      %1325 = vmatmul.mubr.bf16.gmra.mxu0 %v1064
      %v1326 = vpop.f32.mrf.mxu0
      %v1327 = vadd.f32 %v829, %v1326
      %v1328 = vpop.f32.mrf.mxu0
      %v1329 = vpop.f32.mrf.mxu0
      %v1330 = vadd.f32 %v832, %v1329
      %v1331 = vpop.f32.mrf.mxu0
      %1332 = vmatprep.mubr.bf16.mxu0 0
      %1333 = vmatmul.mubr.bf16.gmra.mxu0 %v1067
      %v1334 = vpop.f32.mrf.mxu0
      %v1335 = vadd.f32 %v837, %v1334
      %v1336 = vpop.f32.mrf.mxu0
      %v1337 = vpop.f32.mrf.mxu0
      %v1338 = vadd.f32 %v840, %v1337
      %v1339 = vpop.f32.mrf.mxu0
      %1340 = vmatprep.mubr.bf16.mxu0 0
      %1341 = vmatmul.mubr.bf16.gmra.mxu0 %v1070
      %v1342 = vpop.f32.mrf.mxu0
      %v1343 = vadd.f32 %v845, %v1342
      %v1344 = vpop.f32.mrf.mxu0
      %v1345 = vpop.f32.mrf.mxu0
      %v1346 = vadd.f32 %v848, %v1345
      %v1347 = vpop.f32.mrf.mxu0
      %1348 = vmatprep.mubr.bf16.mxu0 0
      %1349 = vmatmul.mubr.bf16.gmra.mxu0 %v1073
      %v1350 = vpop.f32.mrf.mxu0
      %v1351 = vadd.f32 %v853, %v1350
      %v1352 = vpop.f32.mrf.mxu0
      %v1353 = vpop.f32.mrf.mxu0
      %v1354 = vadd.f32 %v856, %v1353
      %v1355 = vpop.f32.mrf.mxu0
      %1356 = vmatprep.mubr.bf16.mxu0 0
      %1357 = vmatmul.mubr.bf16.gmra.mxu0 %v1076
      %v1358 = vpop.f32.mrf.mxu0
      %v1359 = vadd.f32 %v861, %v1358
      %v1360 = vpop.f32.mrf.mxu0
      %v1361 = vpop.f32.mrf.mxu0
      %v1362 = vadd.f32 %v864, %v1361
      %v1363 = vpop.f32.mrf.mxu0
      %1364 = vmatprep.mubr.bf16.mxu0 0
      %1365 = vmatmul.mubr.bf16.gmra.mxu0 %v1079
      %v1366 = vpop.f32.mrf.mxu0
      %v1367 = vadd.f32 %v869, %v1366
      %v1368 = vpop.f32.mrf.mxu0
      %v1369 = vpop.f32.mrf.mxu0
      %v1370 = vadd.f32 %v872, %v1369
      %v1371 = vpop.f32.mrf.mxu0
      %1372 = vmatprep.mubr.bf16.mxu0 0
      %1373 = vmatmul.mubr.bf16.gmra.mxu0 %v1082
      %v1374 = vpop.f32.mrf.mxu0
      %v1375 = vadd.f32 %v877, %v1374
      %v1376 = vpop.f32.mrf.mxu0
      %v1377 = vpop.f32.mrf.mxu0
      %v1378 = vadd.f32 %v880, %v1377
      %v1379 = vpop.f32.mrf.mxu0
      %1380 = vmatprep.mubr.bf16.mxu0 0
      %1381 = vmatmul.mubr.bf16.gmra.mxu0 %v1085
      %v1382 = vpop.f32.mrf.mxu0
      %v1383 = vadd.f32 %v885, %v1382
      %v1384 = vpop.f32.mrf.mxu0
      %v1385 = vpop.f32.mrf.mxu0
      %v1386 = vadd.f32 %v888, %v1385
      %v1387 = vpop.f32.mrf.mxu0
      %1388 = vmatprep.mubr.bf16.mxu0 0
      %1389 = vmatmul.mubr.bf16.gmra.mxu0 %v1088
      %v1390 = vpop.f32.mrf.mxu0
      %v1391 = vadd.f32 %v893, %v1390
      %v1392 = vpop.f32.mrf.mxu0
      %v1393 = vpop.f32.mrf.mxu0
      %v1394 = vadd.f32 %v896, %v1393
      %v1395 = vpop.f32.mrf.mxu0
      %1396 = vmatprep.mubr.bf16.mxu0 0
      %1397 = vmatmul.mubr.bf16.gmra.mxu0 %v1091
      %v1398 = vpop.f32.mrf.mxu0
      %v1399 = vadd.f32 %v901, %v1398
      %v1400 = vpop.f32.mrf.mxu0
      %v1401 = vpop.f32.mrf.mxu0
      %v1402 = vadd.f32 %v904, %v1401
      %v1403 = vpop.f32.mrf.mxu0
      %1404 = vmatprep.mubr.bf16.mxu0 0
      %1405 = vmatmul.mubr.bf16.gmra.mxu0 %v1094
      %v1406 = vpop.f32.mrf.mxu0
      %v1407 = vadd.f32 %v909, %v1406
      %v1408 = vpop.f32.mrf.mxu0
      %v1409 = vpop.f32.mrf.mxu0
      %v1410 = vadd.f32 %v912, %v1409
      %v1411 = vpop.f32.mrf.mxu0
      %1412 = vmatprep.mubr.bf16.mxu0 0
      %1413 = vmatmul.mubr.bf16.gmra.mxu0 %v1097
      %v1414 = vpop.f32.mrf.mxu0
      %v1415 = vadd.f32 %v917, %v1414
      %v1416 = vpop.f32.mrf.mxu0
      %v1417 = vpop.f32.mrf.mxu0
      %v1418 = vadd.f32 %v920, %v1417
      %v1419 = vpop.f32.mrf.mxu0
      %1420 = vmatprep.mubr.bf16.mxu0 0
      %1421 = vmatmul.mubr.bf16.gmra.mxu0 %v1100
      %v1422 = vpop.f32.mrf.mxu0
      %v1423 = vadd.f32 %v925, %v1422
      %v1424 = vpop.f32.mrf.mxu0
      %v1425 = vpop.f32.mrf.mxu0
      %v1426 = vadd.f32 %v928, %v1425
      %v1427 = vpop.f32.mrf.mxu0
      %1428 = vmatprep.mubr.bf16.mxu0 0
      %1429 = vmatmul.mubr.bf16.gmra.mxu0 %v1103
      %v1430 = vpop.f32.mrf.mxu0
      %v1431 = vadd.f32 %v933, %v1430
      %v1432 = vpop.f32.mrf.mxu0
      %v1433 = vpop.f32.mrf.mxu0
      %v1434 = vadd.f32 %v936, %v1433
      %v1435 = vpop.f32.mrf.mxu0
      %1436 = vmatprep.mubr.bf16.mxu0 0
      %1437 = vmatmul.mubr.bf16.gmra.mxu0 %v1106
      %v1438 = vpop.f32.mrf.mxu0
      %v1439 = vadd.f32 %v941, %v1438
      %v1440 = vpop.f32.mrf.mxu0
      %v1441 = vpop.f32.mrf.mxu0
      %v1442 = vadd.f32 %v944, %v1441
      %v1443 = vpop.f32.mrf.mxu0
      %1444 = vmatprep.mubr.bf16.mxu0 0
      %1445 = vmatmul.mubr.bf16.gmra.mxu0 %v1109
      %v1446 = vpop.f32.mrf.mxu0
      %v1447 = vadd.f32 %v949, %v1446
      %v1448 = vpop.f32.mrf.mxu0
      %v1449 = vpop.f32.mrf.mxu0
      %v1450 = vadd.f32 %v952, %v1449
      %v1451 = vpop.f32.mrf.mxu0
      %1452 = vmatprep.mubr.bf16.mxu0 0
      %1453 = vmatmul.mubr.bf16.gmra.mxu0 %v1112
      %v1454 = vpop.f32.mrf.mxu0
      %v1455 = vadd.f32 %v957, %v1454
      %v1456 = vpop.f32.mrf.mxu0
      %v1457 = vpop.f32.mrf.mxu0
      %v1458 = vadd.f32 %v960, %v1457
      %v1459 = vpop.f32.mrf.mxu0
      %1460 = vmatprep.mubr.bf16.mxu0 0
      %1461 = vmatmul.mubr.bf16.gmra.mxu0 %v1115
      %v1462 = vpop.f32.mrf.mxu0
      %v1463 = vadd.f32 %v965, %v1462
      %v1464 = vpop.f32.mrf.mxu0
      %v1465 = vpop.f32.mrf.mxu0
      %v1466 = vadd.f32 %v968, %v1465
      %v1467 = vpop.f32.mrf.mxu0
      %1468 = vmatprep.mubr.bf16.mxu0 0
      %1469 = vmatmul.mubr.bf16.gmra.mxu0 %v1118
      %v1470 = vpop.f32.mrf.mxu0
      %v1471 = vadd.f32 %v973, %v1470
      %v1472 = vpop.f32.mrf.mxu0
      %v1473 = vpop.f32.mrf.mxu0
      %v1474 = vadd.f32 %v976, %v1473
      %v1475 = vpop.f32.mrf.mxu0
      %1476 = vmatprep.mubr.bf16.mxu0 0
      %1477 = vmatmul.mubr.bf16.gmra.mxu0 %v1121
      %v1478 = vpop.f32.mrf.mxu0
      %v1479 = vadd.f32 %v981, %v1478
      %v1480 = vpop.f32.mrf.mxu0
      %v1481 = vpop.f32.mrf.mxu0
      %v1482 = vadd.f32 %v984, %v1481
      %v1483 = vpop.f32.mrf.mxu0
      %1484 = vmatprep.mubr.bf16.mxu0 0
      %1485 = vmatmul.mubr.bf16.gmra.mxu0 %v1124
      %v1486 = vpop.f32.mrf.mxu0
      %v1487 = vadd.f32 %v989, %v1486
      %v1488 = vpop.f32.mrf.mxu0
      %v1489 = vpop.f32.mrf.mxu0
      %v1490 = vadd.f32 %v992, %v1489
      %v1491 = vpop.f32.mrf.mxu0
      %1492 = vmatprep.mubr.bf16.mxu0 0
      %1493 = vmatmul.mubr.bf16.gmra.mxu0 %v1127
      %v1494 = vpop.f32.mrf.mxu0
      %v1495 = vadd.f32 %v997, %v1494
      %v1496 = vpop.f32.mrf.mxu0
      %v1497 = vpop.f32.mrf.mxu0
      %v1498 = vadd.f32 %v1000, %v1497
      %v1499 = vpop.f32.mrf.mxu0
      %1500 = vdwg.mxu0
      %s1501 = sadd.s32 %s241, 2
      %s1502 = scalar_lea.vmem %s219, %s1501
      %v1503 = vld [vmem:[%s1502] sm:$0xff]
      %v1504 = vld [vmem:[%s1502 + $0x8] sm:$0xff]
      %v1505 = vld [vmem:[%s1502 + $0x10] sm:$0xff]
      %v1506 = vld [vmem:[%s1502 + $0x18] sm:$0xff]
      %v1507 = vld [vmem:[%s1502 + $0x20] sm:$0xff]
      %v1508 = vld [vmem:[%s1502 + $0x28] sm:$0xff]
      %v1509 = vld [vmem:[%s1502 + $0x30] sm:$0xff]
      %v1510 = vld [vmem:[%s1502 + $0x38] sm:$0xff]
      %v1511 = vld [vmem:[%s1502 + $0x40] sm:$0xff]
      %v1512 = vld [vmem:[%s1502 + $0x48] sm:$0xff]
      %v1513 = vld [vmem:[%s1502 + $0x50] sm:$0xff]
      %v1514 = vld [vmem:[%s1502 + $0x58] sm:$0xff]
      %v1515 = vld [vmem:[%s1502 + $0x60] sm:$0xff]
      %v1516 = vld [vmem:[%s1502 + $0x68] sm:$0xff]
      %v1517 = vld [vmem:[%s1502 + $0x70] sm:$0xff]
      %v1518 = vld [vmem:[%s1502 + $0x78] sm:$0xff]
      %v1519 = vld [vmem:[%s1502 + $0x80] sm:$0xff]
      %v1520 = vld [vmem:[%s1502 + $0x88] sm:$0xff]
      %v1521 = vld [vmem:[%s1502 + $0x90] sm:$0xff]
      %v1522 = vld [vmem:[%s1502 + $0x98] sm:$0xff]
      %v1523 = vld [vmem:[%s1502 + $0xa0] sm:$0xff]
      %v1524 = vld [vmem:[%s1502 + $0xa8] sm:$0xff]
      %v1525 = vld [vmem:[%s1502 + $0xb0] sm:$0xff]
      %v1526 = vld [vmem:[%s1502 + $0xb8] sm:$0xff]
      %v1527 = vld [vmem:[%s1502 + $0xc0] sm:$0xff]
      %v1528 = vld [vmem:[%s1502 + $0xc8] sm:$0xff]
      %v1529 = vld [vmem:[%s1502 + $0xd0] sm:$0xff]
      %v1530 = vld [vmem:[%s1502 + $0xd8] sm:$0xff]
      %v1531 = vld [vmem:[%s1502 + $0xe0] sm:$0xff]
      %v1532 = vld [vmem:[%s1502 + $0xe8] sm:$0xff]
      %v1533 = vld [vmem:[%s1502 + $0xf0] sm:$0xff]
      %v1534 = vld [vmem:[%s1502 + $0xf8] sm:$0xff]
      %v1535 = vld [vmem:[%s1502 + $0x100] sm:$0xff]
      %v1536 = vld [vmem:[%s1502 + $0x108] sm:$0xff]
      %v1537 = vld [vmem:[%s1502 + $0x110] sm:$0xff]
      %v1538 = vld [vmem:[%s1502 + $0x118] sm:$0xff]
      %v1539 = vld [vmem:[%s1502 + $0x120] sm:$0xff]
      %v1540 = vld [vmem:[%s1502 + $0x128] sm:$0xff]
      %v1541 = vld [vmem:[%s1502 + $0x130] sm:$0xff]
      %v1542 = vld [vmem:[%s1502 + $0x138] sm:$0xff]
      %v1543 = vld [vmem:[%s1502 + $0x140] sm:$0xff]
      %v1544 = vld [vmem:[%s1502 + $0x148] sm:$0xff]
      %v1545 = vld [vmem:[%s1502 + $0x150] sm:$0xff]
      %v1546 = vld [vmem:[%s1502 + $0x158] sm:$0xff]
      %v1547 = vld [vmem:[%s1502 + $0x160] sm:$0xff]
      %v1548 = vld [vmem:[%s1502 + $0x168] sm:$0xff]
      %v1549 = vld [vmem:[%s1502 + $0x170] sm:$0xff]
      %v1550 = vld [vmem:[%s1502 + $0x178] sm:$0xff]
      %v1551 = vld [vmem:[%s1502 + $0x180] sm:$0xff]
      %v1552 = vld [vmem:[%s1502 + $0x188] sm:$0xff]
      %v1553 = vld [vmem:[%s1502 + $0x190] sm:$0xff]
      %v1554 = vld [vmem:[%s1502 + $0x198] sm:$0xff]
      %v1555 = vld [vmem:[%s1502 + $0x1a0] sm:$0xff]
      %v1556 = vld [vmem:[%s1502 + $0x1a8] sm:$0xff]
      %v1557 = vld [vmem:[%s1502 + $0x1b0] sm:$0xff]
      %v1558 = vld [vmem:[%s1502 + $0x1b8] sm:$0xff]
      %v1559 = vld [vmem:[%s1502 + $0x1c0] sm:$0xff]
      %v1560 = vld [vmem:[%s1502 + $0x1c8] sm:$0xff]
      %v1561 = vld [vmem:[%s1502 + $0x1d0] sm:$0xff]
      %v1562 = vld [vmem:[%s1502 + $0x1d8] sm:$0xff]
      %v1563 = vld [vmem:[%s1502 + $0x1e0] sm:$0xff]
      %v1564 = vld [vmem:[%s1502 + $0x1e8] sm:$0xff]
      %v1565 = vld [vmem:[%s1502 + $0x1f0] sm:$0xff]
      %v1566 = vld [vmem:[%s1502 + $0x1f8] sm:$0xff]
      %v1567 = vld [vmem:[%s1502 + $0x200] sm:$0xff]
      %v1568 = vld [vmem:[%s1502 + $0x208] sm:$0xff]
      %v1569 = vld [vmem:[%s1502 + $0x210] sm:$0xff]
      %v1570 = vld [vmem:[%s1502 + $0x218] sm:$0xff]
      %v1571 = vld [vmem:[%s1502 + $0x220] sm:$0xff]
      %v1572 = vld [vmem:[%s1502 + $0x228] sm:$0xff]
      %v1573 = vld [vmem:[%s1502 + $0x230] sm:$0xff]
      %v1574 = vld [vmem:[%s1502 + $0x238] sm:$0xff]
      %v1575 = vld [vmem:[%s1502 + $0x240] sm:$0xff]
      %v1576 = vld [vmem:[%s1502 + $0x248] sm:$0xff]
      %v1577 = vld [vmem:[%s1502 + $0x250] sm:$0xff]
      %v1578 = vld [vmem:[%s1502 + $0x258] sm:$0xff]
      %v1579 = vld [vmem:[%s1502 + $0x260] sm:$0xff]
      %v1580 = vld [vmem:[%s1502 + $0x268] sm:$0xff]
      %v1581 = vld [vmem:[%s1502 + $0x270] sm:$0xff]
      %v1582 = vld [vmem:[%s1502 + $0x278] sm:$0xff]
      %v1583 = vld [vmem:[%s1502 + $0x280] sm:$0xff]
      %v1584 = vld [vmem:[%s1502 + $0x288] sm:$0xff]
      %v1585 = vld [vmem:[%s1502 + $0x290] sm:$0xff]
      %v1586 = vld [vmem:[%s1502 + $0x298] sm:$0xff]
      %v1587 = vpack.c.bf16 %v1504, %v1503
      %v1588 = vpack.c.bf16 %v1506, %v1505
      %v1589 = vpack.c.bf16 %v1508, %v1507
      %v1590 = vpack.c.bf16 %v1510, %v1509
      %v1591 = vpack.c.bf16 %v1512, %v1511
      %v1592 = vpack.c.bf16 %v1514, %v1513
      %v1593 = vpack.c.bf16 %v1516, %v1515
      %v1594 = vpack.c.bf16 %v1518, %v1517
      %v1595 = vpack.c.bf16 %v1520, %v1519
      %v1596 = vpack.c.bf16 %v1522, %v1521
      %v1597 = vpack.c.bf16 %v1524, %v1523
      %v1598 = vpack.c.bf16 %v1526, %v1525
      %v1599 = vpack.c.bf16 %v1528, %v1527
      %v1600 = vpack.c.bf16 %v1530, %v1529
      %v1601 = vpack.c.bf16 %v1532, %v1531
      %v1602 = vpack.c.bf16 %v1534, %v1533
      %v1603 = vpack.c.bf16 %v1536, %v1535
      %v1604 = vpack.c.bf16 %v1538, %v1537
      %v1605 = vpack.c.bf16 %v1540, %v1539
      %v1606 = vpack.c.bf16 %v1542, %v1541
      %v1607 = vpack.c.bf16 %v1544, %v1543
      %v1608 = vpack.c.bf16 %v1546, %v1545
      %v1609 = vpack.c.bf16 %v1548, %v1547
      %v1610 = vpack.c.bf16 %v1550, %v1549
      %v1611 = vpack.c.bf16 %v1552, %v1551
      %v1612 = vpack.c.bf16 %v1554, %v1553
      %v1613 = vpack.c.bf16 %v1556, %v1555
      %v1614 = vpack.c.bf16 %v1558, %v1557
      %v1615 = vpack.c.bf16 %v1560, %v1559
      %v1616 = vpack.c.bf16 %v1562, %v1561
      %v1617 = vpack.c.bf16 %v1564, %v1563
      %v1618 = vpack.c.bf16 %v1566, %v1565
      %v1619 = vpack.c.bf16 %v1568, %v1567
      %v1620 = vpack.c.bf16 %v1570, %v1569
      %v1621 = vpack.c.bf16 %v1572, %v1571
      %v1622 = vpack.c.bf16 %v1574, %v1573
      %v1623 = vpack.c.bf16 %v1576, %v1575
      %v1624 = vpack.c.bf16 %v1578, %v1577
      %v1625 = vpack.c.bf16 %v1580, %v1579
      %v1626 = vpack.c.bf16 %v1582, %v1581
      %v1627 = vpack.c.bf16 %v1584, %v1583
      %v1628 = vpack.c.bf16 %v1586, %v1585
      %s1629 = scalar_lea.vmem %s223, 4
      %v1630 = vld [vmem:[%s1629] sm:$0x3]
      %v1632 = vsel %vm500, %v1587, 0
      %v1635 = vsel %vm500, %v1588, 0
      %v1638 = vsel %vm500, %v1589, 0
      %v1641 = vsel %vm500, %v1590, 0
      %v1644 = vsel %vm500, %v1591, 0
      %v1647 = vsel %vm500, %v1592, 0
      %v1650 = vsel %vm500, %v1593, 0
      %v1653 = vsel %vm500, %v1594, 0
      %v1656 = vsel %vm500, %v1595, 0
      %v1659 = vsel %vm500, %v1596, 0
      %v1662 = vsel %vm500, %v1597, 0
      %v1665 = vsel %vm500, %v1598, 0
      %v1668 = vsel %vm500, %v1599, 0
      %v1671 = vsel %vm500, %v1600, 0
      %v1674 = vsel %vm500, %v1601, 0
      %v1677 = vsel %vm500, %v1602, 0
      %v1680 = vsel %vm500, %v1603, 0
      %v1683 = vsel %vm500, %v1604, 0
      %v1686 = vsel %vm500, %v1605, 0
      %v1689 = vsel %vm500, %v1606, 0
      %v1692 = vsel %vm500, %v1607, 0
      %v1695 = vsel %vm500, %v1608, 0
      %v1698 = vsel %vm500, %v1609, 0
      %v1701 = vsel %vm500, %v1610, 0
      %v1704 = vsel %vm500, %v1611, 0
      %v1707 = vsel %vm500, %v1612, 0
      %v1710 = vsel %vm500, %v1613, 0
      %v1713 = vsel %vm500, %v1614, 0
      %v1716 = vsel %vm500, %v1615, 0
      %v1719 = vsel %vm500, %v1616, 0
      %v1722 = vsel %vm500, %v1617, 0
      %v1725 = vsel %vm500, %v1618, 0
      %v1728 = vsel %vm500, %v1619, 0
      %v1731 = vsel %vm500, %v1620, 0
      %v1734 = vsel %vm500, %v1621, 0
      %v1737 = vsel %vm500, %v1622, 0
      %v1740 = vsel %vm500, %v1623, 0
      %v1743 = vsel %vm500, %v1624, 0
      %v1746 = vsel %vm500, %v1625, 0
      %v1749 = vsel %vm500, %v1626, 0
      %v1752 = vsel %vm500, %v1627, 0
      %v1755 = vsel %vm500, %v1628, 0
      %v1758 = vand.u32 %v1630, %v630
      %1760 = vmatprep.subr.bf16.mxu0 0
      %1761 = vmatpush1.bf16.msra.mxu0 0
      %1762 = vmatprep.subr.bf16.mxu0 0
      %1763 = vmatpush1.bf16.msra.mxu0 0
      %1764 = vmatprep.subr.bf16.mxu0 0
      %1765 = vmatpush1.bf16.msra.mxu0 0
      %1766 = vmatprep.subr.bf16.mxu0 0
      %1767 = vmatpush1.bf16.msra.mxu0 0
      %1768 = vmatprep.subr.bf16.mxu0 0
      %1769 = vmatpush1.bf16.msra.mxu0 0
      %1770 = vmatprep.subr.bf16.mxu0 0
      %1771 = vmatpush1.bf16.msra.mxu0 0
      %1772 = vmatprep.subr.bf16.mxu0 0
      %1773 = vmatpush1.bf16.msra.mxu0 0
      %1774 = vmatprep.subr.bf16.mxu0 0
      %1775 = vmatpush1.bf16.msra.mxu0 %v1758
      %1776 = vmatprep.subr.bf16.mxu0 0
      %1777 = vmatpush2.bf16.msra.mxu0 0
      %1778 = vmatprep.subr.bf16.mxu0 0
      %1779 = vmatpush2.bf16.msra.mxu0 0
      %1780 = vmatprep.subr.bf16.mxu0 0
      %1781 = vmatpush2.bf16.msra.mxu0 0
      %1782 = vmatprep.subr.bf16.mxu0 0
      %1783 = vmatpush2.bf16.msra.mxu0 0
      %1784 = vmatprep.subr.bf16.mxu0 0
      %1785 = vmatpush2.bf16.msra.mxu0 0
      %1786 = vmatprep.subr.bf16.mxu0 0
      %1787 = vmatpush2.bf16.msra.mxu0 0
      %1788 = vmatprep.subr.bf16.mxu0 0
      %1789 = vmatpush2.bf16.msra.mxu0 0
      %1790 = vmatprep.subr.bf16.mxu0 0
      %1791 = vmatpush2.bf16.msra.mxu0 0
      %1792 = vmatprep.mubr.bf16.mxu0 0
      %1793 = vmatmul.mubr.bf16.gmra.mxu0 %v1632
      %v1794 = vpop.f32.mrf.mxu0
      %v1795 = vadd.f32 0.0, %v1794
      %v1796 = vpop.f32.mrf.mxu0
      %v1797 = vpop.f32.mrf.mxu0
      %v1798 = vadd.f32 0.0, %v1797
      %v1799 = vpop.f32.mrf.mxu0
      %1800 = vmatprep.mubr.bf16.mxu0 0
      %1801 = vmatmul.mubr.bf16.gmra.mxu0 %v1635
      %v1802 = vpop.f32.mrf.mxu0
      %v1803 = vadd.f32 0.0, %v1802
      %v1804 = vpop.f32.mrf.mxu0
      %v1805 = vpop.f32.mrf.mxu0
      %v1806 = vadd.f32 0.0, %v1805
      %v1807 = vpop.f32.mrf.mxu0
      %1808 = vmatprep.mubr.bf16.mxu0 0
      %1809 = vmatmul.mubr.bf16.gmra.mxu0 %v1638
      %v1810 = vpop.f32.mrf.mxu0
      %v1811 = vadd.f32 0.0, %v1810
      %v1812 = vpop.f32.mrf.mxu0
      %v1813 = vpop.f32.mrf.mxu0
      %v1814 = vadd.f32 0.0, %v1813
      %v1815 = vpop.f32.mrf.mxu0
      %1816 = vmatprep.mubr.bf16.mxu0 0
      %1817 = vmatmul.mubr.bf16.gmra.mxu0 %v1641
      %v1818 = vpop.f32.mrf.mxu0
      %v1819 = vadd.f32 0.0, %v1818
      %v1820 = vpop.f32.mrf.mxu0
      %v1821 = vpop.f32.mrf.mxu0
      %v1822 = vadd.f32 0.0, %v1821
      %v1823 = vpop.f32.mrf.mxu0
      %1824 = vmatprep.mubr.bf16.mxu0 0
      %1825 = vmatmul.mubr.bf16.gmra.mxu0 %v1644
      %v1826 = vpop.f32.mrf.mxu0
      %v1827 = vadd.f32 0.0, %v1826
      %v1828 = vpop.f32.mrf.mxu0
      %v1829 = vpop.f32.mrf.mxu0
      %v1830 = vadd.f32 0.0, %v1829
      %v1831 = vpop.f32.mrf.mxu0
      %1832 = vmatprep.mubr.bf16.mxu0 0
      %1833 = vmatmul.mubr.bf16.gmra.mxu0 %v1647
      %v1834 = vpop.f32.mrf.mxu0
      %v1835 = vadd.f32 0.0, %v1834
      %v1836 = vpop.f32.mrf.mxu0
      %v1837 = vpop.f32.mrf.mxu0
      %v1838 = vadd.f32 0.0, %v1837
      %v1839 = vpop.f32.mrf.mxu0
      %1840 = vmatprep.mubr.bf16.mxu0 0
      %1841 = vmatmul.mubr.bf16.gmra.mxu0 %v1650
      %v1842 = vpop.f32.mrf.mxu0
      %v1843 = vadd.f32 0.0, %v1842
      %v1844 = vpop.f32.mrf.mxu0
      %v1845 = vpop.f32.mrf.mxu0
      %v1846 = vadd.f32 0.0, %v1845
      %v1847 = vpop.f32.mrf.mxu0
      %1848 = vmatprep.mubr.bf16.mxu0 0
      %1849 = vmatmul.mubr.bf16.gmra.mxu0 %v1653
      %v1850 = vpop.f32.mrf.mxu0
      %v1851 = vadd.f32 0.0, %v1850
      %v1852 = vpop.f32.mrf.mxu0
      %v1853 = vpop.f32.mrf.mxu0
      %v1854 = vadd.f32 0.0, %v1853
      %v1855 = vpop.f32.mrf.mxu0
      %1856 = vmatprep.mubr.bf16.mxu0 0
      %1857 = vmatmul.mubr.bf16.gmra.mxu0 %v1656
      %v1858 = vpop.f32.mrf.mxu0
      %v1859 = vadd.f32 0.0, %v1858
      %v1860 = vpop.f32.mrf.mxu0
      %v1861 = vpop.f32.mrf.mxu0
      %v1862 = vadd.f32 0.0, %v1861
      %v1863 = vpop.f32.mrf.mxu0
      %1864 = vmatprep.mubr.bf16.mxu0 0
      %1865 = vmatmul.mubr.bf16.gmra.mxu0 %v1659
      %v1866 = vpop.f32.mrf.mxu0
      %v1867 = vadd.f32 0.0, %v1866
      %v1868 = vpop.f32.mrf.mxu0
      %v1869 = vpop.f32.mrf.mxu0
      %v1870 = vadd.f32 0.0, %v1869
      %v1871 = vpop.f32.mrf.mxu0
      %1872 = vmatprep.mubr.bf16.mxu0 0
      %1873 = vmatmul.mubr.bf16.gmra.mxu0 %v1662
      %v1874 = vpop.f32.mrf.mxu0
      %v1875 = vadd.f32 0.0, %v1874
      %v1876 = vpop.f32.mrf.mxu0
      %v1877 = vpop.f32.mrf.mxu0
      %v1878 = vadd.f32 0.0, %v1877
      %v1879 = vpop.f32.mrf.mxu0
      %1880 = vmatprep.mubr.bf16.mxu0 0
      %1881 = vmatmul.mubr.bf16.gmra.mxu0 %v1665
      %v1882 = vpop.f32.mrf.mxu0
      %v1883 = vadd.f32 0.0, %v1882
      %v1884 = vpop.f32.mrf.mxu0
      %v1885 = vpop.f32.mrf.mxu0
      %v1886 = vadd.f32 0.0, %v1885
      %v1887 = vpop.f32.mrf.mxu0
      %1888 = vmatprep.mubr.bf16.mxu0 0
      %1889 = vmatmul.mubr.bf16.gmra.mxu0 %v1668
      %v1890 = vpop.f32.mrf.mxu0
      %v1891 = vadd.f32 0.0, %v1890
      %v1892 = vpop.f32.mrf.mxu0
      %v1893 = vpop.f32.mrf.mxu0
      %v1894 = vadd.f32 0.0, %v1893
      %v1895 = vpop.f32.mrf.mxu0
      %1896 = vmatprep.mubr.bf16.mxu0 0
      %1897 = vmatmul.mubr.bf16.gmra.mxu0 %v1671
      %v1898 = vpop.f32.mrf.mxu0
      %v1899 = vadd.f32 0.0, %v1898
      %v1900 = vpop.f32.mrf.mxu0
      %v1901 = vpop.f32.mrf.mxu0
      %v1902 = vadd.f32 0.0, %v1901
      %v1903 = vpop.f32.mrf.mxu0
      %1904 = vmatprep.mubr.bf16.mxu0 0
      %1905 = vmatmul.mubr.bf16.gmra.mxu0 %v1674
      %v1906 = vpop.f32.mrf.mxu0
      %v1907 = vadd.f32 0.0, %v1906
      %v1908 = vpop.f32.mrf.mxu0
      %v1909 = vpop.f32.mrf.mxu0
      %v1910 = vadd.f32 0.0, %v1909
      %v1911 = vpop.f32.mrf.mxu0
      %1912 = vmatprep.mubr.bf16.mxu0 0
      %1913 = vmatmul.mubr.bf16.gmra.mxu0 %v1677
      %v1914 = vpop.f32.mrf.mxu0
      %v1915 = vadd.f32 0.0, %v1914
      %v1916 = vpop.f32.mrf.mxu0
      %v1917 = vpop.f32.mrf.mxu0
      %v1918 = vadd.f32 0.0, %v1917
      %v1919 = vpop.f32.mrf.mxu0
      %1920 = vmatprep.mubr.bf16.mxu0 0
      %1921 = vmatmul.mubr.bf16.gmra.mxu0 %v1680
      %v1922 = vpop.f32.mrf.mxu0
      %v1923 = vadd.f32 0.0, %v1922
      %v1924 = vpop.f32.mrf.mxu0
      %v1925 = vpop.f32.mrf.mxu0
      %v1926 = vadd.f32 0.0, %v1925
      %v1927 = vpop.f32.mrf.mxu0
      %1928 = vmatprep.mubr.bf16.mxu0 0
      %1929 = vmatmul.mubr.bf16.gmra.mxu0 %v1683
      %v1930 = vpop.f32.mrf.mxu0
      %v1931 = vadd.f32 0.0, %v1930
      %v1932 = vpop.f32.mrf.mxu0
      %v1933 = vpop.f32.mrf.mxu0
      %v1934 = vadd.f32 0.0, %v1933
      %v1935 = vpop.f32.mrf.mxu0
      %1936 = vmatprep.mubr.bf16.mxu0 0
      %1937 = vmatmul.mubr.bf16.gmra.mxu0 %v1686
      %v1938 = vpop.f32.mrf.mxu0
      %v1939 = vadd.f32 0.0, %v1938
      %v1940 = vpop.f32.mrf.mxu0
      %v1941 = vpop.f32.mrf.mxu0
      %v1942 = vadd.f32 0.0, %v1941
      %v1943 = vpop.f32.mrf.mxu0
      %1944 = vmatprep.mubr.bf16.mxu0 0
      %1945 = vmatmul.mubr.bf16.gmra.mxu0 %v1689
      %v1946 = vpop.f32.mrf.mxu0
      %v1947 = vadd.f32 0.0, %v1946
      %v1948 = vpop.f32.mrf.mxu0
      %v1949 = vpop.f32.mrf.mxu0
      %v1950 = vadd.f32 0.0, %v1949
      %v1951 = vpop.f32.mrf.mxu0
      %1952 = vmatprep.mubr.bf16.mxu0 0
      %1953 = vmatmul.mubr.bf16.gmra.mxu0 %v1692
      %v1954 = vpop.f32.mrf.mxu0
      %v1955 = vadd.f32 0.0, %v1954
      %v1956 = vpop.f32.mrf.mxu0
      %v1957 = vpop.f32.mrf.mxu0
      %v1958 = vadd.f32 0.0, %v1957
      %v1959 = vpop.f32.mrf.mxu0
      %1960 = vmatprep.mubr.bf16.mxu0 0
      %1961 = vmatmul.mubr.bf16.gmra.mxu0 %v1695
      %v1962 = vpop.f32.mrf.mxu0
      %v1963 = vadd.f32 0.0, %v1962
      %v1964 = vpop.f32.mrf.mxu0
      %v1965 = vpop.f32.mrf.mxu0
      %v1966 = vadd.f32 0.0, %v1965
      %v1967 = vpop.f32.mrf.mxu0
      %1968 = vmatprep.mubr.bf16.mxu0 0
      %1969 = vmatmul.mubr.bf16.gmra.mxu0 %v1698
      %v1970 = vpop.f32.mrf.mxu0
      %v1971 = vadd.f32 0.0, %v1970
      %v1972 = vpop.f32.mrf.mxu0
      %v1973 = vpop.f32.mrf.mxu0
      %v1974 = vadd.f32 0.0, %v1973
      %v1975 = vpop.f32.mrf.mxu0
      %1976 = vmatprep.mubr.bf16.mxu0 0
      %1977 = vmatmul.mubr.bf16.gmra.mxu0 %v1701
      %v1978 = vpop.f32.mrf.mxu0
      %v1979 = vadd.f32 0.0, %v1978
      %v1980 = vpop.f32.mrf.mxu0
      %v1981 = vpop.f32.mrf.mxu0
      %v1982 = vadd.f32 0.0, %v1981
      %v1983 = vpop.f32.mrf.mxu0
      %1984 = vmatprep.mubr.bf16.mxu0 0
      %1985 = vmatmul.mubr.bf16.gmra.mxu0 %v1704
      %v1986 = vpop.f32.mrf.mxu0
      %v1987 = vadd.f32 0.0, %v1986
      %v1988 = vpop.f32.mrf.mxu0
      %v1989 = vpop.f32.mrf.mxu0
      %v1990 = vadd.f32 0.0, %v1989
      %v1991 = vpop.f32.mrf.mxu0
      %1992 = vmatprep.mubr.bf16.mxu0 0
      %1993 = vmatmul.mubr.bf16.gmra.mxu0 %v1707
      %v1994 = vpop.f32.mrf.mxu0
      %v1995 = vadd.f32 0.0, %v1994
      %v1996 = vpop.f32.mrf.mxu0
      %v1997 = vpop.f32.mrf.mxu0
      %v1998 = vadd.f32 0.0, %v1997
      %v1999 = vpop.f32.mrf.mxu0
      %2000 = vmatprep.mubr.bf16.mxu0 0
      %2001 = vmatmul.mubr.bf16.gmra.mxu0 %v1710
      %v2002 = vpop.f32.mrf.mxu0
      %v2003 = vadd.f32 0.0, %v2002
      %v2004 = vpop.f32.mrf.mxu0
      %v2005 = vpop.f32.mrf.mxu0
      %v2006 = vadd.f32 0.0, %v2005
      %v2007 = vpop.f32.mrf.mxu0
      %2008 = vmatprep.mubr.bf16.mxu0 0
      %2009 = vmatmul.mubr.bf16.gmra.mxu0 %v1713
      %v2010 = vpop.f32.mrf.mxu0
      %v2011 = vadd.f32 0.0, %v2010
      %v2012 = vpop.f32.mrf.mxu0
      %v2013 = vpop.f32.mrf.mxu0
      %v2014 = vadd.f32 0.0, %v2013
      %v2015 = vpop.f32.mrf.mxu0
      %2016 = vmatprep.mubr.bf16.mxu0 0
      %2017 = vmatmul.mubr.bf16.gmra.mxu0 %v1716
      %v2018 = vpop.f32.mrf.mxu0
      %v2019 = vadd.f32 0.0, %v2018
      %v2020 = vpop.f32.mrf.mxu0
      %v2021 = vpop.f32.mrf.mxu0
      %v2022 = vadd.f32 0.0, %v2021
      %v2023 = vpop.f32.mrf.mxu0
      %2024 = vmatprep.mubr.bf16.mxu0 0
      %2025 = vmatmul.mubr.bf16.gmra.mxu0 %v1719
      %v2026 = vpop.f32.mrf.mxu0
      %v2027 = vadd.f32 0.0, %v2026
      %v2028 = vpop.f32.mrf.mxu0
      %v2029 = vpop.f32.mrf.mxu0
      %v2030 = vadd.f32 0.0, %v2029
      %v2031 = vpop.f32.mrf.mxu0
      %2032 = vmatprep.mubr.bf16.mxu0 0
      %2033 = vmatmul.mubr.bf16.gmra.mxu0 %v1722
      %v2034 = vpop.f32.mrf.mxu0
      %v2035 = vadd.f32 0.0, %v2034
      %v2036 = vpop.f32.mrf.mxu0
      %v2037 = vpop.f32.mrf.mxu0
      %v2038 = vadd.f32 0.0, %v2037
      %v2039 = vpop.f32.mrf.mxu0
      %2040 = vmatprep.mubr.bf16.mxu0 0
      %2041 = vmatmul.mubr.bf16.gmra.mxu0 %v1725
      %v2042 = vpop.f32.mrf.mxu0
      %v2043 = vadd.f32 0.0, %v2042
      %v2044 = vpop.f32.mrf.mxu0
      %v2045 = vpop.f32.mrf.mxu0
      %v2046 = vadd.f32 0.0, %v2045
      %v2047 = vpop.f32.mrf.mxu0
      %2048 = vmatprep.mubr.bf16.mxu0 0
      %2049 = vmatmul.mubr.bf16.gmra.mxu0 %v1728
      %v2050 = vpop.f32.mrf.mxu0
      %v2051 = vadd.f32 0.0, %v2050
      %v2052 = vpop.f32.mrf.mxu0
      %v2053 = vpop.f32.mrf.mxu0
      %v2054 = vadd.f32 0.0, %v2053
      %v2055 = vpop.f32.mrf.mxu0
      %2056 = vmatprep.mubr.bf16.mxu0 0
      %2057 = vmatmul.mubr.bf16.gmra.mxu0 %v1731
      %v2058 = vpop.f32.mrf.mxu0
      %v2059 = vadd.f32 0.0, %v2058
      %v2060 = vpop.f32.mrf.mxu0
      %v2061 = vpop.f32.mrf.mxu0
      %v2062 = vadd.f32 0.0, %v2061
      %v2063 = vpop.f32.mrf.mxu0
      %2064 = vmatprep.mubr.bf16.mxu0 0
      %2065 = vmatmul.mubr.bf16.gmra.mxu0 %v1734
      %v2066 = vpop.f32.mrf.mxu0
      %v2067 = vadd.f32 0.0, %v2066
      %v2068 = vpop.f32.mrf.mxu0
      %v2069 = vpop.f32.mrf.mxu0
      %v2070 = vadd.f32 0.0, %v2069
      %v2071 = vpop.f32.mrf.mxu0
      %2072 = vmatprep.mubr.bf16.mxu0 0
      %2073 = vmatmul.mubr.bf16.gmra.mxu0 %v1737
      %v2074 = vpop.f32.mrf.mxu0
      %v2075 = vadd.f32 0.0, %v2074
      %v2076 = vpop.f32.mrf.mxu0
      %v2077 = vpop.f32.mrf.mxu0
      %v2078 = vadd.f32 0.0, %v2077
      %v2079 = vpop.f32.mrf.mxu0
      %2080 = vmatprep.mubr.bf16.mxu0 0
      %2081 = vmatmul.mubr.bf16.gmra.mxu0 %v1740
      %v2082 = vpop.f32.mrf.mxu0
      %v2083 = vadd.f32 0.0, %v2082
      %v2084 = vpop.f32.mrf.mxu0
      %v2085 = vpop.f32.mrf.mxu0
      %v2086 = vadd.f32 0.0, %v2085
      %v2087 = vpop.f32.mrf.mxu0
      %2088 = vmatprep.mubr.bf16.mxu0 0
      %2089 = vmatmul.mubr.bf16.gmra.mxu0 %v1743
      %v2090 = vpop.f32.mrf.mxu0
      %v2091 = vadd.f32 0.0, %v2090
      %v2092 = vpop.f32.mrf.mxu0
      %v2093 = vpop.f32.mrf.mxu0
      %v2094 = vadd.f32 0.0, %v2093
      %v2095 = vpop.f32.mrf.mxu0
      %2096 = vmatprep.mubr.bf16.mxu0 0
      %2097 = vmatmul.mubr.bf16.gmra.mxu0 %v1746
      %v2098 = vpop.f32.mrf.mxu0
      %v2099 = vadd.f32 0.0, %v2098
      %v2100 = vpop.f32.mrf.mxu0
      %v2101 = vpop.f32.mrf.mxu0
      %v2102 = vadd.f32 0.0, %v2101
      %v2103 = vpop.f32.mrf.mxu0
      %2104 = vmatprep.mubr.bf16.mxu0 0
      %2105 = vmatmul.mubr.bf16.gmra.mxu0 %v1749
      %v2106 = vpop.f32.mrf.mxu0
      %v2107 = vadd.f32 0.0, %v2106
      %v2108 = vpop.f32.mrf.mxu0
      %v2109 = vpop.f32.mrf.mxu0
      %v2110 = vadd.f32 0.0, %v2109
      %v2111 = vpop.f32.mrf.mxu0
      %2112 = vmatprep.mubr.bf16.mxu0 0
      %2113 = vmatmul.mubr.bf16.gmra.mxu0 %v1752
      %v2114 = vpop.f32.mrf.mxu0
      %v2115 = vadd.f32 0.0, %v2114
      %v2116 = vpop.f32.mrf.mxu0
      %v2117 = vpop.f32.mrf.mxu0
      %v2118 = vadd.f32 0.0, %v2117
      %v2119 = vpop.f32.mrf.mxu0
      %2120 = vmatprep.mubr.bf16.mxu0 0
      %2121 = vmatmul.mubr.bf16.gmra.mxu0 %v1755
      %v2122 = vpop.f32.mrf.mxu0
      %v2123 = vadd.f32 0.0, %v2122
      %v2124 = vpop.f32.mrf.mxu0
      %v2125 = vpop.f32.mrf.mxu0
      %v2126 = vadd.f32 0.0, %v2125
      %v2127 = vpop.f32.mrf.mxu0
      %2128 = vdwg.mxu0
      %v2129 = vadd.f32 %v1167, %v1795
      %v2130 = vadd.f32 %v1170, %v1798
      %v2131 = vadd.f32 %v1175, %v1803
      %v2132 = vadd.f32 %v1178, %v1806
      %v2133 = vadd.f32 %v1183, %v1811
      %v2134 = vadd.f32 %v1186, %v1814
      %v2135 = vadd.f32 %v1191, %v1819
      %v2136 = vadd.f32 %v1194, %v1822
      %v2137 = vadd.f32 %v1199, %v1827
      %v2138 = vadd.f32 %v1202, %v1830
      %v2139 = vadd.f32 %v1207, %v1835
      %v2140 = vadd.f32 %v1210, %v1838
      %v2141 = vadd.f32 %v1215, %v1843
      %v2142 = vadd.f32 %v1218, %v1846
      %v2143 = vadd.f32 %v1223, %v1851
      %v2144 = vadd.f32 %v1226, %v1854
      %v2145 = vadd.f32 %v1231, %v1859
      %v2146 = vadd.f32 %v1234, %v1862
      %v2147 = vadd.f32 %v1239, %v1867
      %v2148 = vadd.f32 %v1242, %v1870
      %v2149 = vadd.f32 %v1247, %v1875
      %v2150 = vadd.f32 %v1250, %v1878
      %v2151 = vadd.f32 %v1255, %v1883
      %v2152 = vadd.f32 %v1258, %v1886
      %v2153 = vadd.f32 %v1263, %v1891
      %v2154 = vadd.f32 %v1266, %v1894
      %v2155 = vadd.f32 %v1271, %v1899
      %v2156 = vadd.f32 %v1274, %v1902
      %v2157 = vadd.f32 %v1279, %v1907
      %v2158 = vadd.f32 %v1282, %v1910
      %v2159 = vadd.f32 %v1287, %v1915
      %v2160 = vadd.f32 %v1290, %v1918
      %v2161 = vadd.f32 %v1295, %v1923
      %v2162 = vadd.f32 %v1298, %v1926
      %v2163 = vadd.f32 %v1303, %v1931
      %v2164 = vadd.f32 %v1306, %v1934
      %v2165 = vadd.f32 %v1311, %v1939
      %v2166 = vadd.f32 %v1314, %v1942
      %v2167 = vadd.f32 %v1319, %v1947
      %v2168 = vadd.f32 %v1322, %v1950
      %v2169 = vadd.f32 %v1327, %v1955
      %v2170 = vadd.f32 %v1330, %v1958
      %v2171 = vadd.f32 %v1335, %v1963
      %v2172 = vadd.f32 %v1338, %v1966
      %v2173 = vadd.f32 %v1343, %v1971
      %v2174 = vadd.f32 %v1346, %v1974
      %v2175 = vadd.f32 %v1351, %v1979
      %v2176 = vadd.f32 %v1354, %v1982
      %v2177 = vadd.f32 %v1359, %v1987
      %v2178 = vadd.f32 %v1362, %v1990
      %v2179 = vadd.f32 %v1367, %v1995
      %v2180 = vadd.f32 %v1370, %v1998
      %v2181 = vadd.f32 %v1375, %v2003
      %v2182 = vadd.f32 %v1378, %v2006
      %v2183 = vadd.f32 %v1383, %v2011
      %v2184 = vadd.f32 %v1386, %v2014
      %v2185 = vadd.f32 %v1391, %v2019
      %v2186 = vadd.f32 %v1394, %v2022
      %v2187 = vadd.f32 %v1399, %v2027
      %v2188 = vadd.f32 %v1402, %v2030
      %v2189 = vadd.f32 %v1407, %v2035
      %v2190 = vadd.f32 %v1410, %v2038
      %v2191 = vadd.f32 %v1415, %v2043
      %v2192 = vadd.f32 %v1418, %v2046
      %v2193 = vadd.f32 %v1423, %v2051
      %v2194 = vadd.f32 %v1426, %v2054
      %v2195 = vadd.f32 %v1431, %v2059
      %v2196 = vadd.f32 %v1434, %v2062
      %v2197 = vadd.f32 %v1439, %v2067
      %v2198 = vadd.f32 %v1442, %v2070
      %v2199 = vadd.f32 %v1447, %v2075
      %v2200 = vadd.f32 %v1450, %v2078
      %v2201 = vadd.f32 %v1455, %v2083
      %v2202 = vadd.f32 %v1458, %v2086
      %v2203 = vadd.f32 %v1463, %v2091
      %v2204 = vadd.f32 %v1466, %v2094
      %v2205 = vadd.f32 %v1471, %v2099
      %v2206 = vadd.f32 %v1474, %v2102
      %v2207 = vadd.f32 %v1479, %v2107
      %v2208 = vadd.f32 %v1482, %v2110
      %v2209 = vadd.f32 %v1487, %v2115
      %v2210 = vadd.f32 %v1490, %v2118
      %v2211 = vadd.f32 %v1495, %v2123
      %v2212 = vadd.f32 %v1498, %v2126
      %s2213 = sadd.s32 %s241, 224
      %s2214 = scalar_lea.vmem %s219, %s2213
      %v2215 = vld [vmem:[%s2214] sm:$0xff]
      %v2216 = vld [vmem:[%s2214 + $0x8] sm:$0xff]
      %v2217 = vld [vmem:[%s2214 + $0x10] sm:$0xff]
      %v2218 = vld [vmem:[%s2214 + $0x18] sm:$0xff]
      %v2219 = vld [vmem:[%s2214 + $0x20] sm:$0xff]
      %v2220 = vld [vmem:[%s2214 + $0x28] sm:$0xff]
      %v2221 = vld [vmem:[%s2214 + $0x30] sm:$0xff]
      %v2222 = vld [vmem:[%s2214 + $0x38] sm:$0xff]
      %v2223 = vld [vmem:[%s2214 + $0x40] sm:$0xff]
      %v2224 = vld [vmem:[%s2214 + $0x48] sm:$0xff]
      %v2225 = vld [vmem:[%s2214 + $0x50] sm:$0xff]
      %v2226 = vld [vmem:[%s2214 + $0x58] sm:$0xff]
      %v2227 = vld [vmem:[%s2214 + $0x60] sm:$0xff]
      %v2228 = vld [vmem:[%s2214 + $0x68] sm:$0xff]
      %v2229 = vld [vmem:[%s2214 + $0x70] sm:$0xff]
      %v2230 = vld [vmem:[%s2214 + $0x78] sm:$0xff]
      %v2231 = vld [vmem:[%s2214 + $0x80] sm:$0xff]
      %v2232 = vld [vmem:[%s2214 + $0x88] sm:$0xff]
      %v2233 = vld [vmem:[%s2214 + $0x90] sm:$0xff]
      %v2234 = vld [vmem:[%s2214 + $0x98] sm:$0xff]
      %v2235 = vld [vmem:[%s2214 + $0xa0] sm:$0xff]
      %v2236 = vld [vmem:[%s2214 + $0xa8] sm:$0xff]
      %v2237 = vld [vmem:[%s2214 + $0xb0] sm:$0xff]
      %v2238 = vld [vmem:[%s2214 + $0xb8] sm:$0xff]
      %v2239 = vld [vmem:[%s2214 + $0xc0] sm:$0xff]
      %v2240 = vld [vmem:[%s2214 + $0xc8] sm:$0xff]
      %v2241 = vld [vmem:[%s2214 + $0xd0] sm:$0xff]
      %v2242 = vld [vmem:[%s2214 + $0xd8] sm:$0xff]
      %v2243 = vld [vmem:[%s2214 + $0xe0] sm:$0xff]
      %v2244 = vld [vmem:[%s2214 + $0xe8] sm:$0xff]
      %v2245 = vld [vmem:[%s2214 + $0xf0] sm:$0xff]
      %v2246 = vld [vmem:[%s2214 + $0xf8] sm:$0xff]
      %v2247 = vld [vmem:[%s2214 + $0x100] sm:$0xff]
      %v2248 = vld [vmem:[%s2214 + $0x108] sm:$0xff]
      %v2249 = vld [vmem:[%s2214 + $0x110] sm:$0xff]
      %v2250 = vld [vmem:[%s2214 + $0x118] sm:$0xff]
      %v2251 = vld [vmem:[%s2214 + $0x120] sm:$0xff]
      %v2252 = vld [vmem:[%s2214 + $0x128] sm:$0xff]
      %v2253 = vld [vmem:[%s2214 + $0x130] sm:$0xff]
      %v2254 = vld [vmem:[%s2214 + $0x138] sm:$0xff]
      %v2255 = vld [vmem:[%s2214 + $0x140] sm:$0xff]
      %v2256 = vld [vmem:[%s2214 + $0x148] sm:$0xff]
      %v2257 = vld [vmem:[%s2214 + $0x150] sm:$0xff]
      %v2258 = vld [vmem:[%s2214 + $0x158] sm:$0xff]
      %v2259 = vld [vmem:[%s2214 + $0x160] sm:$0xff]
      %v2260 = vld [vmem:[%s2214 + $0x168] sm:$0xff]
      %v2261 = vld [vmem:[%s2214 + $0x170] sm:$0xff]
      %v2262 = vld [vmem:[%s2214 + $0x178] sm:$0xff]
      %v2263 = vld [vmem:[%s2214 + $0x180] sm:$0xff]
      %v2264 = vld [vmem:[%s2214 + $0x188] sm:$0xff]
      %v2265 = vld [vmem:[%s2214 + $0x190] sm:$0xff]
      %v2266 = vld [vmem:[%s2214 + $0x198] sm:$0xff]
      %v2267 = vld [vmem:[%s2214 + $0x1a0] sm:$0xff]
      %v2268 = vld [vmem:[%s2214 + $0x1a8] sm:$0xff]
      %v2269 = vld [vmem:[%s2214 + $0x1b0] sm:$0xff]
      %v2270 = vld [vmem:[%s2214 + $0x1b8] sm:$0xff]
      %v2271 = vld [vmem:[%s2214 + $0x1c0] sm:$0xff]
      %v2272 = vld [vmem:[%s2214 + $0x1c8] sm:$0xff]
      %v2273 = vld [vmem:[%s2214 + $0x1d0] sm:$0xff]
      %v2274 = vld [vmem:[%s2214 + $0x1d8] sm:$0xff]
      %v2275 = vld [vmem:[%s2214 + $0x1e0] sm:$0xff]
      %v2276 = vld [vmem:[%s2214 + $0x1e8] sm:$0xff]
      %v2277 = vld [vmem:[%s2214 + $0x1f0] sm:$0xff]
      %v2278 = vld [vmem:[%s2214 + $0x1f8] sm:$0xff]
      %v2279 = vld [vmem:[%s2214 + $0x200] sm:$0xff]
      %v2280 = vld [vmem:[%s2214 + $0x208] sm:$0xff]
      %v2281 = vld [vmem:[%s2214 + $0x210] sm:$0xff]
      %v2282 = vld [vmem:[%s2214 + $0x218] sm:$0xff]
      %v2283 = vld [vmem:[%s2214 + $0x220] sm:$0xff]
      %v2284 = vld [vmem:[%s2214 + $0x228] sm:$0xff]
      %v2285 = vld [vmem:[%s2214 + $0x230] sm:$0xff]
      %v2286 = vld [vmem:[%s2214 + $0x238] sm:$0xff]
      %v2287 = vld [vmem:[%s2214 + $0x240] sm:$0xff]
      %v2288 = vld [vmem:[%s2214 + $0x248] sm:$0xff]
      %v2289 = vld [vmem:[%s2214 + $0x250] sm:$0xff]
      %v2290 = vld [vmem:[%s2214 + $0x258] sm:$0xff]
      %v2291 = vld [vmem:[%s2214 + $0x260] sm:$0xff]
      %v2292 = vld [vmem:[%s2214 + $0x268] sm:$0xff]
      %v2293 = vld [vmem:[%s2214 + $0x270] sm:$0xff]
      %v2294 = vld [vmem:[%s2214 + $0x278] sm:$0xff]
      %v2295 = vld [vmem:[%s2214 + $0x280] sm:$0xff]
      %v2296 = vld [vmem:[%s2214 + $0x288] sm:$0xff]
      %v2297 = vld [vmem:[%s2214 + $0x290] sm:$0xff]
      %v2298 = vld [vmem:[%s2214 + $0x298] sm:$0xff]
      %v2299 = vpack.c.bf16 %v2216, %v2215
      %v2300 = vpack.c.bf16 %v2218, %v2217
      %v2301 = vpack.c.bf16 %v2220, %v2219
      %v2302 = vpack.c.bf16 %v2222, %v2221
      %v2303 = vpack.c.bf16 %v2224, %v2223
      %v2304 = vpack.c.bf16 %v2226, %v2225
      %v2305 = vpack.c.bf16 %v2228, %v2227
      %v2306 = vpack.c.bf16 %v2230, %v2229
      %v2307 = vpack.c.bf16 %v2232, %v2231
      %v2308 = vpack.c.bf16 %v2234, %v2233
      %v2309 = vpack.c.bf16 %v2236, %v2235
      %v2310 = vpack.c.bf16 %v2238, %v2237
      %v2311 = vpack.c.bf16 %v2240, %v2239
      %v2312 = vpack.c.bf16 %v2242, %v2241
      %v2313 = vpack.c.bf16 %v2244, %v2243
      %v2314 = vpack.c.bf16 %v2246, %v2245
      %v2315 = vpack.c.bf16 %v2248, %v2247
      %v2316 = vpack.c.bf16 %v2250, %v2249
      %v2317 = vpack.c.bf16 %v2252, %v2251
      %v2318 = vpack.c.bf16 %v2254, %v2253
      %v2319 = vpack.c.bf16 %v2256, %v2255
      %v2320 = vpack.c.bf16 %v2258, %v2257
      %v2321 = vpack.c.bf16 %v2260, %v2259
      %v2322 = vpack.c.bf16 %v2262, %v2261
      %v2323 = vpack.c.bf16 %v2264, %v2263
      %v2324 = vpack.c.bf16 %v2266, %v2265
      %v2325 = vpack.c.bf16 %v2268, %v2267
      %v2326 = vpack.c.bf16 %v2270, %v2269
      %v2327 = vpack.c.bf16 %v2272, %v2271
      %v2328 = vpack.c.bf16 %v2274, %v2273
      %v2329 = vpack.c.bf16 %v2276, %v2275
      %v2330 = vpack.c.bf16 %v2278, %v2277
      %v2331 = vpack.c.bf16 %v2280, %v2279
      %v2332 = vpack.c.bf16 %v2282, %v2281
      %v2333 = vpack.c.bf16 %v2284, %v2283
      %v2334 = vpack.c.bf16 %v2286, %v2285
      %v2335 = vpack.c.bf16 %v2288, %v2287
      %v2336 = vpack.c.bf16 %v2290, %v2289
      %v2337 = vpack.c.bf16 %v2292, %v2291
      %v2338 = vpack.c.bf16 %v2294, %v2293
      %v2339 = vpack.c.bf16 %v2296, %v2295
      %v2340 = vpack.c.bf16 %v2298, %v2297
      %s2341 = scalar_lea.vmem %s223, 6
      %v2342 = vld [vmem:[%s2341] sm:$0x3]
      %v2344 = vsel %vm500, %v2299, 0
      %v2347 = vsel %vm500, %v2300, 0
      %v2350 = vsel %vm500, %v2301, 0
      %v2353 = vsel %vm500, %v2302, 0
      %v2356 = vsel %vm500, %v2303, 0
      %v2359 = vsel %vm500, %v2304, 0
      %v2362 = vsel %vm500, %v2305, 0
      %v2365 = vsel %vm500, %v2306, 0
      %v2368 = vsel %vm500, %v2307, 0
      %v2371 = vsel %vm500, %v2308, 0
      %v2374 = vsel %vm500, %v2309, 0
      %v2377 = vsel %vm500, %v2310, 0
      %v2380 = vsel %vm500, %v2311, 0
      %v2383 = vsel %vm500, %v2312, 0
      %v2386 = vsel %vm500, %v2313, 0
      %v2389 = vsel %vm500, %v2314, 0
      %v2392 = vsel %vm500, %v2315, 0
      %v2395 = vsel %vm500, %v2316, 0
      %v2398 = vsel %vm500, %v2317, 0
      %v2401 = vsel %vm500, %v2318, 0
      %v2404 = vsel %vm500, %v2319, 0
      %v2407 = vsel %vm500, %v2320, 0
      %v2410 = vsel %vm500, %v2321, 0
      %v2413 = vsel %vm500, %v2322, 0
      %v2416 = vsel %vm500, %v2323, 0
      %v2419 = vsel %vm500, %v2324, 0
      %v2422 = vsel %vm500, %v2325, 0
      %v2425 = vsel %vm500, %v2326, 0
      %v2428 = vsel %vm500, %v2327, 0
      %v2431 = vsel %vm500, %v2328, 0
      %v2434 = vsel %vm500, %v2329, 0
      %v2437 = vsel %vm500, %v2330, 0
      %v2440 = vsel %vm500, %v2331, 0
      %v2443 = vsel %vm500, %v2332, 0
      %v2446 = vsel %vm500, %v2333, 0
      %v2449 = vsel %vm500, %v2334, 0
      %v2452 = vsel %vm500, %v2335, 0
      %v2455 = vsel %vm500, %v2336, 0
      %v2458 = vsel %vm500, %v2337, 0
      %v2461 = vsel %vm500, %v2338, 0
      %v2464 = vsel %vm500, %v2339, 0
      %v2467 = vsel %vm500, %v2340, 0
      %v2470 = vand.u32 %v2342, %v630
      %2472 = vmatprep.subr.bf16.mxu0 0
      %2473 = vmatpush1.bf16.msra.mxu0 0
      %2474 = vmatprep.subr.bf16.mxu0 0
      %2475 = vmatpush1.bf16.msra.mxu0 0
      %2476 = vmatprep.subr.bf16.mxu0 0
      %2477 = vmatpush1.bf16.msra.mxu0 0
      %2478 = vmatprep.subr.bf16.mxu0 0
      %2479 = vmatpush1.bf16.msra.mxu0 0
      %2480 = vmatprep.subr.bf16.mxu0 0
      %2481 = vmatpush1.bf16.msra.mxu0 0
      %2482 = vmatprep.subr.bf16.mxu0 0
      %2483 = vmatpush1.bf16.msra.mxu0 0
      %2484 = vmatprep.subr.bf16.mxu0 0
      %2485 = vmatpush1.bf16.msra.mxu0 0
      %2486 = vmatprep.subr.bf16.mxu0 0
      %2487 = vmatpush1.bf16.msra.mxu0 %v2470
      %2488 = vmatprep.subr.bf16.mxu0 0
      %2489 = vmatpush2.bf16.msra.mxu0 0
      %2490 = vmatprep.subr.bf16.mxu0 0
      %2491 = vmatpush2.bf16.msra.mxu0 0
      %2492 = vmatprep.subr.bf16.mxu0 0
      %2493 = vmatpush2.bf16.msra.mxu0 0
      %2494 = vmatprep.subr.bf16.mxu0 0
      %2495 = vmatpush2.bf16.msra.mxu0 0
      %2496 = vmatprep.subr.bf16.mxu0 0
      %2497 = vmatpush2.bf16.msra.mxu0 0
      %2498 = vmatprep.subr.bf16.mxu0 0
      %2499 = vmatpush2.bf16.msra.mxu0 0
      %2500 = vmatprep.subr.bf16.mxu0 0
      %2501 = vmatpush2.bf16.msra.mxu0 0
      %2502 = vmatprep.subr.bf16.mxu0 0
      %2503 = vmatpush2.bf16.msra.mxu0 0
      %2504 = vmatprep.mubr.bf16.mxu0 0
      %2505 = vmatmul.mubr.bf16.gmra.mxu0 %v2344
      %v2506 = vpop.f32.mrf.mxu0
      %v2507 = vadd.f32 0.0, %v2506
      %v2508 = vpop.f32.mrf.mxu0
      %v2509 = vpop.f32.mrf.mxu0
      %v2510 = vadd.f32 0.0, %v2509
      %v2511 = vpop.f32.mrf.mxu0
      %2512 = vmatprep.mubr.bf16.mxu0 0
      %2513 = vmatmul.mubr.bf16.gmra.mxu0 %v2347
      %v2514 = vpop.f32.mrf.mxu0
      %v2515 = vadd.f32 0.0, %v2514
      %v2516 = vpop.f32.mrf.mxu0
      %v2517 = vpop.f32.mrf.mxu0
      %v2518 = vadd.f32 0.0, %v2517
      %v2519 = vpop.f32.mrf.mxu0
      %2520 = vmatprep.mubr.bf16.mxu0 0
      %2521 = vmatmul.mubr.bf16.gmra.mxu0 %v2350
      %v2522 = vpop.f32.mrf.mxu0
      %v2523 = vadd.f32 0.0, %v2522
      %v2524 = vpop.f32.mrf.mxu0
      %v2525 = vpop.f32.mrf.mxu0
      %v2526 = vadd.f32 0.0, %v2525
      %v2527 = vpop.f32.mrf.mxu0
      %2528 = vmatprep.mubr.bf16.mxu0 0
      %2529 = vmatmul.mubr.bf16.gmra.mxu0 %v2353
      %v2530 = vpop.f32.mrf.mxu0
      %v2531 = vadd.f32 0.0, %v2530
      %v2532 = vpop.f32.mrf.mxu0
      %v2533 = vpop.f32.mrf.mxu0
      %v2534 = vadd.f32 0.0, %v2533
      %v2535 = vpop.f32.mrf.mxu0
      %2536 = vmatprep.mubr.bf16.mxu0 0
      %2537 = vmatmul.mubr.bf16.gmra.mxu0 %v2356
      %v2538 = vpop.f32.mrf.mxu0
      %v2539 = vadd.f32 0.0, %v2538
      %v2540 = vpop.f32.mrf.mxu0
      %v2541 = vpop.f32.mrf.mxu0
      %v2542 = vadd.f32 0.0, %v2541
      %v2543 = vpop.f32.mrf.mxu0
      %2544 = vmatprep.mubr.bf16.mxu0 0
      %2545 = vmatmul.mubr.bf16.gmra.mxu0 %v2359
      %v2546 = vpop.f32.mrf.mxu0
      %v2547 = vadd.f32 0.0, %v2546
      %v2548 = vpop.f32.mrf.mxu0
      %v2549 = vpop.f32.mrf.mxu0
      %v2550 = vadd.f32 0.0, %v2549
      %v2551 = vpop.f32.mrf.mxu0
      %2552 = vmatprep.mubr.bf16.mxu0 0
      %2553 = vmatmul.mubr.bf16.gmra.mxu0 %v2362
      %v2554 = vpop.f32.mrf.mxu0
      %v2555 = vadd.f32 0.0, %v2554
      %v2556 = vpop.f32.mrf.mxu0
      %v2557 = vpop.f32.mrf.mxu0
      %v2558 = vadd.f32 0.0, %v2557
      %v2559 = vpop.f32.mrf.mxu0
      %2560 = vmatprep.mubr.bf16.mxu0 0
      %2561 = vmatmul.mubr.bf16.gmra.mxu0 %v2365
      %v2562 = vpop.f32.mrf.mxu0
      %v2563 = vadd.f32 0.0, %v2562
      %v2564 = vpop.f32.mrf.mxu0
      %v2565 = vpop.f32.mrf.mxu0
      %v2566 = vadd.f32 0.0, %v2565
      %v2567 = vpop.f32.mrf.mxu0
      %2568 = vmatprep.mubr.bf16.mxu0 0
      %2569 = vmatmul.mubr.bf16.gmra.mxu0 %v2368
      %v2570 = vpop.f32.mrf.mxu0
      %v2571 = vadd.f32 0.0, %v2570
      %v2572 = vpop.f32.mrf.mxu0
      %v2573 = vpop.f32.mrf.mxu0
      %v2574 = vadd.f32 0.0, %v2573
      %v2575 = vpop.f32.mrf.mxu0
      %2576 = vmatprep.mubr.bf16.mxu0 0
      %2577 = vmatmul.mubr.bf16.gmra.mxu0 %v2371
      %v2578 = vpop.f32.mrf.mxu0
      %v2579 = vadd.f32 0.0, %v2578
      %v2580 = vpop.f32.mrf.mxu0
      %v2581 = vpop.f32.mrf.mxu0
      %v2582 = vadd.f32 0.0, %v2581
      %v2583 = vpop.f32.mrf.mxu0
      %2584 = vmatprep.mubr.bf16.mxu0 0
      %2585 = vmatmul.mubr.bf16.gmra.mxu0 %v2374
      %v2586 = vpop.f32.mrf.mxu0
      %v2587 = vadd.f32 0.0, %v2586
      %v2588 = vpop.f32.mrf.mxu0
      %v2589 = vpop.f32.mrf.mxu0
      %v2590 = vadd.f32 0.0, %v2589
      %v2591 = vpop.f32.mrf.mxu0
      %2592 = vmatprep.mubr.bf16.mxu0 0
      %2593 = vmatmul.mubr.bf16.gmra.mxu0 %v2377
      %v2594 = vpop.f32.mrf.mxu0
      %v2595 = vadd.f32 0.0, %v2594
      %v2596 = vpop.f32.mrf.mxu0
      %v2597 = vpop.f32.mrf.mxu0
      %v2598 = vadd.f32 0.0, %v2597
      %v2599 = vpop.f32.mrf.mxu0
      %2600 = vmatprep.mubr.bf16.mxu0 0
      %2601 = vmatmul.mubr.bf16.gmra.mxu0 %v2380
      %v2602 = vpop.f32.mrf.mxu0
      %v2603 = vadd.f32 0.0, %v2602
      %v2604 = vpop.f32.mrf.mxu0
      %v2605 = vpop.f32.mrf.mxu0
      %v2606 = vadd.f32 0.0, %v2605
      %v2607 = vpop.f32.mrf.mxu0
      %2608 = vmatprep.mubr.bf16.mxu0 0
      %2609 = vmatmul.mubr.bf16.gmra.mxu0 %v2383
      %v2610 = vpop.f32.mrf.mxu0
      %v2611 = vadd.f32 0.0, %v2610
      %v2612 = vpop.f32.mrf.mxu0
      %v2613 = vpop.f32.mrf.mxu0
      %v2614 = vadd.f32 0.0, %v2613
      %v2615 = vpop.f32.mrf.mxu0
      %2616 = vmatprep.mubr.bf16.mxu0 0
      %2617 = vmatmul.mubr.bf16.gmra.mxu0 %v2386
      %v2618 = vpop.f32.mrf.mxu0
      %v2619 = vadd.f32 0.0, %v2618
      %v2620 = vpop.f32.mrf.mxu0
      %v2621 = vpop.f32.mrf.mxu0
      %v2622 = vadd.f32 0.0, %v2621
      %v2623 = vpop.f32.mrf.mxu0
      %2624 = vmatprep.mubr.bf16.mxu0 0
      %2625 = vmatmul.mubr.bf16.gmra.mxu0 %v2389
      %v2626 = vpop.f32.mrf.mxu0
      %v2627 = vadd.f32 0.0, %v2626
      %v2628 = vpop.f32.mrf.mxu0
      %v2629 = vpop.f32.mrf.mxu0
      %v2630 = vadd.f32 0.0, %v2629
      %v2631 = vpop.f32.mrf.mxu0
      %2632 = vmatprep.mubr.bf16.mxu0 0
      %2633 = vmatmul.mubr.bf16.gmra.mxu0 %v2392
      %v2634 = vpop.f32.mrf.mxu0
      %v2635 = vadd.f32 0.0, %v2634
      %v2636 = vpop.f32.mrf.mxu0
      %v2637 = vpop.f32.mrf.mxu0
      %v2638 = vadd.f32 0.0, %v2637
      %v2639 = vpop.f32.mrf.mxu0
      %2640 = vmatprep.mubr.bf16.mxu0 0
      %2641 = vmatmul.mubr.bf16.gmra.mxu0 %v2395
      %v2642 = vpop.f32.mrf.mxu0
      %v2643 = vadd.f32 0.0, %v2642
      %v2644 = vpop.f32.mrf.mxu0
      %v2645 = vpop.f32.mrf.mxu0
      %v2646 = vadd.f32 0.0, %v2645
      %v2647 = vpop.f32.mrf.mxu0
      %2648 = vmatprep.mubr.bf16.mxu0 0
      %2649 = vmatmul.mubr.bf16.gmra.mxu0 %v2398
      %v2650 = vpop.f32.mrf.mxu0
      %v2651 = vadd.f32 0.0, %v2650
      %v2652 = vpop.f32.mrf.mxu0
      %v2653 = vpop.f32.mrf.mxu0
      %v2654 = vadd.f32 0.0, %v2653
      %v2655 = vpop.f32.mrf.mxu0
      %2656 = vmatprep.mubr.bf16.mxu0 0
      %2657 = vmatmul.mubr.bf16.gmra.mxu0 %v2401
      %v2658 = vpop.f32.mrf.mxu0
      %v2659 = vadd.f32 0.0, %v2658
      %v2660 = vpop.f32.mrf.mxu0
      %v2661 = vpop.f32.mrf.mxu0
      %v2662 = vadd.f32 0.0, %v2661
      %v2663 = vpop.f32.mrf.mxu0
      %2664 = vmatprep.mubr.bf16.mxu0 0
      %2665 = vmatmul.mubr.bf16.gmra.mxu0 %v2404
      %v2666 = vpop.f32.mrf.mxu0
      %v2667 = vadd.f32 0.0, %v2666
      %v2668 = vpop.f32.mrf.mxu0
      %v2669 = vpop.f32.mrf.mxu0
      %v2670 = vadd.f32 0.0, %v2669
      %v2671 = vpop.f32.mrf.mxu0
      %2672 = vmatprep.mubr.bf16.mxu0 0
      %2673 = vmatmul.mubr.bf16.gmra.mxu0 %v2407
      %v2674 = vpop.f32.mrf.mxu0
      %v2675 = vadd.f32 0.0, %v2674
      %v2676 = vpop.f32.mrf.mxu0
      %v2677 = vpop.f32.mrf.mxu0
      %v2678 = vadd.f32 0.0, %v2677
      %v2679 = vpop.f32.mrf.mxu0
      %2680 = vmatprep.mubr.bf16.mxu0 0
      %2681 = vmatmul.mubr.bf16.gmra.mxu0 %v2410
      %v2682 = vpop.f32.mrf.mxu0
      %v2683 = vadd.f32 0.0, %v2682
      %v2684 = vpop.f32.mrf.mxu0
      %v2685 = vpop.f32.mrf.mxu0
      %v2686 = vadd.f32 0.0, %v2685
      %v2687 = vpop.f32.mrf.mxu0
      %2688 = vmatprep.mubr.bf16.mxu0 0
      %2689 = vmatmul.mubr.bf16.gmra.mxu0 %v2413
      %v2690 = vpop.f32.mrf.mxu0
      %v2691 = vadd.f32 0.0, %v2690
      %v2692 = vpop.f32.mrf.mxu0
      %v2693 = vpop.f32.mrf.mxu0
      %v2694 = vadd.f32 0.0, %v2693
      %v2695 = vpop.f32.mrf.mxu0
      %2696 = vmatprep.mubr.bf16.mxu0 0
      %2697 = vmatmul.mubr.bf16.gmra.mxu0 %v2416
      %v2698 = vpop.f32.mrf.mxu0
      %v2699 = vadd.f32 0.0, %v2698
      %v2700 = vpop.f32.mrf.mxu0
      %v2701 = vpop.f32.mrf.mxu0
      %v2702 = vadd.f32 0.0, %v2701
      %v2703 = vpop.f32.mrf.mxu0
      %2704 = vmatprep.mubr.bf16.mxu0 0
      %2705 = vmatmul.mubr.bf16.gmra.mxu0 %v2419
      %v2706 = vpop.f32.mrf.mxu0
      %v2707 = vadd.f32 0.0, %v2706
      %v2708 = vpop.f32.mrf.mxu0
      %v2709 = vpop.f32.mrf.mxu0
      %v2710 = vadd.f32 0.0, %v2709
      %v2711 = vpop.f32.mrf.mxu0
      %2712 = vmatprep.mubr.bf16.mxu0 0
      %2713 = vmatmul.mubr.bf16.gmra.mxu0 %v2422
      %v2714 = vpop.f32.mrf.mxu0
      %v2715 = vadd.f32 0.0, %v2714
      %v2716 = vpop.f32.mrf.mxu0
      %v2717 = vpop.f32.mrf.mxu0
      %v2718 = vadd.f32 0.0, %v2717
      %v2719 = vpop.f32.mrf.mxu0
      %2720 = vmatprep.mubr.bf16.mxu0 0
      %2721 = vmatmul.mubr.bf16.gmra.mxu0 %v2425
      %v2722 = vpop.f32.mrf.mxu0
      %v2723 = vadd.f32 0.0, %v2722
      %v2724 = vpop.f32.mrf.mxu0
      %v2725 = vpop.f32.mrf.mxu0
      %v2726 = vadd.f32 0.0, %v2725
      %v2727 = vpop.f32.mrf.mxu0
      %2728 = vmatprep.mubr.bf16.mxu0 0
      %2729 = vmatmul.mubr.bf16.gmra.mxu0 %v2428
      %v2730 = vpop.f32.mrf.mxu0
      %v2731 = vadd.f32 0.0, %v2730
      %v2732 = vpop.f32.mrf.mxu0
      %v2733 = vpop.f32.mrf.mxu0
      %v2734 = vadd.f32 0.0, %v2733
      %v2735 = vpop.f32.mrf.mxu0
      %2736 = vmatprep.mubr.bf16.mxu0 0
      %2737 = vmatmul.mubr.bf16.gmra.mxu0 %v2431
      %v2738 = vpop.f32.mrf.mxu0
      %v2739 = vadd.f32 0.0, %v2738
      %v2740 = vpop.f32.mrf.mxu0
      %v2741 = vpop.f32.mrf.mxu0
      %v2742 = vadd.f32 0.0, %v2741
      %v2743 = vpop.f32.mrf.mxu0
      %2744 = vmatprep.mubr.bf16.mxu0 0
      %2745 = vmatmul.mubr.bf16.gmra.mxu0 %v2434
      %v2746 = vpop.f32.mrf.mxu0
      %v2747 = vadd.f32 0.0, %v2746
      %v2748 = vpop.f32.mrf.mxu0
      %v2749 = vpop.f32.mrf.mxu0
      %v2750 = vadd.f32 0.0, %v2749
      %v2751 = vpop.f32.mrf.mxu0
      %2752 = vmatprep.mubr.bf16.mxu0 0
      %2753 = vmatmul.mubr.bf16.gmra.mxu0 %v2437
      %v2754 = vpop.f32.mrf.mxu0
      %v2755 = vadd.f32 0.0, %v2754
      %v2756 = vpop.f32.mrf.mxu0
      %v2757 = vpop.f32.mrf.mxu0
      %v2758 = vadd.f32 0.0, %v2757
      %v2759 = vpop.f32.mrf.mxu0
      %2760 = vmatprep.mubr.bf16.mxu0 0
      %2761 = vmatmul.mubr.bf16.gmra.mxu0 %v2440
      %v2762 = vpop.f32.mrf.mxu0
      %v2763 = vadd.f32 0.0, %v2762
      %v2764 = vpop.f32.mrf.mxu0
      %v2765 = vpop.f32.mrf.mxu0
      %v2766 = vadd.f32 0.0, %v2765
      %v2767 = vpop.f32.mrf.mxu0
      %2768 = vmatprep.mubr.bf16.mxu0 0
      %2769 = vmatmul.mubr.bf16.gmra.mxu0 %v2443
      %v2770 = vpop.f32.mrf.mxu0
      %v2771 = vadd.f32 0.0, %v2770
      %v2772 = vpop.f32.mrf.mxu0
      %v2773 = vpop.f32.mrf.mxu0
      %v2774 = vadd.f32 0.0, %v2773
      %v2775 = vpop.f32.mrf.mxu0
      %2776 = vmatprep.mubr.bf16.mxu0 0
      %2777 = vmatmul.mubr.bf16.gmra.mxu0 %v2446
      %v2778 = vpop.f32.mrf.mxu0
      %v2779 = vadd.f32 0.0, %v2778
      %v2780 = vpop.f32.mrf.mxu0
      %v2781 = vpop.f32.mrf.mxu0
      %v2782 = vadd.f32 0.0, %v2781
      %v2783 = vpop.f32.mrf.mxu0
      %2784 = vmatprep.mubr.bf16.mxu0 0
      %2785 = vmatmul.mubr.bf16.gmra.mxu0 %v2449
      %v2786 = vpop.f32.mrf.mxu0
      %v2787 = vadd.f32 0.0, %v2786
      %v2788 = vpop.f32.mrf.mxu0
      %v2789 = vpop.f32.mrf.mxu0
      %v2790 = vadd.f32 0.0, %v2789
      %v2791 = vpop.f32.mrf.mxu0
      %2792 = vmatprep.mubr.bf16.mxu0 0
      %2793 = vmatmul.mubr.bf16.gmra.mxu0 %v2452
      %v2794 = vpop.f32.mrf.mxu0
      %v2795 = vadd.f32 0.0, %v2794
      %v2796 = vpop.f32.mrf.mxu0
      %v2797 = vpop.f32.mrf.mxu0
      %v2798 = vadd.f32 0.0, %v2797
      %v2799 = vpop.f32.mrf.mxu0
      %2800 = vmatprep.mubr.bf16.mxu0 0
      %2801 = vmatmul.mubr.bf16.gmra.mxu0 %v2455
      %v2802 = vpop.f32.mrf.mxu0
      %v2803 = vadd.f32 0.0, %v2802
      %v2804 = vpop.f32.mrf.mxu0
      %v2805 = vpop.f32.mrf.mxu0
      %v2806 = vadd.f32 0.0, %v2805
      %v2807 = vpop.f32.mrf.mxu0
      %2808 = vmatprep.mubr.bf16.mxu0 0
      %2809 = vmatmul.mubr.bf16.gmra.mxu0 %v2458
      %v2810 = vpop.f32.mrf.mxu0
      %v2811 = vadd.f32 0.0, %v2810
      %v2812 = vpop.f32.mrf.mxu0
      %v2813 = vpop.f32.mrf.mxu0
      %v2814 = vadd.f32 0.0, %v2813
      %v2815 = vpop.f32.mrf.mxu0
      %2816 = vmatprep.mubr.bf16.mxu0 0
      %2817 = vmatmul.mubr.bf16.gmra.mxu0 %v2461
      %v2818 = vpop.f32.mrf.mxu0
      %v2819 = vadd.f32 0.0, %v2818
      %v2820 = vpop.f32.mrf.mxu0
      %v2821 = vpop.f32.mrf.mxu0
      %v2822 = vadd.f32 0.0, %v2821
      %v2823 = vpop.f32.mrf.mxu0
      %2824 = vmatprep.mubr.bf16.mxu0 0
      %2825 = vmatmul.mubr.bf16.gmra.mxu0 %v2464
      %v2826 = vpop.f32.mrf.mxu0
      %v2827 = vadd.f32 0.0, %v2826
      %v2828 = vpop.f32.mrf.mxu0
      %v2829 = vpop.f32.mrf.mxu0
      %v2830 = vadd.f32 0.0, %v2829
      %v2831 = vpop.f32.mrf.mxu0
      %2832 = vmatprep.mubr.bf16.mxu0 0
      %2833 = vmatmul.mubr.bf16.gmra.mxu0 %v2467
      %v2834 = vpop.f32.mrf.mxu0
      %v2835 = vadd.f32 0.0, %v2834
      %v2836 = vpop.f32.mrf.mxu0
      %v2837 = vpop.f32.mrf.mxu0
      %v2838 = vadd.f32 0.0, %v2837
      %v2839 = vpop.f32.mrf.mxu0
      %2840 = vdwg.mxu0
      %v2841 = vadd.f32 %v2129, %v2507
      %v2842 = vadd.f32 %v2130, %v2510
      %v2843 = vadd.f32 %v2131, %v2515
      %v2844 = vadd.f32 %v2132, %v2518
      %v2845 = vadd.f32 %v2133, %v2523
      %v2846 = vadd.f32 %v2134, %v2526
      %v2847 = vadd.f32 %v2135, %v2531
      %v2848 = vadd.f32 %v2136, %v2534
      %v2849 = vadd.f32 %v2137, %v2539
      %v2850 = vadd.f32 %v2138, %v2542
      %v2851 = vadd.f32 %v2139, %v2547
      %v2852 = vadd.f32 %v2140, %v2550
      %v2853 = vadd.f32 %v2141, %v2555
      %v2854 = vadd.f32 %v2142, %v2558
      %v2855 = vadd.f32 %v2143, %v2563
      %v2856 = vadd.f32 %v2144, %v2566
      %v2857 = vadd.f32 %v2145, %v2571
      %v2858 = vadd.f32 %v2146, %v2574
      %v2859 = vadd.f32 %v2147, %v2579
      %v2860 = vadd.f32 %v2148, %v2582
      %v2861 = vadd.f32 %v2149, %v2587
      %v2862 = vadd.f32 %v2150, %v2590
      %v2863 = vadd.f32 %v2151, %v2595
      %v2864 = vadd.f32 %v2152, %v2598
      %v2865 = vadd.f32 %v2153, %v2603
      %v2866 = vadd.f32 %v2154, %v2606
      %v2867 = vadd.f32 %v2155, %v2611
      %v2868 = vadd.f32 %v2156, %v2614
      %v2869 = vadd.f32 %v2157, %v2619
      %v2870 = vadd.f32 %v2158, %v2622
      %v2871 = vadd.f32 %v2159, %v2627
      %v2872 = vadd.f32 %v2160, %v2630
      %v2873 = vadd.f32 %v2161, %v2635
      %v2874 = vadd.f32 %v2162, %v2638
      %v2875 = vadd.f32 %v2163, %v2643
      %v2876 = vadd.f32 %v2164, %v2646
      %v2877 = vadd.f32 %v2165, %v2651
      %v2878 = vadd.f32 %v2166, %v2654
      %v2879 = vadd.f32 %v2167, %v2659
      %v2880 = vadd.f32 %v2168, %v2662
      %v2881 = vadd.f32 %v2169, %v2667
      %v2882 = vadd.f32 %v2170, %v2670
      %v2883 = vadd.f32 %v2171, %v2675
      %v2884 = vadd.f32 %v2172, %v2678
      %v2885 = vadd.f32 %v2173, %v2683
      %v2886 = vadd.f32 %v2174, %v2686
      %v2887 = vadd.f32 %v2175, %v2691
      %v2888 = vadd.f32 %v2176, %v2694
      %v2889 = vadd.f32 %v2177, %v2699
      %v2890 = vadd.f32 %v2178, %v2702
      %v2891 = vadd.f32 %v2179, %v2707
      %v2892 = vadd.f32 %v2180, %v2710
      %v2893 = vadd.f32 %v2181, %v2715
      %v2894 = vadd.f32 %v2182, %v2718
      %v2895 = vadd.f32 %v2183, %v2723
      %v2896 = vadd.f32 %v2184, %v2726
      %v2897 = vadd.f32 %v2185, %v2731
      %v2898 = vadd.f32 %v2186, %v2734
      %v2899 = vadd.f32 %v2187, %v2739
      %v2900 = vadd.f32 %v2188, %v2742
      %v2901 = vadd.f32 %v2189, %v2747
      %v2902 = vadd.f32 %v2190, %v2750
      %v2903 = vadd.f32 %v2191, %v2755
      %v2904 = vadd.f32 %v2192, %v2758
      %v2905 = vadd.f32 %v2193, %v2763
      %v2906 = vadd.f32 %v2194, %v2766
      %v2907 = vadd.f32 %v2195, %v2771
      %v2908 = vadd.f32 %v2196, %v2774
      %v2909 = vadd.f32 %v2197, %v2779
      %v2910 = vadd.f32 %v2198, %v2782
      %v2911 = vadd.f32 %v2199, %v2787
      %v2912 = vadd.f32 %v2200, %v2790
      %v2913 = vadd.f32 %v2201, %v2795
      %v2914 = vadd.f32 %v2202, %v2798
      %v2915 = vadd.f32 %v2203, %v2803
      %v2916 = vadd.f32 %v2204, %v2806
      %v2917 = vadd.f32 %v2205, %v2811
      %v2918 = vadd.f32 %v2206, %v2814
      %v2919 = vadd.f32 %v2207, %v2819
      %v2920 = vadd.f32 %v2208, %v2822
      %v2921 = vadd.f32 %v2209, %v2827
      %v2922 = vadd.f32 %v2210, %v2830
      %v2923 = vadd.f32 %v2211, %v2835
      %v2924 = vadd.f32 %v2212, %v2838
      %s2925 = sadd.s32 %s241, 225
      %s2926 = scalar_lea.vmem %s219, %s2925
      %v2927 = vld [vmem:[%s2926] sm:$0xff]
      %v2928 = vld [vmem:[%s2926 + $0x8] sm:$0xff]
      %v2929 = vld [vmem:[%s2926 + $0x10] sm:$0xff]
      %v2930 = vld [vmem:[%s2926 + $0x18] sm:$0xff]
      %v2931 = vld [vmem:[%s2926 + $0x20] sm:$0xff]
      %v2932 = vld [vmem:[%s2926 + $0x28] sm:$0xff]
      %v2933 = vld [vmem:[%s2926 + $0x30] sm:$0xff]
      %v2934 = vld [vmem:[%s2926 + $0x38] sm:$0xff]
      %v2935 = vld [vmem:[%s2926 + $0x40] sm:$0xff]
      %v2936 = vld [vmem:[%s2926 + $0x48] sm:$0xff]
      %v2937 = vld [vmem:[%s2926 + $0x50] sm:$0xff]
      %v2938 = vld [vmem:[%s2926 + $0x58] sm:$0xff]
      %v2939 = vld [vmem:[%s2926 + $0x60] sm:$0xff]
      %v2940 = vld [vmem:[%s2926 + $0x68] sm:$0xff]
      %v2941 = vld [vmem:[%s2926 + $0x70] sm:$0xff]
      %v2942 = vld [vmem:[%s2926 + $0x78] sm:$0xff]
      %v2943 = vld [vmem:[%s2926 + $0x80] sm:$0xff]
      %v2944 = vld [vmem:[%s2926 + $0x88] sm:$0xff]
      %v2945 = vld [vmem:[%s2926 + $0x90] sm:$0xff]
      %v2946 = vld [vmem:[%s2926 + $0x98] sm:$0xff]
      %v2947 = vld [vmem:[%s2926 + $0xa0] sm:$0xff]
      %v2948 = vld [vmem:[%s2926 + $0xa8] sm:$0xff]
      %v2949 = vld [vmem:[%s2926 + $0xb0] sm:$0xff]
      %v2950 = vld [vmem:[%s2926 + $0xb8] sm:$0xff]
      %v2951 = vld [vmem:[%s2926 + $0xc0] sm:$0xff]
      %v2952 = vld [vmem:[%s2926 + $0xc8] sm:$0xff]
      %v2953 = vld [vmem:[%s2926 + $0xd0] sm:$0xff]
      %v2954 = vld [vmem:[%s2926 + $0xd8] sm:$0xff]
      %v2955 = vld [vmem:[%s2926 + $0xe0] sm:$0xff]
      %v2956 = vld [vmem:[%s2926 + $0xe8] sm:$0xff]
      %v2957 = vld [vmem:[%s2926 + $0xf0] sm:$0xff]
      %v2958 = vld [vmem:[%s2926 + $0xf8] sm:$0xff]
      %v2959 = vld [vmem:[%s2926 + $0x100] sm:$0xff]
      %v2960 = vld [vmem:[%s2926 + $0x108] sm:$0xff]
      %v2961 = vld [vmem:[%s2926 + $0x110] sm:$0xff]
      %v2962 = vld [vmem:[%s2926 + $0x118] sm:$0xff]
      %v2963 = vld [vmem:[%s2926 + $0x120] sm:$0xff]
      %v2964 = vld [vmem:[%s2926 + $0x128] sm:$0xff]
      %v2965 = vld [vmem:[%s2926 + $0x130] sm:$0xff]
      %v2966 = vld [vmem:[%s2926 + $0x138] sm:$0xff]
      %v2967 = vld [vmem:[%s2926 + $0x140] sm:$0xff]
      %v2968 = vld [vmem:[%s2926 + $0x148] sm:$0xff]
      %v2969 = vld [vmem:[%s2926 + $0x150] sm:$0xff]
      %v2970 = vld [vmem:[%s2926 + $0x158] sm:$0xff]
      %v2971 = vld [vmem:[%s2926 + $0x160] sm:$0xff]
      %v2972 = vld [vmem:[%s2926 + $0x168] sm:$0xff]
      %v2973 = vld [vmem:[%s2926 + $0x170] sm:$0xff]
      %v2974 = vld [vmem:[%s2926 + $0x178] sm:$0xff]
      %v2975 = vld [vmem:[%s2926 + $0x180] sm:$0xff]
      %v2976 = vld [vmem:[%s2926 + $0x188] sm:$0xff]
      %v2977 = vld [vmem:[%s2926 + $0x190] sm:$0xff]
      %v2978 = vld [vmem:[%s2926 + $0x198] sm:$0xff]
      %v2979 = vld [vmem:[%s2926 + $0x1a0] sm:$0xff]
      %v2980 = vld [vmem:[%s2926 + $0x1a8] sm:$0xff]
      %v2981 = vld [vmem:[%s2926 + $0x1b0] sm:$0xff]
      %v2982 = vld [vmem:[%s2926 + $0x1b8] sm:$0xff]
      %v2983 = vld [vmem:[%s2926 + $0x1c0] sm:$0xff]
      %v2984 = vld [vmem:[%s2926 + $0x1c8] sm:$0xff]
      %v2985 = vld [vmem:[%s2926 + $0x1d0] sm:$0xff]
      %v2986 = vld [vmem:[%s2926 + $0x1d8] sm:$0xff]
      %v2987 = vld [vmem:[%s2926 + $0x1e0] sm:$0xff]
      %v2988 = vld [vmem:[%s2926 + $0x1e8] sm:$0xff]
      %v2989 = vld [vmem:[%s2926 + $0x1f0] sm:$0xff]
      %v2990 = vld [vmem:[%s2926 + $0x1f8] sm:$0xff]
      %v2991 = vld [vmem:[%s2926 + $0x200] sm:$0xff]
      %v2992 = vld [vmem:[%s2926 + $0x208] sm:$0xff]
      %v2993 = vld [vmem:[%s2926 + $0x210] sm:$0xff]
      %v2994 = vld [vmem:[%s2926 + $0x218] sm:$0xff]
      %v2995 = vld [vmem:[%s2926 + $0x220] sm:$0xff]
      %v2996 = vld [vmem:[%s2926 + $0x228] sm:$0xff]
      %v2997 = vld [vmem:[%s2926 + $0x230] sm:$0xff]
      %v2998 = vld [vmem:[%s2926 + $0x238] sm:$0xff]
      %v2999 = vld [vmem:[%s2926 + $0x240] sm:$0xff]
      %v3000 = vld [vmem:[%s2926 + $0x248] sm:$0xff]
      %v3001 = vld [vmem:[%s2926 + $0x250] sm:$0xff]
      %v3002 = vld [vmem:[%s2926 + $0x258] sm:$0xff]
      %v3003 = vld [vmem:[%s2926 + $0x260] sm:$0xff]
      %v3004 = vld [vmem:[%s2926 + $0x268] sm:$0xff]
      %v3005 = vld [vmem:[%s2926 + $0x270] sm:$0xff]
      %v3006 = vld [vmem:[%s2926 + $0x278] sm:$0xff]
      %v3007 = vld [vmem:[%s2926 + $0x280] sm:$0xff]
      %v3008 = vld [vmem:[%s2926 + $0x288] sm:$0xff]
      %v3009 = vld [vmem:[%s2926 + $0x290] sm:$0xff]
      %v3010 = vld [vmem:[%s2926 + $0x298] sm:$0xff]
      %v3011 = vpack.c.bf16 %v2928, %v2927
      %v3012 = vpack.c.bf16 %v2930, %v2929
      %v3013 = vpack.c.bf16 %v2932, %v2931
      %v3014 = vpack.c.bf16 %v2934, %v2933
      %v3015 = vpack.c.bf16 %v2936, %v2935
      %v3016 = vpack.c.bf16 %v2938, %v2937
      %v3017 = vpack.c.bf16 %v2940, %v2939
      %v3018 = vpack.c.bf16 %v2942, %v2941
      %v3019 = vpack.c.bf16 %v2944, %v2943
      %v3020 = vpack.c.bf16 %v2946, %v2945
      %v3021 = vpack.c.bf16 %v2948, %v2947
      %v3022 = vpack.c.bf16 %v2950, %v2949
      %v3023 = vpack.c.bf16 %v2952, %v2951
      %v3024 = vpack.c.bf16 %v2954, %v2953
      %v3025 = vpack.c.bf16 %v2956, %v2955
      %v3026 = vpack.c.bf16 %v2958, %v2957
      %v3027 = vpack.c.bf16 %v2960, %v2959
      %v3028 = vpack.c.bf16 %v2962, %v2961
      %v3029 = vpack.c.bf16 %v2964, %v2963
      %v3030 = vpack.c.bf16 %v2966, %v2965
      %v3031 = vpack.c.bf16 %v2968, %v2967
      %v3032 = vpack.c.bf16 %v2970, %v2969
      %v3033 = vpack.c.bf16 %v2972, %v2971
      %v3034 = vpack.c.bf16 %v2974, %v2973
      %v3035 = vpack.c.bf16 %v2976, %v2975
      %v3036 = vpack.c.bf16 %v2978, %v2977
      %v3037 = vpack.c.bf16 %v2980, %v2979
      %v3038 = vpack.c.bf16 %v2982, %v2981
      %v3039 = vpack.c.bf16 %v2984, %v2983
      %v3040 = vpack.c.bf16 %v2986, %v2985
      %v3041 = vpack.c.bf16 %v2988, %v2987
      %v3042 = vpack.c.bf16 %v2990, %v2989
      %v3043 = vpack.c.bf16 %v2992, %v2991
      %v3044 = vpack.c.bf16 %v2994, %v2993
      %v3045 = vpack.c.bf16 %v2996, %v2995
      %v3046 = vpack.c.bf16 %v2998, %v2997
      %v3047 = vpack.c.bf16 %v3000, %v2999
      %v3048 = vpack.c.bf16 %v3002, %v3001
      %v3049 = vpack.c.bf16 %v3004, %v3003
      %v3050 = vpack.c.bf16 %v3006, %v3005
      %v3051 = vpack.c.bf16 %v3008, %v3007
      %v3052 = vpack.c.bf16 %v3010, %v3009
      %s3053 = scalar_lea.vmem %s223, 8
      %v3054 = vld [vmem:[%s3053] sm:$0x3]
      %v3056 = vsel %vm500, %v3011, 0
      %v3059 = vsel %vm500, %v3012, 0
      %v3062 = vsel %vm500, %v3013, 0
      %v3065 = vsel %vm500, %v3014, 0
      %v3068 = vsel %vm500, %v3015, 0
      %v3071 = vsel %vm500, %v3016, 0
      %v3074 = vsel %vm500, %v3017, 0
      %v3077 = vsel %vm500, %v3018, 0
      %v3080 = vsel %vm500, %v3019, 0
      %v3083 = vsel %vm500, %v3020, 0
      %v3086 = vsel %vm500, %v3021, 0
      %v3089 = vsel %vm500, %v3022, 0
      %v3092 = vsel %vm500, %v3023, 0
      %v3095 = vsel %vm500, %v3024, 0
      %v3098 = vsel %vm500, %v3025, 0
      %v3101 = vsel %vm500, %v3026, 0
      %v3104 = vsel %vm500, %v3027, 0
      %v3107 = vsel %vm500, %v3028, 0
      %v3110 = vsel %vm500, %v3029, 0
      %v3113 = vsel %vm500, %v3030, 0
      %v3116 = vsel %vm500, %v3031, 0
      %v3119 = vsel %vm500, %v3032, 0
      %v3122 = vsel %vm500, %v3033, 0
      %v3125 = vsel %vm500, %v3034, 0
      %v3128 = vsel %vm500, %v3035, 0
      %v3131 = vsel %vm500, %v3036, 0
      %v3134 = vsel %vm500, %v3037, 0
      %v3137 = vsel %vm500, %v3038, 0
      %v3140 = vsel %vm500, %v3039, 0
      %v3143 = vsel %vm500, %v3040, 0
      %v3146 = vsel %vm500, %v3041, 0
      %v3149 = vsel %vm500, %v3042, 0
      %v3152 = vsel %vm500, %v3043, 0
      %v3155 = vsel %vm500, %v3044, 0
      %v3158 = vsel %vm500, %v3045, 0
      %v3161 = vsel %vm500, %v3046, 0
      %v3164 = vsel %vm500, %v3047, 0
      %v3167 = vsel %vm500, %v3048, 0
      %v3170 = vsel %vm500, %v3049, 0
      %v3173 = vsel %vm500, %v3050, 0
      %v3176 = vsel %vm500, %v3051, 0
      %v3179 = vsel %vm500, %v3052, 0
      %v3182 = vand.u32 %v3054, %v630
      %3184 = vmatprep.subr.bf16.mxu0 0
      %3185 = vmatpush1.bf16.msra.mxu0 0
      %3186 = vmatprep.subr.bf16.mxu0 0
      %3187 = vmatpush1.bf16.msra.mxu0 0
      %3188 = vmatprep.subr.bf16.mxu0 0
      %3189 = vmatpush1.bf16.msra.mxu0 0
      %3190 = vmatprep.subr.bf16.mxu0 0
      %3191 = vmatpush1.bf16.msra.mxu0 0
      %3192 = vmatprep.subr.bf16.mxu0 0
      %3193 = vmatpush1.bf16.msra.mxu0 0
      %3194 = vmatprep.subr.bf16.mxu0 0
      %3195 = vmatpush1.bf16.msra.mxu0 0
      %3196 = vmatprep.subr.bf16.mxu0 0
      %3197 = vmatpush1.bf16.msra.mxu0 0
      %3198 = vmatprep.subr.bf16.mxu0 0
      %3199 = vmatpush1.bf16.msra.mxu0 %v3182
      %3200 = vmatprep.subr.bf16.mxu0 0
      %3201 = vmatpush2.bf16.msra.mxu0 0
      %3202 = vmatprep.subr.bf16.mxu0 0
      %3203 = vmatpush2.bf16.msra.mxu0 0
      %3204 = vmatprep.subr.bf16.mxu0 0
      %3205 = vmatpush2.bf16.msra.mxu0 0
      %3206 = vmatprep.subr.bf16.mxu0 0
      %3207 = vmatpush2.bf16.msra.mxu0 0
      %3208 = vmatprep.subr.bf16.mxu0 0
      %3209 = vmatpush2.bf16.msra.mxu0 0
      %3210 = vmatprep.subr.bf16.mxu0 0
      %3211 = vmatpush2.bf16.msra.mxu0 0
      %3212 = vmatprep.subr.bf16.mxu0 0
      %3213 = vmatpush2.bf16.msra.mxu0 0
      %3214 = vmatprep.subr.bf16.mxu0 0
      %3215 = vmatpush2.bf16.msra.mxu0 0
      %3216 = vmatprep.mubr.bf16.mxu0 0
      %3217 = vmatmul.mubr.bf16.gmra.mxu0 %v3056
      %v3218 = vpop.f32.mrf.mxu0
      %v3219 = vadd.f32 0.0, %v3218
      %v3220 = vpop.f32.mrf.mxu0
      %v3221 = vpop.f32.mrf.mxu0
      %v3222 = vadd.f32 0.0, %v3221
      %v3223 = vpop.f32.mrf.mxu0
      %3224 = vmatprep.mubr.bf16.mxu0 0
      %3225 = vmatmul.mubr.bf16.gmra.mxu0 %v3059
      %v3226 = vpop.f32.mrf.mxu0
      %v3227 = vadd.f32 0.0, %v3226
      %v3228 = vpop.f32.mrf.mxu0
      %v3229 = vpop.f32.mrf.mxu0
      %v3230 = vadd.f32 0.0, %v3229
      %v3231 = vpop.f32.mrf.mxu0
      %3232 = vmatprep.mubr.bf16.mxu0 0
      %3233 = vmatmul.mubr.bf16.gmra.mxu0 %v3062
      %v3234 = vpop.f32.mrf.mxu0
      %v3235 = vadd.f32 0.0, %v3234
      %v3236 = vpop.f32.mrf.mxu0
      %v3237 = vpop.f32.mrf.mxu0
      %v3238 = vadd.f32 0.0, %v3237
      %v3239 = vpop.f32.mrf.mxu0
      %3240 = vmatprep.mubr.bf16.mxu0 0
      %3241 = vmatmul.mubr.bf16.gmra.mxu0 %v3065
      %v3242 = vpop.f32.mrf.mxu0
      %v3243 = vadd.f32 0.0, %v3242
      %v3244 = vpop.f32.mrf.mxu0
      %v3245 = vpop.f32.mrf.mxu0
      %v3246 = vadd.f32 0.0, %v3245
      %v3247 = vpop.f32.mrf.mxu0
      %3248 = vmatprep.mubr.bf16.mxu0 0
      %3249 = vmatmul.mubr.bf16.gmra.mxu0 %v3068
      %v3250 = vpop.f32.mrf.mxu0
      %v3251 = vadd.f32 0.0, %v3250
      %v3252 = vpop.f32.mrf.mxu0
      %v3253 = vpop.f32.mrf.mxu0
      %v3254 = vadd.f32 0.0, %v3253
      %v3255 = vpop.f32.mrf.mxu0
      %3256 = vmatprep.mubr.bf16.mxu0 0
      %3257 = vmatmul.mubr.bf16.gmra.mxu0 %v3071
      %v3258 = vpop.f32.mrf.mxu0
      %v3259 = vadd.f32 0.0, %v3258
      %v3260 = vpop.f32.mrf.mxu0
      %v3261 = vpop.f32.mrf.mxu0
      %v3262 = vadd.f32 0.0, %v3261
      %v3263 = vpop.f32.mrf.mxu0
      %3264 = vmatprep.mubr.bf16.mxu0 0
      %3265 = vmatmul.mubr.bf16.gmra.mxu0 %v3074
      %v3266 = vpop.f32.mrf.mxu0
      %v3267 = vadd.f32 0.0, %v3266
      %v3268 = vpop.f32.mrf.mxu0
      %v3269 = vpop.f32.mrf.mxu0
      %v3270 = vadd.f32 0.0, %v3269
      %v3271 = vpop.f32.mrf.mxu0
      %3272 = vmatprep.mubr.bf16.mxu0 0
      %3273 = vmatmul.mubr.bf16.gmra.mxu0 %v3077
      %v3274 = vpop.f32.mrf.mxu0
      %v3275 = vadd.f32 0.0, %v3274
      %v3276 = vpop.f32.mrf.mxu0
      %v3277 = vpop.f32.mrf.mxu0
      %v3278 = vadd.f32 0.0, %v3277
      %v3279 = vpop.f32.mrf.mxu0
      %3280 = vmatprep.mubr.bf16.mxu0 0
      %3281 = vmatmul.mubr.bf16.gmra.mxu0 %v3080
      %v3282 = vpop.f32.mrf.mxu0
      %v3283 = vadd.f32 0.0, %v3282
      %v3284 = vpop.f32.mrf.mxu0
      %v3285 = vpop.f32.mrf.mxu0
      %v3286 = vadd.f32 0.0, %v3285
      %v3287 = vpop.f32.mrf.mxu0
      %3288 = vmatprep.mubr.bf16.mxu0 0
      %3289 = vmatmul.mubr.bf16.gmra.mxu0 %v3083
      %v3290 = vpop.f32.mrf.mxu0
      %v3291 = vadd.f32 0.0, %v3290
      %v3292 = vpop.f32.mrf.mxu0
      %v3293 = vpop.f32.mrf.mxu0
      %v3294 = vadd.f32 0.0, %v3293
      %v3295 = vpop.f32.mrf.mxu0
      %3296 = vmatprep.mubr.bf16.mxu0 0
      %3297 = vmatmul.mubr.bf16.gmra.mxu0 %v3086
      %v3298 = vpop.f32.mrf.mxu0
      %v3299 = vadd.f32 0.0, %v3298
      %v3300 = vpop.f32.mrf.mxu0
      %v3301 = vpop.f32.mrf.mxu0
      %v3302 = vadd.f32 0.0, %v3301
      %v3303 = vpop.f32.mrf.mxu0
      %3304 = vmatprep.mubr.bf16.mxu0 0
      %3305 = vmatmul.mubr.bf16.gmra.mxu0 %v3089
      %v3306 = vpop.f32.mrf.mxu0
      %v3307 = vadd.f32 0.0, %v3306
      %v3308 = vpop.f32.mrf.mxu0
      %v3309 = vpop.f32.mrf.mxu0
      %v3310 = vadd.f32 0.0, %v3309
      %v3311 = vpop.f32.mrf.mxu0
      %3312 = vmatprep.mubr.bf16.mxu0 0
      %3313 = vmatmul.mubr.bf16.gmra.mxu0 %v3092
      %v3314 = vpop.f32.mrf.mxu0
      %v3315 = vadd.f32 0.0, %v3314
      %v3316 = vpop.f32.mrf.mxu0
      %v3317 = vpop.f32.mrf.mxu0
      %v3318 = vadd.f32 0.0, %v3317
      %v3319 = vpop.f32.mrf.mxu0
      %3320 = vmatprep.mubr.bf16.mxu0 0
      %3321 = vmatmul.mubr.bf16.gmra.mxu0 %v3095
      %v3322 = vpop.f32.mrf.mxu0
      %v3323 = vadd.f32 0.0, %v3322
      %v3324 = vpop.f32.mrf.mxu0
      %v3325 = vpop.f32.mrf.mxu0
      %v3326 = vadd.f32 0.0, %v3325
      %v3327 = vpop.f32.mrf.mxu0
      %3328 = vmatprep.mubr.bf16.mxu0 0
      %3329 = vmatmul.mubr.bf16.gmra.mxu0 %v3098
      %v3330 = vpop.f32.mrf.mxu0
      %v3331 = vadd.f32 0.0, %v3330
      %v3332 = vpop.f32.mrf.mxu0
      %v3333 = vpop.f32.mrf.mxu0
      %v3334 = vadd.f32 0.0, %v3333
      %v3335 = vpop.f32.mrf.mxu0
      %3336 = vmatprep.mubr.bf16.mxu0 0
      %3337 = vmatmul.mubr.bf16.gmra.mxu0 %v3101
      %v3338 = vpop.f32.mrf.mxu0
      %v3339 = vadd.f32 0.0, %v3338
      %v3340 = vpop.f32.mrf.mxu0
      %v3341 = vpop.f32.mrf.mxu0
      %v3342 = vadd.f32 0.0, %v3341
      %v3343 = vpop.f32.mrf.mxu0
      %3344 = vmatprep.mubr.bf16.mxu0 0
      %3345 = vmatmul.mubr.bf16.gmra.mxu0 %v3104
      %v3346 = vpop.f32.mrf.mxu0
      %v3347 = vadd.f32 0.0, %v3346
      %v3348 = vpop.f32.mrf.mxu0
      %v3349 = vpop.f32.mrf.mxu0
      %v3350 = vadd.f32 0.0, %v3349
      %v3351 = vpop.f32.mrf.mxu0
      %3352 = vmatprep.mubr.bf16.mxu0 0
      %3353 = vmatmul.mubr.bf16.gmra.mxu0 %v3107
      %v3354 = vpop.f32.mrf.mxu0
      %v3355 = vadd.f32 0.0, %v3354
      %v3356 = vpop.f32.mrf.mxu0
      %v3357 = vpop.f32.mrf.mxu0
      %v3358 = vadd.f32 0.0, %v3357
      %v3359 = vpop.f32.mrf.mxu0
      %3360 = vmatprep.mubr.bf16.mxu0 0
      %3361 = vmatmul.mubr.bf16.gmra.mxu0 %v3110
      %v3362 = vpop.f32.mrf.mxu0
      %v3363 = vadd.f32 0.0, %v3362
      %v3364 = vpop.f32.mrf.mxu0
      %v3365 = vpop.f32.mrf.mxu0
      %v3366 = vadd.f32 0.0, %v3365
      %v3367 = vpop.f32.mrf.mxu0
      %3368 = vmatprep.mubr.bf16.mxu0 0
      %3369 = vmatmul.mubr.bf16.gmra.mxu0 %v3113
      %v3370 = vpop.f32.mrf.mxu0
      %v3371 = vadd.f32 0.0, %v3370
      %v3372 = vpop.f32.mrf.mxu0
      %v3373 = vpop.f32.mrf.mxu0
      %v3374 = vadd.f32 0.0, %v3373
      %v3375 = vpop.f32.mrf.mxu0
      %3376 = vmatprep.mubr.bf16.mxu0 0
      %3377 = vmatmul.mubr.bf16.gmra.mxu0 %v3116
      %v3378 = vpop.f32.mrf.mxu0
      %v3379 = vadd.f32 0.0, %v3378
      %v3380 = vpop.f32.mrf.mxu0
      %v3381 = vpop.f32.mrf.mxu0
      %v3382 = vadd.f32 0.0, %v3381
      %v3383 = vpop.f32.mrf.mxu0
      %3384 = vmatprep.mubr.bf16.mxu0 0
      %3385 = vmatmul.mubr.bf16.gmra.mxu0 %v3119
      %v3386 = vpop.f32.mrf.mxu0
      %v3387 = vadd.f32 0.0, %v3386
      %v3388 = vpop.f32.mrf.mxu0
      %v3389 = vpop.f32.mrf.mxu0
      %v3390 = vadd.f32 0.0, %v3389
      %v3391 = vpop.f32.mrf.mxu0
      %3392 = vmatprep.mubr.bf16.mxu0 0
      %3393 = vmatmul.mubr.bf16.gmra.mxu0 %v3122
      %v3394 = vpop.f32.mrf.mxu0
      %v3395 = vadd.f32 0.0, %v3394
      %v3396 = vpop.f32.mrf.mxu0
      %v3397 = vpop.f32.mrf.mxu0
      %v3398 = vadd.f32 0.0, %v3397
      %v3399 = vpop.f32.mrf.mxu0
      %3400 = vmatprep.mubr.bf16.mxu0 0
      %3401 = vmatmul.mubr.bf16.gmra.mxu0 %v3125
      %v3402 = vpop.f32.mrf.mxu0
      %v3403 = vadd.f32 0.0, %v3402
      %v3404 = vpop.f32.mrf.mxu0
      %v3405 = vpop.f32.mrf.mxu0
      %v3406 = vadd.f32 0.0, %v3405
      %v3407 = vpop.f32.mrf.mxu0
      %3408 = vmatprep.mubr.bf16.mxu0 0
      %3409 = vmatmul.mubr.bf16.gmra.mxu0 %v3128
      %v3410 = vpop.f32.mrf.mxu0
      %v3411 = vadd.f32 0.0, %v3410
      %v3412 = vpop.f32.mrf.mxu0
      %v3413 = vpop.f32.mrf.mxu0
      %v3414 = vadd.f32 0.0, %v3413
      %v3415 = vpop.f32.mrf.mxu0
      %3416 = vmatprep.mubr.bf16.mxu0 0
      %3417 = vmatmul.mubr.bf16.gmra.mxu0 %v3131
      %v3418 = vpop.f32.mrf.mxu0
      %v3419 = vadd.f32 0.0, %v3418
      %v3420 = vpop.f32.mrf.mxu0
      %v3421 = vpop.f32.mrf.mxu0
      %v3422 = vadd.f32 0.0, %v3421
      %v3423 = vpop.f32.mrf.mxu0
      %3424 = vmatprep.mubr.bf16.mxu0 0
      %3425 = vmatmul.mubr.bf16.gmra.mxu0 %v3134
      %v3426 = vpop.f32.mrf.mxu0
      %v3427 = vadd.f32 0.0, %v3426
      %v3428 = vpop.f32.mrf.mxu0
      %v3429 = vpop.f32.mrf.mxu0
      %v3430 = vadd.f32 0.0, %v3429
      %v3431 = vpop.f32.mrf.mxu0
      %3432 = vmatprep.mubr.bf16.mxu0 0
      %3433 = vmatmul.mubr.bf16.gmra.mxu0 %v3137
      %v3434 = vpop.f32.mrf.mxu0
      %v3435 = vadd.f32 0.0, %v3434
      %v3436 = vpop.f32.mrf.mxu0
      %v3437 = vpop.f32.mrf.mxu0
      %v3438 = vadd.f32 0.0, %v3437
      %v3439 = vpop.f32.mrf.mxu0
      %3440 = vmatprep.mubr.bf16.mxu0 0
      %3441 = vmatmul.mubr.bf16.gmra.mxu0 %v3140
      %v3442 = vpop.f32.mrf.mxu0
      %v3443 = vadd.f32 0.0, %v3442
      %v3444 = vpop.f32.mrf.mxu0
      %v3445 = vpop.f32.mrf.mxu0
      %v3446 = vadd.f32 0.0, %v3445
      %v3447 = vpop.f32.mrf.mxu0
      %3448 = vmatprep.mubr.bf16.mxu0 0
      %3449 = vmatmul.mubr.bf16.gmra.mxu0 %v3143
      %v3450 = vpop.f32.mrf.mxu0
      %v3451 = vadd.f32 0.0, %v3450
      %v3452 = vpop.f32.mrf.mxu0
      %v3453 = vpop.f32.mrf.mxu0
      %v3454 = vadd.f32 0.0, %v3453
      %v3455 = vpop.f32.mrf.mxu0
      %3456 = vmatprep.mubr.bf16.mxu0 0
      %3457 = vmatmul.mubr.bf16.gmra.mxu0 %v3146
      %v3458 = vpop.f32.mrf.mxu0
      %v3459 = vadd.f32 0.0, %v3458
      %v3460 = vpop.f32.mrf.mxu0
      %v3461 = vpop.f32.mrf.mxu0
      %v3462 = vadd.f32 0.0, %v3461
      %v3463 = vpop.f32.mrf.mxu0
      %3464 = vmatprep.mubr.bf16.mxu0 0
      %3465 = vmatmul.mubr.bf16.gmra.mxu0 %v3149
      %v3466 = vpop.f32.mrf.mxu0
      %v3467 = vadd.f32 0.0, %v3466
      %v3468 = vpop.f32.mrf.mxu0
      %v3469 = vpop.f32.mrf.mxu0
      %v3470 = vadd.f32 0.0, %v3469
      %v3471 = vpop.f32.mrf.mxu0
      %3472 = vmatprep.mubr.bf16.mxu0 0
      %3473 = vmatmul.mubr.bf16.gmra.mxu0 %v3152
      %v3474 = vpop.f32.mrf.mxu0
      %v3475 = vadd.f32 0.0, %v3474
      %v3476 = vpop.f32.mrf.mxu0
      %v3477 = vpop.f32.mrf.mxu0
      %v3478 = vadd.f32 0.0, %v3477
      %v3479 = vpop.f32.mrf.mxu0
      %3480 = vmatprep.mubr.bf16.mxu0 0
      %3481 = vmatmul.mubr.bf16.gmra.mxu0 %v3155
      %v3482 = vpop.f32.mrf.mxu0
      %v3483 = vadd.f32 0.0, %v3482
      %v3484 = vpop.f32.mrf.mxu0
      %v3485 = vpop.f32.mrf.mxu0
      %v3486 = vadd.f32 0.0, %v3485
      %v3487 = vpop.f32.mrf.mxu0
      %3488 = vmatprep.mubr.bf16.mxu0 0
      %3489 = vmatmul.mubr.bf16.gmra.mxu0 %v3158
      %v3490 = vpop.f32.mrf.mxu0
      %v3491 = vadd.f32 0.0, %v3490
      %v3492 = vpop.f32.mrf.mxu0
      %v3493 = vpop.f32.mrf.mxu0
      %v3494 = vadd.f32 0.0, %v3493
      %v3495 = vpop.f32.mrf.mxu0
      %3496 = vmatprep.mubr.bf16.mxu0 0
      %3497 = vmatmul.mubr.bf16.gmra.mxu0 %v3161
      %v3498 = vpop.f32.mrf.mxu0
      %v3499 = vadd.f32 0.0, %v3498
      %v3500 = vpop.f32.mrf.mxu0
      %v3501 = vpop.f32.mrf.mxu0
      %v3502 = vadd.f32 0.0, %v3501
      %v3503 = vpop.f32.mrf.mxu0
      %3504 = vmatprep.mubr.bf16.mxu0 0
      %3505 = vmatmul.mubr.bf16.gmra.mxu0 %v3164
      %v3506 = vpop.f32.mrf.mxu0
      %v3507 = vadd.f32 0.0, %v3506
      %v3508 = vpop.f32.mrf.mxu0
      %v3509 = vpop.f32.mrf.mxu0
      %v3510 = vadd.f32 0.0, %v3509
      %v3511 = vpop.f32.mrf.mxu0
      %3512 = vmatprep.mubr.bf16.mxu0 0
      %3513 = vmatmul.mubr.bf16.gmra.mxu0 %v3167
      %v3514 = vpop.f32.mrf.mxu0
      %v3515 = vadd.f32 0.0, %v3514
      %v3516 = vpop.f32.mrf.mxu0
      %v3517 = vpop.f32.mrf.mxu0
      %v3518 = vadd.f32 0.0, %v3517
      %v3519 = vpop.f32.mrf.mxu0
      %3520 = vmatprep.mubr.bf16.mxu0 0
      %3521 = vmatmul.mubr.bf16.gmra.mxu0 %v3170
      %v3522 = vpop.f32.mrf.mxu0
      %v3523 = vadd.f32 0.0, %v3522
      %v3524 = vpop.f32.mrf.mxu0
      %v3525 = vpop.f32.mrf.mxu0
      %v3526 = vadd.f32 0.0, %v3525
      %v3527 = vpop.f32.mrf.mxu0
      %3528 = vmatprep.mubr.bf16.mxu0 0
      %3529 = vmatmul.mubr.bf16.gmra.mxu0 %v3173
      %v3530 = vpop.f32.mrf.mxu0
      %v3531 = vadd.f32 0.0, %v3530
      %v3532 = vpop.f32.mrf.mxu0
      %v3533 = vpop.f32.mrf.mxu0
      %v3534 = vadd.f32 0.0, %v3533
      %v3535 = vpop.f32.mrf.mxu0
      %3536 = vmatprep.mubr.bf16.mxu0 0
      %3537 = vmatmul.mubr.bf16.gmra.mxu0 %v3176
      %v3538 = vpop.f32.mrf.mxu0
      %v3539 = vadd.f32 0.0, %v3538
      %v3540 = vpop.f32.mrf.mxu0
      %v3541 = vpop.f32.mrf.mxu0
      %v3542 = vadd.f32 0.0, %v3541
      %v3543 = vpop.f32.mrf.mxu0
      %3544 = vmatprep.mubr.bf16.mxu0 0
      %3545 = vmatmul.mubr.bf16.gmra.mxu0 %v3179
      %v3546 = vpop.f32.mrf.mxu0
      %v3547 = vadd.f32 0.0, %v3546
      %v3548 = vpop.f32.mrf.mxu0
      %v3549 = vpop.f32.mrf.mxu0
      %v3550 = vadd.f32 0.0, %v3549
      %v3551 = vpop.f32.mrf.mxu0
      %3552 = vdwg.mxu0
      %v3553 = vadd.f32 %v2841, %v3219
      %v3554 = vadd.f32 %v2842, %v3222
      %v3555 = vadd.f32 %v2843, %v3227
      %v3556 = vadd.f32 %v2844, %v3230
      %v3557 = vadd.f32 %v2845, %v3235
      %v3558 = vadd.f32 %v2846, %v3238
      %v3559 = vadd.f32 %v2847, %v3243
      %v3560 = vadd.f32 %v2848, %v3246
      %v3561 = vadd.f32 %v2849, %v3251
      %v3562 = vadd.f32 %v2850, %v3254
      %v3563 = vadd.f32 %v2851, %v3259
      %v3564 = vadd.f32 %v2852, %v3262
      %v3565 = vadd.f32 %v2853, %v3267
      %v3566 = vadd.f32 %v2854, %v3270
      %v3567 = vadd.f32 %v2855, %v3275
      %v3568 = vadd.f32 %v2856, %v3278
      %v3569 = vadd.f32 %v2857, %v3283
      %v3570 = vadd.f32 %v2858, %v3286
      %v3571 = vadd.f32 %v2859, %v3291
      %v3572 = vadd.f32 %v2860, %v3294
      %v3573 = vadd.f32 %v2861, %v3299
      %v3574 = vadd.f32 %v2862, %v3302
      %v3575 = vadd.f32 %v2863, %v3307
      %v3576 = vadd.f32 %v2864, %v3310
      %v3577 = vadd.f32 %v2865, %v3315
      %v3578 = vadd.f32 %v2866, %v3318
      %v3579 = vadd.f32 %v2867, %v3323
      %v3580 = vadd.f32 %v2868, %v3326
      %v3581 = vadd.f32 %v2869, %v3331
      %v3582 = vadd.f32 %v2870, %v3334
      %v3583 = vadd.f32 %v2871, %v3339
      %v3584 = vadd.f32 %v2872, %v3342
      %v3585 = vadd.f32 %v2873, %v3347
      %v3586 = vadd.f32 %v2874, %v3350
      %v3587 = vadd.f32 %v2875, %v3355
      %v3588 = vadd.f32 %v2876, %v3358
      %v3589 = vadd.f32 %v2877, %v3363
      %v3590 = vadd.f32 %v2878, %v3366
      %v3591 = vadd.f32 %v2879, %v3371
      %v3592 = vadd.f32 %v2880, %v3374
      %v3593 = vadd.f32 %v2881, %v3379
      %v3594 = vadd.f32 %v2882, %v3382
      %v3595 = vadd.f32 %v2883, %v3387
      %v3596 = vadd.f32 %v2884, %v3390
      %v3597 = vadd.f32 %v2885, %v3395
      %v3598 = vadd.f32 %v2886, %v3398
      %v3599 = vadd.f32 %v2887, %v3403
      %v3600 = vadd.f32 %v2888, %v3406
      %v3601 = vadd.f32 %v2889, %v3411
      %v3602 = vadd.f32 %v2890, %v3414
      %v3603 = vadd.f32 %v2891, %v3419
      %v3604 = vadd.f32 %v2892, %v3422
      %v3605 = vadd.f32 %v2893, %v3427
      %v3606 = vadd.f32 %v2894, %v3430
      %v3607 = vadd.f32 %v2895, %v3435
      %v3608 = vadd.f32 %v2896, %v3438
      %v3609 = vadd.f32 %v2897, %v3443
      %v3610 = vadd.f32 %v2898, %v3446
      %v3611 = vadd.f32 %v2899, %v3451
      %v3612 = vadd.f32 %v2900, %v3454
      %v3613 = vadd.f32 %v2901, %v3459
      %v3614 = vadd.f32 %v2902, %v3462
      %v3615 = vadd.f32 %v2903, %v3467
      %v3616 = vadd.f32 %v2904, %v3470
      %v3617 = vadd.f32 %v2905, %v3475
      %v3618 = vadd.f32 %v2906, %v3478
      %v3619 = vadd.f32 %v2907, %v3483
      %v3620 = vadd.f32 %v2908, %v3486
      %v3621 = vadd.f32 %v2909, %v3491
      %v3622 = vadd.f32 %v2910, %v3494
      %v3623 = vadd.f32 %v2911, %v3499
      %v3624 = vadd.f32 %v2912, %v3502
      %v3625 = vadd.f32 %v2913, %v3507
      %v3626 = vadd.f32 %v2914, %v3510
      %v3627 = vadd.f32 %v2915, %v3515
      %v3628 = vadd.f32 %v2916, %v3518
      %v3629 = vadd.f32 %v2917, %v3523
      %v3630 = vadd.f32 %v2918, %v3526
      %v3631 = vadd.f32 %v2919, %v3531
      %v3632 = vadd.f32 %v2920, %v3534
      %v3633 = vadd.f32 %v2921, %v3539
      %v3634 = vadd.f32 %v2922, %v3542
      %v3635 = vadd.f32 %v2923, %v3547
      %v3636 = vadd.f32 %v2924, %v3550
      %s3637 = sadd.s32 %s241, 226
      %s3638 = scalar_lea.vmem %s219, %s3637
      %v3639 = vld [vmem:[%s3638] sm:$0xff]
      %v3640 = vld [vmem:[%s3638 + $0x8] sm:$0xff]
      %v3641 = vld [vmem:[%s3638 + $0x10] sm:$0xff]
      %v3642 = vld [vmem:[%s3638 + $0x18] sm:$0xff]
      %v3643 = vld [vmem:[%s3638 + $0x20] sm:$0xff]
      %v3644 = vld [vmem:[%s3638 + $0x28] sm:$0xff]
      %v3645 = vld [vmem:[%s3638 + $0x30] sm:$0xff]
      %v3646 = vld [vmem:[%s3638 + $0x38] sm:$0xff]
      %v3647 = vld [vmem:[%s3638 + $0x40] sm:$0xff]
      %v3648 = vld [vmem:[%s3638 + $0x48] sm:$0xff]
      %v3649 = vld [vmem:[%s3638 + $0x50] sm:$0xff]
      %v3650 = vld [vmem:[%s3638 + $0x58] sm:$0xff]
      %v3651 = vld [vmem:[%s3638 + $0x60] sm:$0xff]
      %v3652 = vld [vmem:[%s3638 + $0x68] sm:$0xff]
      %v3653 = vld [vmem:[%s3638 + $0x70] sm:$0xff]
      %v3654 = vld [vmem:[%s3638 + $0x78] sm:$0xff]
      %v3655 = vld [vmem:[%s3638 + $0x80] sm:$0xff]
      %v3656 = vld [vmem:[%s3638 + $0x88] sm:$0xff]
      %v3657 = vld [vmem:[%s3638 + $0x90] sm:$0xff]
      %v3658 = vld [vmem:[%s3638 + $0x98] sm:$0xff]
      %v3659 = vld [vmem:[%s3638 + $0xa0] sm:$0xff]
      %v3660 = vld [vmem:[%s3638 + $0xa8] sm:$0xff]
      %v3661 = vld [vmem:[%s3638 + $0xb0] sm:$0xff]
      %v3662 = vld [vmem:[%s3638 + $0xb8] sm:$0xff]
      %v3663 = vld [vmem:[%s3638 + $0xc0] sm:$0xff]
      %v3664 = vld [vmem:[%s3638 + $0xc8] sm:$0xff]
      %v3665 = vld [vmem:[%s3638 + $0xd0] sm:$0xff]
      %v3666 = vld [vmem:[%s3638 + $0xd8] sm:$0xff]
      %v3667 = vld [vmem:[%s3638 + $0xe0] sm:$0xff]
      %v3668 = vld [vmem:[%s3638 + $0xe8] sm:$0xff]
      %v3669 = vld [vmem:[%s3638 + $0xf0] sm:$0xff]
      %v3670 = vld [vmem:[%s3638 + $0xf8] sm:$0xff]
      %v3671 = vld [vmem:[%s3638 + $0x100] sm:$0xff]
      %v3672 = vld [vmem:[%s3638 + $0x108] sm:$0xff]
      %v3673 = vld [vmem:[%s3638 + $0x110] sm:$0xff]
      %v3674 = vld [vmem:[%s3638 + $0x118] sm:$0xff]
      %v3675 = vld [vmem:[%s3638 + $0x120] sm:$0xff]
      %v3676 = vld [vmem:[%s3638 + $0x128] sm:$0xff]
      %v3677 = vld [vmem:[%s3638 + $0x130] sm:$0xff]
      %v3678 = vld [vmem:[%s3638 + $0x138] sm:$0xff]
      %v3679 = vld [vmem:[%s3638 + $0x140] sm:$0xff]
      %v3680 = vld [vmem:[%s3638 + $0x148] sm:$0xff]
      %v3681 = vld [vmem:[%s3638 + $0x150] sm:$0xff]
      %v3682 = vld [vmem:[%s3638 + $0x158] sm:$0xff]
      %v3683 = vld [vmem:[%s3638 + $0x160] sm:$0xff]
      %v3684 = vld [vmem:[%s3638 + $0x168] sm:$0xff]
      %v3685 = vld [vmem:[%s3638 + $0x170] sm:$0xff]
      %v3686 = vld [vmem:[%s3638 + $0x178] sm:$0xff]
      %v3687 = vld [vmem:[%s3638 + $0x180] sm:$0xff]
      %v3688 = vld [vmem:[%s3638 + $0x188] sm:$0xff]
      %v3689 = vld [vmem:[%s3638 + $0x190] sm:$0xff]
      %v3690 = vld [vmem:[%s3638 + $0x198] sm:$0xff]
      %v3691 = vld [vmem:[%s3638 + $0x1a0] sm:$0xff]
      %v3692 = vld [vmem:[%s3638 + $0x1a8] sm:$0xff]
      %v3693 = vld [vmem:[%s3638 + $0x1b0] sm:$0xff]
      %v3694 = vld [vmem:[%s3638 + $0x1b8] sm:$0xff]
      %v3695 = vld [vmem:[%s3638 + $0x1c0] sm:$0xff]
      %v3696 = vld [vmem:[%s3638 + $0x1c8] sm:$0xff]
      %v3697 = vld [vmem:[%s3638 + $0x1d0] sm:$0xff]
      %v3698 = vld [vmem:[%s3638 + $0x1d8] sm:$0xff]
      %v3699 = vld [vmem:[%s3638 + $0x1e0] sm:$0xff]
      %v3700 = vld [vmem:[%s3638 + $0x1e8] sm:$0xff]
      %v3701 = vld [vmem:[%s3638 + $0x1f0] sm:$0xff]
      %v3702 = vld [vmem:[%s3638 + $0x1f8] sm:$0xff]
      %v3703 = vld [vmem:[%s3638 + $0x200] sm:$0xff]
      %v3704 = vld [vmem:[%s3638 + $0x208] sm:$0xff]
      %v3705 = vld [vmem:[%s3638 + $0x210] sm:$0xff]
      %v3706 = vld [vmem:[%s3638 + $0x218] sm:$0xff]
      %v3707 = vld [vmem:[%s3638 + $0x220] sm:$0xff]
      %v3708 = vld [vmem:[%s3638 + $0x228] sm:$0xff]
      %v3709 = vld [vmem:[%s3638 + $0x230] sm:$0xff]
      %v3710 = vld [vmem:[%s3638 + $0x238] sm:$0xff]
      %v3711 = vld [vmem:[%s3638 + $0x240] sm:$0xff]
      %v3712 = vld [vmem:[%s3638 + $0x248] sm:$0xff]
      %v3713 = vld [vmem:[%s3638 + $0x250] sm:$0xff]
      %v3714 = vld [vmem:[%s3638 + $0x258] sm:$0xff]
      %v3715 = vld [vmem:[%s3638 + $0x260] sm:$0xff]
      %v3716 = vld [vmem:[%s3638 + $0x268] sm:$0xff]
      %v3717 = vld [vmem:[%s3638 + $0x270] sm:$0xff]
      %v3718 = vld [vmem:[%s3638 + $0x278] sm:$0xff]
      %v3719 = vld [vmem:[%s3638 + $0x280] sm:$0xff]
      %v3720 = vld [vmem:[%s3638 + $0x288] sm:$0xff]
      %v3721 = vld [vmem:[%s3638 + $0x290] sm:$0xff]
      %v3722 = vld [vmem:[%s3638 + $0x298] sm:$0xff]
      %v3723 = vpack.c.bf16 %v3640, %v3639
      %v3724 = vpack.c.bf16 %v3642, %v3641
      %v3725 = vpack.c.bf16 %v3644, %v3643
      %v3726 = vpack.c.bf16 %v3646, %v3645
      %v3727 = vpack.c.bf16 %v3648, %v3647
      %v3728 = vpack.c.bf16 %v3650, %v3649
      %v3729 = vpack.c.bf16 %v3652, %v3651
      %v3730 = vpack.c.bf16 %v3654, %v3653
      %v3731 = vpack.c.bf16 %v3656, %v3655
      %v3732 = vpack.c.bf16 %v3658, %v3657
      %v3733 = vpack.c.bf16 %v3660, %v3659
      %v3734 = vpack.c.bf16 %v3662, %v3661
      %v3735 = vpack.c.bf16 %v3664, %v3663
      %v3736 = vpack.c.bf16 %v3666, %v3665
      %v3737 = vpack.c.bf16 %v3668, %v3667
      %v3738 = vpack.c.bf16 %v3670, %v3669
      %v3739 = vpack.c.bf16 %v3672, %v3671
      %v3740 = vpack.c.bf16 %v3674, %v3673
      %v3741 = vpack.c.bf16 %v3676, %v3675
      %v3742 = vpack.c.bf16 %v3678, %v3677
      %v3743 = vpack.c.bf16 %v3680, %v3679
      %v3744 = vpack.c.bf16 %v3682, %v3681
      %v3745 = vpack.c.bf16 %v3684, %v3683
      %v3746 = vpack.c.bf16 %v3686, %v3685
      %v3747 = vpack.c.bf16 %v3688, %v3687
      %v3748 = vpack.c.bf16 %v3690, %v3689
      %v3749 = vpack.c.bf16 %v3692, %v3691
      %v3750 = vpack.c.bf16 %v3694, %v3693
      %v3751 = vpack.c.bf16 %v3696, %v3695
      %v3752 = vpack.c.bf16 %v3698, %v3697
      %v3753 = vpack.c.bf16 %v3700, %v3699
      %v3754 = vpack.c.bf16 %v3702, %v3701
      %v3755 = vpack.c.bf16 %v3704, %v3703
      %v3756 = vpack.c.bf16 %v3706, %v3705
      %v3757 = vpack.c.bf16 %v3708, %v3707
      %v3758 = vpack.c.bf16 %v3710, %v3709
      %v3759 = vpack.c.bf16 %v3712, %v3711
      %v3760 = vpack.c.bf16 %v3714, %v3713
      %v3761 = vpack.c.bf16 %v3716, %v3715
      %v3762 = vpack.c.bf16 %v3718, %v3717
      %v3763 = vpack.c.bf16 %v3720, %v3719
      %v3764 = vpack.c.bf16 %v3722, %v3721
      %s3765 = scalar_lea.vmem %s223, 10
      %v3766 = vld [vmem:[%s3765] sm:$0x3]
      %v3768 = vsel %vm500, %v3723, 0
      %v3771 = vsel %vm500, %v3724, 0
      %v3774 = vsel %vm500, %v3725, 0
      %v3777 = vsel %vm500, %v3726, 0
      %v3780 = vsel %vm500, %v3727, 0
      %v3783 = vsel %vm500, %v3728, 0
      %v3786 = vsel %vm500, %v3729, 0
      %v3789 = vsel %vm500, %v3730, 0
      %v3792 = vsel %vm500, %v3731, 0
      %v3795 = vsel %vm500, %v3732, 0
      %v3798 = vsel %vm500, %v3733, 0
      %v3801 = vsel %vm500, %v3734, 0
      %v3804 = vsel %vm500, %v3735, 0
      %v3807 = vsel %vm500, %v3736, 0
      %v3810 = vsel %vm500, %v3737, 0
      %v3813 = vsel %vm500, %v3738, 0
      %v3816 = vsel %vm500, %v3739, 0
      %v3819 = vsel %vm500, %v3740, 0
      %v3822 = vsel %vm500, %v3741, 0
      %v3825 = vsel %vm500, %v3742, 0
      %v3828 = vsel %vm500, %v3743, 0
      %v3831 = vsel %vm500, %v3744, 0
      %v3834 = vsel %vm500, %v3745, 0
      %v3837 = vsel %vm500, %v3746, 0
      %v3840 = vsel %vm500, %v3747, 0
      %v3843 = vsel %vm500, %v3748, 0
      %v3846 = vsel %vm500, %v3749, 0
      %v3849 = vsel %vm500, %v3750, 0
      %v3852 = vsel %vm500, %v3751, 0
      %v3855 = vsel %vm500, %v3752, 0
      %v3858 = vsel %vm500, %v3753, 0
      %v3861 = vsel %vm500, %v3754, 0
      %v3864 = vsel %vm500, %v3755, 0
      %v3867 = vsel %vm500, %v3756, 0
      %v3870 = vsel %vm500, %v3757, 0
      %v3873 = vsel %vm500, %v3758, 0
      %v3876 = vsel %vm500, %v3759, 0
      %v3879 = vsel %vm500, %v3760, 0
      %v3882 = vsel %vm500, %v3761, 0
      %v3885 = vsel %vm500, %v3762, 0
      %v3888 = vsel %vm500, %v3763, 0
      %v3891 = vsel %vm500, %v3764, 0
      %v3894 = vand.u32 %v3766, %v630
      %3896 = vmatprep.subr.bf16.mxu0 0
      %3897 = vmatpush1.bf16.msra.mxu0 0
      %3898 = vmatprep.subr.bf16.mxu0 0
      %3899 = vmatpush1.bf16.msra.mxu0 0
      %3900 = vmatprep.subr.bf16.mxu0 0
      %3901 = vmatpush1.bf16.msra.mxu0 0
      %3902 = vmatprep.subr.bf16.mxu0 0
      %3903 = vmatpush1.bf16.msra.mxu0 0
      %3904 = vmatprep.subr.bf16.mxu0 0
      %3905 = vmatpush1.bf16.msra.mxu0 0
      %3906 = vmatprep.subr.bf16.mxu0 0
      %3907 = vmatpush1.bf16.msra.mxu0 0
      %3908 = vmatprep.subr.bf16.mxu0 0
      %3909 = vmatpush1.bf16.msra.mxu0 0
      %3910 = vmatprep.subr.bf16.mxu0 0
      %3911 = vmatpush1.bf16.msra.mxu0 %v3894
      %3912 = vmatprep.subr.bf16.mxu0 0
      %3913 = vmatpush2.bf16.msra.mxu0 0
      %3914 = vmatprep.subr.bf16.mxu0 0
      %3915 = vmatpush2.bf16.msra.mxu0 0
      %3916 = vmatprep.subr.bf16.mxu0 0
      %3917 = vmatpush2.bf16.msra.mxu0 0
      %3918 = vmatprep.subr.bf16.mxu0 0
      %3919 = vmatpush2.bf16.msra.mxu0 0
      %3920 = vmatprep.subr.bf16.mxu0 0
      %3921 = vmatpush2.bf16.msra.mxu0 0
      %3922 = vmatprep.subr.bf16.mxu0 0
      %3923 = vmatpush2.bf16.msra.mxu0 0
      %3924 = vmatprep.subr.bf16.mxu0 0
      %3925 = vmatpush2.bf16.msra.mxu0 0
      %3926 = vmatprep.subr.bf16.mxu0 0
      %3927 = vmatpush2.bf16.msra.mxu0 0
      %3928 = vmatprep.mubr.bf16.mxu0 0
      %3929 = vmatmul.mubr.bf16.gmra.mxu0 %v3768
      %v3930 = vpop.f32.mrf.mxu0
      %v3931 = vadd.f32 0.0, %v3930
      %v3932 = vpop.f32.mrf.mxu0
      %v3933 = vpop.f32.mrf.mxu0
      %v3934 = vadd.f32 0.0, %v3933
      %v3935 = vpop.f32.mrf.mxu0
      %3936 = vmatprep.mubr.bf16.mxu0 0
      %3937 = vmatmul.mubr.bf16.gmra.mxu0 %v3771
      %v3938 = vpop.f32.mrf.mxu0
      %v3939 = vadd.f32 0.0, %v3938
      %v3940 = vpop.f32.mrf.mxu0
      %v3941 = vpop.f32.mrf.mxu0
      %v3942 = vadd.f32 0.0, %v3941
      %v3943 = vpop.f32.mrf.mxu0
      %3944 = vmatprep.mubr.bf16.mxu0 0
      %3945 = vmatmul.mubr.bf16.gmra.mxu0 %v3774
      %v3946 = vpop.f32.mrf.mxu0
      %v3947 = vadd.f32 0.0, %v3946
      %v3948 = vpop.f32.mrf.mxu0
      %v3949 = vpop.f32.mrf.mxu0
      %v3950 = vadd.f32 0.0, %v3949
      %v3951 = vpop.f32.mrf.mxu0
      %3952 = vmatprep.mubr.bf16.mxu0 0
      %3953 = vmatmul.mubr.bf16.gmra.mxu0 %v3777
      %v3954 = vpop.f32.mrf.mxu0
      %v3955 = vadd.f32 0.0, %v3954
      %v3956 = vpop.f32.mrf.mxu0
      %v3957 = vpop.f32.mrf.mxu0
      %v3958 = vadd.f32 0.0, %v3957
      %v3959 = vpop.f32.mrf.mxu0
      %3960 = vmatprep.mubr.bf16.mxu0 0
      %3961 = vmatmul.mubr.bf16.gmra.mxu0 %v3780
      %v3962 = vpop.f32.mrf.mxu0
      %v3963 = vadd.f32 0.0, %v3962
      %v3964 = vpop.f32.mrf.mxu0
      %v3965 = vpop.f32.mrf.mxu0
      %v3966 = vadd.f32 0.0, %v3965
      %v3967 = vpop.f32.mrf.mxu0
      %3968 = vmatprep.mubr.bf16.mxu0 0
      %3969 = vmatmul.mubr.bf16.gmra.mxu0 %v3783
      %v3970 = vpop.f32.mrf.mxu0
      %v3971 = vadd.f32 0.0, %v3970
      %v3972 = vpop.f32.mrf.mxu0
      %v3973 = vpop.f32.mrf.mxu0
      %v3974 = vadd.f32 0.0, %v3973
      %v3975 = vpop.f32.mrf.mxu0
      %3976 = vmatprep.mubr.bf16.mxu0 0
      %3977 = vmatmul.mubr.bf16.gmra.mxu0 %v3786
      %v3978 = vpop.f32.mrf.mxu0
      %v3979 = vadd.f32 0.0, %v3978
      %v3980 = vpop.f32.mrf.mxu0
      %v3981 = vpop.f32.mrf.mxu0
      %v3982 = vadd.f32 0.0, %v3981
      %v3983 = vpop.f32.mrf.mxu0
      %3984 = vmatprep.mubr.bf16.mxu0 0
      %3985 = vmatmul.mubr.bf16.gmra.mxu0 %v3789
      %v3986 = vpop.f32.mrf.mxu0
      %v3987 = vadd.f32 0.0, %v3986
      %v3988 = vpop.f32.mrf.mxu0
      %v3989 = vpop.f32.mrf.mxu0
      %v3990 = vadd.f32 0.0, %v3989
      %v3991 = vpop.f32.mrf.mxu0
      %3992 = vmatprep.mubr.bf16.mxu0 0
      %3993 = vmatmul.mubr.bf16.gmra.mxu0 %v3792
      %v3994 = vpop.f32.mrf.mxu0
      %v3995 = vadd.f32 0.0, %v3994
      %v3996 = vpop.f32.mrf.mxu0
      %v3997 = vpop.f32.mrf.mxu0
      %v3998 = vadd.f32 0.0, %v3997
      %v3999 = vpop.f32.mrf.mxu0
      %4000 = vmatprep.mubr.bf16.mxu0 0
      %4001 = vmatmul.mubr.bf16.gmra.mxu0 %v3795
      %v4002 = vpop.f32.mrf.mxu0
      %v4003 = vadd.f32 0.0, %v4002
      %v4004 = vpop.f32.mrf.mxu0
      %v4005 = vpop.f32.mrf.mxu0
      %v4006 = vadd.f32 0.0, %v4005
      %v4007 = vpop.f32.mrf.mxu0
      %4008 = vmatprep.mubr.bf16.mxu0 0
      %4009 = vmatmul.mubr.bf16.gmra.mxu0 %v3798
      %v4010 = vpop.f32.mrf.mxu0
      %v4011 = vadd.f32 0.0, %v4010
      %v4012 = vpop.f32.mrf.mxu0
      %v4013 = vpop.f32.mrf.mxu0
      %v4014 = vadd.f32 0.0, %v4013
      %v4015 = vpop.f32.mrf.mxu0
      %4016 = vmatprep.mubr.bf16.mxu0 0
      %4017 = vmatmul.mubr.bf16.gmra.mxu0 %v3801
      %v4018 = vpop.f32.mrf.mxu0
      %v4019 = vadd.f32 0.0, %v4018
      %v4020 = vpop.f32.mrf.mxu0
      %v4021 = vpop.f32.mrf.mxu0
      %v4022 = vadd.f32 0.0, %v4021
      %v4023 = vpop.f32.mrf.mxu0
      %4024 = vmatprep.mubr.bf16.mxu0 0
      %4025 = vmatmul.mubr.bf16.gmra.mxu0 %v3804
      %v4026 = vpop.f32.mrf.mxu0
      %v4027 = vadd.f32 0.0, %v4026
      %v4028 = vpop.f32.mrf.mxu0
      %v4029 = vpop.f32.mrf.mxu0
      %v4030 = vadd.f32 0.0, %v4029
      %v4031 = vpop.f32.mrf.mxu0
      %4032 = vmatprep.mubr.bf16.mxu0 0
      %4033 = vmatmul.mubr.bf16.gmra.mxu0 %v3807
      %v4034 = vpop.f32.mrf.mxu0
      %v4035 = vadd.f32 0.0, %v4034
      %v4036 = vpop.f32.mrf.mxu0
      %v4037 = vpop.f32.mrf.mxu0
      %v4038 = vadd.f32 0.0, %v4037
      %v4039 = vpop.f32.mrf.mxu0
      %4040 = vmatprep.mubr.bf16.mxu0 0
      %4041 = vmatmul.mubr.bf16.gmra.mxu0 %v3810
      %v4042 = vpop.f32.mrf.mxu0
      %v4043 = vadd.f32 0.0, %v4042
      %v4044 = vpop.f32.mrf.mxu0
      %v4045 = vpop.f32.mrf.mxu0
      %v4046 = vadd.f32 0.0, %v4045
      %v4047 = vpop.f32.mrf.mxu0
      %4048 = vmatprep.mubr.bf16.mxu0 0
      %4049 = vmatmul.mubr.bf16.gmra.mxu0 %v3813
      %v4050 = vpop.f32.mrf.mxu0
      %v4051 = vadd.f32 0.0, %v4050
      %v4052 = vpop.f32.mrf.mxu0
      %v4053 = vpop.f32.mrf.mxu0
      %v4054 = vadd.f32 0.0, %v4053
      %v4055 = vpop.f32.mrf.mxu0
      %4056 = vmatprep.mubr.bf16.mxu0 0
      %4057 = vmatmul.mubr.bf16.gmra.mxu0 %v3816
      %v4058 = vpop.f32.mrf.mxu0
      %v4059 = vadd.f32 0.0, %v4058
      %v4060 = vpop.f32.mrf.mxu0
      %v4061 = vpop.f32.mrf.mxu0
      %v4062 = vadd.f32 0.0, %v4061
      %v4063 = vpop.f32.mrf.mxu0
      %4064 = vmatprep.mubr.bf16.mxu0 0
      %4065 = vmatmul.mubr.bf16.gmra.mxu0 %v3819
      %v4066 = vpop.f32.mrf.mxu0
      %v4067 = vadd.f32 0.0, %v4066
      %v4068 = vpop.f32.mrf.mxu0
      %v4069 = vpop.f32.mrf.mxu0
      %v4070 = vadd.f32 0.0, %v4069
      %v4071 = vpop.f32.mrf.mxu0
      %4072 = vmatprep.mubr.bf16.mxu0 0
      %4073 = vmatmul.mubr.bf16.gmra.mxu0 %v3822
      %v4074 = vpop.f32.mrf.mxu0
      %v4075 = vadd.f32 0.0, %v4074
      %v4076 = vpop.f32.mrf.mxu0
      %v4077 = vpop.f32.mrf.mxu0
      %v4078 = vadd.f32 0.0, %v4077
      %v4079 = vpop.f32.mrf.mxu0
      %4080 = vmatprep.mubr.bf16.mxu0 0
      %4081 = vmatmul.mubr.bf16.gmra.mxu0 %v3825
      %v4082 = vpop.f32.mrf.mxu0
      %v4083 = vadd.f32 0.0, %v4082
      %v4084 = vpop.f32.mrf.mxu0
      %v4085 = vpop.f32.mrf.mxu0
      %v4086 = vadd.f32 0.0, %v4085
      %v4087 = vpop.f32.mrf.mxu0
      %4088 = vmatprep.mubr.bf16.mxu0 0
      %4089 = vmatmul.mubr.bf16.gmra.mxu0 %v3828
      %v4090 = vpop.f32.mrf.mxu0
      %v4091 = vadd.f32 0.0, %v4090
      %v4092 = vpop.f32.mrf.mxu0
      %v4093 = vpop.f32.mrf.mxu0
      %v4094 = vadd.f32 0.0, %v4093
      %v4095 = vpop.f32.mrf.mxu0
      %4096 = vmatprep.mubr.bf16.mxu0 0
      %4097 = vmatmul.mubr.bf16.gmra.mxu0 %v3831
      %v4098 = vpop.f32.mrf.mxu0
      %v4099 = vadd.f32 0.0, %v4098
      %v4100 = vpop.f32.mrf.mxu0
      %v4101 = vpop.f32.mrf.mxu0
      %v4102 = vadd.f32 0.0, %v4101
      %v4103 = vpop.f32.mrf.mxu0
      %4104 = vmatprep.mubr.bf16.mxu0 0
      %4105 = vmatmul.mubr.bf16.gmra.mxu0 %v3834
      %v4106 = vpop.f32.mrf.mxu0
      %v4107 = vadd.f32 0.0, %v4106
      %v4108 = vpop.f32.mrf.mxu0
      %v4109 = vpop.f32.mrf.mxu0
      %v4110 = vadd.f32 0.0, %v4109
      %v4111 = vpop.f32.mrf.mxu0
      %4112 = vmatprep.mubr.bf16.mxu0 0
      %4113 = vmatmul.mubr.bf16.gmra.mxu0 %v3837
      %v4114 = vpop.f32.mrf.mxu0
      %v4115 = vadd.f32 0.0, %v4114
      %v4116 = vpop.f32.mrf.mxu0
      %v4117 = vpop.f32.mrf.mxu0
      %v4118 = vadd.f32 0.0, %v4117
      %v4119 = vpop.f32.mrf.mxu0
      %4120 = vmatprep.mubr.bf16.mxu0 0
      %4121 = vmatmul.mubr.bf16.gmra.mxu0 %v3840
      %v4122 = vpop.f32.mrf.mxu0
      %v4123 = vadd.f32 0.0, %v4122
      %v4124 = vpop.f32.mrf.mxu0
      %v4125 = vpop.f32.mrf.mxu0
      %v4126 = vadd.f32 0.0, %v4125
      %v4127 = vpop.f32.mrf.mxu0
      %4128 = vmatprep.mubr.bf16.mxu0 0
      %4129 = vmatmul.mubr.bf16.gmra.mxu0 %v3843
      %v4130 = vpop.f32.mrf.mxu0
      %v4131 = vadd.f32 0.0, %v4130
      %v4132 = vpop.f32.mrf.mxu0
      %v4133 = vpop.f32.mrf.mxu0
      %v4134 = vadd.f32 0.0, %v4133
      %v4135 = vpop.f32.mrf.mxu0
      %4136 = vmatprep.mubr.bf16.mxu0 0
      %4137 = vmatmul.mubr.bf16.gmra.mxu0 %v3846
      %v4138 = vpop.f32.mrf.mxu0
      %v4139 = vadd.f32 0.0, %v4138
      %v4140 = vpop.f32.mrf.mxu0
      %v4141 = vpop.f32.mrf.mxu0
      %v4142 = vadd.f32 0.0, %v4141
      %v4143 = vpop.f32.mrf.mxu0
      %4144 = vmatprep.mubr.bf16.mxu0 0
      %4145 = vmatmul.mubr.bf16.gmra.mxu0 %v3849
      %v4146 = vpop.f32.mrf.mxu0
      %v4147 = vadd.f32 0.0, %v4146
      %v4148 = vpop.f32.mrf.mxu0
      %v4149 = vpop.f32.mrf.mxu0
      %v4150 = vadd.f32 0.0, %v4149
      %v4151 = vpop.f32.mrf.mxu0
      %4152 = vmatprep.mubr.bf16.mxu0 0
      %4153 = vmatmul.mubr.bf16.gmra.mxu0 %v3852
      %v4154 = vpop.f32.mrf.mxu0
      %v4155 = vadd.f32 0.0, %v4154
      %v4156 = vpop.f32.mrf.mxu0
      %v4157 = vpop.f32.mrf.mxu0
      %v4158 = vadd.f32 0.0, %v4157
      %v4159 = vpop.f32.mrf.mxu0
      %4160 = vmatprep.mubr.bf16.mxu0 0
      %4161 = vmatmul.mubr.bf16.gmra.mxu0 %v3855
      %v4162 = vpop.f32.mrf.mxu0
      %v4163 = vadd.f32 0.0, %v4162
      %v4164 = vpop.f32.mrf.mxu0
      %v4165 = vpop.f32.mrf.mxu0
      %v4166 = vadd.f32 0.0, %v4165
      %v4167 = vpop.f32.mrf.mxu0
      %4168 = vmatprep.mubr.bf16.mxu0 0
      %4169 = vmatmul.mubr.bf16.gmra.mxu0 %v3858
      %v4170 = vpop.f32.mrf.mxu0
      %v4171 = vadd.f32 0.0, %v4170
      %v4172 = vpop.f32.mrf.mxu0
      %v4173 = vpop.f32.mrf.mxu0
      %v4174 = vadd.f32 0.0, %v4173
      %v4175 = vpop.f32.mrf.mxu0
      %4176 = vmatprep.mubr.bf16.mxu0 0
      %4177 = vmatmul.mubr.bf16.gmra.mxu0 %v3861
      %v4178 = vpop.f32.mrf.mxu0
      %v4179 = vadd.f32 0.0, %v4178
      %v4180 = vpop.f32.mrf.mxu0
      %v4181 = vpop.f32.mrf.mxu0
      %v4182 = vadd.f32 0.0, %v4181
      %v4183 = vpop.f32.mrf.mxu0
      %4184 = vmatprep.mubr.bf16.mxu0 0
      %4185 = vmatmul.mubr.bf16.gmra.mxu0 %v3864
      %v4186 = vpop.f32.mrf.mxu0
      %v4187 = vadd.f32 0.0, %v4186
      %v4188 = vpop.f32.mrf.mxu0
      %v4189 = vpop.f32.mrf.mxu0
      %v4190 = vadd.f32 0.0, %v4189
      %v4191 = vpop.f32.mrf.mxu0
      %4192 = vmatprep.mubr.bf16.mxu0 0
      %4193 = vmatmul.mubr.bf16.gmra.mxu0 %v3867
      %v4194 = vpop.f32.mrf.mxu0
      %v4195 = vadd.f32 0.0, %v4194
      %v4196 = vpop.f32.mrf.mxu0
      %v4197 = vpop.f32.mrf.mxu0
      %v4198 = vadd.f32 0.0, %v4197
      %v4199 = vpop.f32.mrf.mxu0
      %4200 = vmatprep.mubr.bf16.mxu0 0
      %4201 = vmatmul.mubr.bf16.gmra.mxu0 %v3870
      %v4202 = vpop.f32.mrf.mxu0
      %v4203 = vadd.f32 0.0, %v4202
      %v4204 = vpop.f32.mrf.mxu0
      %v4205 = vpop.f32.mrf.mxu0
      %v4206 = vadd.f32 0.0, %v4205
      %v4207 = vpop.f32.mrf.mxu0
      %4208 = vmatprep.mubr.bf16.mxu0 0
      %4209 = vmatmul.mubr.bf16.gmra.mxu0 %v3873
      %v4210 = vpop.f32.mrf.mxu0
      %v4211 = vadd.f32 0.0, %v4210
      %v4212 = vpop.f32.mrf.mxu0
      %v4213 = vpop.f32.mrf.mxu0
      %v4214 = vadd.f32 0.0, %v4213
      %v4215 = vpop.f32.mrf.mxu0
      %4216 = vmatprep.mubr.bf16.mxu0 0
      %4217 = vmatmul.mubr.bf16.gmra.mxu0 %v3876
      %v4218 = vpop.f32.mrf.mxu0
      %v4219 = vadd.f32 0.0, %v4218
      %v4220 = vpop.f32.mrf.mxu0
      %v4221 = vpop.f32.mrf.mxu0
      %v4222 = vadd.f32 0.0, %v4221
      %v4223 = vpop.f32.mrf.mxu0
      %4224 = vmatprep.mubr.bf16.mxu0 0
      %4225 = vmatmul.mubr.bf16.gmra.mxu0 %v3879
      %v4226 = vpop.f32.mrf.mxu0
      %v4227 = vadd.f32 0.0, %v4226
      %v4228 = vpop.f32.mrf.mxu0
      %v4229 = vpop.f32.mrf.mxu0
      %v4230 = vadd.f32 0.0, %v4229
      %v4231 = vpop.f32.mrf.mxu0
      %4232 = vmatprep.mubr.bf16.mxu0 0
      %4233 = vmatmul.mubr.bf16.gmra.mxu0 %v3882
      %v4234 = vpop.f32.mrf.mxu0
      %v4235 = vadd.f32 0.0, %v4234
      %v4236 = vpop.f32.mrf.mxu0
      %v4237 = vpop.f32.mrf.mxu0
      %v4238 = vadd.f32 0.0, %v4237
      %v4239 = vpop.f32.mrf.mxu0
      %4240 = vmatprep.mubr.bf16.mxu0 0
      %4241 = vmatmul.mubr.bf16.gmra.mxu0 %v3885
      %v4242 = vpop.f32.mrf.mxu0
      %v4243 = vadd.f32 0.0, %v4242
      %v4244 = vpop.f32.mrf.mxu0
      %v4245 = vpop.f32.mrf.mxu0
      %v4246 = vadd.f32 0.0, %v4245
      %v4247 = vpop.f32.mrf.mxu0
      %4248 = vmatprep.mubr.bf16.mxu0 0
      %4249 = vmatmul.mubr.bf16.gmra.mxu0 %v3888
      %v4250 = vpop.f32.mrf.mxu0
      %v4251 = vadd.f32 0.0, %v4250
      %v4252 = vpop.f32.mrf.mxu0
      %v4253 = vpop.f32.mrf.mxu0
      %v4254 = vadd.f32 0.0, %v4253
      %v4255 = vpop.f32.mrf.mxu0
      %4256 = vmatprep.mubr.bf16.mxu0 0
      %4257 = vmatmul.mubr.bf16.gmra.mxu0 %v3891
      %v4258 = vpop.f32.mrf.mxu0
      %v4259 = vadd.f32 0.0, %v4258
      %v4260 = vpop.f32.mrf.mxu0
      %v4261 = vpop.f32.mrf.mxu0
      %v4262 = vadd.f32 0.0, %v4261
      %v4263 = vpop.f32.mrf.mxu0
      %4264 = vdwg.mxu0
      %v4265 = vadd.f32 %v3553, %v3931
      %v4266 = vadd.f32 %v3554, %v3934
      %v4267 = vadd.f32 %v3555, %v3939
      %v4268 = vadd.f32 %v3556, %v3942
      %v4269 = vadd.f32 %v3557, %v3947
      %v4270 = vadd.f32 %v3558, %v3950
      %v4271 = vadd.f32 %v3559, %v3955
      %v4272 = vadd.f32 %v3560, %v3958
      %v4273 = vadd.f32 %v3561, %v3963
      %v4274 = vadd.f32 %v3562, %v3966
      %v4275 = vadd.f32 %v3563, %v3971
      %v4276 = vadd.f32 %v3564, %v3974
      %v4277 = vadd.f32 %v3565, %v3979
      %v4278 = vadd.f32 %v3566, %v3982
      %v4279 = vadd.f32 %v3567, %v3987
      %v4280 = vadd.f32 %v3568, %v3990
      %v4281 = vadd.f32 %v3569, %v3995
      %v4282 = vadd.f32 %v3570, %v3998
      %v4283 = vadd.f32 %v3571, %v4003
      %v4284 = vadd.f32 %v3572, %v4006
      %v4285 = vadd.f32 %v3573, %v4011
      %v4286 = vadd.f32 %v3574, %v4014
      %v4287 = vadd.f32 %v3575, %v4019
      %v4288 = vadd.f32 %v3576, %v4022
      %v4289 = vadd.f32 %v3577, %v4027
      %v4290 = vadd.f32 %v3578, %v4030
      %v4291 = vadd.f32 %v3579, %v4035
      %v4292 = vadd.f32 %v3580, %v4038
      %v4293 = vadd.f32 %v3581, %v4043
      %v4294 = vadd.f32 %v3582, %v4046
      %v4295 = vadd.f32 %v3583, %v4051
      %v4296 = vadd.f32 %v3584, %v4054
      %v4297 = vadd.f32 %v3585, %v4059
      %v4298 = vadd.f32 %v3586, %v4062
      %v4299 = vadd.f32 %v3587, %v4067
      %v4300 = vadd.f32 %v3588, %v4070
      %v4301 = vadd.f32 %v3589, %v4075
      %v4302 = vadd.f32 %v3590, %v4078
      %v4303 = vadd.f32 %v3591, %v4083
      %v4304 = vadd.f32 %v3592, %v4086
      %v4305 = vadd.f32 %v3593, %v4091
      %v4306 = vadd.f32 %v3594, %v4094
      %v4307 = vadd.f32 %v3595, %v4099
      %v4308 = vadd.f32 %v3596, %v4102
      %v4309 = vadd.f32 %v3597, %v4107
      %v4310 = vadd.f32 %v3598, %v4110
      %v4311 = vadd.f32 %v3599, %v4115
      %v4312 = vadd.f32 %v3600, %v4118
      %v4313 = vadd.f32 %v3601, %v4123
      %v4314 = vadd.f32 %v3602, %v4126
      %v4315 = vadd.f32 %v3603, %v4131
      %v4316 = vadd.f32 %v3604, %v4134
      %v4317 = vadd.f32 %v3605, %v4139
      %v4318 = vadd.f32 %v3606, %v4142
      %v4319 = vadd.f32 %v3607, %v4147
      %v4320 = vadd.f32 %v3608, %v4150
      %v4321 = vadd.f32 %v3609, %v4155
      %v4322 = vadd.f32 %v3610, %v4158
      %v4323 = vadd.f32 %v3611, %v4163
      %v4324 = vadd.f32 %v3612, %v4166
      %v4325 = vadd.f32 %v3613, %v4171
      %v4326 = vadd.f32 %v3614, %v4174
      %v4327 = vadd.f32 %v3615, %v4179
      %v4328 = vadd.f32 %v3616, %v4182
      %v4329 = vadd.f32 %v3617, %v4187
      %v4330 = vadd.f32 %v3618, %v4190
      %v4331 = vadd.f32 %v3619, %v4195
      %v4332 = vadd.f32 %v3620, %v4198
      %v4333 = vadd.f32 %v3621, %v4203
      %v4334 = vadd.f32 %v3622, %v4206
      %v4335 = vadd.f32 %v3623, %v4211
      %v4336 = vadd.f32 %v3624, %v4214
      %v4337 = vadd.f32 %v3625, %v4219
      %v4338 = vadd.f32 %v3626, %v4222
      %v4339 = vadd.f32 %v3627, %v4227
      %v4340 = vadd.f32 %v3628, %v4230
      %v4341 = vadd.f32 %v3629, %v4235
      %v4342 = vadd.f32 %v3630, %v4238
      %v4343 = vadd.f32 %v3631, %v4243
      %v4344 = vadd.f32 %v3632, %v4246
      %v4345 = vadd.f32 %v3633, %v4251
      %v4346 = vadd.f32 %v3634, %v4254
      %v4347 = vadd.f32 %v3635, %v4259
      %v4348 = vadd.f32 %v3636, %v4262
      %s4349 = sadd.s32 %s241, 448
      %s4350 = scalar_lea.vmem %s219, %s4349
      %v4351 = vld [vmem:[%s4350] sm:$0xff]
      %v4352 = vld [vmem:[%s4350 + $0x8] sm:$0xff]
      %v4353 = vld [vmem:[%s4350 + $0x10] sm:$0xff]
      %v4354 = vld [vmem:[%s4350 + $0x18] sm:$0xff]
      %v4355 = vld [vmem:[%s4350 + $0x20] sm:$0xff]
      %v4356 = vld [vmem:[%s4350 + $0x28] sm:$0xff]
      %v4357 = vld [vmem:[%s4350 + $0x30] sm:$0xff]
      %v4358 = vld [vmem:[%s4350 + $0x38] sm:$0xff]
      %v4359 = vld [vmem:[%s4350 + $0x40] sm:$0xff]
      %v4360 = vld [vmem:[%s4350 + $0x48] sm:$0xff]
      %v4361 = vld [vmem:[%s4350 + $0x50] sm:$0xff]
      %v4362 = vld [vmem:[%s4350 + $0x58] sm:$0xff]
      %v4363 = vld [vmem:[%s4350 + $0x60] sm:$0xff]
      %v4364 = vld [vmem:[%s4350 + $0x68] sm:$0xff]
      %v4365 = vld [vmem:[%s4350 + $0x70] sm:$0xff]
      %v4366 = vld [vmem:[%s4350 + $0x78] sm:$0xff]
      %v4367 = vld [vmem:[%s4350 + $0x80] sm:$0xff]
      %v4368 = vld [vmem:[%s4350 + $0x88] sm:$0xff]
      %v4369 = vld [vmem:[%s4350 + $0x90] sm:$0xff]
      %v4370 = vld [vmem:[%s4350 + $0x98] sm:$0xff]
      %v4371 = vld [vmem:[%s4350 + $0xa0] sm:$0xff]
      %v4372 = vld [vmem:[%s4350 + $0xa8] sm:$0xff]
      %v4373 = vld [vmem:[%s4350 + $0xb0] sm:$0xff]
      %v4374 = vld [vmem:[%s4350 + $0xb8] sm:$0xff]
      %v4375 = vld [vmem:[%s4350 + $0xc0] sm:$0xff]
      %v4376 = vld [vmem:[%s4350 + $0xc8] sm:$0xff]
      %v4377 = vld [vmem:[%s4350 + $0xd0] sm:$0xff]
      %v4378 = vld [vmem:[%s4350 + $0xd8] sm:$0xff]
      %v4379 = vld [vmem:[%s4350 + $0xe0] sm:$0xff]
      %v4380 = vld [vmem:[%s4350 + $0xe8] sm:$0xff]
      %v4381 = vld [vmem:[%s4350 + $0xf0] sm:$0xff]
      %v4382 = vld [vmem:[%s4350 + $0xf8] sm:$0xff]
      %v4383 = vld [vmem:[%s4350 + $0x100] sm:$0xff]
      %v4384 = vld [vmem:[%s4350 + $0x108] sm:$0xff]
      %v4385 = vld [vmem:[%s4350 + $0x110] sm:$0xff]
      %v4386 = vld [vmem:[%s4350 + $0x118] sm:$0xff]
      %v4387 = vld [vmem:[%s4350 + $0x120] sm:$0xff]
      %v4388 = vld [vmem:[%s4350 + $0x128] sm:$0xff]
      %v4389 = vld [vmem:[%s4350 + $0x130] sm:$0xff]
      %v4390 = vld [vmem:[%s4350 + $0x138] sm:$0xff]
      %v4391 = vld [vmem:[%s4350 + $0x140] sm:$0xff]
      %v4392 = vld [vmem:[%s4350 + $0x148] sm:$0xff]
      %v4393 = vld [vmem:[%s4350 + $0x150] sm:$0xff]
      %v4394 = vld [vmem:[%s4350 + $0x158] sm:$0xff]
      %v4395 = vld [vmem:[%s4350 + $0x160] sm:$0xff]
      %v4396 = vld [vmem:[%s4350 + $0x168] sm:$0xff]
      %v4397 = vld [vmem:[%s4350 + $0x170] sm:$0xff]
      %v4398 = vld [vmem:[%s4350 + $0x178] sm:$0xff]
      %v4399 = vld [vmem:[%s4350 + $0x180] sm:$0xff]
      %v4400 = vld [vmem:[%s4350 + $0x188] sm:$0xff]
      %v4401 = vld [vmem:[%s4350 + $0x190] sm:$0xff]
      %v4402 = vld [vmem:[%s4350 + $0x198] sm:$0xff]
      %v4403 = vld [vmem:[%s4350 + $0x1a0] sm:$0xff]
      %v4404 = vld [vmem:[%s4350 + $0x1a8] sm:$0xff]
      %v4405 = vld [vmem:[%s4350 + $0x1b0] sm:$0xff]
      %v4406 = vld [vmem:[%s4350 + $0x1b8] sm:$0xff]
      %v4407 = vld [vmem:[%s4350 + $0x1c0] sm:$0xff]
      %v4408 = vld [vmem:[%s4350 + $0x1c8] sm:$0xff]
      %v4409 = vld [vmem:[%s4350 + $0x1d0] sm:$0xff]
      %v4410 = vld [vmem:[%s4350 + $0x1d8] sm:$0xff]
      %v4411 = vld [vmem:[%s4350 + $0x1e0] sm:$0xff]
      %v4412 = vld [vmem:[%s4350 + $0x1e8] sm:$0xff]
      %v4413 = vld [vmem:[%s4350 + $0x1f0] sm:$0xff]
      %v4414 = vld [vmem:[%s4350 + $0x1f8] sm:$0xff]
      %v4415 = vld [vmem:[%s4350 + $0x200] sm:$0xff]
      %v4416 = vld [vmem:[%s4350 + $0x208] sm:$0xff]
      %v4417 = vld [vmem:[%s4350 + $0x210] sm:$0xff]
      %v4418 = vld [vmem:[%s4350 + $0x218] sm:$0xff]
      %v4419 = vld [vmem:[%s4350 + $0x220] sm:$0xff]
      %v4420 = vld [vmem:[%s4350 + $0x228] sm:$0xff]
      %v4421 = vld [vmem:[%s4350 + $0x230] sm:$0xff]
      %v4422 = vld [vmem:[%s4350 + $0x238] sm:$0xff]
      %v4423 = vld [vmem:[%s4350 + $0x240] sm:$0xff]
      %v4424 = vld [vmem:[%s4350 + $0x248] sm:$0xff]
      %v4425 = vld [vmem:[%s4350 + $0x250] sm:$0xff]
      %v4426 = vld [vmem:[%s4350 + $0x258] sm:$0xff]
      %v4427 = vld [vmem:[%s4350 + $0x260] sm:$0xff]
      %v4428 = vld [vmem:[%s4350 + $0x268] sm:$0xff]
      %v4429 = vld [vmem:[%s4350 + $0x270] sm:$0xff]
      %v4430 = vld [vmem:[%s4350 + $0x278] sm:$0xff]
      %v4431 = vld [vmem:[%s4350 + $0x280] sm:$0xff]
      %v4432 = vld [vmem:[%s4350 + $0x288] sm:$0xff]
      %v4433 = vld [vmem:[%s4350 + $0x290] sm:$0xff]
      %v4434 = vld [vmem:[%s4350 + $0x298] sm:$0xff]
      %v4435 = vpack.c.bf16 %v4352, %v4351
      %v4436 = vpack.c.bf16 %v4354, %v4353
      %v4437 = vpack.c.bf16 %v4356, %v4355
      %v4438 = vpack.c.bf16 %v4358, %v4357
      %v4439 = vpack.c.bf16 %v4360, %v4359
      %v4440 = vpack.c.bf16 %v4362, %v4361
      %v4441 = vpack.c.bf16 %v4364, %v4363
      %v4442 = vpack.c.bf16 %v4366, %v4365
      %v4443 = vpack.c.bf16 %v4368, %v4367
      %v4444 = vpack.c.bf16 %v4370, %v4369
      %v4445 = vpack.c.bf16 %v4372, %v4371
      %v4446 = vpack.c.bf16 %v4374, %v4373
      %v4447 = vpack.c.bf16 %v4376, %v4375
      %v4448 = vpack.c.bf16 %v4378, %v4377
      %v4449 = vpack.c.bf16 %v4380, %v4379
      %v4450 = vpack.c.bf16 %v4382, %v4381
      %v4451 = vpack.c.bf16 %v4384, %v4383
      %v4452 = vpack.c.bf16 %v4386, %v4385
      %v4453 = vpack.c.bf16 %v4388, %v4387
      %v4454 = vpack.c.bf16 %v4390, %v4389
      %v4455 = vpack.c.bf16 %v4392, %v4391
      %v4456 = vpack.c.bf16 %v4394, %v4393
      %v4457 = vpack.c.bf16 %v4396, %v4395
      %v4458 = vpack.c.bf16 %v4398, %v4397
      %v4459 = vpack.c.bf16 %v4400, %v4399
      %v4460 = vpack.c.bf16 %v4402, %v4401
      %v4461 = vpack.c.bf16 %v4404, %v4403
      %v4462 = vpack.c.bf16 %v4406, %v4405
      %v4463 = vpack.c.bf16 %v4408, %v4407
      %v4464 = vpack.c.bf16 %v4410, %v4409
      %v4465 = vpack.c.bf16 %v4412, %v4411
      %v4466 = vpack.c.bf16 %v4414, %v4413
      %v4467 = vpack.c.bf16 %v4416, %v4415
      %v4468 = vpack.c.bf16 %v4418, %v4417
      %v4469 = vpack.c.bf16 %v4420, %v4419
      %v4470 = vpack.c.bf16 %v4422, %v4421
      %v4471 = vpack.c.bf16 %v4424, %v4423
      %v4472 = vpack.c.bf16 %v4426, %v4425
      %v4473 = vpack.c.bf16 %v4428, %v4427
      %v4474 = vpack.c.bf16 %v4430, %v4429
      %v4475 = vpack.c.bf16 %v4432, %v4431
      %v4476 = vpack.c.bf16 %v4434, %v4433
      %s4477 = scalar_lea.vmem %s223, 12
      %v4478 = vld [vmem:[%s4477] sm:$0x3]
      %v4480 = vsel %vm500, %v4435, 0
      %v4483 = vsel %vm500, %v4436, 0
      %v4486 = vsel %vm500, %v4437, 0
      %v4489 = vsel %vm500, %v4438, 0
      %v4492 = vsel %vm500, %v4439, 0
      %v4495 = vsel %vm500, %v4440, 0
      %v4498 = vsel %vm500, %v4441, 0
      %v4501 = vsel %vm500, %v4442, 0
      %v4504 = vsel %vm500, %v4443, 0
      %v4507 = vsel %vm500, %v4444, 0
      %v4510 = vsel %vm500, %v4445, 0
      %v4513 = vsel %vm500, %v4446, 0
      %v4516 = vsel %vm500, %v4447, 0
      %v4519 = vsel %vm500, %v4448, 0
      %v4522 = vsel %vm500, %v4449, 0
      %v4525 = vsel %vm500, %v4450, 0
      %v4528 = vsel %vm500, %v4451, 0
      %v4531 = vsel %vm500, %v4452, 0
      %v4534 = vsel %vm500, %v4453, 0
      %v4537 = vsel %vm500, %v4454, 0
      %v4540 = vsel %vm500, %v4455, 0
      %v4543 = vsel %vm500, %v4456, 0
      %v4546 = vsel %vm500, %v4457, 0
      %v4549 = vsel %vm500, %v4458, 0
      %v4552 = vsel %vm500, %v4459, 0
      %v4555 = vsel %vm500, %v4460, 0
      %v4558 = vsel %vm500, %v4461, 0
      %v4561 = vsel %vm500, %v4462, 0
      %v4564 = vsel %vm500, %v4463, 0
      %v4567 = vsel %vm500, %v4464, 0
      %v4570 = vsel %vm500, %v4465, 0
      %v4573 = vsel %vm500, %v4466, 0
      %v4576 = vsel %vm500, %v4467, 0
      %v4579 = vsel %vm500, %v4468, 0
      %v4582 = vsel %vm500, %v4469, 0
      %v4585 = vsel %vm500, %v4470, 0
      %v4588 = vsel %vm500, %v4471, 0
      %v4591 = vsel %vm500, %v4472, 0
      %v4594 = vsel %vm500, %v4473, 0
      %v4597 = vsel %vm500, %v4474, 0
      %v4600 = vsel %vm500, %v4475, 0
      %v4603 = vsel %vm500, %v4476, 0
      %v4606 = vand.u32 %v4478, %v630
      %4608 = vmatprep.subr.bf16.mxu0 0
      %4609 = vmatpush1.bf16.msra.mxu0 0
      %4610 = vmatprep.subr.bf16.mxu0 0
      %4611 = vmatpush1.bf16.msra.mxu0 0
      %4612 = vmatprep.subr.bf16.mxu0 0
      %4613 = vmatpush1.bf16.msra.mxu0 0
      %4614 = vmatprep.subr.bf16.mxu0 0
      %4615 = vmatpush1.bf16.msra.mxu0 0
      %4616 = vmatprep.subr.bf16.mxu0 0
      %4617 = vmatpush1.bf16.msra.mxu0 0
      %4618 = vmatprep.subr.bf16.mxu0 0
      %4619 = vmatpush1.bf16.msra.mxu0 0
      %4620 = vmatprep.subr.bf16.mxu0 0
      %4621 = vmatpush1.bf16.msra.mxu0 0
      %4622 = vmatprep.subr.bf16.mxu0 0
      %4623 = vmatpush1.bf16.msra.mxu0 %v4606
      %4624 = vmatprep.subr.bf16.mxu0 0
      %4625 = vmatpush2.bf16.msra.mxu0 0
      %4626 = vmatprep.subr.bf16.mxu0 0
      %4627 = vmatpush2.bf16.msra.mxu0 0
      %4628 = vmatprep.subr.bf16.mxu0 0
      %4629 = vmatpush2.bf16.msra.mxu0 0
      %4630 = vmatprep.subr.bf16.mxu0 0
      %4631 = vmatpush2.bf16.msra.mxu0 0
      %4632 = vmatprep.subr.bf16.mxu0 0
      %4633 = vmatpush2.bf16.msra.mxu0 0
      %4634 = vmatprep.subr.bf16.mxu0 0
      %4635 = vmatpush2.bf16.msra.mxu0 0
      %4636 = vmatprep.subr.bf16.mxu0 0
      %4637 = vmatpush2.bf16.msra.mxu0 0
      %4638 = vmatprep.subr.bf16.mxu0 0
      %4639 = vmatpush2.bf16.msra.mxu0 0
      %4640 = vmatprep.mubr.bf16.mxu0 0
      %4641 = vmatmul.mubr.bf16.gmra.mxu0 %v4480
      %v4642 = vpop.f32.mrf.mxu0
      %v4643 = vadd.f32 0.0, %v4642
      %v4644 = vpop.f32.mrf.mxu0
      %v4645 = vpop.f32.mrf.mxu0
      %v4646 = vadd.f32 0.0, %v4645
      %v4647 = vpop.f32.mrf.mxu0
      %4648 = vmatprep.mubr.bf16.mxu0 0
      %4649 = vmatmul.mubr.bf16.gmra.mxu0 %v4483
      %v4650 = vpop.f32.mrf.mxu0
      %v4651 = vadd.f32 0.0, %v4650
      %v4652 = vpop.f32.mrf.mxu0
      %v4653 = vpop.f32.mrf.mxu0
      %v4654 = vadd.f32 0.0, %v4653
      %v4655 = vpop.f32.mrf.mxu0
      %4656 = vmatprep.mubr.bf16.mxu0 0
      %4657 = vmatmul.mubr.bf16.gmra.mxu0 %v4486
      %v4658 = vpop.f32.mrf.mxu0
      %v4659 = vadd.f32 0.0, %v4658
      %v4660 = vpop.f32.mrf.mxu0
      %v4661 = vpop.f32.mrf.mxu0
      %v4662 = vadd.f32 0.0, %v4661
      %v4663 = vpop.f32.mrf.mxu0
      %4664 = vmatprep.mubr.bf16.mxu0 0
      %4665 = vmatmul.mubr.bf16.gmra.mxu0 %v4489
      %v4666 = vpop.f32.mrf.mxu0
      %v4667 = vadd.f32 0.0, %v4666
      %v4668 = vpop.f32.mrf.mxu0
      %v4669 = vpop.f32.mrf.mxu0
      %v4670 = vadd.f32 0.0, %v4669
      %v4671 = vpop.f32.mrf.mxu0
      %4672 = vmatprep.mubr.bf16.mxu0 0
      %4673 = vmatmul.mubr.bf16.gmra.mxu0 %v4492
      %v4674 = vpop.f32.mrf.mxu0
      %v4675 = vadd.f32 0.0, %v4674
      %v4676 = vpop.f32.mrf.mxu0
      %v4677 = vpop.f32.mrf.mxu0
      %v4678 = vadd.f32 0.0, %v4677
      %v4679 = vpop.f32.mrf.mxu0
      %4680 = vmatprep.mubr.bf16.mxu0 0
      %4681 = vmatmul.mubr.bf16.gmra.mxu0 %v4495
      %v4682 = vpop.f32.mrf.mxu0
      %v4683 = vadd.f32 0.0, %v4682
      %v4684 = vpop.f32.mrf.mxu0
      %v4685 = vpop.f32.mrf.mxu0
      %v4686 = vadd.f32 0.0, %v4685
      %v4687 = vpop.f32.mrf.mxu0
      %4688 = vmatprep.mubr.bf16.mxu0 0
      %4689 = vmatmul.mubr.bf16.gmra.mxu0 %v4498
      %v4690 = vpop.f32.mrf.mxu0
      %v4691 = vadd.f32 0.0, %v4690
      %v4692 = vpop.f32.mrf.mxu0
      %v4693 = vpop.f32.mrf.mxu0
      %v4694 = vadd.f32 0.0, %v4693
      %v4695 = vpop.f32.mrf.mxu0
      %4696 = vmatprep.mubr.bf16.mxu0 0
      %4697 = vmatmul.mubr.bf16.gmra.mxu0 %v4501
      %v4698 = vpop.f32.mrf.mxu0
      %v4699 = vadd.f32 0.0, %v4698
      %v4700 = vpop.f32.mrf.mxu0
      %v4701 = vpop.f32.mrf.mxu0
      %v4702 = vadd.f32 0.0, %v4701
      %v4703 = vpop.f32.mrf.mxu0
      %4704 = vmatprep.mubr.bf16.mxu0 0
      %4705 = vmatmul.mubr.bf16.gmra.mxu0 %v4504
      %v4706 = vpop.f32.mrf.mxu0
      %v4707 = vadd.f32 0.0, %v4706
      %v4708 = vpop.f32.mrf.mxu0
      %v4709 = vpop.f32.mrf.mxu0
      %v4710 = vadd.f32 0.0, %v4709
      %v4711 = vpop.f32.mrf.mxu0
      %4712 = vmatprep.mubr.bf16.mxu0 0
      %4713 = vmatmul.mubr.bf16.gmra.mxu0 %v4507
      %v4714 = vpop.f32.mrf.mxu0
      %v4715 = vadd.f32 0.0, %v4714
      %v4716 = vpop.f32.mrf.mxu0
      %v4717 = vpop.f32.mrf.mxu0
      %v4718 = vadd.f32 0.0, %v4717
      %v4719 = vpop.f32.mrf.mxu0
      %4720 = vmatprep.mubr.bf16.mxu0 0
      %4721 = vmatmul.mubr.bf16.gmra.mxu0 %v4510
      %v4722 = vpop.f32.mrf.mxu0
      %v4723 = vadd.f32 0.0, %v4722
      %v4724 = vpop.f32.mrf.mxu0
      %v4725 = vpop.f32.mrf.mxu0
      %v4726 = vadd.f32 0.0, %v4725
      %v4727 = vpop.f32.mrf.mxu0
      %4728 = vmatprep.mubr.bf16.mxu0 0
      %4729 = vmatmul.mubr.bf16.gmra.mxu0 %v4513
      %v4730 = vpop.f32.mrf.mxu0
      %v4731 = vadd.f32 0.0, %v4730
      %v4732 = vpop.f32.mrf.mxu0
      %v4733 = vpop.f32.mrf.mxu0
      %v4734 = vadd.f32 0.0, %v4733
      %v4735 = vpop.f32.mrf.mxu0
      %4736 = vmatprep.mubr.bf16.mxu0 0
      %4737 = vmatmul.mubr.bf16.gmra.mxu0 %v4516
      %v4738 = vpop.f32.mrf.mxu0
      %v4739 = vadd.f32 0.0, %v4738
      %v4740 = vpop.f32.mrf.mxu0
      %v4741 = vpop.f32.mrf.mxu0
      %v4742 = vadd.f32 0.0, %v4741
      %v4743 = vpop.f32.mrf.mxu0
      %4744 = vmatprep.mubr.bf16.mxu0 0
      %4745 = vmatmul.mubr.bf16.gmra.mxu0 %v4519
      %v4746 = vpop.f32.mrf.mxu0
      %v4747 = vadd.f32 0.0, %v4746
      %v4748 = vpop.f32.mrf.mxu0
      %v4749 = vpop.f32.mrf.mxu0
      %v4750 = vadd.f32 0.0, %v4749
      %v4751 = vpop.f32.mrf.mxu0
      %4752 = vmatprep.mubr.bf16.mxu0 0
      %4753 = vmatmul.mubr.bf16.gmra.mxu0 %v4522
      %v4754 = vpop.f32.mrf.mxu0
      %v4755 = vadd.f32 0.0, %v4754
      %v4756 = vpop.f32.mrf.mxu0
      %v4757 = vpop.f32.mrf.mxu0
      %v4758 = vadd.f32 0.0, %v4757
      %v4759 = vpop.f32.mrf.mxu0
      %4760 = vmatprep.mubr.bf16.mxu0 0
      %4761 = vmatmul.mubr.bf16.gmra.mxu0 %v4525
      %v4762 = vpop.f32.mrf.mxu0
      %v4763 = vadd.f32 0.0, %v4762
      %v4764 = vpop.f32.mrf.mxu0
      %v4765 = vpop.f32.mrf.mxu0
      %v4766 = vadd.f32 0.0, %v4765
      %v4767 = vpop.f32.mrf.mxu0
      %4768 = vmatprep.mubr.bf16.mxu0 0
      %4769 = vmatmul.mubr.bf16.gmra.mxu0 %v4528
      %v4770 = vpop.f32.mrf.mxu0
      %v4771 = vadd.f32 0.0, %v4770
      %v4772 = vpop.f32.mrf.mxu0
      %v4773 = vpop.f32.mrf.mxu0
      %v4774 = vadd.f32 0.0, %v4773
      %v4775 = vpop.f32.mrf.mxu0
      %4776 = vmatprep.mubr.bf16.mxu0 0
      %4777 = vmatmul.mubr.bf16.gmra.mxu0 %v4531
      %v4778 = vpop.f32.mrf.mxu0
      %v4779 = vadd.f32 0.0, %v4778
      %v4780 = vpop.f32.mrf.mxu0
      %v4781 = vpop.f32.mrf.mxu0
      %v4782 = vadd.f32 0.0, %v4781
      %v4783 = vpop.f32.mrf.mxu0
      %4784 = vmatprep.mubr.bf16.mxu0 0
      %4785 = vmatmul.mubr.bf16.gmra.mxu0 %v4534
      %v4786 = vpop.f32.mrf.mxu0
      %v4787 = vadd.f32 0.0, %v4786
      %v4788 = vpop.f32.mrf.mxu0
      %v4789 = vpop.f32.mrf.mxu0
      %v4790 = vadd.f32 0.0, %v4789
      %v4791 = vpop.f32.mrf.mxu0
      %4792 = vmatprep.mubr.bf16.mxu0 0
      %4793 = vmatmul.mubr.bf16.gmra.mxu0 %v4537
      %v4794 = vpop.f32.mrf.mxu0
      %v4795 = vadd.f32 0.0, %v4794
      %v4796 = vpop.f32.mrf.mxu0
      %v4797 = vpop.f32.mrf.mxu0
      %v4798 = vadd.f32 0.0, %v4797
      %v4799 = vpop.f32.mrf.mxu0
      %4800 = vmatprep.mubr.bf16.mxu0 0
      %4801 = vmatmul.mubr.bf16.gmra.mxu0 %v4540
      %v4802 = vpop.f32.mrf.mxu0
      %v4803 = vadd.f32 0.0, %v4802
      %v4804 = vpop.f32.mrf.mxu0
      %v4805 = vpop.f32.mrf.mxu0
      %v4806 = vadd.f32 0.0, %v4805
      %v4807 = vpop.f32.mrf.mxu0
      %4808 = vmatprep.mubr.bf16.mxu0 0
      %4809 = vmatmul.mubr.bf16.gmra.mxu0 %v4543
      %v4810 = vpop.f32.mrf.mxu0
      %v4811 = vadd.f32 0.0, %v4810
      %v4812 = vpop.f32.mrf.mxu0
      %v4813 = vpop.f32.mrf.mxu0
      %v4814 = vadd.f32 0.0, %v4813
      %v4815 = vpop.f32.mrf.mxu0
      %4816 = vmatprep.mubr.bf16.mxu0 0
      %4817 = vmatmul.mubr.bf16.gmra.mxu0 %v4546
      %v4818 = vpop.f32.mrf.mxu0
      %v4819 = vadd.f32 0.0, %v4818
      %v4820 = vpop.f32.mrf.mxu0
      %v4821 = vpop.f32.mrf.mxu0
      %v4822 = vadd.f32 0.0, %v4821
      %v4823 = vpop.f32.mrf.mxu0
      %4824 = vmatprep.mubr.bf16.mxu0 0
      %4825 = vmatmul.mubr.bf16.gmra.mxu0 %v4549
      %v4826 = vpop.f32.mrf.mxu0
      %v4827 = vadd.f32 0.0, %v4826
      %v4828 = vpop.f32.mrf.mxu0
      %v4829 = vpop.f32.mrf.mxu0
      %v4830 = vadd.f32 0.0, %v4829
      %v4831 = vpop.f32.mrf.mxu0
      %4832 = vmatprep.mubr.bf16.mxu0 0
      %4833 = vmatmul.mubr.bf16.gmra.mxu0 %v4552
      %v4834 = vpop.f32.mrf.mxu0
      %v4835 = vadd.f32 0.0, %v4834
      %v4836 = vpop.f32.mrf.mxu0
      %v4837 = vpop.f32.mrf.mxu0
      %v4838 = vadd.f32 0.0, %v4837
      %v4839 = vpop.f32.mrf.mxu0
      %4840 = vmatprep.mubr.bf16.mxu0 0
      %4841 = vmatmul.mubr.bf16.gmra.mxu0 %v4555
      %v4842 = vpop.f32.mrf.mxu0
      %v4843 = vadd.f32 0.0, %v4842
      %v4844 = vpop.f32.mrf.mxu0
      %v4845 = vpop.f32.mrf.mxu0
      %v4846 = vadd.f32 0.0, %v4845
      %v4847 = vpop.f32.mrf.mxu0
      %4848 = vmatprep.mubr.bf16.mxu0 0
      %4849 = vmatmul.mubr.bf16.gmra.mxu0 %v4558
      %v4850 = vpop.f32.mrf.mxu0
      %v4851 = vadd.f32 0.0, %v4850
      %v4852 = vpop.f32.mrf.mxu0
      %v4853 = vpop.f32.mrf.mxu0
      %v4854 = vadd.f32 0.0, %v4853
      %v4855 = vpop.f32.mrf.mxu0
      %4856 = vmatprep.mubr.bf16.mxu0 0
      %4857 = vmatmul.mubr.bf16.gmra.mxu0 %v4561
      %v4858 = vpop.f32.mrf.mxu0
      %v4859 = vadd.f32 0.0, %v4858
      %v4860 = vpop.f32.mrf.mxu0
      %v4861 = vpop.f32.mrf.mxu0
      %v4862 = vadd.f32 0.0, %v4861
      %v4863 = vpop.f32.mrf.mxu0
      %4864 = vmatprep.mubr.bf16.mxu0 0
      %4865 = vmatmul.mubr.bf16.gmra.mxu0 %v4564
      %v4866 = vpop.f32.mrf.mxu0
      %v4867 = vadd.f32 0.0, %v4866
      %v4868 = vpop.f32.mrf.mxu0
      %v4869 = vpop.f32.mrf.mxu0
      %v4870 = vadd.f32 0.0, %v4869
      %v4871 = vpop.f32.mrf.mxu0
      %4872 = vmatprep.mubr.bf16.mxu0 0
      %4873 = vmatmul.mubr.bf16.gmra.mxu0 %v4567
      %v4874 = vpop.f32.mrf.mxu0
      %v4875 = vadd.f32 0.0, %v4874
      %v4876 = vpop.f32.mrf.mxu0
      %v4877 = vpop.f32.mrf.mxu0
      %v4878 = vadd.f32 0.0, %v4877
      %v4879 = vpop.f32.mrf.mxu0
      %4880 = vmatprep.mubr.bf16.mxu0 0
      %4881 = vmatmul.mubr.bf16.gmra.mxu0 %v4570
      %v4882 = vpop.f32.mrf.mxu0
      %v4883 = vadd.f32 0.0, %v4882
      %v4884 = vpop.f32.mrf.mxu0
      %v4885 = vpop.f32.mrf.mxu0
      %v4886 = vadd.f32 0.0, %v4885
      %v4887 = vpop.f32.mrf.mxu0
      %4888 = vmatprep.mubr.bf16.mxu0 0
      %4889 = vmatmul.mubr.bf16.gmra.mxu0 %v4573
      %v4890 = vpop.f32.mrf.mxu0
      %v4891 = vadd.f32 0.0, %v4890
      %v4892 = vpop.f32.mrf.mxu0
      %v4893 = vpop.f32.mrf.mxu0
      %v4894 = vadd.f32 0.0, %v4893
      %v4895 = vpop.f32.mrf.mxu0
      %4896 = vmatprep.mubr.bf16.mxu0 0
      %4897 = vmatmul.mubr.bf16.gmra.mxu0 %v4576
      %v4898 = vpop.f32.mrf.mxu0
      %v4899 = vadd.f32 0.0, %v4898
      %v4900 = vpop.f32.mrf.mxu0
      %v4901 = vpop.f32.mrf.mxu0
      %v4902 = vadd.f32 0.0, %v4901
      %v4903 = vpop.f32.mrf.mxu0
      %4904 = vmatprep.mubr.bf16.mxu0 0
      %4905 = vmatmul.mubr.bf16.gmra.mxu0 %v4579
      %v4906 = vpop.f32.mrf.mxu0
      %v4907 = vadd.f32 0.0, %v4906
      %v4908 = vpop.f32.mrf.mxu0
      %v4909 = vpop.f32.mrf.mxu0
      %v4910 = vadd.f32 0.0, %v4909
      %v4911 = vpop.f32.mrf.mxu0
      %4912 = vmatprep.mubr.bf16.mxu0 0
      %4913 = vmatmul.mubr.bf16.gmra.mxu0 %v4582
      %v4914 = vpop.f32.mrf.mxu0
      %v4915 = vadd.f32 0.0, %v4914
      %v4916 = vpop.f32.mrf.mxu0
      %v4917 = vpop.f32.mrf.mxu0
      %v4918 = vadd.f32 0.0, %v4917
      %v4919 = vpop.f32.mrf.mxu0
      %4920 = vmatprep.mubr.bf16.mxu0 0
      %4921 = vmatmul.mubr.bf16.gmra.mxu0 %v4585
      %v4922 = vpop.f32.mrf.mxu0
      %v4923 = vadd.f32 0.0, %v4922
      %v4924 = vpop.f32.mrf.mxu0
      %v4925 = vpop.f32.mrf.mxu0
      %v4926 = vadd.f32 0.0, %v4925
      %v4927 = vpop.f32.mrf.mxu0
      %4928 = vmatprep.mubr.bf16.mxu0 0
      %4929 = vmatmul.mubr.bf16.gmra.mxu0 %v4588
      %v4930 = vpop.f32.mrf.mxu0
      %v4931 = vadd.f32 0.0, %v4930
      %v4932 = vpop.f32.mrf.mxu0
      %v4933 = vpop.f32.mrf.mxu0
      %v4934 = vadd.f32 0.0, %v4933
      %v4935 = vpop.f32.mrf.mxu0
      %4936 = vmatprep.mubr.bf16.mxu0 0
      %4937 = vmatmul.mubr.bf16.gmra.mxu0 %v4591
      %v4938 = vpop.f32.mrf.mxu0
      %v4939 = vadd.f32 0.0, %v4938
      %v4940 = vpop.f32.mrf.mxu0
      %v4941 = vpop.f32.mrf.mxu0
      %v4942 = vadd.f32 0.0, %v4941
      %v4943 = vpop.f32.mrf.mxu0
      %4944 = vmatprep.mubr.bf16.mxu0 0
      %4945 = vmatmul.mubr.bf16.gmra.mxu0 %v4594
      %v4946 = vpop.f32.mrf.mxu0
      %v4947 = vadd.f32 0.0, %v4946
      %v4948 = vpop.f32.mrf.mxu0
      %v4949 = vpop.f32.mrf.mxu0
      %v4950 = vadd.f32 0.0, %v4949
      %v4951 = vpop.f32.mrf.mxu0
      %4952 = vmatprep.mubr.bf16.mxu0 0
      %4953 = vmatmul.mubr.bf16.gmra.mxu0 %v4597
      %v4954 = vpop.f32.mrf.mxu0
      %v4955 = vadd.f32 0.0, %v4954
      %v4956 = vpop.f32.mrf.mxu0
      %v4957 = vpop.f32.mrf.mxu0
      %v4958 = vadd.f32 0.0, %v4957
      %v4959 = vpop.f32.mrf.mxu0
      %4960 = vmatprep.mubr.bf16.mxu0 0
      %4961 = vmatmul.mubr.bf16.gmra.mxu0 %v4600
      %v4962 = vpop.f32.mrf.mxu0
      %v4963 = vadd.f32 0.0, %v4962
      %v4964 = vpop.f32.mrf.mxu0
      %v4965 = vpop.f32.mrf.mxu0
      %v4966 = vadd.f32 0.0, %v4965
      %v4967 = vpop.f32.mrf.mxu0
      %4968 = vmatprep.mubr.bf16.mxu0 0
      %4969 = vmatmul.mubr.bf16.gmra.mxu0 %v4603
      %v4970 = vpop.f32.mrf.mxu0
      %v4971 = vadd.f32 0.0, %v4970
      %v4972 = vpop.f32.mrf.mxu0
      %v4973 = vpop.f32.mrf.mxu0
      %v4974 = vadd.f32 0.0, %v4973
      %v4975 = vpop.f32.mrf.mxu0
      %4976 = vdwg.mxu0
      %v4977 = vadd.f32 %v4265, %v4643
      %v4978 = vadd.f32 %v4266, %v4646
      %v4979 = vadd.f32 %v4267, %v4651
      %v4980 = vadd.f32 %v4268, %v4654
      %v4981 = vadd.f32 %v4269, %v4659
      %v4982 = vadd.f32 %v4270, %v4662
      %v4983 = vadd.f32 %v4271, %v4667
      %v4984 = vadd.f32 %v4272, %v4670
      %v4985 = vadd.f32 %v4273, %v4675
      %v4986 = vadd.f32 %v4274, %v4678
      %v4987 = vadd.f32 %v4275, %v4683
      %v4988 = vadd.f32 %v4276, %v4686
      %v4989 = vadd.f32 %v4277, %v4691
      %v4990 = vadd.f32 %v4278, %v4694
      %v4991 = vadd.f32 %v4279, %v4699
      %v4992 = vadd.f32 %v4280, %v4702
      %v4993 = vadd.f32 %v4281, %v4707
      %v4994 = vadd.f32 %v4282, %v4710
      %v4995 = vadd.f32 %v4283, %v4715
      %v4996 = vadd.f32 %v4284, %v4718
      %v4997 = vadd.f32 %v4285, %v4723
      %v4998 = vadd.f32 %v4286, %v4726
      %v4999 = vadd.f32 %v4287, %v4731
      %v5000 = vadd.f32 %v4288, %v4734
      %v5001 = vadd.f32 %v4289, %v4739
      %v5002 = vadd.f32 %v4290, %v4742
      %v5003 = vadd.f32 %v4291, %v4747
      %v5004 = vadd.f32 %v4292, %v4750
      %v5005 = vadd.f32 %v4293, %v4755
      %v5006 = vadd.f32 %v4294, %v4758
      %v5007 = vadd.f32 %v4295, %v4763
      %v5008 = vadd.f32 %v4296, %v4766
      %v5009 = vadd.f32 %v4297, %v4771
      %v5010 = vadd.f32 %v4298, %v4774
      %v5011 = vadd.f32 %v4299, %v4779
      %v5012 = vadd.f32 %v4300, %v4782
      %v5013 = vadd.f32 %v4301, %v4787
      %v5014 = vadd.f32 %v4302, %v4790
      %v5015 = vadd.f32 %v4303, %v4795
      %v5016 = vadd.f32 %v4304, %v4798
      %v5017 = vadd.f32 %v4305, %v4803
      %v5018 = vadd.f32 %v4306, %v4806
      %v5019 = vadd.f32 %v4307, %v4811
      %v5020 = vadd.f32 %v4308, %v4814
      %v5021 = vadd.f32 %v4309, %v4819
      %v5022 = vadd.f32 %v4310, %v4822
      %v5023 = vadd.f32 %v4311, %v4827
      %v5024 = vadd.f32 %v4312, %v4830
      %v5025 = vadd.f32 %v4313, %v4835
      %v5026 = vadd.f32 %v4314, %v4838
      %v5027 = vadd.f32 %v4315, %v4843
      %v5028 = vadd.f32 %v4316, %v4846
      %v5029 = vadd.f32 %v4317, %v4851
      %v5030 = vadd.f32 %v4318, %v4854
      %v5031 = vadd.f32 %v4319, %v4859
      %v5032 = vadd.f32 %v4320, %v4862
      %v5033 = vadd.f32 %v4321, %v4867
      %v5034 = vadd.f32 %v4322, %v4870
      %v5035 = vadd.f32 %v4323, %v4875
      %v5036 = vadd.f32 %v4324, %v4878
      %v5037 = vadd.f32 %v4325, %v4883
      %v5038 = vadd.f32 %v4326, %v4886
      %v5039 = vadd.f32 %v4327, %v4891
      %v5040 = vadd.f32 %v4328, %v4894
      %v5041 = vadd.f32 %v4329, %v4899
      %v5042 = vadd.f32 %v4330, %v4902
      %v5043 = vadd.f32 %v4331, %v4907
      %v5044 = vadd.f32 %v4332, %v4910
      %v5045 = vadd.f32 %v4333, %v4915
      %v5046 = vadd.f32 %v4334, %v4918
      %v5047 = vadd.f32 %v4335, %v4923
      %v5048 = vadd.f32 %v4336, %v4926
      %v5049 = vadd.f32 %v4337, %v4931
      %v5050 = vadd.f32 %v4338, %v4934
      %v5051 = vadd.f32 %v4339, %v4939
      %v5052 = vadd.f32 %v4340, %v4942
      %v5053 = vadd.f32 %v4341, %v4947
      %v5054 = vadd.f32 %v4342, %v4950
      %v5055 = vadd.f32 %v4343, %v4955
      %v5056 = vadd.f32 %v4344, %v4958
      %v5057 = vadd.f32 %v4345, %v4963
      %v5058 = vadd.f32 %v4346, %v4966
      %v5059 = vadd.f32 %v4347, %v4971
      %v5060 = vadd.f32 %v4348, %v4974
      %s5061 = sadd.s32 %s241, 449
      %s5062 = scalar_lea.vmem %s219, %s5061
      %v5063 = vld [vmem:[%s5062] sm:$0xff]
      %v5064 = vld [vmem:[%s5062 + $0x8] sm:$0xff]
      %v5065 = vld [vmem:[%s5062 + $0x10] sm:$0xff]
      %v5066 = vld [vmem:[%s5062 + $0x18] sm:$0xff]
      %v5067 = vld [vmem:[%s5062 + $0x20] sm:$0xff]
      %v5068 = vld [vmem:[%s5062 + $0x28] sm:$0xff]
      %v5069 = vld [vmem:[%s5062 + $0x30] sm:$0xff]
      %v5070 = vld [vmem:[%s5062 + $0x38] sm:$0xff]
      %v5071 = vld [vmem:[%s5062 + $0x40] sm:$0xff]
      %v5072 = vld [vmem:[%s5062 + $0x48] sm:$0xff]
      %v5073 = vld [vmem:[%s5062 + $0x50] sm:$0xff]
      %v5074 = vld [vmem:[%s5062 + $0x58] sm:$0xff]
      %v5075 = vld [vmem:[%s5062 + $0x60] sm:$0xff]
      %v5076 = vld [vmem:[%s5062 + $0x68] sm:$0xff]
      %v5077 = vld [vmem:[%s5062 + $0x70] sm:$0xff]
      %v5078 = vld [vmem:[%s5062 + $0x78] sm:$0xff]
      %v5079 = vld [vmem:[%s5062 + $0x80] sm:$0xff]
      %v5080 = vld [vmem:[%s5062 + $0x88] sm:$0xff]
      %v5081 = vld [vmem:[%s5062 + $0x90] sm:$0xff]
      %v5082 = vld [vmem:[%s5062 + $0x98] sm:$0xff]
      %v5083 = vld [vmem:[%s5062 + $0xa0] sm:$0xff]
      %v5084 = vld [vmem:[%s5062 + $0xa8] sm:$0xff]
      %v5085 = vld [vmem:[%s5062 + $0xb0] sm:$0xff]
      %v5086 = vld [vmem:[%s5062 + $0xb8] sm:$0xff]
      %v5087 = vld [vmem:[%s5062 + $0xc0] sm:$0xff]
      %v5088 = vld [vmem:[%s5062 + $0xc8] sm:$0xff]
      %v5089 = vld [vmem:[%s5062 + $0xd0] sm:$0xff]
      %v5090 = vld [vmem:[%s5062 + $0xd8] sm:$0xff]
      %v5091 = vld [vmem:[%s5062 + $0xe0] sm:$0xff]
      %v5092 = vld [vmem:[%s5062 + $0xe8] sm:$0xff]
      %v5093 = vld [vmem:[%s5062 + $0xf0] sm:$0xff]
      %v5094 = vld [vmem:[%s5062 + $0xf8] sm:$0xff]
      %v5095 = vld [vmem:[%s5062 + $0x100] sm:$0xff]
      %v5096 = vld [vmem:[%s5062 + $0x108] sm:$0xff]
      %v5097 = vld [vmem:[%s5062 + $0x110] sm:$0xff]
      %v5098 = vld [vmem:[%s5062 + $0x118] sm:$0xff]
      %v5099 = vld [vmem:[%s5062 + $0x120] sm:$0xff]
      %v5100 = vld [vmem:[%s5062 + $0x128] sm:$0xff]
      %v5101 = vld [vmem:[%s5062 + $0x130] sm:$0xff]
      %v5102 = vld [vmem:[%s5062 + $0x138] sm:$0xff]
      %v5103 = vld [vmem:[%s5062 + $0x140] sm:$0xff]
      %v5104 = vld [vmem:[%s5062 + $0x148] sm:$0xff]
      %v5105 = vld [vmem:[%s5062 + $0x150] sm:$0xff]
      %v5106 = vld [vmem:[%s5062 + $0x158] sm:$0xff]
      %v5107 = vld [vmem:[%s5062 + $0x160] sm:$0xff]
      %v5108 = vld [vmem:[%s5062 + $0x168] sm:$0xff]
      %v5109 = vld [vmem:[%s5062 + $0x170] sm:$0xff]
      %v5110 = vld [vmem:[%s5062 + $0x178] sm:$0xff]
      %v5111 = vld [vmem:[%s5062 + $0x180] sm:$0xff]
      %v5112 = vld [vmem:[%s5062 + $0x188] sm:$0xff]
      %v5113 = vld [vmem:[%s5062 + $0x190] sm:$0xff]
      %v5114 = vld [vmem:[%s5062 + $0x198] sm:$0xff]
      %v5115 = vld [vmem:[%s5062 + $0x1a0] sm:$0xff]
      %v5116 = vld [vmem:[%s5062 + $0x1a8] sm:$0xff]
      %v5117 = vld [vmem:[%s5062 + $0x1b0] sm:$0xff]
      %v5118 = vld [vmem:[%s5062 + $0x1b8] sm:$0xff]
      %v5119 = vld [vmem:[%s5062 + $0x1c0] sm:$0xff]
      %v5120 = vld [vmem:[%s5062 + $0x1c8] sm:$0xff]
      %v5121 = vld [vmem:[%s5062 + $0x1d0] sm:$0xff]
      %v5122 = vld [vmem:[%s5062 + $0x1d8] sm:$0xff]
      %v5123 = vld [vmem:[%s5062 + $0x1e0] sm:$0xff]
      %v5124 = vld [vmem:[%s5062 + $0x1e8] sm:$0xff]
      %v5125 = vld [vmem:[%s5062 + $0x1f0] sm:$0xff]
      %v5126 = vld [vmem:[%s5062 + $0x1f8] sm:$0xff]
      %v5127 = vld [vmem:[%s5062 + $0x200] sm:$0xff]
      %v5128 = vld [vmem:[%s5062 + $0x208] sm:$0xff]
      %v5129 = vld [vmem:[%s5062 + $0x210] sm:$0xff]
      %v5130 = vld [vmem:[%s5062 + $0x218] sm:$0xff]
      %v5131 = vld [vmem:[%s5062 + $0x220] sm:$0xff]
      %v5132 = vld [vmem:[%s5062 + $0x228] sm:$0xff]
      %v5133 = vld [vmem:[%s5062 + $0x230] sm:$0xff]
      %v5134 = vld [vmem:[%s5062 + $0x238] sm:$0xff]
      %v5135 = vld [vmem:[%s5062 + $0x240] sm:$0xff]
      %v5136 = vld [vmem:[%s5062 + $0x248] sm:$0xff]
      %v5137 = vld [vmem:[%s5062 + $0x250] sm:$0xff]
      %v5138 = vld [vmem:[%s5062 + $0x258] sm:$0xff]
      %v5139 = vld [vmem:[%s5062 + $0x260] sm:$0xff]
      %v5140 = vld [vmem:[%s5062 + $0x268] sm:$0xff]
      %v5141 = vld [vmem:[%s5062 + $0x270] sm:$0xff]
      %v5142 = vld [vmem:[%s5062 + $0x278] sm:$0xff]
      %v5143 = vld [vmem:[%s5062 + $0x280] sm:$0xff]
      %v5144 = vld [vmem:[%s5062 + $0x288] sm:$0xff]
      %v5145 = vld [vmem:[%s5062 + $0x290] sm:$0xff]
      %v5146 = vld [vmem:[%s5062 + $0x298] sm:$0xff]
      %v5147 = vpack.c.bf16 %v5064, %v5063
      %v5148 = vpack.c.bf16 %v5066, %v5065
      %v5149 = vpack.c.bf16 %v5068, %v5067
      %v5150 = vpack.c.bf16 %v5070, %v5069
      %v5151 = vpack.c.bf16 %v5072, %v5071
      %v5152 = vpack.c.bf16 %v5074, %v5073
      %v5153 = vpack.c.bf16 %v5076, %v5075
      %v5154 = vpack.c.bf16 %v5078, %v5077
      %v5155 = vpack.c.bf16 %v5080, %v5079
      %v5156 = vpack.c.bf16 %v5082, %v5081
      %v5157 = vpack.c.bf16 %v5084, %v5083
      %v5158 = vpack.c.bf16 %v5086, %v5085
      %v5159 = vpack.c.bf16 %v5088, %v5087
      %v5160 = vpack.c.bf16 %v5090, %v5089
      %v5161 = vpack.c.bf16 %v5092, %v5091
      %v5162 = vpack.c.bf16 %v5094, %v5093
      %v5163 = vpack.c.bf16 %v5096, %v5095
      %v5164 = vpack.c.bf16 %v5098, %v5097
      %v5165 = vpack.c.bf16 %v5100, %v5099
      %v5166 = vpack.c.bf16 %v5102, %v5101
      %v5167 = vpack.c.bf16 %v5104, %v5103
      %v5168 = vpack.c.bf16 %v5106, %v5105
      %v5169 = vpack.c.bf16 %v5108, %v5107
      %v5170 = vpack.c.bf16 %v5110, %v5109
      %v5171 = vpack.c.bf16 %v5112, %v5111
      %v5172 = vpack.c.bf16 %v5114, %v5113
      %v5173 = vpack.c.bf16 %v5116, %v5115
      %v5174 = vpack.c.bf16 %v5118, %v5117
      %v5175 = vpack.c.bf16 %v5120, %v5119
      %v5176 = vpack.c.bf16 %v5122, %v5121
      %v5177 = vpack.c.bf16 %v5124, %v5123
      %v5178 = vpack.c.bf16 %v5126, %v5125
      %v5179 = vpack.c.bf16 %v5128, %v5127
      %v5180 = vpack.c.bf16 %v5130, %v5129
      %v5181 = vpack.c.bf16 %v5132, %v5131
      %v5182 = vpack.c.bf16 %v5134, %v5133
      %v5183 = vpack.c.bf16 %v5136, %v5135
      %v5184 = vpack.c.bf16 %v5138, %v5137
      %v5185 = vpack.c.bf16 %v5140, %v5139
      %v5186 = vpack.c.bf16 %v5142, %v5141
      %v5187 = vpack.c.bf16 %v5144, %v5143
      %v5188 = vpack.c.bf16 %v5146, %v5145
      %s5189 = scalar_lea.vmem %s223, 14
      %v5190 = vld [vmem:[%s5189] sm:$0x3]
      %v5192 = vsel %vm500, %v5147, 0
      %v5195 = vsel %vm500, %v5148, 0
      %v5198 = vsel %vm500, %v5149, 0
      %v5201 = vsel %vm500, %v5150, 0
      %v5204 = vsel %vm500, %v5151, 0
      %v5207 = vsel %vm500, %v5152, 0
      %v5210 = vsel %vm500, %v5153, 0
      %v5213 = vsel %vm500, %v5154, 0
      %v5216 = vsel %vm500, %v5155, 0
      %v5219 = vsel %vm500, %v5156, 0
      %v5222 = vsel %vm500, %v5157, 0
      %v5225 = vsel %vm500, %v5158, 0
      %v5228 = vsel %vm500, %v5159, 0
      %v5231 = vsel %vm500, %v5160, 0
      %v5234 = vsel %vm500, %v5161, 0
      %v5237 = vsel %vm500, %v5162, 0
      %v5240 = vsel %vm500, %v5163, 0
      %v5243 = vsel %vm500, %v5164, 0
      %v5246 = vsel %vm500, %v5165, 0
      %v5249 = vsel %vm500, %v5166, 0
      %v5252 = vsel %vm500, %v5167, 0
      %v5255 = vsel %vm500, %v5168, 0
      %v5258 = vsel %vm500, %v5169, 0
      %v5261 = vsel %vm500, %v5170, 0
      %v5264 = vsel %vm500, %v5171, 0
      %v5267 = vsel %vm500, %v5172, 0
      %v5270 = vsel %vm500, %v5173, 0
      %v5273 = vsel %vm500, %v5174, 0
      %v5276 = vsel %vm500, %v5175, 0
      %v5279 = vsel %vm500, %v5176, 0
      %v5282 = vsel %vm500, %v5177, 0
      %v5285 = vsel %vm500, %v5178, 0
      %v5288 = vsel %vm500, %v5179, 0
      %v5291 = vsel %vm500, %v5180, 0
      %v5294 = vsel %vm500, %v5181, 0
      %v5297 = vsel %vm500, %v5182, 0
      %v5300 = vsel %vm500, %v5183, 0
      %v5303 = vsel %vm500, %v5184, 0
      %v5306 = vsel %vm500, %v5185, 0
      %v5309 = vsel %vm500, %v5186, 0
      %v5312 = vsel %vm500, %v5187, 0
      %v5315 = vsel %vm500, %v5188, 0
      %v5318 = vand.u32 %v5190, %v630
      %5320 = vmatprep.subr.bf16.mxu0 0
      %5321 = vmatpush1.bf16.msra.mxu0 0
      %5322 = vmatprep.subr.bf16.mxu0 0
      %5323 = vmatpush1.bf16.msra.mxu0 0
      %5324 = vmatprep.subr.bf16.mxu0 0
      %5325 = vmatpush1.bf16.msra.mxu0 0
      %5326 = vmatprep.subr.bf16.mxu0 0
      %5327 = vmatpush1.bf16.msra.mxu0 0
      %5328 = vmatprep.subr.bf16.mxu0 0
      %5329 = vmatpush1.bf16.msra.mxu0 0
      %5330 = vmatprep.subr.bf16.mxu0 0
      %5331 = vmatpush1.bf16.msra.mxu0 0
      %5332 = vmatprep.subr.bf16.mxu0 0
      %5333 = vmatpush1.bf16.msra.mxu0 0
      %5334 = vmatprep.subr.bf16.mxu0 0
      %5335 = vmatpush1.bf16.msra.mxu0 %v5318
      %5336 = vmatprep.subr.bf16.mxu0 0
      %5337 = vmatpush2.bf16.msra.mxu0 0
      %5338 = vmatprep.subr.bf16.mxu0 0
      %5339 = vmatpush2.bf16.msra.mxu0 0
      %5340 = vmatprep.subr.bf16.mxu0 0
      %5341 = vmatpush2.bf16.msra.mxu0 0
      %5342 = vmatprep.subr.bf16.mxu0 0
      %5343 = vmatpush2.bf16.msra.mxu0 0
      %5344 = vmatprep.subr.bf16.mxu0 0
      %5345 = vmatpush2.bf16.msra.mxu0 0
      %5346 = vmatprep.subr.bf16.mxu0 0
      %5347 = vmatpush2.bf16.msra.mxu0 0
      %5348 = vmatprep.subr.bf16.mxu0 0
      %5349 = vmatpush2.bf16.msra.mxu0 0
      %5350 = vmatprep.subr.bf16.mxu0 0
      %5351 = vmatpush2.bf16.msra.mxu0 0
      %5352 = vmatprep.mubr.bf16.mxu0 0
      %5353 = vmatmul.mubr.bf16.gmra.mxu0 %v5192
      %v5354 = vpop.f32.mrf.mxu0
      %v5355 = vadd.f32 0.0, %v5354
      %v5356 = vpop.f32.mrf.mxu0
      %v5357 = vpop.f32.mrf.mxu0
      %v5358 = vadd.f32 0.0, %v5357
      %v5359 = vpop.f32.mrf.mxu0
      %5360 = vmatprep.mubr.bf16.mxu0 0
      %5361 = vmatmul.mubr.bf16.gmra.mxu0 %v5195
      %v5362 = vpop.f32.mrf.mxu0
      %v5363 = vadd.f32 0.0, %v5362
      %v5364 = vpop.f32.mrf.mxu0
      %v5365 = vpop.f32.mrf.mxu0
      %v5366 = vadd.f32 0.0, %v5365
      %v5367 = vpop.f32.mrf.mxu0
      %5368 = vmatprep.mubr.bf16.mxu0 0
      %5369 = vmatmul.mubr.bf16.gmra.mxu0 %v5198
      %v5370 = vpop.f32.mrf.mxu0
      %v5371 = vadd.f32 0.0, %v5370
      %v5372 = vpop.f32.mrf.mxu0
      %v5373 = vpop.f32.mrf.mxu0
      %v5374 = vadd.f32 0.0, %v5373
      %v5375 = vpop.f32.mrf.mxu0
      %5376 = vmatprep.mubr.bf16.mxu0 0
      %5377 = vmatmul.mubr.bf16.gmra.mxu0 %v5201
      %v5378 = vpop.f32.mrf.mxu0
      %v5379 = vadd.f32 0.0, %v5378
      %v5380 = vpop.f32.mrf.mxu0
      %v5381 = vpop.f32.mrf.mxu0
      %v5382 = vadd.f32 0.0, %v5381
      %v5383 = vpop.f32.mrf.mxu0
      %5384 = vmatprep.mubr.bf16.mxu0 0
      %5385 = vmatmul.mubr.bf16.gmra.mxu0 %v5204
      %v5386 = vpop.f32.mrf.mxu0
      %v5387 = vadd.f32 0.0, %v5386
      %v5388 = vpop.f32.mrf.mxu0
      %v5389 = vpop.f32.mrf.mxu0
      %v5390 = vadd.f32 0.0, %v5389
      %v5391 = vpop.f32.mrf.mxu0
      %5392 = vmatprep.mubr.bf16.mxu0 0
      %5393 = vmatmul.mubr.bf16.gmra.mxu0 %v5207
      %v5394 = vpop.f32.mrf.mxu0
      %v5395 = vadd.f32 0.0, %v5394
      %v5396 = vpop.f32.mrf.mxu0
      %v5397 = vpop.f32.mrf.mxu0
      %v5398 = vadd.f32 0.0, %v5397
      %v5399 = vpop.f32.mrf.mxu0
      %5400 = vmatprep.mubr.bf16.mxu0 0
      %5401 = vmatmul.mubr.bf16.gmra.mxu0 %v5210
      %v5402 = vpop.f32.mrf.mxu0
      %v5403 = vadd.f32 0.0, %v5402
      %v5404 = vpop.f32.mrf.mxu0
      %v5405 = vpop.f32.mrf.mxu0
      %v5406 = vadd.f32 0.0, %v5405
      %v5407 = vpop.f32.mrf.mxu0
      %5408 = vmatprep.mubr.bf16.mxu0 0
      %5409 = vmatmul.mubr.bf16.gmra.mxu0 %v5213
      %v5410 = vpop.f32.mrf.mxu0
      %v5411 = vadd.f32 0.0, %v5410
      %v5412 = vpop.f32.mrf.mxu0
      %v5413 = vpop.f32.mrf.mxu0
      %v5414 = vadd.f32 0.0, %v5413
      %v5415 = vpop.f32.mrf.mxu0
      %5416 = vmatprep.mubr.bf16.mxu0 0
      %5417 = vmatmul.mubr.bf16.gmra.mxu0 %v5216
      %v5418 = vpop.f32.mrf.mxu0
      %v5419 = vadd.f32 0.0, %v5418
      %v5420 = vpop.f32.mrf.mxu0
      %v5421 = vpop.f32.mrf.mxu0
      %v5422 = vadd.f32 0.0, %v5421
      %v5423 = vpop.f32.mrf.mxu0
      %5424 = vmatprep.mubr.bf16.mxu0 0
      %5425 = vmatmul.mubr.bf16.gmra.mxu0 %v5219
      %v5426 = vpop.f32.mrf.mxu0
      %v5427 = vadd.f32 0.0, %v5426
      %v5428 = vpop.f32.mrf.mxu0
      %v5429 = vpop.f32.mrf.mxu0
      %v5430 = vadd.f32 0.0, %v5429
      %v5431 = vpop.f32.mrf.mxu0
      %5432 = vmatprep.mubr.bf16.mxu0 0
      %5433 = vmatmul.mubr.bf16.gmra.mxu0 %v5222
      %v5434 = vpop.f32.mrf.mxu0
      %v5435 = vadd.f32 0.0, %v5434
      %v5436 = vpop.f32.mrf.mxu0
      %v5437 = vpop.f32.mrf.mxu0
      %v5438 = vadd.f32 0.0, %v5437
      %v5439 = vpop.f32.mrf.mxu0
      %5440 = vmatprep.mubr.bf16.mxu0 0
      %5441 = vmatmul.mubr.bf16.gmra.mxu0 %v5225
      %v5442 = vpop.f32.mrf.mxu0
      %v5443 = vadd.f32 0.0, %v5442
      %v5444 = vpop.f32.mrf.mxu0
      %v5445 = vpop.f32.mrf.mxu0
      %v5446 = vadd.f32 0.0, %v5445
      %v5447 = vpop.f32.mrf.mxu0
      %5448 = vmatprep.mubr.bf16.mxu0 0
      %5449 = vmatmul.mubr.bf16.gmra.mxu0 %v5228
      %v5450 = vpop.f32.mrf.mxu0
      %v5451 = vadd.f32 0.0, %v5450
      %v5452 = vpop.f32.mrf.mxu0
      %v5453 = vpop.f32.mrf.mxu0
      %v5454 = vadd.f32 0.0, %v5453
      %v5455 = vpop.f32.mrf.mxu0
      %5456 = vmatprep.mubr.bf16.mxu0 0
      %5457 = vmatmul.mubr.bf16.gmra.mxu0 %v5231
      %v5458 = vpop.f32.mrf.mxu0
      %v5459 = vadd.f32 0.0, %v5458
      %v5460 = vpop.f32.mrf.mxu0
      %v5461 = vpop.f32.mrf.mxu0
      %v5462 = vadd.f32 0.0, %v5461
      %v5463 = vpop.f32.mrf.mxu0
      %5464 = vmatprep.mubr.bf16.mxu0 0
      %5465 = vmatmul.mubr.bf16.gmra.mxu0 %v5234
      %v5466 = vpop.f32.mrf.mxu0
      %v5467 = vadd.f32 0.0, %v5466
      %v5468 = vpop.f32.mrf.mxu0
      %v5469 = vpop.f32.mrf.mxu0
      %v5470 = vadd.f32 0.0, %v5469
      %v5471 = vpop.f32.mrf.mxu0
      %5472 = vmatprep.mubr.bf16.mxu0 0
      %5473 = vmatmul.mubr.bf16.gmra.mxu0 %v5237
      %v5474 = vpop.f32.mrf.mxu0
      %v5475 = vadd.f32 0.0, %v5474
      %v5476 = vpop.f32.mrf.mxu0
      %v5477 = vpop.f32.mrf.mxu0
      %v5478 = vadd.f32 0.0, %v5477
      %v5479 = vpop.f32.mrf.mxu0
      %5480 = vmatprep.mubr.bf16.mxu0 0
      %5481 = vmatmul.mubr.bf16.gmra.mxu0 %v5240
      %v5482 = vpop.f32.mrf.mxu0
      %v5483 = vadd.f32 0.0, %v5482
      %v5484 = vpop.f32.mrf.mxu0
      %v5485 = vpop.f32.mrf.mxu0
      %v5486 = vadd.f32 0.0, %v5485
      %v5487 = vpop.f32.mrf.mxu0
      %5488 = vmatprep.mubr.bf16.mxu0 0
      %5489 = vmatmul.mubr.bf16.gmra.mxu0 %v5243
      %v5490 = vpop.f32.mrf.mxu0
      %v5491 = vadd.f32 0.0, %v5490
      %v5492 = vpop.f32.mrf.mxu0
      %v5493 = vpop.f32.mrf.mxu0
      %v5494 = vadd.f32 0.0, %v5493
      %v5495 = vpop.f32.mrf.mxu0
      %5496 = vmatprep.mubr.bf16.mxu0 0
      %5497 = vmatmul.mubr.bf16.gmra.mxu0 %v5246
      %v5498 = vpop.f32.mrf.mxu0
      %v5499 = vadd.f32 0.0, %v5498
      %v5500 = vpop.f32.mrf.mxu0
      %v5501 = vpop.f32.mrf.mxu0
      %v5502 = vadd.f32 0.0, %v5501
      %v5503 = vpop.f32.mrf.mxu0
      %5504 = vmatprep.mubr.bf16.mxu0 0
      %5505 = vmatmul.mubr.bf16.gmra.mxu0 %v5249
      %v5506 = vpop.f32.mrf.mxu0
      %v5507 = vadd.f32 0.0, %v5506
      %v5508 = vpop.f32.mrf.mxu0
      %v5509 = vpop.f32.mrf.mxu0
      %v5510 = vadd.f32 0.0, %v5509
      %v5511 = vpop.f32.mrf.mxu0
      %5512 = vmatprep.mubr.bf16.mxu0 0
      %5513 = vmatmul.mubr.bf16.gmra.mxu0 %v5252
      %v5514 = vpop.f32.mrf.mxu0
      %v5515 = vadd.f32 0.0, %v5514
      %v5516 = vpop.f32.mrf.mxu0
      %v5517 = vpop.f32.mrf.mxu0
      %v5518 = vadd.f32 0.0, %v5517
      %v5519 = vpop.f32.mrf.mxu0
      %5520 = vmatprep.mubr.bf16.mxu0 0
      %5521 = vmatmul.mubr.bf16.gmra.mxu0 %v5255
      %v5522 = vpop.f32.mrf.mxu0
      %v5523 = vadd.f32 0.0, %v5522
      %v5524 = vpop.f32.mrf.mxu0
      %v5525 = vpop.f32.mrf.mxu0
      %v5526 = vadd.f32 0.0, %v5525
      %v5527 = vpop.f32.mrf.mxu0
      %5528 = vmatprep.mubr.bf16.mxu0 0
      %5529 = vmatmul.mubr.bf16.gmra.mxu0 %v5258
      %v5530 = vpop.f32.mrf.mxu0
      %v5531 = vadd.f32 0.0, %v5530
      %v5532 = vpop.f32.mrf.mxu0
      %v5533 = vpop.f32.mrf.mxu0
      %v5534 = vadd.f32 0.0, %v5533
      %v5535 = vpop.f32.mrf.mxu0
      %5536 = vmatprep.mubr.bf16.mxu0 0
      %5537 = vmatmul.mubr.bf16.gmra.mxu0 %v5261
      %v5538 = vpop.f32.mrf.mxu0
      %v5539 = vadd.f32 0.0, %v5538
      %v5540 = vpop.f32.mrf.mxu0
      %v5541 = vpop.f32.mrf.mxu0
      %v5542 = vadd.f32 0.0, %v5541
      %v5543 = vpop.f32.mrf.mxu0
      %5544 = vmatprep.mubr.bf16.mxu0 0
      %5545 = vmatmul.mubr.bf16.gmra.mxu0 %v5264
      %v5546 = vpop.f32.mrf.mxu0
      %v5547 = vadd.f32 0.0, %v5546
      %v5548 = vpop.f32.mrf.mxu0
      %v5549 = vpop.f32.mrf.mxu0
      %v5550 = vadd.f32 0.0, %v5549
      %v5551 = vpop.f32.mrf.mxu0
      %5552 = vmatprep.mubr.bf16.mxu0 0
      %5553 = vmatmul.mubr.bf16.gmra.mxu0 %v5267
      %v5554 = vpop.f32.mrf.mxu0
      %v5555 = vadd.f32 0.0, %v5554
      %v5556 = vpop.f32.mrf.mxu0
      %v5557 = vpop.f32.mrf.mxu0
      %v5558 = vadd.f32 0.0, %v5557
      %v5559 = vpop.f32.mrf.mxu0
      %5560 = vmatprep.mubr.bf16.mxu0 0
      %5561 = vmatmul.mubr.bf16.gmra.mxu0 %v5270
      %v5562 = vpop.f32.mrf.mxu0
      %v5563 = vadd.f32 0.0, %v5562
      %v5564 = vpop.f32.mrf.mxu0
      %v5565 = vpop.f32.mrf.mxu0
      %v5566 = vadd.f32 0.0, %v5565
      %v5567 = vpop.f32.mrf.mxu0
      %5568 = vmatprep.mubr.bf16.mxu0 0
      %5569 = vmatmul.mubr.bf16.gmra.mxu0 %v5273
      %v5570 = vpop.f32.mrf.mxu0
      %v5571 = vadd.f32 0.0, %v5570
      %v5572 = vpop.f32.mrf.mxu0
      %v5573 = vpop.f32.mrf.mxu0
      %v5574 = vadd.f32 0.0, %v5573
      %v5575 = vpop.f32.mrf.mxu0
      %5576 = vmatprep.mubr.bf16.mxu0 0
      %5577 = vmatmul.mubr.bf16.gmra.mxu0 %v5276
      %v5578 = vpop.f32.mrf.mxu0
      %v5579 = vadd.f32 0.0, %v5578
      %v5580 = vpop.f32.mrf.mxu0
      %v5581 = vpop.f32.mrf.mxu0
      %v5582 = vadd.f32 0.0, %v5581
      %v5583 = vpop.f32.mrf.mxu0
      %5584 = vmatprep.mubr.bf16.mxu0 0
      %5585 = vmatmul.mubr.bf16.gmra.mxu0 %v5279
      %v5586 = vpop.f32.mrf.mxu0
      %v5587 = vadd.f32 0.0, %v5586
      %v5588 = vpop.f32.mrf.mxu0
      %v5589 = vpop.f32.mrf.mxu0
      %v5590 = vadd.f32 0.0, %v5589
      %v5591 = vpop.f32.mrf.mxu0
      %5592 = vmatprep.mubr.bf16.mxu0 0
      %5593 = vmatmul.mubr.bf16.gmra.mxu0 %v5282
      %v5594 = vpop.f32.mrf.mxu0
      %v5595 = vadd.f32 0.0, %v5594
      %v5596 = vpop.f32.mrf.mxu0
      %v5597 = vpop.f32.mrf.mxu0
      %v5598 = vadd.f32 0.0, %v5597
      %v5599 = vpop.f32.mrf.mxu0
      %5600 = vmatprep.mubr.bf16.mxu0 0
      %5601 = vmatmul.mubr.bf16.gmra.mxu0 %v5285
      %v5602 = vpop.f32.mrf.mxu0
      %v5603 = vadd.f32 0.0, %v5602
      %v5604 = vpop.f32.mrf.mxu0
      %v5605 = vpop.f32.mrf.mxu0
      %v5606 = vadd.f32 0.0, %v5605
      %v5607 = vpop.f32.mrf.mxu0
      %5608 = vmatprep.mubr.bf16.mxu0 0
      %5609 = vmatmul.mubr.bf16.gmra.mxu0 %v5288
      %v5610 = vpop.f32.mrf.mxu0
      %v5611 = vadd.f32 0.0, %v5610
      %v5612 = vpop.f32.mrf.mxu0
      %v5613 = vpop.f32.mrf.mxu0
      %v5614 = vadd.f32 0.0, %v5613
      %v5615 = vpop.f32.mrf.mxu0
      %5616 = vmatprep.mubr.bf16.mxu0 0
      %5617 = vmatmul.mubr.bf16.gmra.mxu0 %v5291
      %v5618 = vpop.f32.mrf.mxu0
      %v5619 = vadd.f32 0.0, %v5618
      %v5620 = vpop.f32.mrf.mxu0
      %v5621 = vpop.f32.mrf.mxu0
      %v5622 = vadd.f32 0.0, %v5621
      %v5623 = vpop.f32.mrf.mxu0
      %5624 = vmatprep.mubr.bf16.mxu0 0
      %5625 = vmatmul.mubr.bf16.gmra.mxu0 %v5294
      %v5626 = vpop.f32.mrf.mxu0
      %v5627 = vadd.f32 0.0, %v5626
      %v5628 = vpop.f32.mrf.mxu0
      %v5629 = vpop.f32.mrf.mxu0
      %v5630 = vadd.f32 0.0, %v5629
      %v5631 = vpop.f32.mrf.mxu0
      %5632 = vmatprep.mubr.bf16.mxu0 0
      %5633 = vmatmul.mubr.bf16.gmra.mxu0 %v5297
      %v5634 = vpop.f32.mrf.mxu0
      %v5635 = vadd.f32 0.0, %v5634
      %v5636 = vpop.f32.mrf.mxu0
      %v5637 = vpop.f32.mrf.mxu0
      %v5638 = vadd.f32 0.0, %v5637
      %v5639 = vpop.f32.mrf.mxu0
      %5640 = vmatprep.mubr.bf16.mxu0 0
      %5641 = vmatmul.mubr.bf16.gmra.mxu0 %v5300
      %v5642 = vpop.f32.mrf.mxu0
      %v5643 = vadd.f32 0.0, %v5642
      %v5644 = vpop.f32.mrf.mxu0
      %v5645 = vpop.f32.mrf.mxu0
      %v5646 = vadd.f32 0.0, %v5645
      %v5647 = vpop.f32.mrf.mxu0
      %5648 = vmatprep.mubr.bf16.mxu0 0
      %5649 = vmatmul.mubr.bf16.gmra.mxu0 %v5303
      %v5650 = vpop.f32.mrf.mxu0
      %v5651 = vadd.f32 0.0, %v5650
      %v5652 = vpop.f32.mrf.mxu0
      %v5653 = vpop.f32.mrf.mxu0
      %v5654 = vadd.f32 0.0, %v5653
      %v5655 = vpop.f32.mrf.mxu0
      %5656 = vmatprep.mubr.bf16.mxu0 0
      %5657 = vmatmul.mubr.bf16.gmra.mxu0 %v5306
      %v5658 = vpop.f32.mrf.mxu0
      %v5659 = vadd.f32 0.0, %v5658
      %v5660 = vpop.f32.mrf.mxu0
      %v5661 = vpop.f32.mrf.mxu0
      %v5662 = vadd.f32 0.0, %v5661
      %v5663 = vpop.f32.mrf.mxu0
      %5664 = vmatprep.mubr.bf16.mxu0 0
      %5665 = vmatmul.mubr.bf16.gmra.mxu0 %v5309
      %v5666 = vpop.f32.mrf.mxu0
      %v5667 = vadd.f32 0.0, %v5666
      %v5668 = vpop.f32.mrf.mxu0
      %v5669 = vpop.f32.mrf.mxu0
      %v5670 = vadd.f32 0.0, %v5669
      %v5671 = vpop.f32.mrf.mxu0
      %5672 = vmatprep.mubr.bf16.mxu0 0
      %5673 = vmatmul.mubr.bf16.gmra.mxu0 %v5312
      %v5674 = vpop.f32.mrf.mxu0
      %v5675 = vadd.f32 0.0, %v5674
      %v5676 = vpop.f32.mrf.mxu0
      %v5677 = vpop.f32.mrf.mxu0
      %v5678 = vadd.f32 0.0, %v5677
      %v5679 = vpop.f32.mrf.mxu0
      %5680 = vmatprep.mubr.bf16.mxu0 0
      %5681 = vmatmul.mubr.bf16.gmra.mxu0 %v5315
      %v5682 = vpop.f32.mrf.mxu0
      %v5683 = vadd.f32 0.0, %v5682
      %v5684 = vpop.f32.mrf.mxu0
      %v5685 = vpop.f32.mrf.mxu0
      %v5686 = vadd.f32 0.0, %v5685
      %v5687 = vpop.f32.mrf.mxu0
      %5688 = vdwg.mxu0
      %v5689 = vadd.f32 %v4977, %v5355
      %v5690 = vadd.f32 %v4978, %v5358
      %v5691 = vadd.f32 %v4979, %v5363
      %v5692 = vadd.f32 %v4980, %v5366
      %v5693 = vadd.f32 %v4981, %v5371
      %v5694 = vadd.f32 %v4982, %v5374
      %v5695 = vadd.f32 %v4983, %v5379
      %v5696 = vadd.f32 %v4984, %v5382
      %v5697 = vadd.f32 %v4985, %v5387
      %v5698 = vadd.f32 %v4986, %v5390
      %v5699 = vadd.f32 %v4987, %v5395
      %v5700 = vadd.f32 %v4988, %v5398
      %v5701 = vadd.f32 %v4989, %v5403
      %v5702 = vadd.f32 %v4990, %v5406
      %v5703 = vadd.f32 %v4991, %v5411
      %v5704 = vadd.f32 %v4992, %v5414
      %v5705 = vadd.f32 %v4993, %v5419
      %v5706 = vadd.f32 %v4994, %v5422
      %v5707 = vadd.f32 %v4995, %v5427
      %v5708 = vadd.f32 %v4996, %v5430
      %v5709 = vadd.f32 %v4997, %v5435
      %v5710 = vadd.f32 %v4998, %v5438
      %v5711 = vadd.f32 %v4999, %v5443
      %v5712 = vadd.f32 %v5000, %v5446
      %v5713 = vadd.f32 %v5001, %v5451
      %v5714 = vadd.f32 %v5002, %v5454
      %v5715 = vadd.f32 %v5003, %v5459
      %v5716 = vadd.f32 %v5004, %v5462
      %v5717 = vadd.f32 %v5005, %v5467
      %v5718 = vadd.f32 %v5006, %v5470
      %v5719 = vadd.f32 %v5007, %v5475
      %v5720 = vadd.f32 %v5008, %v5478
      %v5721 = vadd.f32 %v5009, %v5483
      %v5722 = vadd.f32 %v5010, %v5486
      %v5723 = vadd.f32 %v5011, %v5491
      %v5724 = vadd.f32 %v5012, %v5494
      %v5725 = vadd.f32 %v5013, %v5499
      %v5726 = vadd.f32 %v5014, %v5502
      %v5727 = vadd.f32 %v5015, %v5507
      %v5728 = vadd.f32 %v5016, %v5510
      %v5729 = vadd.f32 %v5017, %v5515
      %v5730 = vadd.f32 %v5018, %v5518
      %v5731 = vadd.f32 %v5019, %v5523
      %v5732 = vadd.f32 %v5020, %v5526
      %v5733 = vadd.f32 %v5021, %v5531
      %v5734 = vadd.f32 %v5022, %v5534
      %v5735 = vadd.f32 %v5023, %v5539
      %v5736 = vadd.f32 %v5024, %v5542
      %v5737 = vadd.f32 %v5025, %v5547
      %v5738 = vadd.f32 %v5026, %v5550
      %v5739 = vadd.f32 %v5027, %v5555
      %v5740 = vadd.f32 %v5028, %v5558
      %v5741 = vadd.f32 %v5029, %v5563
      %v5742 = vadd.f32 %v5030, %v5566
      %v5743 = vadd.f32 %v5031, %v5571
      %v5744 = vadd.f32 %v5032, %v5574
      %v5745 = vadd.f32 %v5033, %v5579
      %v5746 = vadd.f32 %v5034, %v5582
      %v5747 = vadd.f32 %v5035, %v5587
      %v5748 = vadd.f32 %v5036, %v5590
      %v5749 = vadd.f32 %v5037, %v5595
      %v5750 = vadd.f32 %v5038, %v5598
      %v5751 = vadd.f32 %v5039, %v5603
      %v5752 = vadd.f32 %v5040, %v5606
      %v5753 = vadd.f32 %v5041, %v5611
      %v5754 = vadd.f32 %v5042, %v5614
      %v5755 = vadd.f32 %v5043, %v5619
      %v5756 = vadd.f32 %v5044, %v5622
      %v5757 = vadd.f32 %v5045, %v5627
      %v5758 = vadd.f32 %v5046, %v5630
      %v5759 = vadd.f32 %v5047, %v5635
      %v5760 = vadd.f32 %v5048, %v5638
      %v5761 = vadd.f32 %v5049, %v5643
      %v5762 = vadd.f32 %v5050, %v5646
      %v5763 = vadd.f32 %v5051, %v5651
      %v5764 = vadd.f32 %v5052, %v5654
      %v5765 = vadd.f32 %v5053, %v5659
      %v5766 = vadd.f32 %v5054, %v5662
      %v5767 = vadd.f32 %v5055, %v5667
      %v5768 = vadd.f32 %v5056, %v5670
      %v5769 = vadd.f32 %v5057, %v5675
      %v5770 = vadd.f32 %v5058, %v5678
      %v5771 = vadd.f32 %v5059, %v5683
      %v5772 = vadd.f32 %v5060, %v5686
      %s5773 = sadd.s32 %s241, 450
      %s5774 = scalar_lea.vmem %s219, %s5773
      %v5775 = vld [vmem:[%s5774] sm:$0xff]
      %v5776 = vld [vmem:[%s5774 + $0x8] sm:$0xff]
      %v5777 = vld [vmem:[%s5774 + $0x10] sm:$0xff]
      %v5778 = vld [vmem:[%s5774 + $0x18] sm:$0xff]
      %v5779 = vld [vmem:[%s5774 + $0x20] sm:$0xff]
      %v5780 = vld [vmem:[%s5774 + $0x28] sm:$0xff]
      %v5781 = vld [vmem:[%s5774 + $0x30] sm:$0xff]
      %v5782 = vld [vmem:[%s5774 + $0x38] sm:$0xff]
      %v5783 = vld [vmem:[%s5774 + $0x40] sm:$0xff]
      %v5784 = vld [vmem:[%s5774 + $0x48] sm:$0xff]
      %v5785 = vld [vmem:[%s5774 + $0x50] sm:$0xff]
      %v5786 = vld [vmem:[%s5774 + $0x58] sm:$0xff]
      %v5787 = vld [vmem:[%s5774 + $0x60] sm:$0xff]
      %v5788 = vld [vmem:[%s5774 + $0x68] sm:$0xff]
      %v5789 = vld [vmem:[%s5774 + $0x70] sm:$0xff]
      %v5790 = vld [vmem:[%s5774 + $0x78] sm:$0xff]
      %v5791 = vld [vmem:[%s5774 + $0x80] sm:$0xff]
      %v5792 = vld [vmem:[%s5774 + $0x88] sm:$0xff]
      %v5793 = vld [vmem:[%s5774 + $0x90] sm:$0xff]
      %v5794 = vld [vmem:[%s5774 + $0x98] sm:$0xff]
      %v5795 = vld [vmem:[%s5774 + $0xa0] sm:$0xff]
      %v5796 = vld [vmem:[%s5774 + $0xa8] sm:$0xff]
      %v5797 = vld [vmem:[%s5774 + $0xb0] sm:$0xff]
      %v5798 = vld [vmem:[%s5774 + $0xb8] sm:$0xff]
      %v5799 = vld [vmem:[%s5774 + $0xc0] sm:$0xff]
      %v5800 = vld [vmem:[%s5774 + $0xc8] sm:$0xff]
      %v5801 = vld [vmem:[%s5774 + $0xd0] sm:$0xff]
      %v5802 = vld [vmem:[%s5774 + $0xd8] sm:$0xff]
      %v5803 = vld [vmem:[%s5774 + $0xe0] sm:$0xff]
      %v5804 = vld [vmem:[%s5774 + $0xe8] sm:$0xff]
      %v5805 = vld [vmem:[%s5774 + $0xf0] sm:$0xff]
      %v5806 = vld [vmem:[%s5774 + $0xf8] sm:$0xff]
      %v5807 = vld [vmem:[%s5774 + $0x100] sm:$0xff]
      %v5808 = vld [vmem:[%s5774 + $0x108] sm:$0xff]
      %v5809 = vld [vmem:[%s5774 + $0x110] sm:$0xff]
      %v5810 = vld [vmem:[%s5774 + $0x118] sm:$0xff]
      %v5811 = vld [vmem:[%s5774 + $0x120] sm:$0xff]
      %v5812 = vld [vmem:[%s5774 + $0x128] sm:$0xff]
      %v5813 = vld [vmem:[%s5774 + $0x130] sm:$0xff]
      %v5814 = vld [vmem:[%s5774 + $0x138] sm:$0xff]
      %v5815 = vld [vmem:[%s5774 + $0x140] sm:$0xff]
      %v5816 = vld [vmem:[%s5774 + $0x148] sm:$0xff]
      %v5817 = vld [vmem:[%s5774 + $0x150] sm:$0xff]
      %v5818 = vld [vmem:[%s5774 + $0x158] sm:$0xff]
      %v5819 = vld [vmem:[%s5774 + $0x160] sm:$0xff]
      %v5820 = vld [vmem:[%s5774 + $0x168] sm:$0xff]
      %v5821 = vld [vmem:[%s5774 + $0x170] sm:$0xff]
      %v5822 = vld [vmem:[%s5774 + $0x178] sm:$0xff]
      %v5823 = vld [vmem:[%s5774 + $0x180] sm:$0xff]
      %v5824 = vld [vmem:[%s5774 + $0x188] sm:$0xff]
      %v5825 = vld [vmem:[%s5774 + $0x190] sm:$0xff]
      %v5826 = vld [vmem:[%s5774 + $0x198] sm:$0xff]
      %v5827 = vld [vmem:[%s5774 + $0x1a0] sm:$0xff]
      %v5828 = vld [vmem:[%s5774 + $0x1a8] sm:$0xff]
      %v5829 = vld [vmem:[%s5774 + $0x1b0] sm:$0xff]
      %v5830 = vld [vmem:[%s5774 + $0x1b8] sm:$0xff]
      %v5831 = vld [vmem:[%s5774 + $0x1c0] sm:$0xff]
      %v5832 = vld [vmem:[%s5774 + $0x1c8] sm:$0xff]
      %v5833 = vld [vmem:[%s5774 + $0x1d0] sm:$0xff]
      %v5834 = vld [vmem:[%s5774 + $0x1d8] sm:$0xff]
      %v5835 = vld [vmem:[%s5774 + $0x1e0] sm:$0xff]
      %v5836 = vld [vmem:[%s5774 + $0x1e8] sm:$0xff]
      %v5837 = vld [vmem:[%s5774 + $0x1f0] sm:$0xff]
      %v5838 = vld [vmem:[%s5774 + $0x1f8] sm:$0xff]
      %v5839 = vld [vmem:[%s5774 + $0x200] sm:$0xff]
      %v5840 = vld [vmem:[%s5774 + $0x208] sm:$0xff]
      %v5841 = vld [vmem:[%s5774 + $0x210] sm:$0xff]
      %v5842 = vld [vmem:[%s5774 + $0x218] sm:$0xff]
      %v5843 = vld [vmem:[%s5774 + $0x220] sm:$0xff]
      %v5844 = vld [vmem:[%s5774 + $0x228] sm:$0xff]
      %v5845 = vld [vmem:[%s5774 + $0x230] sm:$0xff]
      %v5846 = vld [vmem:[%s5774 + $0x238] sm:$0xff]
      %v5847 = vld [vmem:[%s5774 + $0x240] sm:$0xff]
      %v5848 = vld [vmem:[%s5774 + $0x248] sm:$0xff]
      %v5849 = vld [vmem:[%s5774 + $0x250] sm:$0xff]
      %v5850 = vld [vmem:[%s5774 + $0x258] sm:$0xff]
      %v5851 = vld [vmem:[%s5774 + $0x260] sm:$0xff]
      %v5852 = vld [vmem:[%s5774 + $0x268] sm:$0xff]
      %v5853 = vld [vmem:[%s5774 + $0x270] sm:$0xff]
      %v5854 = vld [vmem:[%s5774 + $0x278] sm:$0xff]
      %v5855 = vld [vmem:[%s5774 + $0x280] sm:$0xff]
      %v5856 = vld [vmem:[%s5774 + $0x288] sm:$0xff]
      %v5857 = vld [vmem:[%s5774 + $0x290] sm:$0xff]
      %v5858 = vld [vmem:[%s5774 + $0x298] sm:$0xff]
      %v5859 = vpack.c.bf16 %v5776, %v5775
      %v5860 = vpack.c.bf16 %v5778, %v5777
      %v5861 = vpack.c.bf16 %v5780, %v5779
      %v5862 = vpack.c.bf16 %v5782, %v5781
      %v5863 = vpack.c.bf16 %v5784, %v5783
      %v5864 = vpack.c.bf16 %v5786, %v5785
      %v5865 = vpack.c.bf16 %v5788, %v5787
      %v5866 = vpack.c.bf16 %v5790, %v5789
      %v5867 = vpack.c.bf16 %v5792, %v5791
      %v5868 = vpack.c.bf16 %v5794, %v5793
      %v5869 = vpack.c.bf16 %v5796, %v5795
      %v5870 = vpack.c.bf16 %v5798, %v5797
      %v5871 = vpack.c.bf16 %v5800, %v5799
      %v5872 = vpack.c.bf16 %v5802, %v5801
      %v5873 = vpack.c.bf16 %v5804, %v5803
      %v5874 = vpack.c.bf16 %v5806, %v5805
      %v5875 = vpack.c.bf16 %v5808, %v5807
      %v5876 = vpack.c.bf16 %v5810, %v5809
      %v5877 = vpack.c.bf16 %v5812, %v5811
      %v5878 = vpack.c.bf16 %v5814, %v5813
      %v5879 = vpack.c.bf16 %v5816, %v5815
      %v5880 = vpack.c.bf16 %v5818, %v5817
      %v5881 = vpack.c.bf16 %v5820, %v5819
      %v5882 = vpack.c.bf16 %v5822, %v5821
      %v5883 = vpack.c.bf16 %v5824, %v5823
      %v5884 = vpack.c.bf16 %v5826, %v5825
      %v5885 = vpack.c.bf16 %v5828, %v5827
      %v5886 = vpack.c.bf16 %v5830, %v5829
      %v5887 = vpack.c.bf16 %v5832, %v5831
      %v5888 = vpack.c.bf16 %v5834, %v5833
      %v5889 = vpack.c.bf16 %v5836, %v5835
      %v5890 = vpack.c.bf16 %v5838, %v5837
      %v5891 = vpack.c.bf16 %v5840, %v5839
      %v5892 = vpack.c.bf16 %v5842, %v5841
      %v5893 = vpack.c.bf16 %v5844, %v5843
      %v5894 = vpack.c.bf16 %v5846, %v5845
      %v5895 = vpack.c.bf16 %v5848, %v5847
      %v5896 = vpack.c.bf16 %v5850, %v5849
      %v5897 = vpack.c.bf16 %v5852, %v5851
      %v5898 = vpack.c.bf16 %v5854, %v5853
      %v5899 = vpack.c.bf16 %v5856, %v5855
      %v5900 = vpack.c.bf16 %v5858, %v5857
      %s5901 = scalar_lea.vmem %s223, 16
      %v5902 = vld [vmem:[%s5901] sm:$0x3]
      %v5904 = vsel %vm500, %v5859, 0
      %v5907 = vsel %vm500, %v5860, 0
      %v5910 = vsel %vm500, %v5861, 0
      %v5913 = vsel %vm500, %v5862, 0
      %v5916 = vsel %vm500, %v5863, 0
      %v5919 = vsel %vm500, %v5864, 0
      %v5922 = vsel %vm500, %v5865, 0
      %v5925 = vsel %vm500, %v5866, 0
      %v5928 = vsel %vm500, %v5867, 0
      %v5931 = vsel %vm500, %v5868, 0
      %v5934 = vsel %vm500, %v5869, 0
      %v5937 = vsel %vm500, %v5870, 0
      %v5940 = vsel %vm500, %v5871, 0
      %v5943 = vsel %vm500, %v5872, 0
      %v5946 = vsel %vm500, %v5873, 0
      %v5949 = vsel %vm500, %v5874, 0
      %v5952 = vsel %vm500, %v5875, 0
      %v5955 = vsel %vm500, %v5876, 0
      %v5958 = vsel %vm500, %v5877, 0
      %v5961 = vsel %vm500, %v5878, 0
      %v5964 = vsel %vm500, %v5879, 0
      %v5967 = vsel %vm500, %v5880, 0
      %v5970 = vsel %vm500, %v5881, 0
      %v5973 = vsel %vm500, %v5882, 0
      %v5976 = vsel %vm500, %v5883, 0
      %v5979 = vsel %vm500, %v5884, 0
      %v5982 = vsel %vm500, %v5885, 0
      %v5985 = vsel %vm500, %v5886, 0
      %v5988 = vsel %vm500, %v5887, 0
      %v5991 = vsel %vm500, %v5888, 0
      %v5994 = vsel %vm500, %v5889, 0
      %v5997 = vsel %vm500, %v5890, 0
      %v6000 = vsel %vm500, %v5891, 0
      %v6003 = vsel %vm500, %v5892, 0
      %v6006 = vsel %vm500, %v5893, 0
      %v6009 = vsel %vm500, %v5894, 0
      %v6012 = vsel %vm500, %v5895, 0
      %v6015 = vsel %vm500, %v5896, 0
      %v6018 = vsel %vm500, %v5897, 0
      %v6021 = vsel %vm500, %v5898, 0
      %v6024 = vsel %vm500, %v5899, 0
      %v6027 = vsel %vm500, %v5900, 0
      %v6030 = vand.u32 %v5902, %v630
      %6032 = vmatprep.subr.bf16.mxu0 0
      %6033 = vmatpush1.bf16.msra.mxu0 0
      %6034 = vmatprep.subr.bf16.mxu0 0
      %6035 = vmatpush1.bf16.msra.mxu0 0
      %6036 = vmatprep.subr.bf16.mxu0 0
      %6037 = vmatpush1.bf16.msra.mxu0 0
      %6038 = vmatprep.subr.bf16.mxu0 0
      %6039 = vmatpush1.bf16.msra.mxu0 0
      %6040 = vmatprep.subr.bf16.mxu0 0
      %6041 = vmatpush1.bf16.msra.mxu0 0
      %6042 = vmatprep.subr.bf16.mxu0 0
      %6043 = vmatpush1.bf16.msra.mxu0 0
      %6044 = vmatprep.subr.bf16.mxu0 0
      %6045 = vmatpush1.bf16.msra.mxu0 0
      %6046 = vmatprep.subr.bf16.mxu0 0
      %6047 = vmatpush1.bf16.msra.mxu0 %v6030
      %6048 = vmatprep.subr.bf16.mxu0 0
      %6049 = vmatpush2.bf16.msra.mxu0 0
      %6050 = vmatprep.subr.bf16.mxu0 0
      %6051 = vmatpush2.bf16.msra.mxu0 0
      %6052 = vmatprep.subr.bf16.mxu0 0
      %6053 = vmatpush2.bf16.msra.mxu0 0
      %6054 = vmatprep.subr.bf16.mxu0 0
      %6055 = vmatpush2.bf16.msra.mxu0 0
      %6056 = vmatprep.subr.bf16.mxu0 0
      %6057 = vmatpush2.bf16.msra.mxu0 0
      %6058 = vmatprep.subr.bf16.mxu0 0
      %6059 = vmatpush2.bf16.msra.mxu0 0
      %6060 = vmatprep.subr.bf16.mxu0 0
      %6061 = vmatpush2.bf16.msra.mxu0 0
      %6062 = vmatprep.subr.bf16.mxu0 0
      %6063 = vmatpush2.bf16.msra.mxu0 0
      %6064 = vmatprep.mubr.bf16.mxu0 0
      %6065 = vmatmul.mubr.bf16.gmra.mxu0 %v5904
      %v6066 = vpop.f32.mrf.mxu0
      %v6067 = vadd.f32 0.0, %v6066
      %v6068 = vpop.f32.mrf.mxu0
      %v6069 = vpop.f32.mrf.mxu0
      %v6070 = vadd.f32 0.0, %v6069
      %v6071 = vpop.f32.mrf.mxu0
      %6072 = vmatprep.mubr.bf16.mxu0 0
      %6073 = vmatmul.mubr.bf16.gmra.mxu0 %v5907
      %v6074 = vpop.f32.mrf.mxu0
      %v6075 = vadd.f32 0.0, %v6074
      %v6076 = vpop.f32.mrf.mxu0
      %v6077 = vpop.f32.mrf.mxu0
      %v6078 = vadd.f32 0.0, %v6077
      %v6079 = vpop.f32.mrf.mxu0
      %6080 = vmatprep.mubr.bf16.mxu0 0
      %6081 = vmatmul.mubr.bf16.gmra.mxu0 %v5910
      %v6082 = vpop.f32.mrf.mxu0
      %v6083 = vadd.f32 0.0, %v6082
      %v6084 = vpop.f32.mrf.mxu0
      %v6085 = vpop.f32.mrf.mxu0
      %v6086 = vadd.f32 0.0, %v6085
      %v6087 = vpop.f32.mrf.mxu0
      %6088 = vmatprep.mubr.bf16.mxu0 0
      %6089 = vmatmul.mubr.bf16.gmra.mxu0 %v5913
      %v6090 = vpop.f32.mrf.mxu0
      %v6091 = vadd.f32 0.0, %v6090
      %v6092 = vpop.f32.mrf.mxu0
      %v6093 = vpop.f32.mrf.mxu0
      %v6094 = vadd.f32 0.0, %v6093
      %v6095 = vpop.f32.mrf.mxu0
      %6096 = vmatprep.mubr.bf16.mxu0 0
      %6097 = vmatmul.mubr.bf16.gmra.mxu0 %v5916
      %v6098 = vpop.f32.mrf.mxu0
      %v6099 = vadd.f32 0.0, %v6098
      %v6100 = vpop.f32.mrf.mxu0
      %v6101 = vpop.f32.mrf.mxu0
      %v6102 = vadd.f32 0.0, %v6101
      %v6103 = vpop.f32.mrf.mxu0
      %6104 = vmatprep.mubr.bf16.mxu0 0
      %6105 = vmatmul.mubr.bf16.gmra.mxu0 %v5919
      %v6106 = vpop.f32.mrf.mxu0
      %v6107 = vadd.f32 0.0, %v6106
      %v6108 = vpop.f32.mrf.mxu0
      %v6109 = vpop.f32.mrf.mxu0
      %v6110 = vadd.f32 0.0, %v6109
      %v6111 = vpop.f32.mrf.mxu0
      %6112 = vmatprep.mubr.bf16.mxu0 0
      %6113 = vmatmul.mubr.bf16.gmra.mxu0 %v5922
      %v6114 = vpop.f32.mrf.mxu0
      %v6115 = vadd.f32 0.0, %v6114
      %v6116 = vpop.f32.mrf.mxu0
      %v6117 = vpop.f32.mrf.mxu0
      %v6118 = vadd.f32 0.0, %v6117
      %v6119 = vpop.f32.mrf.mxu0
      %6120 = vmatprep.mubr.bf16.mxu0 0
      %6121 = vmatmul.mubr.bf16.gmra.mxu0 %v5925
      %v6122 = vpop.f32.mrf.mxu0
      %v6123 = vadd.f32 0.0, %v6122
      %v6124 = vpop.f32.mrf.mxu0
      %v6125 = vpop.f32.mrf.mxu0
      %v6126 = vadd.f32 0.0, %v6125
      %v6127 = vpop.f32.mrf.mxu0
      %6128 = vmatprep.mubr.bf16.mxu0 0
      %6129 = vmatmul.mubr.bf16.gmra.mxu0 %v5928
      %v6130 = vpop.f32.mrf.mxu0
      %v6131 = vadd.f32 0.0, %v6130
      %v6132 = vpop.f32.mrf.mxu0
      %v6133 = vpop.f32.mrf.mxu0
      %v6134 = vadd.f32 0.0, %v6133
      %v6135 = vpop.f32.mrf.mxu0
      %6136 = vmatprep.mubr.bf16.mxu0 0
      %6137 = vmatmul.mubr.bf16.gmra.mxu0 %v5931
      %v6138 = vpop.f32.mrf.mxu0
      %v6139 = vadd.f32 0.0, %v6138
      %v6140 = vpop.f32.mrf.mxu0
      %v6141 = vpop.f32.mrf.mxu0
      %v6142 = vadd.f32 0.0, %v6141
      %v6143 = vpop.f32.mrf.mxu0
      %6144 = vmatprep.mubr.bf16.mxu0 0
      %6145 = vmatmul.mubr.bf16.gmra.mxu0 %v5934
      %v6146 = vpop.f32.mrf.mxu0
      %v6147 = vadd.f32 0.0, %v6146
      %v6148 = vpop.f32.mrf.mxu0
      %v6149 = vpop.f32.mrf.mxu0
      %v6150 = vadd.f32 0.0, %v6149
      %v6151 = vpop.f32.mrf.mxu0
      %6152 = vmatprep.mubr.bf16.mxu0 0
      %6153 = vmatmul.mubr.bf16.gmra.mxu0 %v5937
      %v6154 = vpop.f32.mrf.mxu0
      %v6155 = vadd.f32 0.0, %v6154
      %v6156 = vpop.f32.mrf.mxu0
      %v6157 = vpop.f32.mrf.mxu0
      %v6158 = vadd.f32 0.0, %v6157
      %v6159 = vpop.f32.mrf.mxu0
      %6160 = vmatprep.mubr.bf16.mxu0 0
      %6161 = vmatmul.mubr.bf16.gmra.mxu0 %v5940
      %v6162 = vpop.f32.mrf.mxu0
      %v6163 = vadd.f32 0.0, %v6162
      %v6164 = vpop.f32.mrf.mxu0
      %v6165 = vpop.f32.mrf.mxu0
      %v6166 = vadd.f32 0.0, %v6165
      %v6167 = vpop.f32.mrf.mxu0
      %6168 = vmatprep.mubr.bf16.mxu0 0
      %6169 = vmatmul.mubr.bf16.gmra.mxu0 %v5943
      %v6170 = vpop.f32.mrf.mxu0
      %v6171 = vadd.f32 0.0, %v6170
      %v6172 = vpop.f32.mrf.mxu0
      %v6173 = vpop.f32.mrf.mxu0
      %v6174 = vadd.f32 0.0, %v6173
      %v6175 = vpop.f32.mrf.mxu0
      %6176 = vmatprep.mubr.bf16.mxu0 0
      %6177 = vmatmul.mubr.bf16.gmra.mxu0 %v5946
      %v6178 = vpop.f32.mrf.mxu0
      %v6179 = vadd.f32 0.0, %v6178
      %v6180 = vpop.f32.mrf.mxu0
      %v6181 = vpop.f32.mrf.mxu0
      %v6182 = vadd.f32 0.0, %v6181
      %v6183 = vpop.f32.mrf.mxu0
      %6184 = vmatprep.mubr.bf16.mxu0 0
      %6185 = vmatmul.mubr.bf16.gmra.mxu0 %v5949
      %v6186 = vpop.f32.mrf.mxu0
      %v6187 = vadd.f32 0.0, %v6186
      %v6188 = vpop.f32.mrf.mxu0
      %v6189 = vpop.f32.mrf.mxu0
      %v6190 = vadd.f32 0.0, %v6189
      %v6191 = vpop.f32.mrf.mxu0
      %6192 = vmatprep.mubr.bf16.mxu0 0
      %6193 = vmatmul.mubr.bf16.gmra.mxu0 %v5952
      %v6194 = vpop.f32.mrf.mxu0
      %v6195 = vadd.f32 0.0, %v6194
      %v6196 = vpop.f32.mrf.mxu0
      %v6197 = vpop.f32.mrf.mxu0
      %v6198 = vadd.f32 0.0, %v6197
      %v6199 = vpop.f32.mrf.mxu0
      %6200 = vmatprep.mubr.bf16.mxu0 0
      %6201 = vmatmul.mubr.bf16.gmra.mxu0 %v5955
      %v6202 = vpop.f32.mrf.mxu0
      %v6203 = vadd.f32 0.0, %v6202
      %v6204 = vpop.f32.mrf.mxu0
      %v6205 = vpop.f32.mrf.mxu0
      %v6206 = vadd.f32 0.0, %v6205
      %v6207 = vpop.f32.mrf.mxu0
      %6208 = vmatprep.mubr.bf16.mxu0 0
      %6209 = vmatmul.mubr.bf16.gmra.mxu0 %v5958
      %v6210 = vpop.f32.mrf.mxu0
      %v6211 = vadd.f32 0.0, %v6210
      %v6212 = vpop.f32.mrf.mxu0
      %v6213 = vpop.f32.mrf.mxu0
      %v6214 = vadd.f32 0.0, %v6213
      %v6215 = vpop.f32.mrf.mxu0
      %6216 = vmatprep.mubr.bf16.mxu0 0
      %6217 = vmatmul.mubr.bf16.gmra.mxu0 %v5961
      %v6218 = vpop.f32.mrf.mxu0
      %v6219 = vadd.f32 0.0, %v6218
      %v6220 = vpop.f32.mrf.mxu0
      %v6221 = vpop.f32.mrf.mxu0
      %v6222 = vadd.f32 0.0, %v6221
      %v6223 = vpop.f32.mrf.mxu0
      %6224 = vmatprep.mubr.bf16.mxu0 0
      %6225 = vmatmul.mubr.bf16.gmra.mxu0 %v5964
      %v6226 = vpop.f32.mrf.mxu0
      %v6227 = vadd.f32 0.0, %v6226
      %v6228 = vpop.f32.mrf.mxu0
      %v6229 = vpop.f32.mrf.mxu0
      %v6230 = vadd.f32 0.0, %v6229
      %v6231 = vpop.f32.mrf.mxu0
      %6232 = vmatprep.mubr.bf16.mxu0 0
      %6233 = vmatmul.mubr.bf16.gmra.mxu0 %v5967
      %v6234 = vpop.f32.mrf.mxu0
      %v6235 = vadd.f32 0.0, %v6234
      %v6236 = vpop.f32.mrf.mxu0
      %v6237 = vpop.f32.mrf.mxu0
      %v6238 = vadd.f32 0.0, %v6237
      %v6239 = vpop.f32.mrf.mxu0
      %6240 = vmatprep.mubr.bf16.mxu0 0
      %6241 = vmatmul.mubr.bf16.gmra.mxu0 %v5970
      %v6242 = vpop.f32.mrf.mxu0
      %v6243 = vadd.f32 0.0, %v6242
      %v6244 = vpop.f32.mrf.mxu0
      %v6245 = vpop.f32.mrf.mxu0
      %v6246 = vadd.f32 0.0, %v6245
      %v6247 = vpop.f32.mrf.mxu0
      %6248 = vmatprep.mubr.bf16.mxu0 0
      %6249 = vmatmul.mubr.bf16.gmra.mxu0 %v5973
      %v6250 = vpop.f32.mrf.mxu0
      %v6251 = vadd.f32 0.0, %v6250
      %v6252 = vpop.f32.mrf.mxu0
      %v6253 = vpop.f32.mrf.mxu0
      %v6254 = vadd.f32 0.0, %v6253
      %v6255 = vpop.f32.mrf.mxu0
      %6256 = vmatprep.mubr.bf16.mxu0 0
      %6257 = vmatmul.mubr.bf16.gmra.mxu0 %v5976
      %v6258 = vpop.f32.mrf.mxu0
      %v6259 = vadd.f32 0.0, %v6258
      %v6260 = vpop.f32.mrf.mxu0
      %v6261 = vpop.f32.mrf.mxu0
      %v6262 = vadd.f32 0.0, %v6261
      %v6263 = vpop.f32.mrf.mxu0
      %6264 = vmatprep.mubr.bf16.mxu0 0
      %6265 = vmatmul.mubr.bf16.gmra.mxu0 %v5979
      %v6266 = vpop.f32.mrf.mxu0
      %v6267 = vadd.f32 0.0, %v6266
      %v6268 = vpop.f32.mrf.mxu0
      %v6269 = vpop.f32.mrf.mxu0
      %v6270 = vadd.f32 0.0, %v6269
      %v6271 = vpop.f32.mrf.mxu0
      %6272 = vmatprep.mubr.bf16.mxu0 0
      %6273 = vmatmul.mubr.bf16.gmra.mxu0 %v5982
      %v6274 = vpop.f32.mrf.mxu0
      %v6275 = vadd.f32 0.0, %v6274
      %v6276 = vpop.f32.mrf.mxu0
      %v6277 = vpop.f32.mrf.mxu0
      %v6278 = vadd.f32 0.0, %v6277
      %v6279 = vpop.f32.mrf.mxu0
      %6280 = vmatprep.mubr.bf16.mxu0 0
      %6281 = vmatmul.mubr.bf16.gmra.mxu0 %v5985
      %v6282 = vpop.f32.mrf.mxu0
      %v6283 = vadd.f32 0.0, %v6282
      %v6284 = vpop.f32.mrf.mxu0
      %v6285 = vpop.f32.mrf.mxu0
      %v6286 = vadd.f32 0.0, %v6285
      %v6287 = vpop.f32.mrf.mxu0
      %6288 = vmatprep.mubr.bf16.mxu0 0
      %6289 = vmatmul.mubr.bf16.gmra.mxu0 %v5988
      %v6290 = vpop.f32.mrf.mxu0
      %v6291 = vadd.f32 0.0, %v6290
      %v6292 = vpop.f32.mrf.mxu0
      %v6293 = vpop.f32.mrf.mxu0
      %v6294 = vadd.f32 0.0, %v6293
      %v6295 = vpop.f32.mrf.mxu0
      %6296 = vmatprep.mubr.bf16.mxu0 0
      %6297 = vmatmul.mubr.bf16.gmra.mxu0 %v5991
      %v6298 = vpop.f32.mrf.mxu0
      %v6299 = vadd.f32 0.0, %v6298
      %v6300 = vpop.f32.mrf.mxu0
      %v6301 = vpop.f32.mrf.mxu0
      %v6302 = vadd.f32 0.0, %v6301
      %v6303 = vpop.f32.mrf.mxu0
      %6304 = vmatprep.mubr.bf16.mxu0 0
      %6305 = vmatmul.mubr.bf16.gmra.mxu0 %v5994
      %v6306 = vpop.f32.mrf.mxu0
      %v6307 = vadd.f32 0.0, %v6306
      %v6308 = vpop.f32.mrf.mxu0
      %v6309 = vpop.f32.mrf.mxu0
      %v6310 = vadd.f32 0.0, %v6309
      %v6311 = vpop.f32.mrf.mxu0
      %6312 = vmatprep.mubr.bf16.mxu0 0
      %6313 = vmatmul.mubr.bf16.gmra.mxu0 %v5997
      %v6314 = vpop.f32.mrf.mxu0
      %v6315 = vadd.f32 0.0, %v6314
      %v6316 = vpop.f32.mrf.mxu0
      %v6317 = vpop.f32.mrf.mxu0
      %v6318 = vadd.f32 0.0, %v6317
      %v6319 = vpop.f32.mrf.mxu0
      %6320 = vmatprep.mubr.bf16.mxu0 0
      %6321 = vmatmul.mubr.bf16.gmra.mxu0 %v6000
      %v6322 = vpop.f32.mrf.mxu0
      %v6323 = vadd.f32 0.0, %v6322
      %v6324 = vpop.f32.mrf.mxu0
      %v6325 = vpop.f32.mrf.mxu0
      %v6326 = vadd.f32 0.0, %v6325
      %v6327 = vpop.f32.mrf.mxu0
      %6328 = vmatprep.mubr.bf16.mxu0 0
      %6329 = vmatmul.mubr.bf16.gmra.mxu0 %v6003
      %v6330 = vpop.f32.mrf.mxu0
      %v6331 = vadd.f32 0.0, %v6330
      %v6332 = vpop.f32.mrf.mxu0
      %v6333 = vpop.f32.mrf.mxu0
      %v6334 = vadd.f32 0.0, %v6333
      %v6335 = vpop.f32.mrf.mxu0
      %6336 = vmatprep.mubr.bf16.mxu0 0
      %6337 = vmatmul.mubr.bf16.gmra.mxu0 %v6006
      %v6338 = vpop.f32.mrf.mxu0
      %v6339 = vadd.f32 0.0, %v6338
      %v6340 = vpop.f32.mrf.mxu0
      %v6341 = vpop.f32.mrf.mxu0
      %v6342 = vadd.f32 0.0, %v6341
      %v6343 = vpop.f32.mrf.mxu0
      %6344 = vmatprep.mubr.bf16.mxu0 0
      %6345 = vmatmul.mubr.bf16.gmra.mxu0 %v6009
      %v6346 = vpop.f32.mrf.mxu0
      %v6347 = vadd.f32 0.0, %v6346
      %v6348 = vpop.f32.mrf.mxu0
      %v6349 = vpop.f32.mrf.mxu0
      %v6350 = vadd.f32 0.0, %v6349
      %v6351 = vpop.f32.mrf.mxu0
      %6352 = vmatprep.mubr.bf16.mxu0 0
      %6353 = vmatmul.mubr.bf16.gmra.mxu0 %v6012
      %v6354 = vpop.f32.mrf.mxu0
      %v6355 = vadd.f32 0.0, %v6354
      %v6356 = vpop.f32.mrf.mxu0
      %v6357 = vpop.f32.mrf.mxu0
      %v6358 = vadd.f32 0.0, %v6357
      %v6359 = vpop.f32.mrf.mxu0
      %6360 = vmatprep.mubr.bf16.mxu0 0
      %6361 = vmatmul.mubr.bf16.gmra.mxu0 %v6015
      %v6362 = vpop.f32.mrf.mxu0
      %v6363 = vadd.f32 0.0, %v6362
      %v6364 = vpop.f32.mrf.mxu0
      %v6365 = vpop.f32.mrf.mxu0
      %v6366 = vadd.f32 0.0, %v6365
      %v6367 = vpop.f32.mrf.mxu0
      %6368 = vmatprep.mubr.bf16.mxu0 0
      %6369 = vmatmul.mubr.bf16.gmra.mxu0 %v6018
      %v6370 = vpop.f32.mrf.mxu0
      %v6371 = vadd.f32 0.0, %v6370
      %v6372 = vpop.f32.mrf.mxu0
      %v6373 = vpop.f32.mrf.mxu0
      %v6374 = vadd.f32 0.0, %v6373
      %v6375 = vpop.f32.mrf.mxu0
      %6376 = vmatprep.mubr.bf16.mxu0 0
      %6377 = vmatmul.mubr.bf16.gmra.mxu0 %v6021
      %v6378 = vpop.f32.mrf.mxu0
      %v6379 = vadd.f32 0.0, %v6378
      %v6380 = vpop.f32.mrf.mxu0
      %v6381 = vpop.f32.mrf.mxu0
      %v6382 = vadd.f32 0.0, %v6381
      %v6383 = vpop.f32.mrf.mxu0
      %6384 = vmatprep.mubr.bf16.mxu0 0
      %6385 = vmatmul.mubr.bf16.gmra.mxu0 %v6024
      %v6386 = vpop.f32.mrf.mxu0
      %v6387 = vadd.f32 0.0, %v6386
      %v6388 = vpop.f32.mrf.mxu0
      %v6389 = vpop.f32.mrf.mxu0
      %v6390 = vadd.f32 0.0, %v6389
      %v6391 = vpop.f32.mrf.mxu0
      %6392 = vmatprep.mubr.bf16.mxu0 0
      %6393 = vmatmul.mubr.bf16.gmra.mxu0 %v6027
      %v6394 = vpop.f32.mrf.mxu0
      %v6395 = vadd.f32 0.0, %v6394
      %v6396 = vpop.f32.mrf.mxu0
      %v6397 = vpop.f32.mrf.mxu0
      %v6398 = vadd.f32 0.0, %v6397
      %v6399 = vpop.f32.mrf.mxu0
      %6400 = vdwg.mxu0
      %v6401 = vadd.f32 %v5689, %v6067
      %v6402 = vadd.f32 %v5690, %v6070
      %v6403 = vadd.f32 %v5691, %v6075
      %v6404 = vadd.f32 %v5692, %v6078
      %v6405 = vadd.f32 %v5693, %v6083
      %v6406 = vadd.f32 %v5694, %v6086
      %v6407 = vadd.f32 %v5695, %v6091
      %v6408 = vadd.f32 %v5696, %v6094
      %v6409 = vadd.f32 %v5697, %v6099
      %v6410 = vadd.f32 %v5698, %v6102
      %v6411 = vadd.f32 %v5699, %v6107
      %v6412 = vadd.f32 %v5700, %v6110
      %v6413 = vadd.f32 %v5701, %v6115
      %v6414 = vadd.f32 %v5702, %v6118
      %v6415 = vadd.f32 %v5703, %v6123
      %v6416 = vadd.f32 %v5704, %v6126
      %v6417 = vadd.f32 %v5705, %v6131
      %v6418 = vadd.f32 %v5706, %v6134
      %v6419 = vadd.f32 %v5707, %v6139
      %v6420 = vadd.f32 %v5708, %v6142
      %v6421 = vadd.f32 %v5709, %v6147
      %v6422 = vadd.f32 %v5710, %v6150
      %v6423 = vadd.f32 %v5711, %v6155
      %v6424 = vadd.f32 %v5712, %v6158
      %v6425 = vadd.f32 %v5713, %v6163
      %v6426 = vadd.f32 %v5714, %v6166
      %v6427 = vadd.f32 %v5715, %v6171
      %v6428 = vadd.f32 %v5716, %v6174
      %v6429 = vadd.f32 %v5717, %v6179
      %v6430 = vadd.f32 %v5718, %v6182
      %v6431 = vadd.f32 %v5719, %v6187
      %v6432 = vadd.f32 %v5720, %v6190
      %v6433 = vadd.f32 %v5721, %v6195
      %v6434 = vadd.f32 %v5722, %v6198
      %v6435 = vadd.f32 %v5723, %v6203
      %v6436 = vadd.f32 %v5724, %v6206
      %v6437 = vadd.f32 %v5725, %v6211
      %v6438 = vadd.f32 %v5726, %v6214
      %v6439 = vadd.f32 %v5727, %v6219
      %v6440 = vadd.f32 %v5728, %v6222
      %v6441 = vadd.f32 %v5729, %v6227
      %v6442 = vadd.f32 %v5730, %v6230
      %v6443 = vadd.f32 %v5731, %v6235
      %v6444 = vadd.f32 %v5732, %v6238
      %v6445 = vadd.f32 %v5733, %v6243
      %v6446 = vadd.f32 %v5734, %v6246
      %v6447 = vadd.f32 %v5735, %v6251
      %v6448 = vadd.f32 %v5736, %v6254
      %v6449 = vadd.f32 %v5737, %v6259
      %v6450 = vadd.f32 %v5738, %v6262
      %v6451 = vadd.f32 %v5739, %v6267
      %v6452 = vadd.f32 %v5740, %v6270
      %v6453 = vadd.f32 %v5741, %v6275
      %v6454 = vadd.f32 %v5742, %v6278
      %v6455 = vadd.f32 %v5743, %v6283
      %v6456 = vadd.f32 %v5744, %v6286
      %v6457 = vadd.f32 %v5745, %v6291
      %v6458 = vadd.f32 %v5746, %v6294
      %v6459 = vadd.f32 %v5747, %v6299
      %v6460 = vadd.f32 %v5748, %v6302
      %v6461 = vadd.f32 %v5749, %v6307
      %v6462 = vadd.f32 %v5750, %v6310
      %v6463 = vadd.f32 %v5751, %v6315
      %v6464 = vadd.f32 %v5752, %v6318
      %v6465 = vadd.f32 %v5753, %v6323
      %v6466 = vadd.f32 %v5754, %v6326
      %v6467 = vadd.f32 %v5755, %v6331
      %v6468 = vadd.f32 %v5756, %v6334
      %v6469 = vadd.f32 %v5757, %v6339
      %v6470 = vadd.f32 %v5758, %v6342
      %v6471 = vadd.f32 %v5759, %v6347
      %v6472 = vadd.f32 %v5760, %v6350
      %v6473 = vadd.f32 %v5761, %v6355
      %v6474 = vadd.f32 %v5762, %v6358
      %v6475 = vadd.f32 %v5763, %v6363
      %v6476 = vadd.f32 %v5764, %v6366
      %v6477 = vadd.f32 %v5765, %v6371
      %v6478 = vadd.f32 %v5766, %v6374
      %v6479 = vadd.f32 %v5767, %v6379
      %v6480 = vadd.f32 %v5768, %v6382
      %v6481 = vadd.f32 %v5769, %v6387
      %v6482 = vadd.f32 %v5770, %v6390
      %v6483 = vadd.f32 %v5771, %v6395
      %v6484 = vadd.f32 %v5772, %v6398
      %v6485 = vld [vmem:[%s226] sm:$0x1]
      %v6487 = vlaneseq
      %v6488 = vshrl.u32 %v6487, 7
      %v6489 = vsub.s32 0, %v6488
      %v6490 = vrot.slane %v6485, %v6489
      %v6492 = vadd.f32 %v6401, %v6490
      %v6493 = vadd.f32 %v6402, %v6490
      %v6494 = vadd.f32 %v6403, %v6490
      %v6495 = vadd.f32 %v6404, %v6490
      %v6496 = vadd.f32 %v6405, %v6490
      %v6497 = vadd.f32 %v6406, %v6490
      %v6498 = vadd.f32 %v6407, %v6490
      %v6499 = vadd.f32 %v6408, %v6490
      %v6500 = vadd.f32 %v6409, %v6490
      %v6501 = vadd.f32 %v6410, %v6490
      %v6502 = vadd.f32 %v6411, %v6490
      %v6503 = vadd.f32 %v6412, %v6490
      %v6504 = vadd.f32 %v6413, %v6490
      %v6505 = vadd.f32 %v6414, %v6490
      %v6506 = vadd.f32 %v6415, %v6490
      %v6507 = vadd.f32 %v6416, %v6490
      %v6508 = vadd.f32 %v6417, %v6490
      %v6509 = vadd.f32 %v6418, %v6490
      %v6510 = vadd.f32 %v6419, %v6490
      %v6511 = vadd.f32 %v6420, %v6490
      %v6512 = vadd.f32 %v6421, %v6490
      %v6513 = vadd.f32 %v6422, %v6490
      %v6514 = vadd.f32 %v6423, %v6490
      %v6515 = vadd.f32 %v6424, %v6490
      %v6516 = vadd.f32 %v6425, %v6490
      %v6517 = vadd.f32 %v6426, %v6490
      %v6518 = vadd.f32 %v6427, %v6490
      %v6519 = vadd.f32 %v6428, %v6490
      %v6520 = vadd.f32 %v6429, %v6490
      %v6521 = vadd.f32 %v6430, %v6490
      %v6522 = vadd.f32 %v6431, %v6490
      %v6523 = vadd.f32 %v6432, %v6490
      %v6524 = vadd.f32 %v6433, %v6490
      %v6525 = vadd.f32 %v6434, %v6490
      %v6526 = vadd.f32 %v6435, %v6490
      %v6527 = vadd.f32 %v6436, %v6490
      %v6528 = vadd.f32 %v6437, %v6490
      %v6529 = vadd.f32 %v6438, %v6490
      %v6530 = vadd.f32 %v6439, %v6490
      %v6531 = vadd.f32 %v6440, %v6490
      %v6532 = vadd.f32 %v6441, %v6490
      %v6533 = vadd.f32 %v6442, %v6490
      %v6534 = vadd.f32 %v6443, %v6490
      %v6535 = vadd.f32 %v6444, %v6490
      %v6536 = vadd.f32 %v6445, %v6490
      %v6537 = vadd.f32 %v6446, %v6490
      %v6538 = vadd.f32 %v6447, %v6490
      %v6539 = vadd.f32 %v6448, %v6490
      %v6540 = vadd.f32 %v6449, %v6490
      %v6541 = vadd.f32 %v6450, %v6490
      %v6542 = vadd.f32 %v6451, %v6490
      %v6543 = vadd.f32 %v6452, %v6490
      %v6544 = vadd.f32 %v6453, %v6490
      %v6545 = vadd.f32 %v6454, %v6490
      %v6546 = vadd.f32 %v6455, %v6490
      %v6547 = vadd.f32 %v6456, %v6490
      %v6548 = vadd.f32 %v6457, %v6490
      %v6549 = vadd.f32 %v6458, %v6490
      %v6550 = vadd.f32 %v6459, %v6490
      %v6551 = vadd.f32 %v6460, %v6490
      %v6552 = vadd.f32 %v6461, %v6490
      %v6553 = vadd.f32 %v6462, %v6490
      %v6554 = vadd.f32 %v6463, %v6490
      %v6555 = vadd.f32 %v6464, %v6490
      %v6556 = vadd.f32 %v6465, %v6490
      %v6557 = vadd.f32 %v6466, %v6490
      %v6558 = vadd.f32 %v6467, %v6490
      %v6559 = vadd.f32 %v6468, %v6490
      %v6560 = vadd.f32 %v6469, %v6490
      %v6561 = vadd.f32 %v6470, %v6490
      %v6562 = vadd.f32 %v6471, %v6490
      %v6563 = vadd.f32 %v6472, %v6490
      %v6564 = vadd.f32 %v6473, %v6490
      %v6565 = vadd.f32 %v6474, %v6490
      %v6566 = vadd.f32 %v6475, %v6490
      %v6567 = vadd.f32 %v6476, %v6490
      %v6568 = vadd.f32 %v6477, %v6490
      %v6569 = vadd.f32 %v6478, %v6490
      %v6570 = vadd.f32 %v6479, %v6490
      %v6571 = vadd.f32 %v6480, %v6490
      %v6572 = vadd.f32 %v6481, %v6490
      %v6573 = vadd.f32 %v6482, %v6490
      %v6574 = vadd.f32 %v6483, %v6490
      %v6575 = vadd.f32 %v6484, %v6490
      %v6576 = vmax.f32 %v6492, 0.0
      %v6577 = vmax.f32 %v6493, 0.0
      %v6578 = vmax.f32 %v6494, 0.0
      %v6579 = vmax.f32 %v6495, 0.0
      %v6580 = vmax.f32 %v6496, 0.0
      %v6581 = vmax.f32 %v6497, 0.0
      %v6582 = vmax.f32 %v6498, 0.0
      %v6583 = vmax.f32 %v6499, 0.0
      %v6584 = vmax.f32 %v6500, 0.0
      %v6585 = vmax.f32 %v6501, 0.0
      %v6586 = vmax.f32 %v6502, 0.0
      %v6587 = vmax.f32 %v6503, 0.0
      %v6588 = vmax.f32 %v6504, 0.0
      %v6589 = vmax.f32 %v6505, 0.0
      %v6590 = vmax.f32 %v6506, 0.0
      %v6591 = vmax.f32 %v6507, 0.0
      %v6592 = vmax.f32 %v6508, 0.0
      %v6593 = vmax.f32 %v6509, 0.0
      %v6594 = vmax.f32 %v6510, 0.0
      %v6595 = vmax.f32 %v6511, 0.0
      %v6596 = vmax.f32 %v6512, 0.0
      %v6597 = vmax.f32 %v6513, 0.0
      %v6598 = vmax.f32 %v6514, 0.0
      %v6599 = vmax.f32 %v6515, 0.0
      %v6600 = vmax.f32 %v6516, 0.0
      %v6601 = vmax.f32 %v6517, 0.0
      %v6602 = vmax.f32 %v6518, 0.0
      %v6603 = vmax.f32 %v6519, 0.0
      %v6604 = vmax.f32 %v6520, 0.0
      %v6605 = vmax.f32 %v6521, 0.0
      %v6606 = vmax.f32 %v6522, 0.0
      %v6607 = vmax.f32 %v6523, 0.0
      %v6608 = vmax.f32 %v6524, 0.0
      %v6609 = vmax.f32 %v6525, 0.0
      %v6610 = vmax.f32 %v6526, 0.0
      %v6611 = vmax.f32 %v6527, 0.0
      %v6612 = vmax.f32 %v6528, 0.0
      %v6613 = vmax.f32 %v6529, 0.0
      %v6614 = vmax.f32 %v6530, 0.0
      %v6615 = vmax.f32 %v6531, 0.0
      %v6616 = vmax.f32 %v6532, 0.0
      %v6617 = vmax.f32 %v6533, 0.0
      %v6618 = vmax.f32 %v6534, 0.0
      %v6619 = vmax.f32 %v6535, 0.0
      %v6620 = vmax.f32 %v6536, 0.0
      %v6621 = vmax.f32 %v6537, 0.0
      %v6622 = vmax.f32 %v6538, 0.0
      %v6623 = vmax.f32 %v6539, 0.0
      %v6624 = vmax.f32 %v6540, 0.0
      %v6625 = vmax.f32 %v6541, 0.0
      %v6626 = vmax.f32 %v6542, 0.0
      %v6627 = vmax.f32 %v6543, 0.0
      %v6628 = vmax.f32 %v6544, 0.0
      %v6629 = vmax.f32 %v6545, 0.0
      %v6630 = vmax.f32 %v6546, 0.0
      %v6631 = vmax.f32 %v6547, 0.0
      %v6632 = vmax.f32 %v6548, 0.0
      %v6633 = vmax.f32 %v6549, 0.0
      %v6634 = vmax.f32 %v6550, 0.0
      %v6635 = vmax.f32 %v6551, 0.0
      %v6636 = vmax.f32 %v6552, 0.0
      %v6637 = vmax.f32 %v6553, 0.0
      %v6638 = vmax.f32 %v6554, 0.0
      %v6639 = vmax.f32 %v6555, 0.0
      %v6640 = vmax.f32 %v6556, 0.0
      %v6641 = vmax.f32 %v6557, 0.0
      %v6642 = vmax.f32 %v6558, 0.0
      %v6643 = vmax.f32 %v6559, 0.0
      %v6644 = vmax.f32 %v6560, 0.0
      %v6645 = vmax.f32 %v6561, 0.0
      %v6646 = vmax.f32 %v6562, 0.0
      %v6647 = vmax.f32 %v6563, 0.0
      %v6648 = vmax.f32 %v6564, 0.0
      %v6649 = vmax.f32 %v6565, 0.0
      %v6650 = vmax.f32 %v6566, 0.0
      %v6651 = vmax.f32 %v6567, 0.0
      %v6652 = vmax.f32 %v6568, 0.0
      %v6653 = vmax.f32 %v6569, 0.0
      %v6654 = vmax.f32 %v6570, 0.0
      %v6655 = vmax.f32 %v6571, 0.0
      %v6656 = vmax.f32 %v6572, 0.0
      %v6657 = vmax.f32 %v6573, 0.0
      %v6658 = vmax.f32 %v6574, 0.0
      %v6659 = vmax.f32 %v6575, 0.0
      %v6660 = vpack.c.bf16 %v6577, %v6576
      %v6661 = vpack.c.bf16 %v6579, %v6578
      %v6662 = vpack.c.bf16 %v6581, %v6580
      %v6663 = vpack.c.bf16 %v6583, %v6582
      %v6664 = vpack.c.bf16 %v6585, %v6584
      %v6665 = vpack.c.bf16 %v6587, %v6586
      %v6666 = vpack.c.bf16 %v6589, %v6588
      %v6667 = vpack.c.bf16 %v6591, %v6590
      %v6668 = vpack.c.bf16 %v6593, %v6592
      %v6669 = vpack.c.bf16 %v6595, %v6594
      %v6670 = vpack.c.bf16 %v6597, %v6596
      %v6671 = vpack.c.bf16 %v6599, %v6598
      %v6672 = vpack.c.bf16 %v6601, %v6600
      %v6673 = vpack.c.bf16 %v6603, %v6602
      %v6674 = vpack.c.bf16 %v6605, %v6604
      %v6675 = vpack.c.bf16 %v6607, %v6606
      %v6676 = vpack.c.bf16 %v6609, %v6608
      %v6677 = vpack.c.bf16 %v6611, %v6610
      %v6678 = vpack.c.bf16 %v6613, %v6612
      %v6679 = vpack.c.bf16 %v6615, %v6614
      %v6680 = vpack.c.bf16 %v6617, %v6616
      %v6681 = vpack.c.bf16 %v6619, %v6618
      %v6682 = vpack.c.bf16 %v6621, %v6620
      %v6683 = vpack.c.bf16 %v6623, %v6622
      %v6684 = vpack.c.bf16 %v6625, %v6624
      %v6685 = vpack.c.bf16 %v6627, %v6626
      %v6686 = vpack.c.bf16 %v6629, %v6628
      %v6687 = vpack.c.bf16 %v6631, %v6630
      %v6688 = vpack.c.bf16 %v6633, %v6632
      %v6689 = vpack.c.bf16 %v6635, %v6634
      %v6690 = vpack.c.bf16 %v6637, %v6636
      %v6691 = vpack.c.bf16 %v6639, %v6638
      %v6692 = vpack.c.bf16 %v6641, %v6640
      %v6693 = vpack.c.bf16 %v6643, %v6642
      %v6694 = vpack.c.bf16 %v6645, %v6644
      %v6695 = vpack.c.bf16 %v6647, %v6646
      %v6696 = vpack.c.bf16 %v6649, %v6648
      %v6697 = vpack.c.bf16 %v6651, %v6650
      %v6698 = vpack.c.bf16 %v6653, %v6652
      %v6699 = vpack.c.bf16 %v6655, %v6654
      %v6700 = vpack.c.bf16 %v6657, %v6656
      %v6701 = vpack.c.bf16 %v6659, %v6658
      %v6744 = vunpack.c.l.b16 %v6660
      %v6745 = vunpack.c.h.b16 %v6660
      %v6746 = vunpack.c.l.b16 %v6661
      %v6747 = vunpack.c.h.b16 %v6661
      %v6748 = vunpack.c.l.b16 %v6662
      %v6749 = vunpack.c.h.b16 %v6662
      %v6750 = vunpack.c.l.b16 %v6663
      %v6751 = vunpack.c.h.b16 %v6663
      %v6752 = vunpack.c.l.b16 %v6664
      %v6753 = vunpack.c.h.b16 %v6664
      %v6754 = vunpack.c.l.b16 %v6665
      %v6755 = vunpack.c.h.b16 %v6665
      %v6756 = vunpack.c.l.b16 %v6666
      %v6757 = vunpack.c.h.b16 %v6666
      %v6758 = vunpack.c.l.b16 %v6667
      %v6759 = vunpack.c.h.b16 %v6667
      %v6760 = vunpack.c.l.b16 %v6668
      %v6761 = vunpack.c.h.b16 %v6668
      %v6762 = vunpack.c.l.b16 %v6669
      %v6763 = vunpack.c.h.b16 %v6669
      %v6764 = vunpack.c.l.b16 %v6670
      %v6765 = vunpack.c.h.b16 %v6670
      %v6766 = vunpack.c.l.b16 %v6671
      %v6767 = vunpack.c.h.b16 %v6671
      %v6768 = vunpack.c.l.b16 %v6672
      %v6769 = vunpack.c.h.b16 %v6672
      %v6770 = vunpack.c.l.b16 %v6673
      %v6771 = vunpack.c.h.b16 %v6673
      %v6772 = vunpack.c.l.b16 %v6674
      %v6773 = vunpack.c.h.b16 %v6674
      %v6774 = vunpack.c.l.b16 %v6675
      %v6775 = vunpack.c.h.b16 %v6675
      %v6776 = vunpack.c.l.b16 %v6676
      %v6777 = vunpack.c.h.b16 %v6676
      %v6778 = vunpack.c.l.b16 %v6677
      %v6779 = vunpack.c.h.b16 %v6677
      %v6780 = vunpack.c.l.b16 %v6678
      %v6781 = vunpack.c.h.b16 %v6678
      %v6782 = vunpack.c.l.b16 %v6679
      %v6783 = vunpack.c.h.b16 %v6679
      %v6784 = vunpack.c.l.b16 %v6680
      %v6785 = vunpack.c.h.b16 %v6680
      %v6786 = vunpack.c.l.b16 %v6681
      %v6787 = vunpack.c.h.b16 %v6681
      %v6788 = vunpack.c.l.b16 %v6682
      %v6789 = vunpack.c.h.b16 %v6682
      %v6790 = vunpack.c.l.b16 %v6683
      %v6791 = vunpack.c.h.b16 %v6683
      %v6792 = vunpack.c.l.b16 %v6684
      %v6793 = vunpack.c.h.b16 %v6684
      %v6794 = vunpack.c.l.b16 %v6685
      %v6795 = vunpack.c.h.b16 %v6685
      %v6796 = vunpack.c.l.b16 %v6686
      %v6797 = vunpack.c.h.b16 %v6686
      %v6798 = vunpack.c.l.b16 %v6687
      %v6799 = vunpack.c.h.b16 %v6687
      %v6800 = vunpack.c.l.b16 %v6688
      %v6801 = vunpack.c.h.b16 %v6688
      %v6802 = vunpack.c.l.b16 %v6689
      %v6803 = vunpack.c.h.b16 %v6689
      %v6804 = vunpack.c.l.b16 %v6690
      %v6805 = vunpack.c.h.b16 %v6690
      %v6806 = vunpack.c.l.b16 %v6691
      %v6807 = vunpack.c.h.b16 %v6691
      %v6808 = vunpack.c.l.b16 %v6692
      %v6809 = vunpack.c.h.b16 %v6692
      %v6810 = vunpack.c.l.b16 %v6693
      %v6811 = vunpack.c.h.b16 %v6693
      %v6812 = vunpack.c.l.b16 %v6694
      %v6813 = vunpack.c.h.b16 %v6694
      %v6814 = vunpack.c.l.b16 %v6695
      %v6815 = vunpack.c.h.b16 %v6695
      %v6816 = vunpack.c.l.b16 %v6696
      %v6817 = vunpack.c.h.b16 %v6696
      %v6818 = vunpack.c.l.b16 %v6697
      %v6819 = vunpack.c.h.b16 %v6697
      %v6820 = vunpack.c.l.b16 %v6698
      %v6821 = vunpack.c.h.b16 %v6698
      %v6822 = vunpack.c.l.b16 %v6699
      %v6823 = vunpack.c.h.b16 %v6699
      %v6824 = vunpack.c.l.b16 %v6700
      %v6825 = vunpack.c.h.b16 %v6700
      %v6826 = vunpack.c.l.b16 %v6701
      %v6827 = vunpack.c.h.b16 %v6701
      %v6828 = vpack.c.b16 %v6744, %v6744
      %v6829 = vpack.c.b16 %v6745, %v6745
      %v6830 = vpack.c.b16 %v6746, %v6746
      %v6831 = vpack.c.b16 %v6747, %v6747
      %v6832 = vpack.c.b16 %v6748, %v6748
      %v6833 = vpack.c.b16 %v6749, %v6749
      %v6834 = vpack.c.b16 %v6750, %v6750
      %v6835 = vpack.c.b16 %v6751, %v6751
      %v6836 = vpack.c.b16 %v6752, %v6752
      %v6837 = vpack.c.b16 %v6753, %v6753
      %v6838 = vpack.c.b16 %v6754, %v6754
      %v6839 = vpack.c.b16 %v6755, %v6755
      %v6840 = vpack.c.b16 %v6756, %v6756
      %v6841 = vpack.c.b16 %v6757, %v6757
      %v6842 = vpack.c.b16 %v6758, %v6758
      %v6843 = vpack.c.b16 %v6759, %v6759
      %v6844 = vpack.c.b16 %v6760, %v6760
      %v6845 = vpack.c.b16 %v6761, %v6761
      %v6846 = vpack.c.b16 %v6762, %v6762
      %v6847 = vpack.c.b16 %v6763, %v6763
      %v6848 = vpack.c.b16 %v6764, %v6764
      %v6849 = vpack.c.b16 %v6765, %v6765
      %v6850 = vpack.c.b16 %v6766, %v6766
      %v6851 = vpack.c.b16 %v6767, %v6767
      %v6852 = vpack.c.b16 %v6768, %v6768
      %v6853 = vpack.c.b16 %v6769, %v6769
      %v6854 = vpack.c.b16 %v6770, %v6770
      %v6855 = vpack.c.b16 %v6771, %v6771
      %v6856 = vpack.c.b16 %v6772, %v6772
      %v6857 = vpack.c.b16 %v6773, %v6773
      %v6858 = vpack.c.b16 %v6774, %v6774
      %v6859 = vpack.c.b16 %v6775, %v6775
      %v6860 = vpack.c.b16 %v6776, %v6776
      %v6861 = vpack.c.b16 %v6777, %v6777
      %v6862 = vpack.c.b16 %v6778, %v6778
      %v6863 = vpack.c.b16 %v6779, %v6779
      %v6864 = vpack.c.b16 %v6780, %v6780
      %v6865 = vpack.c.b16 %v6781, %v6781
      %v6866 = vpack.c.b16 %v6782, %v6782
      %v6867 = vpack.c.b16 %v6783, %v6783
      %v6868 = vpack.c.b16 %v6784, %v6784
      %v6869 = vpack.c.b16 %v6785, %v6785
      %v6870 = vpack.c.b16 %v6786, %v6786
      %v6871 = vpack.c.b16 %v6787, %v6787
      %v6872 = vpack.c.b16 %v6788, %v6788
      %v6873 = vpack.c.b16 %v6789, %v6789
      %v6874 = vpack.c.b16 %v6790, %v6790
      %v6875 = vpack.c.b16 %v6791, %v6791
      %v6876 = vpack.c.b16 %v6792, %v6792
      %v6877 = vpack.c.b16 %v6793, %v6793
      %v6878 = vpack.c.b16 %v6794, %v6794
      %v6879 = vpack.c.b16 %v6795, %v6795
      %v6880 = vpack.c.b16 %v6796, %v6796
      %v6881 = vpack.c.b16 %v6797, %v6797
      %v6882 = vpack.c.b16 %v6798, %v6798
      %v6883 = vpack.c.b16 %v6799, %v6799
      %v6884 = vpack.c.b16 %v6800, %v6800
      %v6885 = vpack.c.b16 %v6801, %v6801
      %v6886 = vpack.c.b16 %v6802, %v6802
      %v6887 = vpack.c.b16 %v6803, %v6803
      %v6888 = vpack.c.b16 %v6804, %v6804
      %v6889 = vpack.c.b16 %v6805, %v6805
      %v6890 = vpack.c.b16 %v6806, %v6806
      %v6891 = vpack.c.b16 %v6807, %v6807
      %v6892 = vpack.c.b16 %v6808, %v6808
      %v6893 = vpack.c.b16 %v6809, %v6809
      %v6894 = vpack.c.b16 %v6810, %v6810
      %v6895 = vpack.c.b16 %v6811, %v6811
      %v6896 = vpack.c.b16 %v6812, %v6812
      %v6897 = vpack.c.b16 %v6813, %v6813
      %v6898 = vpack.c.b16 %v6814, %v6814
      %v6899 = vpack.c.b16 %v6815, %v6815
      %v6900 = vpack.c.b16 %v6816, %v6816
      %v6901 = vpack.c.b16 %v6817, %v6817
      %v6902 = vpack.c.b16 %v6818, %v6818
      %v6903 = vpack.c.b16 %v6819, %v6819
      %v6904 = vpack.c.b16 %v6820, %v6820
      %v6905 = vpack.c.b16 %v6821, %v6821
      %v6906 = vpack.c.b16 %v6822, %v6822
      %v6907 = vpack.c.b16 %v6823, %v6823
      %v6908 = vpack.c.b16 %v6824, %v6824
      %v6909 = vpack.c.b16 %v6825, %v6825
      %v6910 = vpack.c.b16 %v6826, %v6826
      %v6911 = vpack.c.b16 %v6827, %v6827
      %vm6996 = vcmask 519168
      %6997 = vst.msk [vmem:[%s238] sm:$0xf] %vm6996, %v6828
      %6998 = vst.msk [vmem:[%s238 + $0x4] sm:$0xf] %vm6996, %v6829
      %6999 = vst.msk [vmem:[%s238 + $0x8] sm:$0xf] %vm6996, %v6830
      %7000 = vst.msk [vmem:[%s238 + $0xc] sm:$0xf] %vm6996, %v6831
      %7001 = vst.msk [vmem:[%s238 + $0x10] sm:$0xf] %vm6996, %v6832
      %7002 = vst.msk [vmem:[%s238 + $0x14] sm:$0xf] %vm6996, %v6833
      %7003 = vst.msk [vmem:[%s238 + $0x18] sm:$0xf] %vm6996, %v6834
      %7004 = vst.msk [vmem:[%s238 + $0x1c] sm:$0xf] %vm6996, %v6835
      %7005 = vst.msk [vmem:[%s238 + $0x20] sm:$0xf] %vm6996, %v6836
      %7006 = vst.msk [vmem:[%s238 + $0x24] sm:$0xf] %vm6996, %v6837
      %7007 = vst.msk [vmem:[%s238 + $0x28] sm:$0xf] %vm6996, %v6838
      %7008 = vst.msk [vmem:[%s238 + $0x2c] sm:$0xf] %vm6996, %v6839
      %7009 = vst.msk [vmem:[%s238 + $0x30] sm:$0xf] %vm6996, %v6840
      %7010 = vst.msk [vmem:[%s238 + $0x34] sm:$0xf] %vm6996, %v6841
      %7011 = vst.msk [vmem:[%s238 + $0x38] sm:$0xf] %vm6996, %v6842
      %7012 = vst.msk [vmem:[%s238 + $0x3c] sm:$0xf] %vm6996, %v6843
      %7013 = vst.msk [vmem:[%s238 + $0x40] sm:$0xf] %vm6996, %v6844
      %7014 = vst.msk [vmem:[%s238 + $0x44] sm:$0xf] %vm6996, %v6845
      %7015 = vst.msk [vmem:[%s238 + $0x48] sm:$0xf] %vm6996, %v6846
      %7016 = vst.msk [vmem:[%s238 + $0x4c] sm:$0xf] %vm6996, %v6847
      %7017 = vst.msk [vmem:[%s238 + $0x50] sm:$0xf] %vm6996, %v6848
      %7018 = vst.msk [vmem:[%s238 + $0x54] sm:$0xf] %vm6996, %v6849
      %7019 = vst.msk [vmem:[%s238 + $0x58] sm:$0xf] %vm6996, %v6850
      %7020 = vst.msk [vmem:[%s238 + $0x5c] sm:$0xf] %vm6996, %v6851
      %7021 = vst.msk [vmem:[%s238 + $0x60] sm:$0xf] %vm6996, %v6852
      %7022 = vst.msk [vmem:[%s238 + $0x64] sm:$0xf] %vm6996, %v6853
      %7023 = vst.msk [vmem:[%s238 + $0x68] sm:$0xf] %vm6996, %v6854
      %7024 = vst.msk [vmem:[%s238 + $0x6c] sm:$0xf] %vm6996, %v6855
      %7025 = vst.msk [vmem:[%s238 + $0x70] sm:$0xf] %vm6996, %v6856
      %7026 = vst.msk [vmem:[%s238 + $0x74] sm:$0xf] %vm6996, %v6857
      %7027 = vst.msk [vmem:[%s238 + $0x78] sm:$0xf] %vm6996, %v6858
      %7028 = vst.msk [vmem:[%s238 + $0x7c] sm:$0xf] %vm6996, %v6859
      %7029 = vst.msk [vmem:[%s238 + $0x80] sm:$0xf] %vm6996, %v6860
      %7030 = vst.msk [vmem:[%s238 + $0x84] sm:$0xf] %vm6996, %v6861
      %7031 = vst.msk [vmem:[%s238 + $0x88] sm:$0xf] %vm6996, %v6862
      %7032 = vst.msk [vmem:[%s238 + $0x8c] sm:$0xf] %vm6996, %v6863
      %7033 = vst.msk [vmem:[%s238 + $0x90] sm:$0xf] %vm6996, %v6864
      %7034 = vst.msk [vmem:[%s238 + $0x94] sm:$0xf] %vm6996, %v6865
      %7035 = vst.msk [vmem:[%s238 + $0x98] sm:$0xf] %vm6996, %v6866
      %7036 = vst.msk [vmem:[%s238 + $0x9c] sm:$0xf] %vm6996, %v6867
      %7037 = vst.msk [vmem:[%s238 + $0xa0] sm:$0xf] %vm6996, %v6868
      %7038 = vst.msk [vmem:[%s238 + $0xa4] sm:$0xf] %vm6996, %v6869
      %7039 = vst.msk [vmem:[%s238 + $0xa8] sm:$0xf] %vm6996, %v6870
      %7040 = vst.msk [vmem:[%s238 + $0xac] sm:$0xf] %vm6996, %v6871
      %7041 = vst.msk [vmem:[%s238 + $0xb0] sm:$0xf] %vm6996, %v6872
      %7042 = vst.msk [vmem:[%s238 + $0xb4] sm:$0xf] %vm6996, %v6873
      %7043 = vst.msk [vmem:[%s238 + $0xb8] sm:$0xf] %vm6996, %v6874
      %7044 = vst.msk [vmem:[%s238 + $0xbc] sm:$0xf] %vm6996, %v6875
      %7045 = vst.msk [vmem:[%s238 + $0xc0] sm:$0xf] %vm6996, %v6876
      %7046 = vst.msk [vmem:[%s238 + $0xc4] sm:$0xf] %vm6996, %v6877
      %7047 = vst.msk [vmem:[%s238 + $0xc8] sm:$0xf] %vm6996, %v6878
      %7048 = vst.msk [vmem:[%s238 + $0xcc] sm:$0xf] %vm6996, %v6879
      %7049 = vst.msk [vmem:[%s238 + $0xd0] sm:$0xf] %vm6996, %v6880
      %7050 = vst.msk [vmem:[%s238 + $0xd4] sm:$0xf] %vm6996, %v6881
      %7051 = vst.msk [vmem:[%s238 + $0xd8] sm:$0xf] %vm6996, %v6882
      %7052 = vst.msk [vmem:[%s238 + $0xdc] sm:$0xf] %vm6996, %v6883
      %7053 = vst.msk [vmem:[%s238 + $0xe0] sm:$0xf] %vm6996, %v6884
      %7054 = vst.msk [vmem:[%s238 + $0xe4] sm:$0xf] %vm6996, %v6885
      %7055 = vst.msk [vmem:[%s238 + $0xe8] sm:$0xf] %vm6996, %v6886
      %7056 = vst.msk [vmem:[%s238 + $0xec] sm:$0xf] %vm6996, %v6887
      %7057 = vst.msk [vmem:[%s238 + $0xf0] sm:$0xf] %vm6996, %v6888
      %7058 = vst.msk [vmem:[%s238 + $0xf4] sm:$0xf] %vm6996, %v6889
      %7059 = vst.msk [vmem:[%s238 + $0xf8] sm:$0xf] %vm6996, %v6890
      %7060 = vst.msk [vmem:[%s238 + $0xfc] sm:$0xf] %vm6996, %v6891
      %7061 = vst.msk [vmem:[%s238 + $0x100] sm:$0xf] %vm6996, %v6892
      %7062 = vst.msk [vmem:[%s238 + $0x104] sm:$0xf] %vm6996, %v6893
      %7063 = vst.msk [vmem:[%s238 + $0x108] sm:$0xf] %vm6996, %v6894
      %7064 = vst.msk [vmem:[%s238 + $0x10c] sm:$0xf] %vm6996, %v6895
      %7065 = vst.msk [vmem:[%s238 + $0x110] sm:$0xf] %vm6996, %v6896
      %7066 = vst.msk [vmem:[%s238 + $0x114] sm:$0xf] %vm6996, %v6897
      %7067 = vst.msk [vmem:[%s238 + $0x118] sm:$0xf] %vm6996, %v6898
      %7068 = vst.msk [vmem:[%s238 + $0x11c] sm:$0xf] %vm6996, %v6899
      %7069 = vst.msk [vmem:[%s238 + $0x120] sm:$0xf] %vm6996, %v6900
      %7070 = vst.msk [vmem:[%s238 + $0x124] sm:$0xf] %vm6996, %v6901
      %7071 = vst.msk [vmem:[%s238 + $0x128] sm:$0xf] %vm6996, %v6902
      %7072 = vst.msk [vmem:[%s238 + $0x12c] sm:$0xf] %vm6996, %v6903
      %7073 = vst.msk [vmem:[%s238 + $0x130] sm:$0xf] %vm6996, %v6904
      %7074 = vst.msk [vmem:[%s238 + $0x134] sm:$0xf] %vm6996, %v6905
      %7075 = vst.msk [vmem:[%s238 + $0x138] sm:$0xf] %vm6996, %v6906
      %7076 = vst.msk [vmem:[%s238 + $0x13c] sm:$0xf] %vm6996, %v6907
      %7077 = vst.msk [vmem:[%s238 + $0x140] sm:$0xf] %vm6996, %v6908
      %7078 = vst.msk [vmem:[%s238 + $0x144] sm:$0xf] %vm6996, %v6909
      %7079 = vst.msk [vmem:[%s238 + $0x148] sm:$0xf] %vm6996, %v6910
      %7080 = vst.msk [vmem:[%s238 + $0x14c] sm:$0xf] %vm6996, %v6911
      %s7081 = smul.u32 84, %s21
      %p7082 = scmp.lt.s32.totalorder %s19, 1
      %s7083 = scalar_select %p7082, %s19, 1
      %p7084 = scmp.lt.s32.totalorder %s7081, 6047
      %s7085 = scalar_select %p7084, %s7081, 6047
      %p7086 = scmp.lt.s32.totalorder %s20, 0
      %s7087 = scalar_select %p7086, %s20, 0
      %s7088 = sadd.s32 %s7087, %s7085
      %s7089 = smul.addr %s7083, 6048
      %s7090 = sadd.s32 %s7088, %s7089
      %s7091 = smul.addr %s7090, 4
      %s7092 = scalar_lea.vmem %s3, %s7091
      // Predicated region
      $region33: #{tpu_custom_call.1} parent=31 // pred_check
        %p7093 = pneg %p133
      $region34: #{tpu_custom_call.1} parent=31 // pred_check_branch
        %7095 = sbr.rel (%p7093) target = $region36
      $region35: #{tpu_custom_call.1} parent=31 // pred_region
        %s7096 = smul.u32 84, %s21
      $region36: #{tpu_custom_call.1} parent=31 // pred_fallthru
        _
    $region32: #{tpu_custom_call.1} parent=5 // pred_fallthru
      _
    %p7097 = scmp.le.s32.totalorder 2, %s9
    // Predicated region
    $region37: #{tpu_custom_call.1} parent=5 // pred_check
      %p7098 = pneg %p7097
    $region38: #{tpu_custom_call.1} parent=5 // pred_check_branch
      %7100 = sbr.rel (%p7098) target = $region40
    $region39: #{tpu_custom_call.1} parent=5 // pred_region
      %s7101 = ssub.s32 %s9, 2
      // Predicated region
      $region41: #{tpu_custom_call.1} parent=39 // pred_check
        %p7102 = pneg %p139
      $region42: #{tpu_custom_call.1} parent=39 // pred_check_branch
        %7104 = sbr.rel (%p7102) target = $region44
      $region43: #{tpu_custom_call.1} parent=39 // pred_region
        %s7105 = smul.u32 84, %s24
        %p7106 = scmp.lt.s32.totalorder %s22, 1
        %s7107 = scalar_select %p7106, %s22, 1
        %p7108 = scmp.lt.s32.totalorder %s7105, 6047
        %s7109 = scalar_select %p7108, %s7105, 6047
        %p7110 = scmp.lt.s32.totalorder %s23, 0
        %s7111 = scalar_select %p7110, %s23, 0
        %s7112 = sadd.s32 %s7111, %s7109
        %s7113 = smul.addr %s7107, 6048
        %s7114 = sadd.s32 %s7112, %s7113
        %s7115 = smul.addr %s7114, 4
        %s7116 = scalar_lea.vmem %s3, %s7115
      $region44: #{tpu_custom_call.1} parent=39 // pred_fallthru
        _
    $region40: #{tpu_custom_call.1} parent=5 // pred_fallthru
      _
  $region6: #{tpu_custom_call.1} parent=0 // loop_footer
    %s13 = sadd.s32 1, %s9
  $region7: #{tpu_custom_call.1} parent=0 // loop_footer_branch
    %8 = sbr.rel target = $region3
  $region8: #{tpu_custom_call.1} parent=0 // loop_exit
    _

</llo_original>
